<compile_context>
chip_gen: v7x
topology: tpu7x:2x2x1
jax: 0.10.0
libtpu: 0.0.40
codegen_flags: <defaults>
</compile_context>

<pallas_src>
import jax
import jax.numpy as jnp
from jax.experimental import pallas as pl
from jax.experimental.pallas import tpu as pltpu

# Linear layer sizes of the PyTorch nn.Sequential and the 128-padded versions.
LAYER_DIMS = [784, 1000, 500, 250, 30, 250, 500, 1000, 784]
PAD_DIMS   = [896, 1024, 512, 256, 128, 256, 512, 1024, 896]
# Activation following each of the 8 Linear layers
# (LeakyReLU slope 0.01; 250->30 bottleneck has none; final layer -> Sigmoid).
ACTS = ["leaky", "leaky", "leaky", "none", "leaky", "leaky", "leaky", "sigmoid"]
NEG_SLOPE = 0.01  # jnp.maximum(h, NEG_SLOPE*h) == LeakyReLU only for 0<slope<1


def _round_up(n, m):
    return ((n + m - 1) // m) * m


def _default_epilogue_dtype():
    """bf16 epilogue on bf16-VPU chips (v6e/v7x); f32 on v5e and older."""
    try:
        kind = jax.devices()[0].device_kind.lower()
    except Exception:
        return jnp.float32
    if any(tag in kind for tag in ("v2", "v3", "v4", "v5")):
        return jnp.float32
    return jnp.bfloat16


def _choose_tiling(B, max_tile=512):
    """Pick (tile_b, padded_batch).

    Tiles are multiples of 8.  For batches with more than 16 rows we cap the
    tile at ceil(B/2) so there are at least 2 grid tiles (v7x megacore has two
    TensorCores sharing the 'parallel' axis), and we shrink the tile until the
    last-tile padding waste is <= ~12.5%.
    """
    b8 = _round_up(max(int(B), 1), 8)
    if b8 <= 16:
        return b8, b8
    cap = min(max_tile, _round_up((b8 + 1) // 2, 8))
    tb = cap
    while tb > 8:
        padded = _round_up(b8, tb)
        if (padded - b8) * 8 <= padded:   # waste <= 12.5%
            break
        tb -= 8
    return tb, _round_up(b8, tb)


def make_ae_kernel(epilogue_dtype):
    """Kernel factory.

    Kernel args: (x_ref, w0, b0, ..., w7, b7, out_ref)
      x_ref:  (TILE_B, 896) bf16 activation tile (batch-tiled by the grid).
      w_i:    (in_pad, out_pad) bf16, single-buffered + resident in VMEM.
      b_i:    (1, out_pad) f32 (cast to the epilogue dtype in-kernel).
      out_ref:(TILE_B, 896) f32.
    Padded lanes are exactly zero in weights/biases, so zero inputs stay zero
    through LeakyReLU; only the final Sigmoid makes padded lanes 0.5, which the
    wrapper slices off.
    """
    def ae_kernel(x_ref, *refs):
        out_ref = refs[-1]
        h = x_ref[...]                                   # bf16
        for li in range(8):
            w = refs[2 * li][...]                        # bf16 (in_pad, out_pad)
            b = refs[2 * li + 1][...]                    # f32  (1, out_pad)
            acc = jnp.dot(h.astype(jnp.bfloat16), w,
                          preferred_element_type=jnp.float32)
            act = ACTS[li]
            if act == "sigmoid":
                # final layer: keep f32 for output precision
                h = jax.nn.sigmoid(acc + b)
            else:
                h = acc.astype(epilogue_dtype) + b.astype(epilogue_dtype)
                if act == "leaky":
                    h = jnp.maximum(h, NEG_SLOPE * h)    # LeakyReLU (slope<1)
                # "none": bottleneck layer, no activation
        out_ref[...] = h.astype(out_ref.dtype)
    return ae_kernel


def init_params(key):
    """PyTorch nn.Linear default init: U(-1/sqrt(fan_in), 1/sqrt(fan_in))."""
    params = []
    for li in range(8):
        fan_in, fan_out = LAYER_DIMS[li], LAYER_DIMS[li + 1]
        key, kw, kb = jax.random.split(key, 3)
        bound = float(fan_in) ** -0.5
        # stored as (in, out), i.e. transpose of PyTorch's (out, in)
        w = jax.random.uniform(kw, (fan_in, fan_out), jnp.float32, -bound, bound)
        b = jax.random.uniform(kb, (fan_out,), jnp.float32, -bound, bound)
        params.append((w, b))
    return params


def pad_params(params):
    """Zero-pad to 128-lane multiples; weights -> bf16, biases stay f32."""
    padded = []
    for li, (w, b) in enumerate(params):
        in_p, out_p = PAD_DIMS[li], PAD_DIMS[li + 1]
        wp = (jnp.zeros((in_p, out_p), jnp.float32)
              .at[: w.shape[0], : w.shape[1]].set(w)
              .astype(jnp.bfloat16))
        bp = jnp.zeros((1, out_p), jnp.float32).at[0, : b.shape[0]].set(b)
        padded.append((wp, bp))
    return padded


def ae_forward(x, padded_params, max_tile_b=512, epilogue_dtype=None):
    if epilogue_dtype is None:
        epilogue_dtype = _default_epilogue_dtype()

    # glue: mimic x.view(-1, 784)
    x2 = x.reshape(-1, 784)
    B = x2.shape[0]
    tb, b_pad = _choose_tiling(B, max_tile_b)

    # bf16 input, zero-padded to (b_pad, 896)
    x_p = (jnp.zeros((b_pad, PAD_DIMS[0]), jnp.bfloat16)
           .at[:B, :784].set(x2.astype(jnp.bfloat16)))

    flat = []
    for w, b in padded_params:
        flat.extend([w, b])

    in_specs = [pl.BlockSpec((tb, PAD_DIMS[0]), lambda i: (i, 0))]
    for li in range(8):
        # constant index_map -> weight/bias blocks stay resident across steps;
        # Buffered(1): no pointless second pipeline buffer for constant blocks.
        in_specs.append(
            pl.BlockSpec((PAD_DIMS[li], PAD_DIMS[li + 1]), lambda i: (0, 0),
                         pipeline_mode=pl.Buffered(1)))
        in_specs.append(
            pl.BlockSpec((1, PAD_DIMS[li + 1]), lambda i: (0, 0),
                         pipeline_mode=pl.Buffered(1)))

    # Advisory cost estimate for XLA's scheduler.
    layer_elems = sum(PAD_DIMS[i] * PAD_DIMS[i + 1] for i in range(8))
    weight_bytes = layer_elems * 2                      # bf16 weights
    bias_bytes = sum(PAD_DIMS[i + 1] for i in range(8)) * 4
    cost = pl.CostEstimate(
        flops=2 * b_pad * layer_elems,
        transcendentals=b_pad * PAD_DIMS[-1],           # final sigmoid
        bytes_accessed=(weight_bytes + bias_bytes
                        + b_pad * PAD_DIMS[0] * 2       # x in (bf16)
                        + b_pad * PAD_DIMS[-1] * 4))    # out (f32)

    out = pl.pallas_call(
        make_ae_kernel(epilogue_dtype),
        out_shape=jax.ShapeDtypeStruct((b_pad, PAD_DIMS[-1]), jnp.float32),
        grid=(b_pad // tb,),
        in_specs=in_specs,
        out_specs=pl.BlockSpec((tb, PAD_DIMS[-1]), lambda i: (i, 0)),
        compiler_params=pltpu.CompilerParams(
            dimension_semantics=("parallel",),
            vmem_limit_bytes=48 * 1024 * 1024),
        cost_estimate=cost,
    )(x_p, *flat)

    return out[:B, :784]


def ae_forward_ref(x, padded_params, epilogue_dtype=None):
    """Pure-JAX reference using the same bf16-weight / f32-accum recipe."""
    if epilogue_dtype is None:
        epilogue_dtype = _default_epilogue_dtype()
    h = x.reshape(-1, 784).astype(jnp.bfloat16)
    h = jnp.pad(h, ((0, 0), (0, PAD_DIMS[0] - 784)))
    for li, (w, b) in enumerate(padded_params):
        acc = jnp.dot(h.astype(jnp.bfloat16), w,
                      preferred_element_type=jnp.float32)
        if ACTS[li] == "sigmoid":
            h = jax.nn.sigmoid(acc + b)
        else:
            h = acc.astype(epilogue_dtype) + b.astype(epilogue_dtype)
            if ACTS[li] == "leaky":
                h = jnp.maximum(h, NEG_SLOPE * h)
    return h[:, :784].astype(jnp.float32)


# TODO(synk): small-batch serving variant with int8 (v5e/v6e) / fp8 (v7x)
# weight compression is not implemented here; bf16 weights are used on all
# generations.

if __name__ == "__main__":
    key = jax.random.PRNGKey(0)
    kp, kx = jax.random.split(key)
    params = pad_params(init_params(kp))
    # small MNIST-like batch: (2, 1, 28, 28)  (NCHW, flattened in forward)
    x = jax.random.normal(kx, (2, 1, 28, 28), dtype=jnp.float32)

    out = jax.block_until_ready(ae_forward(x, params))
    ref = jax.block_until_ready(ae_forward_ref(x, params))

    assert out.shape == (2, 784), out.shape
    # bf16 weights (and bf16 epilogue on v6e/v7x) -> allow a few bf16 ulps of
    # slack between the Pallas kernel and the XLA reference.
    assert jnp.allclose(out, ref, atol=5e-3, rtol=5e-3), "mismatch vs reference"

    print("KERNEL_OK")
</pallas_src>

<mosaic_0001>
module attributes {stable_mosaic.version = 11 : i64} {
  func.func @ae_kernel(%arg0: i32, %arg1: memref<8x896xbf16, #tpu.memory_space<vmem>>, %arg2: memref<896x1024xbf16, #tpu.memory_space<vmem>>, %arg3: memref<1x1024xf32, #tpu.memory_space<vmem>>, %arg4: memref<1024x512xbf16, #tpu.memory_space<vmem>>, %arg5: memref<1x512xf32, #tpu.memory_space<vmem>>, %arg6: memref<512x256xbf16, #tpu.memory_space<vmem>>, %arg7: memref<1x256xf32, #tpu.memory_space<vmem>>, %arg8: memref<256x128xbf16, #tpu.memory_space<vmem>>, %arg9: memref<1x128xf32, #tpu.memory_space<vmem>>, %arg10: memref<128x256xbf16, #tpu.memory_space<vmem>>, %arg11: memref<1x256xf32, #tpu.memory_space<vmem>>, %arg12: memref<256x512xbf16, #tpu.memory_space<vmem>>, %arg13: memref<1x512xf32, #tpu.memory_space<vmem>>, %arg14: memref<512x1024xbf16, #tpu.memory_space<vmem>>, %arg15: memref<1x1024xf32, #tpu.memory_space<vmem>>, %arg16: memref<1024x896xbf16, #tpu.memory_space<vmem>>, %arg17: memref<1x896xf32, #tpu.memory_space<vmem>>, %arg18: memref<8x896xf32, #tpu.memory_space<vmem>>) attributes {dimension_semantics = [#tpu.dimension_semantics<parallel>], iteration_bounds = array<i64: 1>, scalar_prefetch = 0 : i64, scratch_operands = 0 : i64, tpu.core_type = #tpu.core_type<tc>, window_params = [{transform_indices = @transform_0, window_bounds = array<i64: 8, 896>}, {pipeline_mode = #tpu.pipeline_mode<synchronous>, transform_indices = @transform_1, window_bounds = array<i64: 896, 1024>}, {pipeline_mode = #tpu.pipeline_mode<synchronous>, transform_indices = @transform_2, window_bounds = array<i64: 1, 1024>}, {pipeline_mode = #tpu.pipeline_mode<synchronous>, transform_indices = @transform_3, window_bounds = array<i64: 1024, 512>}, {pipeline_mode = #tpu.pipeline_mode<synchronous>, transform_indices = @transform_4, window_bounds = array<i64: 1, 512>}, {pipeline_mode = #tpu.pipeline_mode<synchronous>, transform_indices = @transform_5, window_bounds = array<i64: 512, 256>}, {pipeline_mode = #tpu.pipeline_mode<synchronous>, transform_indices = @transform_6, window_bounds = array<i64: 1, 256>}, {pipeline_mode = #tpu.pipeline_mode<synchronous>, transform_indices = @transform_7, window_bounds = array<i64: 256, 128>}, {pipeline_mode = #tpu.pipeline_mode<synchronous>, transform_indices = @transform_8, window_bounds = array<i64: 1, 128>}, {pipeline_mode = #tpu.pipeline_mode<synchronous>, transform_indices = @transform_9, window_bounds = array<i64: 128, 256>}, {pipeline_mode = #tpu.pipeline_mode<synchronous>, transform_indices = @transform_10, window_bounds = array<i64: 1, 256>}, {pipeline_mode = #tpu.pipeline_mode<synchronous>, transform_indices = @transform_11, window_bounds = array<i64: 256, 512>}, {pipeline_mode = #tpu.pipeline_mode<synchronous>, transform_indices = @transform_12, window_bounds = array<i64: 1, 512>}, {pipeline_mode = #tpu.pipeline_mode<synchronous>, transform_indices = @transform_13, window_bounds = array<i64: 512, 1024>}, {pipeline_mode = #tpu.pipeline_mode<synchronous>, transform_indices = @transform_14, window_bounds = array<i64: 1, 1024>}, {pipeline_mode = #tpu.pipeline_mode<synchronous>, transform_indices = @transform_15, window_bounds = array<i64: 1024, 896>}, {pipeline_mode = #tpu.pipeline_mode<synchronous>, transform_indices = @transform_16, window_bounds = array<i64: 1, 896>}, {transform_indices = @transform_17, window_bounds = array<i64: 8, 896>}]} {
    %c0 = arith.constant 0 : index
    %c0_0 = arith.constant 0 : index
    %0 = vector.load %arg1[%c0, %c0_0] : memref<8x896xbf16, #tpu.memory_space<vmem>>, vector<8x896xbf16>
    %c0_1 = arith.constant 0 : index
    %c0_2 = arith.constant 0 : index
    %1 = vector.load %arg2[%c0_1, %c0_2] : memref<896x1024xbf16, #tpu.memory_space<vmem>>, vector<896x1024xbf16>
    %c0_3 = arith.constant 0 : index
    %c0_4 = arith.constant 0 : index
    %2 = vector.load %arg3[%c0_3, %c0_4] : memref<1x1024xf32, #tpu.memory_space<vmem>>, vector<1x1024xf32>
    %cst = arith.constant dense<0.000000e+00> : vector<8x1024xf32>
    %3 = tpu.matmul %0, %1, %cst {dimension_numbers = #tpu.dot_dimension_numbers<[1], [0], [0], [1], [0, 0, 1, 1], [], []>} : vector<8x896xbf16>, vector<896x1024xbf16>, vector<8x1024xf32> -> vector<8x1024xf32>
    %4 = arith.truncf %3 : vector<8x1024xf32> to vector<8x1024xbf16>
    %5 = arith.truncf %2 : vector<1x1024xf32> to vector<1x1024xbf16>
    %6 = vector.broadcast %5 : vector<1x1024xbf16> to vector<8x1024xbf16>
    %7 = arith.addf %4, %6 : vector<8x1024xbf16>
    %cst_5 = arith.constant 1.000980e-02 : bf16
    %8 = vector.broadcast %cst_5 : bf16 to vector<8x1024xbf16>
    %9 = arith.mulf %8, %7 : vector<8x1024xbf16>
    %10 = arith.maximumf %7, %9 : vector<8x1024xbf16>
    %c0_6 = arith.constant 0 : index
    %c0_7 = arith.constant 0 : index
    %11 = vector.load %arg4[%c0_6, %c0_7] : memref<1024x512xbf16, #tpu.memory_space<vmem>>, vector<1024x512xbf16>
    %c0_8 = arith.constant 0 : index
    %c0_9 = arith.constant 0 : index
    %12 = vector.load %arg5[%c0_8, %c0_9] : memref<1x512xf32, #tpu.memory_space<vmem>>, vector<1x512xf32>
    %cst_10 = arith.constant dense<0.000000e+00> : vector<8x512xf32>
    %13 = tpu.matmul %10, %11, %cst_10 {dimension_numbers = #tpu.dot_dimension_numbers<[1], [0], [0], [1], [0, 0, 1, 1], [], []>} : vector<8x1024xbf16>, vector<1024x512xbf16>, vector<8x512xf32> -> vector<8x512xf32>
    %14 = arith.truncf %13 : vector<8x512xf32> to vector<8x512xbf16>
    %15 = arith.truncf %12 : vector<1x512xf32> to vector<1x512xbf16>
    %16 = vector.broadcast %15 : vector<1x512xbf16> to vector<8x512xbf16>
    %17 = arith.addf %14, %16 : vector<8x512xbf16>
    %cst_11 = arith.constant 1.000980e-02 : bf16
    %18 = vector.broadcast %cst_11 : bf16 to vector<8x512xbf16>
    %19 = arith.mulf %18, %17 : vector<8x512xbf16>
    %20 = arith.maximumf %17, %19 : vector<8x512xbf16>
    %c0_12 = arith.constant 0 : index
    %c0_13 = arith.constant 0 : index
    %21 = vector.load %arg6[%c0_12, %c0_13] : memref<512x256xbf16, #tpu.memory_space<vmem>>, vector<512x256xbf16>
    %c0_14 = arith.constant 0 : index
    %c0_15 = arith.constant 0 : index
    %22 = vector.load %arg7[%c0_14, %c0_15] : memref<1x256xf32, #tpu.memory_space<vmem>>, vector<1x256xf32>
    %cst_16 = arith.constant dense<0.000000e+00> : vector<8x256xf32>
    %23 = tpu.matmul %20, %21, %cst_16 {dimension_numbers = #tpu.dot_dimension_numbers<[1], [0], [0], [1], [0, 0, 1, 1], [], []>} : vector<8x512xbf16>, vector<512x256xbf16>, vector<8x256xf32> -> vector<8x256xf32>
    %24 = arith.truncf %23 : vector<8x256xf32> to vector<8x256xbf16>
    %25 = arith.truncf %22 : vector<1x256xf32> to vector<1x256xbf16>
    %26 = vector.broadcast %25 : vector<1x256xbf16> to vector<8x256xbf16>
    %27 = arith.addf %24, %26 : vector<8x256xbf16>
    %cst_17 = arith.constant 1.000980e-02 : bf16
    %28 = vector.broadcast %cst_17 : bf16 to vector<8x256xbf16>
    %29 = arith.mulf %28, %27 : vector<8x256xbf16>
    %30 = arith.maximumf %27, %29 : vector<8x256xbf16>
    %c0_18 = arith.constant 0 : index
    %c0_19 = arith.constant 0 : index
    %31 = vector.load %arg8[%c0_18, %c0_19] : memref<256x128xbf16, #tpu.memory_space<vmem>>, vector<256x128xbf16>
    %c0_20 = arith.constant 0 : index
    %c0_21 = arith.constant 0 : index
    %32 = vector.load %arg9[%c0_20, %c0_21] : memref<1x128xf32, #tpu.memory_space<vmem>>, vector<1x128xf32>
    %cst_22 = arith.constant dense<0.000000e+00> : vector<8x128xf32>
    %33 = tpu.matmul %30, %31, %cst_22 {dimension_numbers = #tpu.dot_dimension_numbers<[1], [0], [0], [1], [0, 0, 1, 1], [], []>} : vector<8x256xbf16>, vector<256x128xbf16>, vector<8x128xf32> -> vector<8x128xf32>
    %34 = arith.truncf %33 : vector<8x128xf32> to vector<8x128xbf16>
    %35 = arith.truncf %32 : vector<1x128xf32> to vector<1x128xbf16>
    %36 = vector.broadcast %35 : vector<1x128xbf16> to vector<8x128xbf16>
    %37 = arith.addf %34, %36 : vector<8x128xbf16>
    %c0_23 = arith.constant 0 : index
    %c0_24 = arith.constant 0 : index
    %38 = vector.load %arg10[%c0_23, %c0_24] : memref<128x256xbf16, #tpu.memory_space<vmem>>, vector<128x256xbf16>
    %c0_25 = arith.constant 0 : index
    %c0_26 = arith.constant 0 : index
    %39 = vector.load %arg11[%c0_25, %c0_26] : memref<1x256xf32, #tpu.memory_space<vmem>>, vector<1x256xf32>
    %cst_27 = arith.constant dense<0.000000e+00> : vector<8x256xf32>
    %40 = tpu.matmul %37, %38, %cst_27 {dimension_numbers = #tpu.dot_dimension_numbers<[1], [0], [0], [1], [0, 0, 1, 1], [], []>} : vector<8x128xbf16>, vector<128x256xbf16>, vector<8x256xf32> -> vector<8x256xf32>
    %41 = arith.truncf %40 : vector<8x256xf32> to vector<8x256xbf16>
    %42 = arith.truncf %39 : vector<1x256xf32> to vector<1x256xbf16>
    %43 = vector.broadcast %42 : vector<1x256xbf16> to vector<8x256xbf16>
    %44 = arith.addf %41, %43 : vector<8x256xbf16>
    %cst_28 = arith.constant 1.000980e-02 : bf16
    %45 = vector.broadcast %cst_28 : bf16 to vector<8x256xbf16>
    %46 = arith.mulf %45, %44 : vector<8x256xbf16>
    %47 = arith.maximumf %44, %46 : vector<8x256xbf16>
    %c0_29 = arith.constant 0 : index
    %c0_30 = arith.constant 0 : index
    %48 = vector.load %arg12[%c0_29, %c0_30] : memref<256x512xbf16, #tpu.memory_space<vmem>>, vector<256x512xbf16>
    %c0_31 = arith.constant 0 : index
    %c0_32 = arith.constant 0 : index
    %49 = vector.load %arg13[%c0_31, %c0_32] : memref<1x512xf32, #tpu.memory_space<vmem>>, vector<1x512xf32>
    %cst_33 = arith.constant dense<0.000000e+00> : vector<8x512xf32>
    %50 = tpu.matmul %47, %48, %cst_33 {dimension_numbers = #tpu.dot_dimension_numbers<[1], [0], [0], [1], [0, 0, 1, 1], [], []>} : vector<8x256xbf16>, vector<256x512xbf16>, vector<8x512xf32> -> vector<8x512xf32>
    %51 = arith.truncf %50 : vector<8x512xf32> to vector<8x512xbf16>
    %52 = arith.truncf %49 : vector<1x512xf32> to vector<1x512xbf16>
    %53 = vector.broadcast %52 : vector<1x512xbf16> to vector<8x512xbf16>
    %54 = arith.addf %51, %53 : vector<8x512xbf16>
    %cst_34 = arith.constant 1.000980e-02 : bf16
    %55 = vector.broadcast %cst_34 : bf16 to vector<8x512xbf16>
    %56 = arith.mulf %55, %54 : vector<8x512xbf16>
    %57 = arith.maximumf %54, %56 : vector<8x512xbf16>
    %c0_35 = arith.constant 0 : index
    %c0_36 = arith.constant 0 : index
    %58 = vector.load %arg14[%c0_35, %c0_36] : memref<512x1024xbf16, #tpu.memory_space<vmem>>, vector<512x1024xbf16>
    %c0_37 = arith.constant 0 : index
    %c0_38 = arith.constant 0 : index
    %59 = vector.load %arg15[%c0_37, %c0_38] : memref<1x1024xf32, #tpu.memory_space<vmem>>, vector<1x1024xf32>
    %cst_39 = arith.constant dense<0.000000e+00> : vector<8x1024xf32>
    %60 = tpu.matmul %57, %58, %cst_39 {dimension_numbers = #tpu.dot_dimension_numbers<[1], [0], [0], [1], [0, 0, 1, 1], [], []>} : vector<8x512xbf16>, vector<512x1024xbf16>, vector<8x1024xf32> -> vector<8x1024xf32>
    %61 = arith.truncf %60 : vector<8x1024xf32> to vector<8x1024xbf16>
    %62 = arith.truncf %59 : vector<1x1024xf32> to vector<1x1024xbf16>
    %63 = vector.broadcast %62 : vector<1x1024xbf16> to vector<8x1024xbf16>
    %64 = arith.addf %61, %63 : vector<8x1024xbf16>
    %cst_40 = arith.constant 1.000980e-02 : bf16
    %65 = vector.broadcast %cst_40 : bf16 to vector<8x1024xbf16>
    %66 = arith.mulf %65, %64 : vector<8x1024xbf16>
    %67 = arith.maximumf %64, %66 : vector<8x1024xbf16>
    %c0_41 = arith.constant 0 : index
    %c0_42 = arith.constant 0 : index
    %68 = vector.load %arg16[%c0_41, %c0_42] : memref<1024x896xbf16, #tpu.memory_space<vmem>>, vector<1024x896xbf16>
    %c0_43 = arith.constant 0 : index
    %c0_44 = arith.constant 0 : index
    %69 = vector.load %arg17[%c0_43, %c0_44] : memref<1x896xf32, #tpu.memory_space<vmem>>, vector<1x896xf32>
    %cst_45 = arith.constant dense<0.000000e+00> : vector<8x896xf32>
    %70 = tpu.matmul %67, %68, %cst_45 {dimension_numbers = #tpu.dot_dimension_numbers<[1], [0], [0], [1], [0, 0, 1, 1], [], []>} : vector<8x1024xbf16>, vector<1024x896xbf16>, vector<8x896xf32> -> vector<8x896xf32>
    %71 = vector.broadcast %69 : vector<1x896xf32> to vector<8x896xf32>
    %72 = arith.addf %70, %71 : vector<8x896xf32>
    %73 = arith.negf %72 : vector<8x896xf32>
    %74 = math.exp %73 : vector<8x896xf32>
    %cst_46 = arith.constant 1.000000e+00 : f32
    %75 = vector.broadcast %cst_46 : f32 to vector<8x896xf32>
    %76 = arith.addf %75, %74 : vector<8x896xf32>
    %77 = arith.divf %75, %76 : vector<8x896xf32>
    %c0_47 = arith.constant 0 : index
    %c0_48 = arith.constant 0 : index
    %78 = vector.load %arg18[%c0_47, %c0_48] : memref<8x896xf32, #tpu.memory_space<vmem>>, vector<8x896xf32>
    tpu.vector_store %arg18[%c0_47, %c0_48], %77 {strides = array<i32>} : memref<8x896xf32, #tpu.memory_space<vmem>>, vector<8x896xf32>,
    return
  }
  func.func @transform_0(%arg0: i32) -> (i32, i32) {
    %c0_i32 = arith.constant 0 : i32
    %c0_i32_0 = arith.constant 0 : i32
    return %arg0, %c0_i32 : i32, i32
  }
  func.func @transform_1(%arg0: i32) -> (i32, i32) {
    %c0_i32 = arith.constant 0 : i32
    %c0_i32_0 = arith.constant 0 : i32
    %c0_i32_1 = arith.constant 0 : i32
    return %c0_i32, %c0_i32_0 : i32, i32
  }
  func.func @transform_2(%arg0: i32) -> (i32, i32) {
    %c0_i32 = arith.constant 0 : i32
    %c0_i32_0 = arith.constant 0 : i32
    %c0_i32_1 = arith.constant 0 : i32
    return %c0_i32, %c0_i32_0 : i32, i32
  }
  func.func @transform_3(%arg0: i32) -> (i32, i32) {
    %c0_i32 = arith.constant 0 : i32
    %c0_i32_0 = arith.constant 0 : i32
    %c0_i32_1 = arith.constant 0 : i32
    return %c0_i32, %c0_i32_0 : i32, i32
  }
  func.func @transform_4(%arg0: i32) -> (i32, i32) {
    %c0_i32 = arith.constant 0 : i32
    %c0_i32_0 = arith.constant 0 : i32
    %c0_i32_1 = arith.constant 0 : i32
    return %c0_i32, %c0_i32_0 : i32, i32
  }
  func.func @transform_5(%arg0: i32) -> (i32, i32) {
    %c0_i32 = arith.constant 0 : i32
    %c0_i32_0 = arith.constant 0 : i32
    %c0_i32_1 = arith.constant 0 : i32
    return %c0_i32, %c0_i32_0 : i32, i32
  }
  func.func @transform_6(%arg0: i32) -> (i32, i32) {
    %c0_i32 = arith.constant 0 : i32
    %c0_i32_0 = arith.constant 0 : i32
    %c0_i32_1 = arith.constant 0 : i32
    return %c0_i32, %c0_i32_0 : i32, i32
  }
  func.func @transform_7(%arg0: i32) -> (i32, i32) {
    %c0_i32 = arith.constant 0 : i32
    %c0_i32_0 = arith.constant 0 : i32
    %c0_i32_1 = arith.constant 0 : i32
    return %c0_i32, %c0_i32_0 : i32, i32
  }
  func.func @transform_8(%arg0: i32) -> (i32, i32) {
    %c0_i32 = arith.constant 0 : i32
    %c0_i32_0 = arith.constant 0 : i32
    %c0_i32_1 = arith.constant 0 : i32
    return %c0_i32, %c0_i32_0 : i32, i32
  }
  func.func @transform_9(%arg0: i32) -> (i32, i32) {
    %c0_i32 = arith.constant 0 : i32
    %c0_i32_0 = arith.constant 0 : i32
    %c0_i32_1 = arith.constant 0 : i32
    return %c0_i32, %c0_i32_0 : i32, i32
  }
  func.func @transform_10(%arg0: i32) -> (i32, i32) {
    %c0_i32 = arith.constant 0 : i32
    %c0_i32_0 = arith.constant 0 : i32
    %c0_i32_1 = arith.constant 0 : i32
    return %c0_i32, %c0_i32_0 : i32, i32
  }
  func.func @transform_11(%arg0: i32) -> (i32, i32) {
    %c0_i32 = arith.constant 0 : i32
    %c0_i32_0 = arith.constant 0 : i32
    %c0_i32_1 = arith.constant 0 : i32
    return %c0_i32, %c0_i32_0 : i32, i32
  }
  func.func @transform_12(%arg0: i32) -> (i32, i32) {
    %c0_i32 = arith.constant 0 : i32
    %c0_i32_0 = arith.constant 0 : i32
    %c0_i32_1 = arith.constant 0 : i32
    return %c0_i32, %c0_i32_0 : i32, i32
  }
  func.func @transform_13(%arg0: i32) -> (i32, i32) {
    %c0_i32 = arith.constant 0 : i32
    %c0_i32_0 = arith.constant 0 : i32
    %c0_i32_1 = arith.constant 0 : i32
    return %c0_i32, %c0_i32_0 : i32, i32
  }
  func.func @transform_14(%arg0: i32) -> (i32, i32) {
    %c0_i32 = arith.constant 0 : i32
    %c0_i32_0 = arith.constant 0 : i32
    %c0_i32_1 = arith.constant 0 : i32
    return %c0_i32, %c0_i32_0 : i32, i32
  }
  func.func @transform_15(%arg0: i32) -> (i32, i32) {
    %c0_i32 = arith.constant 0 : i32
    %c0_i32_0 = arith.constant 0 : i32
    %c0_i32_1 = arith.constant 0 : i32
    return %c0_i32, %c0_i32_0 : i32, i32
  }
  func.func @transform_16(%arg0: i32) -> (i32, i32) {
    %c0_i32 = arith.constant 0 : i32
    %c0_i32_0 = arith.constant 0 : i32
    %c0_i32_1 = arith.constant 0 : i32
    return %c0_i32, %c0_i32_0 : i32, i32
  }
  func.func @transform_17(%arg0: i32) -> (i32, i32) {
    %c0_i32 = arith.constant 0 : i32
    %c0_i32_0 = arith.constant 0 : i32
    return %arg0, %c0_i32 : i32, i32
  }
}

</mosaic_0001>

<llo_original>
// kernel: tpu_custom_call.1
$region0: #{tpu_custom_call.1}
  #allocation0 [shape = 'u32[]', space=smem, size = 0x4, offset = 0x4, fixed_abs, tag = 'smem constant byte address 0x4 - core index']
  #allocation1 [shape = 'u32[144,128]{1,0:T(1,128)}', space=vmem, size = 0x12000, scoped, tag = 'internal scratch']
  %s0 = inlined_call_operand.hbm [shape: bf16[8,896], index: 0, kind: input, shape index: {}]
  %s1 = inlined_call_operand.hbm [shape: bf16[896,1024], index: 1, kind: input, shape index: {}]
  %s2 = inlined_call_operand.hbm [shape: f32[1,1024], index: 2, kind: input, shape index: {}]
  %s3 = inlined_call_operand.hbm [shape: bf16[1024,512], index: 3, kind: input, shape index: {}]
  %s4 = inlined_call_operand.hbm [shape: f32[1,512], index: 4, kind: input, shape index: {}]
  %s5 = inlined_call_operand.hbm [shape: bf16[512,256], index: 5, kind: input, shape index: {}]
  %s6 = inlined_call_operand.hbm [shape: f32[1,256], index: 6, kind: input, shape index: {}]
  %s7 = inlined_call_operand.hbm [shape: bf16[256,128], index: 7, kind: input, shape index: {}]
  %s8 = inlined_call_operand.hbm [shape: f32[1,128], index: 8, kind: input, shape index: {}]
  %s9 = inlined_call_operand.hbm [shape: bf16[128,256], index: 9, kind: input, shape index: {}]
  %s10 = inlined_call_operand.hbm [shape: f32[1,256], index: 10, kind: input, shape index: {}]
  %s11 = inlined_call_operand.hbm [shape: bf16[256,512], index: 11, kind: input, shape index: {}]
  %s12 = inlined_call_operand.hbm [shape: f32[1,512], index: 12, kind: input, shape index: {}]
  %s13 = inlined_call_operand.hbm [shape: bf16[512,1024], index: 13, kind: input, shape index: {}]
  %s14 = inlined_call_operand.hbm [shape: f32[1,1024], index: 14, kind: input, shape index: {}]
  %s15 = inlined_call_operand.hbm [shape: bf16[1024,896], index: 15, kind: input, shape index: {}]
  %s16 = inlined_call_operand.hbm [shape: f32[1,896], index: 16, kind: input, shape index: {}]
  %s17 = inlined_call_operand.hbm [shape: f32[8,896], index: 17, kind: output, shape index: {}]
  %s18 = sld [smem:[#allocation0]]
  $region146: #{tpu_custom_call.1} parent=0
    _
  %s20 = ssub.s32 1, %s18
  %s21 = scalar_select 0, %s20, %s18
  $region1: #{tpu_custom_call.1} parent=0
    #allocation2 [shape = 'u8[14336]{0}', space=vmem, size = 0x3800, scoped, tag = 'input window, operand 0, single buffered']
    #allocation3 [shape = 's32[1]{0}', space=sflag, size = 0x4, scoped, tag = 'scoped memory for tpu_custom_call.1']
    #allocation4 [shape = 's32[1]{0}', space=sflag, size = 0x4, scoped, tag = 'scoped memory for tpu_custom_call.1']
    #allocation5 [shape = 'u8[1835008]{0}', space=vmem, size = 0x1c0000, scoped, tag = 'input window, operand 1, single buffered']
    #allocation6 [shape = 's32[1]{0}', space=sflag, size = 0x4, scoped, tag = 'scoped memory for tpu_custom_call.1']
    #allocation7 [shape = 'u8[4096]{0}', space=vmem, size = 0x1000, scoped, tag = 'input window, operand 2, single buffered']
    #allocation8 [shape = 'u8[1048576]{0}', space=vmem, size = 0x100000, scoped, tag = 'input window, operand 3, single buffered']
    #allocation9 [shape = 's32[1]{0}', space=sflag, size = 0x4, scoped, tag = 'scoped memory for tpu_custom_call.1']
    #allocation10 [shape = 'u8[2048]{0}', space=vmem, size = 0x800, scoped, tag = 'input window, operand 4, single buffered']
    #allocation11 [shape = 'u8[262144]{0}', space=vmem, size = 0x40000, scoped, tag = 'input window, operand 5, single buffered']
    #allocation12 [shape = 's32[1]{0}', space=sflag, size = 0x4, scoped, tag = 'scoped memory for tpu_custom_call.1']
    #allocation13 [shape = 'u8[1024]{0}', space=vmem, size = 0x400, scoped, tag = 'input window, operand 6, single buffered']
    #allocation14 [shape = 'u8[65536]{0}', space=vmem, size = 0x10000, scoped, tag = 'input window, operand 7, single buffered']
    #allocation15 [shape = 's32[1]{0}', space=sflag, size = 0x4, scoped, tag = 'scoped memory for tpu_custom_call.1']
    #allocation16 [shape = 'u8[512]{0}', space=vmem, size = 0x400, scoped, tag = 'input window, operand 8, single buffered']
    #allocation17 [shape = 'u8[65536]{0}', space=vmem, size = 0x10000, scoped, tag = 'input window, operand 9, single buffered']
    #allocation18 [shape = 's32[1]{0}', space=sflag, size = 0x4, scoped, tag = 'scoped memory for tpu_custom_call.1']
    #allocation19 [shape = 'u8[1024]{0}', space=vmem, size = 0x400, scoped, tag = 'input window, operand 10, single buffered']
    #allocation20 [shape = 'u8[262144]{0}', space=vmem, size = 0x40000, scoped, tag = 'input window, operand 11, single buffered']
    #allocation21 [shape = 's32[1]{0}', space=sflag, size = 0x4, scoped, tag = 'scoped memory for tpu_custom_call.1']
    #allocation22 [shape = 'u8[2048]{0}', space=vmem, size = 0x800, scoped, tag = 'input window, operand 12, single buffered']
    #allocation23 [shape = 'u8[1048576]{0}', space=vmem, size = 0x100000, scoped, tag = 'input window, operand 13, single buffered']
    #allocation24 [shape = 's32[1]{0}', space=sflag, size = 0x4, scoped, tag = 'scoped memory for tpu_custom_call.1']
    #allocation25 [shape = 'u8[4096]{0}', space=vmem, size = 0x1000, scoped, tag = 'input window, operand 14, single buffered']
    #allocation26 [shape = 'u8[1835008]{0}', space=vmem, size = 0x1c0000, scoped, tag = 'input window, operand 15, single buffered']
    #allocation27 [shape = 's32[1]{0}', space=sflag, size = 0x4, scoped, tag = 'scoped memory for tpu_custom_call.1']
    #allocation28 [shape = 'u8[3584]{0}', space=vmem, size = 0x1000, scoped, tag = 'input window, operand 16, single buffered']
    #allocation29 [shape = 'u8[28672]{0}', space=vmem, size = 0x7000, scoped, tag = 'output window, operand 0, single buffered']
    %22 = vsyncpa [#allocation3], 0
    %23 = vsyncpa [#allocation6], 0
    %24 = vsyncpa [#allocation9], 0
    %25 = vsyncpa [#allocation12], 0
    %26 = vsyncpa [#allocation15], 0
    %27 = vsyncpa [#allocation18], 0
    %28 = vsyncpa [#allocation21], 0
    %29 = vsyncpa [#allocation24], 0
    %30 = vsyncpa [#allocation27], 0
    %31 = vsyncpa [#allocation4], 0
    // Predicated region
    $region2: #{tpu_custom_call.1} parent=1 // pred_check
      _
    $region3: #{tpu_custom_call.1} parent=1 // pred_check_branch
      %33 = sbr.rel (0) target = $region5
    $region4: #{tpu_custom_call.1} parent=1 // pred_region
      %s35 = ssub.s32 448, 448
      %36 = vsyncadd [#allocation3], %s35
      %s38 = sshll.u32 [#allocation2], 4
      %s39 = int_to_ptr.vmem [resolvable:$true] %s38
      %41 = dma.hbm_to_vmem [thread:$0]  %s0, 448, %s39, [#allocation3]
    $region5: #{tpu_custom_call.1} parent=1 // pred_fallthru
      _
    // Predicated region
    $region6: #{tpu_custom_call.1} parent=1 // pred_check
      _
    $region7: #{tpu_custom_call.1} parent=1 // pred_check_branch
      %43 = sbr.rel (0) target = $region9
    $region8: #{tpu_custom_call.1} parent=1 // pred_region
      %s45 = ssub.s32 57344, 57344
      %46 = vsyncadd [#allocation6], %s45
      %s47 = sshll.u32 [#allocation5], 4
      %s48 = int_to_ptr.vmem [resolvable:$true] %s47
      %53 = dma.hbm_to_vmem [thread:$0]  %s1, 57344, %s48, [#allocation6], 512, 512, 32
    $region9: #{tpu_custom_call.1} parent=1 // pred_fallthru
      _
    // Predicated region
    $region10: #{tpu_custom_call.1} parent=1 // pred_check
      _
    $region11: #{tpu_custom_call.1} parent=1 // pred_check_branch
      %55 = sbr.rel (0) target = $region13
    $region12: #{tpu_custom_call.1} parent=1 // pred_region
      %s57 = ssub.s32 128, 128
      %58 = vsyncadd [#allocation6], %s57
      %s60 = sshll.u32 [#allocation7], 4
      %s61 = int_to_ptr.vmem [resolvable:$true] %s60
      %63 = dma.hbm_to_vmem [thread:$0]  %s2, 128, %s61, [#allocation6]
    $region13: #{tpu_custom_call.1} parent=1 // pred_fallthru
      _
    // Predicated region
    $region14: #{tpu_custom_call.1} parent=1 // pred_check
      _
    $region15: #{tpu_custom_call.1} parent=1 // pred_check_branch
      %65 = sbr.rel (0) target = $region17
    $region16: #{tpu_custom_call.1} parent=1 // pred_region
      %s67 = ssub.s32 32768, 32768
      %68 = vsyncadd [#allocation9], %s67
      %s69 = sshll.u32 [#allocation8], 4
      %s70 = int_to_ptr.vmem [resolvable:$true] %s69
      %75 = dma.hbm_to_vmem [thread:$0]  %s3, 32768, %s70, [#allocation9], 256, 256, 16
    $region17: #{tpu_custom_call.1} parent=1 // pred_fallthru
      _
    // Predicated region
    $region18: #{tpu_custom_call.1} parent=1 // pred_check
      _
    $region19: #{tpu_custom_call.1} parent=1 // pred_check_branch
      %77 = sbr.rel (0) target = $region21
    $region20: #{tpu_custom_call.1} parent=1 // pred_region
      %s79 = ssub.s32 64, 64
      %80 = vsyncadd [#allocation9], %s79
      %s82 = sshll.u32 [#allocation10], 4
      %s83 = int_to_ptr.vmem [resolvable:$true] %s82
      %85 = dma.hbm_to_vmem [thread:$0]  %s4, 64, %s83, [#allocation9]
    $region21: #{tpu_custom_call.1} parent=1 // pred_fallthru
      _
    // Predicated region
    $region22: #{tpu_custom_call.1} parent=1 // pred_check
      _
    $region23: #{tpu_custom_call.1} parent=1 // pred_check_branch
      %87 = sbr.rel (0) target = $region25
    $region24: #{tpu_custom_call.1} parent=1 // pred_region
      %s89 = ssub.s32 8192, 8192
      %90 = vsyncadd [#allocation12], %s89
      %s91 = sshll.u32 [#allocation11], 4
      %s92 = int_to_ptr.vmem [resolvable:$true] %s91
      %97 = dma.hbm_to_vmem [thread:$0]  %s5, 8192, %s92, [#allocation12], 128, 128, 8
    $region25: #{tpu_custom_call.1} parent=1 // pred_fallthru
      _
    // Predicated region
    $region26: #{tpu_custom_call.1} parent=1 // pred_check
      _
    $region27: #{tpu_custom_call.1} parent=1 // pred_check_branch
      %99 = sbr.rel (0) target = $region29
    $region28: #{tpu_custom_call.1} parent=1 // pred_region
      %s101 = ssub.s32 32, 32
      %102 = vsyncadd [#allocation12], %s101
      %s104 = sshll.u32 [#allocation13], 4
      %s105 = int_to_ptr.vmem [resolvable:$true] %s104
      %107 = dma.hbm_to_vmem [thread:$0]  %s6, 32, %s105, [#allocation12]
    $region29: #{tpu_custom_call.1} parent=1 // pred_fallthru
      _
    // Predicated region
    $region30: #{tpu_custom_call.1} parent=1 // pred_check
      _
    $region31: #{tpu_custom_call.1} parent=1 // pred_check_branch
      %109 = sbr.rel (0) target = $region33
    $region32: #{tpu_custom_call.1} parent=1 // pred_region
      %s111 = ssub.s32 2048, 2048
      %112 = vsyncadd [#allocation15], %s111
      %s113 = sshll.u32 [#allocation14], 4
      %s114 = int_to_ptr.vmem [resolvable:$true] %s113
      %119 = dma.hbm_to_vmem [thread:$0]  %s7, 2048, %s114, [#allocation15], 64, 64, 4
    $region33: #{tpu_custom_call.1} parent=1 // pred_fallthru
      _
    // Predicated region
    $region34: #{tpu_custom_call.1} parent=1 // pred_check
      _
    $region35: #{tpu_custom_call.1} parent=1 // pred_check_branch
      %121 = sbr.rel (0) target = $region37
    $region36: #{tpu_custom_call.1} parent=1 // pred_region
      %s123 = ssub.s32 16, 16
      %124 = vsyncadd [#allocation15], %s123
      %s126 = sshll.u32 [#allocation16], 4
      %s127 = int_to_ptr.vmem [resolvable:$true] %s126
      %129 = dma.hbm_to_vmem [thread:$0]  %s8, 16, %s127, [#allocation15]
    $region37: #{tpu_custom_call.1} parent=1 // pred_fallthru
      _
    // Predicated region
    $region38: #{tpu_custom_call.1} parent=1 // pred_check
      _
    $region39: #{tpu_custom_call.1} parent=1 // pred_check_branch
      %131 = sbr.rel (0) target = $region41
    $region40: #{tpu_custom_call.1} parent=1 // pred_region
      %s133 = ssub.s32 2048, 2048
      %134 = vsyncadd [#allocation18], %s133
      %s135 = sshll.u32 [#allocation17], 4
      %s136 = int_to_ptr.vmem [resolvable:$true] %s135
      %141 = dma.hbm_to_vmem [thread:$0]  %s9, 2048, %s136, [#allocation18], 128, 128, 8
    $region41: #{tpu_custom_call.1} parent=1 // pred_fallthru
      _
    // Predicated region
    $region42: #{tpu_custom_call.1} parent=1 // pred_check
      _
    $region43: #{tpu_custom_call.1} parent=1 // pred_check_branch
      %143 = sbr.rel (0) target = $region45
    $region44: #{tpu_custom_call.1} parent=1 // pred_region
      %s145 = ssub.s32 32, 32
      %146 = vsyncadd [#allocation18], %s145
      %s148 = sshll.u32 [#allocation19], 4
      %s149 = int_to_ptr.vmem [resolvable:$true] %s148
      %151 = dma.hbm_to_vmem [thread:$0]  %s10, 32, %s149, [#allocation18]
    $region45: #{tpu_custom_call.1} parent=1 // pred_fallthru
      _
    // Predicated region
    $region46: #{tpu_custom_call.1} parent=1 // pred_check
      _
    $region47: #{tpu_custom_call.1} parent=1 // pred_check_branch
      %153 = sbr.rel (0) target = $region49
    $region48: #{tpu_custom_call.1} parent=1 // pred_region
      %s155 = ssub.s32 8192, 8192
      %156 = vsyncadd [#allocation21], %s155
      %s157 = sshll.u32 [#allocation20], 4
      %s158 = int_to_ptr.vmem [resolvable:$true] %s157
      %163 = dma.hbm_to_vmem [thread:$0]  %s11, 8192, %s158, [#allocation21], 256, 256, 16
    $region49: #{tpu_custom_call.1} parent=1 // pred_fallthru
      _
    // Predicated region
    $region50: #{tpu_custom_call.1} parent=1 // pred_check
      _
    $region51: #{tpu_custom_call.1} parent=1 // pred_check_branch
      %165 = sbr.rel (0) target = $region53
    $region52: #{tpu_custom_call.1} parent=1 // pred_region
      %s167 = ssub.s32 64, 64
      %168 = vsyncadd [#allocation21], %s167
      %s170 = sshll.u32 [#allocation22], 4
      %s171 = int_to_ptr.vmem [resolvable:$true] %s170
      %173 = dma.hbm_to_vmem [thread:$0]  %s12, 64, %s171, [#allocation21]
    $region53: #{tpu_custom_call.1} parent=1 // pred_fallthru
      _
    // Predicated region
    $region54: #{tpu_custom_call.1} parent=1 // pred_check
      _
    $region55: #{tpu_custom_call.1} parent=1 // pred_check_branch
      %175 = sbr.rel (0) target = $region57
    $region56: #{tpu_custom_call.1} parent=1 // pred_region
      %s177 = ssub.s32 32768, 32768
      %178 = vsyncadd [#allocation24], %s177
      %s179 = sshll.u32 [#allocation23], 4
      %s180 = int_to_ptr.vmem [resolvable:$true] %s179
      %185 = dma.hbm_to_vmem [thread:$0]  %s13, 32768, %s180, [#allocation24], 512, 512, 32
    $region57: #{tpu_custom_call.1} parent=1 // pred_fallthru
      _
    // Predicated region
    $region58: #{tpu_custom_call.1} parent=1 // pred_check
      _
    $region59: #{tpu_custom_call.1} parent=1 // pred_check_branch
      %187 = sbr.rel (0) target = $region61
    $region60: #{tpu_custom_call.1} parent=1 // pred_region
      %s189 = ssub.s32 128, 128
      %190 = vsyncadd [#allocation24], %s189
      %s192 = sshll.u32 [#allocation25], 4
      %s193 = int_to_ptr.vmem [resolvable:$true] %s192
      %195 = dma.hbm_to_vmem [thread:$0]  %s14, 128, %s193, [#allocation24]
    $region61: #{tpu_custom_call.1} parent=1 // pred_fallthru
      _
    // Predicated region
    $region62: #{tpu_custom_call.1} parent=1 // pred_check
      _
    $region63: #{tpu_custom_call.1} parent=1 // pred_check_branch
      %197 = sbr.rel (0) target = $region65
    $region64: #{tpu_custom_call.1} parent=1 // pred_region
      %s199 = ssub.s32 57344, 57344
      %200 = vsyncadd [#allocation27], %s199
      %s201 = sshll.u32 [#allocation26], 4
      %s202 = int_to_ptr.vmem [resolvable:$true] %s201
      %207 = dma.hbm_to_vmem [thread:$0]  %s15, 57344, %s202, [#allocation27], 448, 448, 28
    $region65: #{tpu_custom_call.1} parent=1 // pred_fallthru
      _
    // Predicated region
    $region66: #{tpu_custom_call.1} parent=1 // pred_check
      _
    $region67: #{tpu_custom_call.1} parent=1 // pred_check_branch
      %209 = sbr.rel (0) target = $region69
    $region68: #{tpu_custom_call.1} parent=1 // pred_region
      %s211 = ssub.s32 112, 112
      %212 = vsyncadd [#allocation27], %s211
      %s214 = sshll.u32 [#allocation28], 4
      %s215 = int_to_ptr.vmem [resolvable:$true] %s214
      %217 = dma.hbm_to_vmem [thread:$0]  %s16, 112, %s215, [#allocation27]
    $region69: #{tpu_custom_call.1} parent=1 // pred_fallthru
      _
    // Predicated region
    $region70: #{tpu_custom_call.1} parent=1 // pred_check
      _
    $region71: #{tpu_custom_call.1} parent=1 // pred_check_branch
      %219 = sbr.rel (0) target = $region73
    $region72: #{tpu_custom_call.1} parent=1 // pred_region
      %220 = dma.done [#allocation3], 448
    $region73: #{tpu_custom_call.1} parent=1 // pred_fallthru
      _
    // Predicated region
    $region74: #{tpu_custom_call.1} parent=1 // pred_check
      _
    $region75: #{tpu_custom_call.1} parent=1 // pred_check_branch
      %222 = sbr.rel (0) target = $region77
    $region76: #{tpu_custom_call.1} parent=1 // pred_region
      %223 = dma.done [#allocation6], 57344
    $region77: #{tpu_custom_call.1} parent=1 // pred_fallthru
      _
    // Predicated region
    $region78: #{tpu_custom_call.1} parent=1 // pred_check
      _
    $region79: #{tpu_custom_call.1} parent=1 // pred_check_branch
      %225 = sbr.rel (0) target = $region81
    $region80: #{tpu_custom_call.1} parent=1 // pred_region
      %226 = dma.done [#allocation6], 128
    $region81: #{tpu_custom_call.1} parent=1 // pred_fallthru
      _
    // Predicated region
    $region82: #{tpu_custom_call.1} parent=1 // pred_check
      _
    $region83: #{tpu_custom_call.1} parent=1 // pred_check_branch
      %228 = sbr.rel (0) target = $region85
    $region84: #{tpu_custom_call.1} parent=1 // pred_region
      %229 = dma.done [#allocation9], 32768
    $region85: #{tpu_custom_call.1} parent=1 // pred_fallthru
      _
    // Predicated region
    $region86: #{tpu_custom_call.1} parent=1 // pred_check
      _
    $region87: #{tpu_custom_call.1} parent=1 // pred_check_branch
      %231 = sbr.rel (0) target = $region89
    $region88: #{tpu_custom_call.1} parent=1 // pred_region
      %232 = dma.done [#allocation9], 64
    $region89: #{tpu_custom_call.1} parent=1 // pred_fallthru
      _
    // Predicated region
    $region90: #{tpu_custom_call.1} parent=1 // pred_check
      _
    $region91: #{tpu_custom_call.1} parent=1 // pred_check_branch
      %234 = sbr.rel (0) target = $region93
    $region92: #{tpu_custom_call.1} parent=1 // pred_region
      %235 = dma.done [#allocation12], 8192
    $region93: #{tpu_custom_call.1} parent=1 // pred_fallthru
      _
    // Predicated region
    $region94: #{tpu_custom_call.1} parent=1 // pred_check
      _
    $region95: #{tpu_custom_call.1} parent=1 // pred_check_branch
      %237 = sbr.rel (0) target = $region97
    $region96: #{tpu_custom_call.1} parent=1 // pred_region
      %238 = dma.done [#allocation12], 32
    $region97: #{tpu_custom_call.1} parent=1 // pred_fallthru
      _
    // Predicated region
    $region98: #{tpu_custom_call.1} parent=1 // pred_check
      _
    $region99: #{tpu_custom_call.1} parent=1 // pred_check_branch
      %240 = sbr.rel (0) target = $region101
    $region100: #{tpu_custom_call.1} parent=1 // pred_region
      %241 = dma.done [#allocation15], 2048
    $region101: #{tpu_custom_call.1} parent=1 // pred_fallthru
      _
    // Predicated region
    $region102: #{tpu_custom_call.1} parent=1 // pred_check
      _
    $region103: #{tpu_custom_call.1} parent=1 // pred_check_branch
      %243 = sbr.rel (0) target = $region105
    $region104: #{tpu_custom_call.1} parent=1 // pred_region
      %244 = dma.done [#allocation15], 16
    $region105: #{tpu_custom_call.1} parent=1 // pred_fallthru
      _
    // Predicated region
    $region106: #{tpu_custom_call.1} parent=1 // pred_check
      _
    $region107: #{tpu_custom_call.1} parent=1 // pred_check_branch
      %246 = sbr.rel (0) target = $region109
    $region108: #{tpu_custom_call.1} parent=1 // pred_region
      %247 = dma.done [#allocation18], 2048
    $region109: #{tpu_custom_call.1} parent=1 // pred_fallthru
      _
    // Predicated region
    $region110: #{tpu_custom_call.1} parent=1 // pred_check
      _
    $region111: #{tpu_custom_call.1} parent=1 // pred_check_branch
      %249 = sbr.rel (0) target = $region113
    $region112: #{tpu_custom_call.1} parent=1 // pred_region
      %250 = dma.done [#allocation18], 32
    $region113: #{tpu_custom_call.1} parent=1 // pred_fallthru
      _
    // Predicated region
    $region114: #{tpu_custom_call.1} parent=1 // pred_check
      _
    $region115: #{tpu_custom_call.1} parent=1 // pred_check_branch
      %252 = sbr.rel (0) target = $region117
    $region116: #{tpu_custom_call.1} parent=1 // pred_region
      %253 = dma.done [#allocation21], 8192
    $region117: #{tpu_custom_call.1} parent=1 // pred_fallthru
      _
    // Predicated region
    $region118: #{tpu_custom_call.1} parent=1 // pred_check
      _
    $region119: #{tpu_custom_call.1} parent=1 // pred_check_branch
      %255 = sbr.rel (0) target = $region121
    $region120: #{tpu_custom_call.1} parent=1 // pred_region
      %256 = dma.done [#allocation21], 64
    $region121: #{tpu_custom_call.1} parent=1 // pred_fallthru
      _
    // Predicated region
    $region122: #{tpu_custom_call.1} parent=1 // pred_check
      _
    $region123: #{tpu_custom_call.1} parent=1 // pred_check_branch
      %258 = sbr.rel (0) target = $region125
    $region124: #{tpu_custom_call.1} parent=1 // pred_region
      %259 = dma.done [#allocation24], 32768
    $region125: #{tpu_custom_call.1} parent=1 // pred_fallthru
      _
    // Predicated region
    $region126: #{tpu_custom_call.1} parent=1 // pred_check
      _
    $region127: #{tpu_custom_call.1} parent=1 // pred_check_branch
      %261 = sbr.rel (0) target = $region129
    $region128: #{tpu_custom_call.1} parent=1 // pred_region
      %262 = dma.done [#allocation24], 128
    $region129: #{tpu_custom_call.1} parent=1 // pred_fallthru
      _
    // Predicated region
    $region130: #{tpu_custom_call.1} parent=1 // pred_check
      _
    $region131: #{tpu_custom_call.1} parent=1 // pred_check_branch
      %264 = sbr.rel (0) target = $region133
    $region132: #{tpu_custom_call.1} parent=1 // pred_region
      %265 = dma.done [#allocation27], 57344
    $region133: #{tpu_custom_call.1} parent=1 // pred_fallthru
      _
    // Predicated region
    $region134: #{tpu_custom_call.1} parent=1 // pred_check
      _
    $region135: #{tpu_custom_call.1} parent=1 // pred_check_branch
      %267 = sbr.rel (0) target = $region137
    $region136: #{tpu_custom_call.1} parent=1 // pred_region
      %268 = dma.done [#allocation27], 112
    $region137: #{tpu_custom_call.1} parent=1 // pred_fallthru
      _
    %v271 = vld [vmem:[#allocation2] sm:$0xff]
    %v272 = vld [vmem:[#allocation2 + $0x8] sm:$0xff]
    %v273 = vld [vmem:[#allocation2 + $0x10] sm:$0xff]
    %v274 = vld [vmem:[#allocation2 + $0x18] sm:$0xf]
    %v275 = vld [vmem:[#allocation5] sm:$0xff]
    %v276 = vld [vmem:[#allocation5 + $0x8] sm:$0xff]
    %v277 = vld [vmem:[#allocation5 + $0x10] sm:$0xff]
    %v278 = vld [vmem:[#allocation5 + $0x18] sm:$0xff]
    %v279 = vld [vmem:[#allocation5 + $0x20] sm:$0xff]
    %v280 = vld [vmem:[#allocation5 + $0x28] sm:$0xff]
    %v281 = vld [vmem:[#allocation5 + $0x30] sm:$0xff]
    %v282 = vld [vmem:[#allocation5 + $0x38] sm:$0xff]
    %v283 = vld [vmem:[#allocation5 + $0x40] sm:$0xff]
    %v284 = vld [vmem:[#allocation5 + $0x48] sm:$0xff]
    %v285 = vld [vmem:[#allocation5 + $0x50] sm:$0xff]
    %v286 = vld [vmem:[#allocation5 + $0x58] sm:$0xff]
    %v287 = vld [vmem:[#allocation5 + $0x60] sm:$0xff]
    %v288 = vld [vmem:[#allocation5 + $0x68] sm:$0xff]
    %v289 = vld [vmem:[#allocation5 + $0x70] sm:$0xff]
    %v290 = vld [vmem:[#allocation5 + $0x78] sm:$0xff]
    %v291 = vld [vmem:[#allocation5 + $0x80] sm:$0xff]
    %v292 = vld [vmem:[#allocation5 + $0x88] sm:$0xff]
    %v293 = vld [vmem:[#allocation5 + $0x90] sm:$0xff]
    %v294 = vld [vmem:[#allocation5 + $0x98] sm:$0xff]
    %v295 = vld [vmem:[#allocation5 + $0xa0] sm:$0xff]
    %v296 = vld [vmem:[#allocation5 + $0xa8] sm:$0xff]
    %v297 = vld [vmem:[#allocation5 + $0xb0] sm:$0xff]
    %v298 = vld [vmem:[#allocation5 + $0xb8] sm:$0xff]
    %v299 = vld [vmem:[#allocation5 + $0xc0] sm:$0xff]
    %v300 = vld [vmem:[#allocation5 + $0xc8] sm:$0xff]
    %v301 = vld [vmem:[#allocation5 + $0xd0] sm:$0xff]
    %v302 = vld [vmem:[#allocation5 + $0xd8] sm:$0xff]
    %v303 = vld [vmem:[#allocation5 + $0xe0] sm:$0xff]
    %v304 = vld [vmem:[#allocation5 + $0xe8] sm:$0xff]
    %v305 = vld [vmem:[#allocation5 + $0xf0] sm:$0xff]
    %v306 = vld [vmem:[#allocation5 + $0xf8] sm:$0xff]
    %v307 = vld [vmem:[#allocation5 + $0x100] sm:$0xff]
    %v308 = vld [vmem:[#allocation5 + $0x108] sm:$0xff]
    %v309 = vld [vmem:[#allocation5 + $0x110] sm:$0xff]
    %v310 = vld [vmem:[#allocation5 + $0x118] sm:$0xff]
    %v311 = vld [vmem:[#allocation5 + $0x120] sm:$0xff]
    %v312 = vld [vmem:[#allocation5 + $0x128] sm:$0xff]
    %v313 = vld [vmem:[#allocation5 + $0x130] sm:$0xff]
    %v314 = vld [vmem:[#allocation5 + $0x138] sm:$0xff]
    %v315 = vld [vmem:[#allocation5 + $0x140] sm:$0xff]
    %v316 = vld [vmem:[#allocation5 + $0x148] sm:$0xff]
    %v317 = vld [vmem:[#allocation5 + $0x150] sm:$0xff]
    %v318 = vld [vmem:[#allocation5 + $0x158] sm:$0xff]
    %v319 = vld [vmem:[#allocation5 + $0x160] sm:$0xff]
    %v320 = vld [vmem:[#allocation5 + $0x168] sm:$0xff]
    %v321 = vld [vmem:[#allocation5 + $0x170] sm:$0xff]
    %v322 = vld [vmem:[#allocation5 + $0x178] sm:$0xff]
    %v323 = vld [vmem:[#allocation5 + $0x180] sm:$0xff]
    %v324 = vld [vmem:[#allocation5 + $0x188] sm:$0xff]
    %v325 = vld [vmem:[#allocation5 + $0x190] sm:$0xff]
    %v326 = vld [vmem:[#allocation5 + $0x198] sm:$0xff]
    %v327 = vld [vmem:[#allocation5 + $0x1a0] sm:$0xff]
    %v328 = vld [vmem:[#allocation5 + $0x1a8] sm:$0xff]
    %v329 = vld [vmem:[#allocation5 + $0x1b0] sm:$0xff]
    %v330 = vld [vmem:[#allocation5 + $0x1b8] sm:$0xff]
    %v331 = vld [vmem:[#allocation5 + $0x1c0] sm:$0xff]
    %v332 = vld [vmem:[#allocation5 + $0x1c8] sm:$0xff]
    %v333 = vld [vmem:[#allocation5 + $0x1d0] sm:$0xff]
    %v334 = vld [vmem:[#allocation5 + $0x1d8] sm:$0xff]
    %v335 = vld [vmem:[#allocation5 + $0x1e0] sm:$0xff]
    %v336 = vld [vmem:[#allocation5 + $0x1e8] sm:$0xff]
    %v337 = vld [vmem:[#allocation5 + $0x1f0] sm:$0xff]
    %v338 = vld [vmem:[#allocation5 + $0x1f8] sm:$0xff]
    %v339 = vld [vmem:[#allocation5 + $0x200] sm:$0xff]
    %v340 = vld [vmem:[#allocation5 + $0x208] sm:$0xff]
    %v341 = vld [vmem:[#allocation5 + $0x210] sm:$0xff]
    %v342 = vld [vmem:[#allocation5 + $0x218] sm:$0xff]
    %v343 = vld [vmem:[#allocation5 + $0x220] sm:$0xff]
    %v344 = vld [vmem:[#allocation5 + $0x228] sm:$0xff]
    %v345 = vld [vmem:[#allocation5 + $0x230] sm:$0xff]
    %v346 = vld [vmem:[#allocation5 + $0x238] sm:$0xff]
    %v347 = vld [vmem:[#allocation5 + $0x240] sm:$0xff]
    %v348 = vld [vmem:[#allocation5 + $0x248] sm:$0xff]
    %v349 = vld [vmem:[#allocation5 + $0x250] sm:$0xff]
    %v350 = vld [vmem:[#allocation5 + $0x258] sm:$0xff]
    %v351 = vld [vmem:[#allocation5 + $0x260] sm:$0xff]
    %v352 = vld [vmem:[#allocation5 + $0x268] sm:$0xff]
    %v353 = vld [vmem:[#allocation5 + $0x270] sm:$0xff]
    %v354 = vld [vmem:[#allocation5 + $0x278] sm:$0xff]
    %v355 = vld [vmem:[#allocation5 + $0x280] sm:$0xff]
    %v356 = vld [vmem:[#allocation5 + $0x288] sm:$0xff]
    %v357 = vld [vmem:[#allocation5 + $0x290] sm:$0xff]
    %v358 = vld [vmem:[#allocation5 + $0x298] sm:$0xff]
    %v359 = vld [vmem:[#allocation5 + $0x2a0] sm:$0xff]
    %v360 = vld [vmem:[#allocation5 + $0x2a8] sm:$0xff]
    %v361 = vld [vmem:[#allocation5 + $0x2b0] sm:$0xff]
    %v362 = vld [vmem:[#allocation5 + $0x2b8] sm:$0xff]
    %v363 = vld [vmem:[#allocation5 + $0x2c0] sm:$0xff]
    %v364 = vld [vmem:[#allocation5 + $0x2c8] sm:$0xff]
    %v365 = vld [vmem:[#allocation5 + $0x2d0] sm:$0xff]
    %v366 = vld [vmem:[#allocation5 + $0x2d8] sm:$0xff]
    %v367 = vld [vmem:[#allocation5 + $0x2e0] sm:$0xff]
    %v368 = vld [vmem:[#allocation5 + $0x2e8] sm:$0xff]
    %v369 = vld [vmem:[#allocation5 + $0x2f0] sm:$0xff]
    %v370 = vld [vmem:[#allocation5 + $0x2f8] sm:$0xff]
    %v371 = vld [vmem:[#allocation5 + $0x300] sm:$0xff]
    %v372 = vld [vmem:[#allocation5 + $0x308] sm:$0xff]
    %v373 = vld [vmem:[#allocation5 + $0x310] sm:$0xff]
    %v374 = vld [vmem:[#allocation5 + $0x318] sm:$0xff]
    %v375 = vld [vmem:[#allocation5 + $0x320] sm:$0xff]
    %v376 = vld [vmem:[#allocation5 + $0x328] sm:$0xff]
    %v377 = vld [vmem:[#allocation5 + $0x330] sm:$0xff]
    %v378 = vld [vmem:[#allocation5 + $0x338] sm:$0xff]
    %v379 = vld [vmem:[#allocation5 + $0x340] sm:$0xff]
    %v380 = vld [vmem:[#allocation5 + $0x348] sm:$0xff]
    %v381 = vld [vmem:[#allocation5 + $0x350] sm:$0xff]
    %v382 = vld [vmem:[#allocation5 + $0x358] sm:$0xff]
    %v383 = vld [vmem:[#allocation5 + $0x360] sm:$0xff]
    %v384 = vld [vmem:[#allocation5 + $0x368] sm:$0xff]
    %v385 = vld [vmem:[#allocation5 + $0x370] sm:$0xff]
    %v386 = vld [vmem:[#allocation5 + $0x378] sm:$0xff]
    %v387 = vld [vmem:[#allocation5 + $0x380] sm:$0xff]
    %v388 = vld [vmem:[#allocation5 + $0x388] sm:$0xff]
    %v389 = vld [vmem:[#allocation5 + $0x390] sm:$0xff]
    %v390 = vld [vmem:[#allocation5 + $0x398] sm:$0xff]
    %v391 = vld [vmem:[#allocation5 + $0x3a0] sm:$0xff]
    %v392 = vld [vmem:[#allocation5 + $0x3a8] sm:$0xff]
    %v393 = vld [vmem:[#allocation5 + $0x3b0] sm:$0xff]
    %v394 = vld [vmem:[#allocation5 + $0x3b8] sm:$0xff]
    %v395 = vld [vmem:[#allocation5 + $0x3c0] sm:$0xff]
    %v396 = vld [vmem:[#allocation5 + $0x3c8] sm:$0xff]
    %v397 = vld [vmem:[#allocation5 + $0x3d0] sm:$0xff]
    %v398 = vld [vmem:[#allocation5 + $0x3d8] sm:$0xff]
    %v399 = vld [vmem:[#allocation5 + $0x3e0] sm:$0xff]
    %v400 = vld [vmem:[#allocation5 + $0x3e8] sm:$0xff]
    %v401 = vld [vmem:[#allocation5 + $0x3f0] sm:$0xff]
    %v402 = vld [vmem:[#allocation5 + $0x3f8] sm:$0xff]
    %v403 = vld [vmem:[#allocation5 + $0x400] sm:$0xff]
    %v404 = vld [vmem:[#allocation5 + $0x408] sm:$0xff]
    %v405 = vld [vmem:[#allocation5 + $0x410] sm:$0xff]
    %v406 = vld [vmem:[#allocation5 + $0x418] sm:$0xff]
    %v407 = vld [vmem:[#allocation5 + $0x420] sm:$0xff]
    %v408 = vld [vmem:[#allocation5 + $0x428] sm:$0xff]
    %v409 = vld [vmem:[#allocation5 + $0x430] sm:$0xff]
    %v410 = vld [vmem:[#allocation5 + $0x438] sm:$0xff]
    %v411 = vld [vmem:[#allocation5 + $0x440] sm:$0xff]
    %v412 = vld [vmem:[#allocation5 + $0x448] sm:$0xff]
    %v413 = vld [vmem:[#allocation5 + $0x450] sm:$0xff]
    %v414 = vld [vmem:[#allocation5 + $0x458] sm:$0xff]
    %v415 = vld [vmem:[#allocation5 + $0x460] sm:$0xff]
    %v416 = vld [vmem:[#allocation5 + $0x468] sm:$0xff]
    %v417 = vld [vmem:[#allocation5 + $0x470] sm:$0xff]
    %v418 = vld [vmem:[#allocation5 + $0x478] sm:$0xff]
    %v419 = vld [vmem:[#allocation5 + $0x480] sm:$0xff]
    %v420 = vld [vmem:[#allocation5 + $0x488] sm:$0xff]
    %v421 = vld [vmem:[#allocation5 + $0x490] sm:$0xff]
    %v422 = vld [vmem:[#allocation5 + $0x498] sm:$0xff]
    %v423 = vld [vmem:[#allocation5 + $0x4a0] sm:$0xff]
    %v424 = vld [vmem:[#allocation5 + $0x4a8] sm:$0xff]
    %v425 = vld [vmem:[#allocation5 + $0x4b0] sm:$0xff]
    %v426 = vld [vmem:[#allocation5 + $0x4b8] sm:$0xff]
    %v427 = vld [vmem:[#allocation5 + $0x4c0] sm:$0xff]
    %v428 = vld [vmem:[#allocation5 + $0x4c8] sm:$0xff]
    %v429 = vld [vmem:[#allocation5 + $0x4d0] sm:$0xff]
    %v430 = vld [vmem:[#allocation5 + $0x4d8] sm:$0xff]
    %v431 = vld [vmem:[#allocation5 + $0x4e0] sm:$0xff]
    %v432 = vld [vmem:[#allocation5 + $0x4e8] sm:$0xff]
    %v433 = vld [vmem:[#allocation5 + $0x4f0] sm:$0xff]
    %v434 = vld [vmem:[#allocation5 + $0x4f8] sm:$0xff]
    %v435 = vld [vmem:[#allocation5 + $0x500] sm:$0xff]
    %v436 = vld [vmem:[#allocation5 + $0x508] sm:$0xff]
    %v437 = vld [vmem:[#allocation5 + $0x510] sm:$0xff]
    %v438 = vld [vmem:[#allocation5 + $0x518] sm:$0xff]
    %v439 = vld [vmem:[#allocation5 + $0x520] sm:$0xff]
    %v440 = vld [vmem:[#allocation5 + $0x528] sm:$0xff]
    %v441 = vld [vmem:[#allocation5 + $0x530] sm:$0xff]
    %v442 = vld [vmem:[#allocation5 + $0x538] sm:$0xff]
    %v443 = vld [vmem:[#allocation5 + $0x540] sm:$0xff]
    %v444 = vld [vmem:[#allocation5 + $0x548] sm:$0xff]
    %v445 = vld [vmem:[#allocation5 + $0x550] sm:$0xff]
    %v446 = vld [vmem:[#allocation5 + $0x558] sm:$0xff]
    %v447 = vld [vmem:[#allocation5 + $0x560] sm:$0xff]
    %v448 = vld [vmem:[#allocation5 + $0x568] sm:$0xff]
    %v449 = vld [vmem:[#allocation5 + $0x570] sm:$0xff]
    %v450 = vld [vmem:[#allocation5 + $0x578] sm:$0xff]
    %v451 = vld [vmem:[#allocation5 + $0x580] sm:$0xff]
    %v452 = vld [vmem:[#allocation5 + $0x588] sm:$0xff]
    %v453 = vld [vmem:[#allocation5 + $0x590] sm:$0xff]
    %v454 = vld [vmem:[#allocation5 + $0x598] sm:$0xff]
    %v455 = vld [vmem:[#allocation5 + $0x5a0] sm:$0xff]
    %v456 = vld [vmem:[#allocation5 + $0x5a8] sm:$0xff]
    %v457 = vld [vmem:[#allocation5 + $0x5b0] sm:$0xff]
    %v458 = vld [vmem:[#allocation5 + $0x5b8] sm:$0xff]
    %v459 = vld [vmem:[#allocation5 + $0x5c0] sm:$0xff]
    %v460 = vld [vmem:[#allocation5 + $0x5c8] sm:$0xff]
    %v461 = vld [vmem:[#allocation5 + $0x5d0] sm:$0xff]
    %v462 = vld [vmem:[#allocation5 + $0x5d8] sm:$0xff]
    %v463 = vld [vmem:[#allocation5 + $0x5e0] sm:$0xff]
    %v464 = vld [vmem:[#allocation5 + $0x5e8] sm:$0xff]
    %v465 = vld [vmem:[#allocation5 + $0x5f0] sm:$0xff]
    %v466 = vld [vmem:[#allocation5 + $0x5f8] sm:$0xff]
    %v467 = vld [vmem:[#allocation5 + $0x600] sm:$0xff]
    %v468 = vld [vmem:[#allocation5 + $0x608] sm:$0xff]
    %v469 = vld [vmem:[#allocation5 + $0x610] sm:$0xff]
    %v470 = vld [vmem:[#allocation5 + $0x618] sm:$0xff]
    %v471 = vld [vmem:[#allocation5 + $0x620] sm:$0xff]
    %v472 = vld [vmem:[#allocation5 + $0x628] sm:$0xff]
    %v473 = vld [vmem:[#allocation5 + $0x630] sm:$0xff]
    %v474 = vld [vmem:[#allocation5 + $0x638] sm:$0xff]
    %v475 = vld [vmem:[#allocation5 + $0x640] sm:$0xff]
    %v476 = vld [vmem:[#allocation5 + $0x648] sm:$0xff]
    %v477 = vld [vmem:[#allocation5 + $0x650] sm:$0xff]
    %v478 = vld [vmem:[#allocation5 + $0x658] sm:$0xff]
    %v479 = vld [vmem:[#allocation5 + $0x660] sm:$0xff]
    %v480 = vld [vmem:[#allocation5 + $0x668] sm:$0xff]
    %v481 = vld [vmem:[#allocation5 + $0x670] sm:$0xff]
    %v482 = vld [vmem:[#allocation5 + $0x678] sm:$0xff]
    %v483 = vld [vmem:[#allocation5 + $0x680] sm:$0xff]
    %v484 = vld [vmem:[#allocation5 + $0x688] sm:$0xff]
    %v485 = vld [vmem:[#allocation5 + $0x690] sm:$0xff]
    %v486 = vld [vmem:[#allocation5 + $0x698] sm:$0xff]
    %v487 = vld [vmem:[#allocation5 + $0x6a0] sm:$0xff]
    %v488 = vld [vmem:[#allocation5 + $0x6a8] sm:$0xff]
    %v489 = vld [vmem:[#allocation5 + $0x6b0] sm:$0xff]
    %v490 = vld [vmem:[#allocation5 + $0x6b8] sm:$0xff]
    %v491 = vld [vmem:[#allocation5 + $0x6c0] sm:$0xff]
    %v492 = vld [vmem:[#allocation5 + $0x6c8] sm:$0xff]
    %v493 = vld [vmem:[#allocation5 + $0x6d0] sm:$0xff]
    %v494 = vld [vmem:[#allocation5 + $0x6d8] sm:$0xff]
    %v495 = vld [vmem:[#allocation5 + $0x6e0] sm:$0xff]
    %v496 = vld [vmem:[#allocation5 + $0x6e8] sm:$0xff]
    %v497 = vld [vmem:[#allocation5 + $0x6f0] sm:$0xff]
    %v498 = vld [vmem:[#allocation5 + $0x6f8] sm:$0xff]
    %v499 = vld [vmem:[#allocation5 + $0x700] sm:$0xff]
    %v500 = vld [vmem:[#allocation5 + $0x708] sm:$0xff]
    %v501 = vld [vmem:[#allocation5 + $0x710] sm:$0xff]
    %v502 = vld [vmem:[#allocation5 + $0x718] sm:$0xff]
    %v503 = vld [vmem:[#allocation5 + $0x720] sm:$0xff]
    %v504 = vld [vmem:[#allocation5 + $0x728] sm:$0xff]
    %v505 = vld [vmem:[#allocation5 + $0x730] sm:$0xff]
    %v506 = vld [vmem:[#allocation5 + $0x738] sm:$0xff]
    %v507 = vld [vmem:[#allocation5 + $0x740] sm:$0xff]
    %v508 = vld [vmem:[#allocation5 + $0x748] sm:$0xff]
    %v509 = vld [vmem:[#allocation5 + $0x750] sm:$0xff]
    %v510 = vld [vmem:[#allocation5 + $0x758] sm:$0xff]
    %v511 = vld [vmem:[#allocation5 + $0x760] sm:$0xff]
    %v512 = vld [vmem:[#allocation5 + $0x768] sm:$0xff]
    %v513 = vld [vmem:[#allocation5 + $0x770] sm:$0xff]
    %v514 = vld [vmem:[#allocation5 + $0x778] sm:$0xff]
    %v515 = vld [vmem:[#allocation5 + $0x780] sm:$0xff]
    %v516 = vld [vmem:[#allocation5 + $0x788] sm:$0xff]
    %v517 = vld [vmem:[#allocation5 + $0x790] sm:$0xff]
    %v518 = vld [vmem:[#allocation5 + $0x798] sm:$0xff]
    %v519 = vld [vmem:[#allocation5 + $0x7a0] sm:$0xff]
    %v520 = vld [vmem:[#allocation5 + $0x7a8] sm:$0xff]
    %v521 = vld [vmem:[#allocation5 + $0x7b0] sm:$0xff]
    %v522 = vld [vmem:[#allocation5 + $0x7b8] sm:$0xff]
    %v523 = vld [vmem:[#allocation5 + $0x7c0] sm:$0xff]
    %v524 = vld [vmem:[#allocation5 + $0x7c8] sm:$0xff]
    %v525 = vld [vmem:[#allocation5 + $0x7d0] sm:$0xff]
    %v526 = vld [vmem:[#allocation5 + $0x7d8] sm:$0xff]
    %v527 = vld [vmem:[#allocation5 + $0x7e0] sm:$0xff]
    %v528 = vld [vmem:[#allocation5 + $0x7e8] sm:$0xff]
    %v529 = vld [vmem:[#allocation5 + $0x7f0] sm:$0xff]
    %v530 = vld [vmem:[#allocation5 + $0x7f8] sm:$0xff]
    %v531 = vld [vmem:[#allocation5 + $0x800] sm:$0xff]
    %v532 = vld [vmem:[#allocation5 + $0x808] sm:$0xff]
    %v533 = vld [vmem:[#allocation5 + $0x810] sm:$0xff]
    %v534 = vld [vmem:[#allocation5 + $0x818] sm:$0xff]
    %v535 = vld [vmem:[#allocation5 + $0x820] sm:$0xff]
    %v536 = vld [vmem:[#allocation5 + $0x828] sm:$0xff]
    %v537 = vld [vmem:[#allocation5 + $0x830] sm:$0xff]
    %v538 = vld [vmem:[#allocation5 + $0x838] sm:$0xff]
    %v539 = vld [vmem:[#allocation5 + $0x840] sm:$0xff]
    %v540 = vld [vmem:[#allocation5 + $0x848] sm:$0xff]
    %v541 = vld [vmem:[#allocation5 + $0x850] sm:$0xff]
    %v542 = vld [vmem:[#allocation5 + $0x858] sm:$0xff]
    %v543 = vld [vmem:[#allocation5 + $0x860] sm:$0xff]
    %v544 = vld [vmem:[#allocation5 + $0x868] sm:$0xff]
    %v545 = vld [vmem:[#allocation5 + $0x870] sm:$0xff]
    %v546 = vld [vmem:[#allocation5 + $0x878] sm:$0xff]
    %v547 = vld [vmem:[#allocation5 + $0x880] sm:$0xff]
    %v548 = vld [vmem:[#allocation5 + $0x888] sm:$0xff]
    %v549 = vld [vmem:[#allocation5 + $0x890] sm:$0xff]
    %v550 = vld [vmem:[#allocation5 + $0x898] sm:$0xff]
    %v551 = vld [vmem:[#allocation5 + $0x8a0] sm:$0xff]
    %v552 = vld [vmem:[#allocation5 + $0x8a8] sm:$0xff]
    %v553 = vld [vmem:[#allocation5 + $0x8b0] sm:$0xff]
    %v554 = vld [vmem:[#allocation5 + $0x8b8] sm:$0xff]
    %v555 = vld [vmem:[#allocation5 + $0x8c0] sm:$0xff]
    %v556 = vld [vmem:[#allocation5 + $0x8c8] sm:$0xff]
    %v557 = vld [vmem:[#allocation5 + $0x8d0] sm:$0xff]
    %v558 = vld [vmem:[#allocation5 + $0x8d8] sm:$0xff]
    %v559 = vld [vmem:[#allocation5 + $0x8e0] sm:$0xff]
    %v560 = vld [vmem:[#allocation5 + $0x8e8] sm:$0xff]
    %v561 = vld [vmem:[#allocation5 + $0x8f0] sm:$0xff]
    %v562 = vld [vmem:[#allocation5 + $0x8f8] sm:$0xff]
    %v563 = vld [vmem:[#allocation5 + $0x900] sm:$0xff]
    %v564 = vld [vmem:[#allocation5 + $0x908] sm:$0xff]
    %v565 = vld [vmem:[#allocation5 + $0x910] sm:$0xff]
    %v566 = vld [vmem:[#allocation5 + $0x918] sm:$0xff]
    %v567 = vld [vmem:[#allocation5 + $0x920] sm:$0xff]
    %v568 = vld [vmem:[#allocation5 + $0x928] sm:$0xff]
    %v569 = vld [vmem:[#allocation5 + $0x930] sm:$0xff]
    %v570 = vld [vmem:[#allocation5 + $0x938] sm:$0xff]
    %v571 = vld [vmem:[#allocation5 + $0x940] sm:$0xff]
    %v572 = vld [vmem:[#allocation5 + $0x948] sm:$0xff]
    %v573 = vld [vmem:[#allocation5 + $0x950] sm:$0xff]
    %v574 = vld [vmem:[#allocation5 + $0x958] sm:$0xff]
    %v575 = vld [vmem:[#allocation5 + $0x960] sm:$0xff]
    %v576 = vld [vmem:[#allocation5 + $0x968] sm:$0xff]
    %v577 = vld [vmem:[#allocation5 + $0x970] sm:$0xff]
    %v578 = vld [vmem:[#allocation5 + $0x978] sm:$0xff]
    %v579 = vld [vmem:[#allocation5 + $0x980] sm:$0xff]
    %v580 = vld [vmem:[#allocation5 + $0x988] sm:$0xff]
    %v581 = vld [vmem:[#allocation5 + $0x990] sm:$0xff]
    %v582 = vld [vmem:[#allocation5 + $0x998] sm:$0xff]
    %v583 = vld [vmem:[#allocation5 + $0x9a0] sm:$0xff]
    %v584 = vld [vmem:[#allocation5 + $0x9a8] sm:$0xff]
    %v585 = vld [vmem:[#allocation5 + $0x9b0] sm:$0xff]
    %v586 = vld [vmem:[#allocation5 + $0x9b8] sm:$0xff]
    %v587 = vld [vmem:[#allocation5 + $0x9c0] sm:$0xff]
    %v588 = vld [vmem:[#allocation5 + $0x9c8] sm:$0xff]
    %v589 = vld [vmem:[#allocation5 + $0x9d0] sm:$0xff]
    %v590 = vld [vmem:[#allocation5 + $0x9d8] sm:$0xff]
    %v591 = vld [vmem:[#allocation5 + $0x9e0] sm:$0xff]
    %v592 = vld [vmem:[#allocation5 + $0x9e8] sm:$0xff]
    %v593 = vld [vmem:[#allocation5 + $0x9f0] sm:$0xff]
    %v594 = vld [vmem:[#allocation5 + $0x9f8] sm:$0xff]
    %v595 = vld [vmem:[#allocation5 + $0xa00] sm:$0xff]
    %v596 = vld [vmem:[#allocation5 + $0xa08] sm:$0xff]
    %v597 = vld [vmem:[#allocation5 + $0xa10] sm:$0xff]
    %v598 = vld [vmem:[#allocation5 + $0xa18] sm:$0xff]
    %v599 = vld [vmem:[#allocation5 + $0xa20] sm:$0xff]
    %v600 = vld [vmem:[#allocation5 + $0xa28] sm:$0xff]
    %v601 = vld [vmem:[#allocation5 + $0xa30] sm:$0xff]
    %v602 = vld [vmem:[#allocation5 + $0xa38] sm:$0xff]
    %v603 = vld [vmem:[#allocation5 + $0xa40] sm:$0xff]
    %v604 = vld [vmem:[#allocation5 + $0xa48] sm:$0xff]
    %v605 = vld [vmem:[#allocation5 + $0xa50] sm:$0xff]
    %v606 = vld [vmem:[#allocation5 + $0xa58] sm:$0xff]
    %v607 = vld [vmem:[#allocation5 + $0xa60] sm:$0xff]
    %v608 = vld [vmem:[#allocation5 + $0xa68] sm:$0xff]
    %v609 = vld [vmem:[#allocation5 + $0xa70] sm:$0xff]
    %v610 = vld [vmem:[#allocation5 + $0xa78] sm:$0xff]
    %v611 = vld [vmem:[#allocation5 + $0xa80] sm:$0xff]
    %v612 = vld [vmem:[#allocation5 + $0xa88] sm:$0xff]
    %v613 = vld [vmem:[#allocation5 + $0xa90] sm:$0xff]
    %v614 = vld [vmem:[#allocation5 + $0xa98] sm:$0xff]
    %v615 = vld [vmem:[#allocation5 + $0xaa0] sm:$0xff]
    %v616 = vld [vmem:[#allocation5 + $0xaa8] sm:$0xff]
    %v617 = vld [vmem:[#allocation5 + $0xab0] sm:$0xff]
    %v618 = vld [vmem:[#allocation5 + $0xab8] sm:$0xff]
    %v619 = vld [vmem:[#allocation5 + $0xac0] sm:$0xff]
    %v620 = vld [vmem:[#allocation5 + $0xac8] sm:$0xff]
    %v621 = vld [vmem:[#allocation5 + $0xad0] sm:$0xff]
    %v622 = vld [vmem:[#allocation5 + $0xad8] sm:$0xff]
    %v623 = vld [vmem:[#allocation5 + $0xae0] sm:$0xff]
    %v624 = vld [vmem:[#allocation5 + $0xae8] sm:$0xff]
    %v625 = vld [vmem:[#allocation5 + $0xaf0] sm:$0xff]
    %v626 = vld [vmem:[#allocation5 + $0xaf8] sm:$0xff]
    %v627 = vld [vmem:[#allocation5 + $0xb00] sm:$0xff]
    %v628 = vld [vmem:[#allocation5 + $0xb08] sm:$0xff]
    %v629 = vld [vmem:[#allocation5 + $0xb10] sm:$0xff]
    %v630 = vld [vmem:[#allocation5 + $0xb18] sm:$0xff]
    %v631 = vld [vmem:[#allocation5 + $0xb20] sm:$0xff]
    %v632 = vld [vmem:[#allocation5 + $0xb28] sm:$0xff]
    %v633 = vld [vmem:[#allocation5 + $0xb30] sm:$0xff]
    %v634 = vld [vmem:[#allocation5 + $0xb38] sm:$0xff]
    %v635 = vld [vmem:[#allocation5 + $0xb40] sm:$0xff]
    %v636 = vld [vmem:[#allocation5 + $0xb48] sm:$0xff]
    %v637 = vld [vmem:[#allocation5 + $0xb50] sm:$0xff]
    %v638 = vld [vmem:[#allocation5 + $0xb58] sm:$0xff]
    %v639 = vld [vmem:[#allocation5 + $0xb60] sm:$0xff]
    %v640 = vld [vmem:[#allocation5 + $0xb68] sm:$0xff]
    %v641 = vld [vmem:[#allocation5 + $0xb70] sm:$0xff]
    %v642 = vld [vmem:[#allocation5 + $0xb78] sm:$0xff]
    %v643 = vld [vmem:[#allocation5 + $0xb80] sm:$0xff]
    %v644 = vld [vmem:[#allocation5 + $0xb88] sm:$0xff]
    %v645 = vld [vmem:[#allocation5 + $0xb90] sm:$0xff]
    %v646 = vld [vmem:[#allocation5 + $0xb98] sm:$0xff]
    %v647 = vld [vmem:[#allocation5 + $0xba0] sm:$0xff]
    %v648 = vld [vmem:[#allocation5 + $0xba8] sm:$0xff]
    %v649 = vld [vmem:[#allocation5 + $0xbb0] sm:$0xff]
    %v650 = vld [vmem:[#allocation5 + $0xbb8] sm:$0xff]
    %v651 = vld [vmem:[#allocation5 + $0xbc0] sm:$0xff]
    %v652 = vld [vmem:[#allocation5 + $0xbc8] sm:$0xff]
    %v653 = vld [vmem:[#allocation5 + $0xbd0] sm:$0xff]
    %v654 = vld [vmem:[#allocation5 + $0xbd8] sm:$0xff]
    %v655 = vld [vmem:[#allocation5 + $0xbe0] sm:$0xff]
    %v656 = vld [vmem:[#allocation5 + $0xbe8] sm:$0xff]
    %v657 = vld [vmem:[#allocation5 + $0xbf0] sm:$0xff]
    %v658 = vld [vmem:[#allocation5 + $0xbf8] sm:$0xff]
    %v659 = vld [vmem:[#allocation5 + $0xc00] sm:$0xff]
    %v660 = vld [vmem:[#allocation5 + $0xc08] sm:$0xff]
    %v661 = vld [vmem:[#allocation5 + $0xc10] sm:$0xff]
    %v662 = vld [vmem:[#allocation5 + $0xc18] sm:$0xff]
    %v663 = vld [vmem:[#allocation5 + $0xc20] sm:$0xff]
    %v664 = vld [vmem:[#allocation5 + $0xc28] sm:$0xff]
    %v665 = vld [vmem:[#allocation5 + $0xc30] sm:$0xff]
    %v666 = vld [vmem:[#allocation5 + $0xc38] sm:$0xff]
    %v667 = vld [vmem:[#allocation5 + $0xc40] sm:$0xff]
    %v668 = vld [vmem:[#allocation5 + $0xc48] sm:$0xff]
    %v669 = vld [vmem:[#allocation5 + $0xc50] sm:$0xff]
    %v670 = vld [vmem:[#allocation5 + $0xc58] sm:$0xff]
    %v671 = vld [vmem:[#allocation5 + $0xc60] sm:$0xff]
    %v672 = vld [vmem:[#allocation5 + $0xc68] sm:$0xff]
    %v673 = vld [vmem:[#allocation5 + $0xc70] sm:$0xff]
    %v674 = vld [vmem:[#allocation5 + $0xc78] sm:$0xff]
    %v675 = vld [vmem:[#allocation5 + $0xc80] sm:$0xff]
    %v676 = vld [vmem:[#allocation5 + $0xc88] sm:$0xff]
    %v677 = vld [vmem:[#allocation5 + $0xc90] sm:$0xff]
    %v678 = vld [vmem:[#allocation5 + $0xc98] sm:$0xff]
    %v679 = vld [vmem:[#allocation5 + $0xca0] sm:$0xff]
    %v680 = vld [vmem:[#allocation5 + $0xca8] sm:$0xff]
    %v681 = vld [vmem:[#allocation5 + $0xcb0] sm:$0xff]
    %v682 = vld [vmem:[#allocation5 + $0xcb8] sm:$0xff]
    %v683 = vld [vmem:[#allocation5 + $0xcc0] sm:$0xff]
    %v684 = vld [vmem:[#allocation5 + $0xcc8] sm:$0xff]
    %v685 = vld [vmem:[#allocation5 + $0xcd0] sm:$0xff]
    %v686 = vld [vmem:[#allocation5 + $0xcd8] sm:$0xff]
    %v687 = vld [vmem:[#allocation5 + $0xce0] sm:$0xff]
    %v688 = vld [vmem:[#allocation5 + $0xce8] sm:$0xff]
    %v689 = vld [vmem:[#allocation5 + $0xcf0] sm:$0xff]
    %v690 = vld [vmem:[#allocation5 + $0xcf8] sm:$0xff]
    %v691 = vld [vmem:[#allocation5 + $0xd00] sm:$0xff]
    %v692 = vld [vmem:[#allocation5 + $0xd08] sm:$0xff]
    %v693 = vld [vmem:[#allocation5 + $0xd10] sm:$0xff]
    %v694 = vld [vmem:[#allocation5 + $0xd18] sm:$0xff]
    %v695 = vld [vmem:[#allocation5 + $0xd20] sm:$0xff]
    %v696 = vld [vmem:[#allocation5 + $0xd28] sm:$0xff]
    %v697 = vld [vmem:[#allocation5 + $0xd30] sm:$0xff]
    %v698 = vld [vmem:[#allocation5 + $0xd38] sm:$0xff]
    %v699 = vld [vmem:[#allocation5 + $0xd40] sm:$0xff]
    %v700 = vld [vmem:[#allocation5 + $0xd48] sm:$0xff]
    %v701 = vld [vmem:[#allocation5 + $0xd50] sm:$0xff]
    %v702 = vld [vmem:[#allocation5 + $0xd58] sm:$0xff]
    %v703 = vld [vmem:[#allocation5 + $0xd60] sm:$0xff]
    %v704 = vld [vmem:[#allocation5 + $0xd68] sm:$0xff]
    %v705 = vld [vmem:[#allocation5 + $0xd70] sm:$0xff]
    %v706 = vld [vmem:[#allocation5 + $0xd78] sm:$0xff]
    %v707 = vld [vmem:[#allocation5 + $0xd80] sm:$0xff]
    %v708 = vld [vmem:[#allocation5 + $0xd88] sm:$0xff]
    %v709 = vld [vmem:[#allocation5 + $0xd90] sm:$0xff]
    %v710 = vld [vmem:[#allocation5 + $0xd98] sm:$0xff]
    %v711 = vld [vmem:[#allocation5 + $0xda0] sm:$0xff]
    %v712 = vld [vmem:[#allocation5 + $0xda8] sm:$0xff]
    %v713 = vld [vmem:[#allocation5 + $0xdb0] sm:$0xff]
    %v714 = vld [vmem:[#allocation5 + $0xdb8] sm:$0xff]
    %v715 = vld [vmem:[#allocation5 + $0xdc0] sm:$0xff]
    %v716 = vld [vmem:[#allocation5 + $0xdc8] sm:$0xff]
    %v717 = vld [vmem:[#allocation5 + $0xdd0] sm:$0xff]
    %v718 = vld [vmem:[#allocation5 + $0xdd8] sm:$0xff]
    %v719 = vld [vmem:[#allocation5 + $0xde0] sm:$0xff]
    %v720 = vld [vmem:[#allocation5 + $0xde8] sm:$0xff]
    %v721 = vld [vmem:[#allocation5 + $0xdf0] sm:$0xff]
    %v722 = vld [vmem:[#allocation5 + $0xdf8] sm:$0xff]
    %v723 = vld [vmem:[#allocation7] sm:$0xff]
    %v728 = vunpack.c.l.b16 %v271
    %v729 = vunpack.c.h.b16 %v271
    %v730 = vunpack.c.l.b16 %v272
    %v731 = vunpack.c.h.b16 %v272
    %v732 = vunpack.c.l.b16 %v273
    %v733 = vunpack.c.h.b16 %v273
    %v734 = vunpack.c.l.b16 %v274
    %v735 = vpack.c.b16 %v728, %v728
    %v736 = vpack.c.b16 %v729, %v729
    %v737 = vpack.c.b16 %v730, %v730
    %v738 = vpack.c.b16 %v731, %v731
    %v739 = vpack.c.b16 %v732, %v732
    %v740 = vpack.c.b16 %v733, %v733
    %v741 = vpack.c.b16 %v734, %v734
    %v1197 = vunpack.c.l.b16 %v275
    %v1198 = vunpack.c.h.b16 %v275
    %v1199 = vunpack.c.l.b16 %v276
    %v1200 = vunpack.c.h.b16 %v276
    %v1201 = vunpack.c.l.b16 %v277
    %v1202 = vunpack.c.h.b16 %v277
    %v1203 = vunpack.c.l.b16 %v278
    %v1204 = vunpack.c.h.b16 %v278
    %v1205 = vunpack.c.l.b16 %v279
    %v1206 = vunpack.c.h.b16 %v279
    %v1207 = vunpack.c.l.b16 %v280
    %v1208 = vunpack.c.h.b16 %v280
    %v1209 = vunpack.c.l.b16 %v281
    %v1210 = vunpack.c.h.b16 %v281
    %v1211 = vunpack.c.l.b16 %v282
    %v1212 = vunpack.c.h.b16 %v282
    %v1213 = vunpack.c.l.b16 %v283
    %v1214 = vunpack.c.h.b16 %v283
    %v1215 = vunpack.c.l.b16 %v284
    %v1216 = vunpack.c.h.b16 %v284
    %v1217 = vunpack.c.l.b16 %v285
    %v1218 = vunpack.c.h.b16 %v285
    %v1219 = vunpack.c.l.b16 %v286
    %v1220 = vunpack.c.h.b16 %v286
    %v1221 = vunpack.c.l.b16 %v287
    %v1222 = vunpack.c.h.b16 %v287
    %v1223 = vunpack.c.l.b16 %v288
    %v1224 = vunpack.c.h.b16 %v288
    %v1225 = vunpack.c.l.b16 %v289
    %v1226 = vunpack.c.h.b16 %v289
    %v1227 = vunpack.c.l.b16 %v290
    %v1228 = vunpack.c.h.b16 %v290
    %v1229 = vunpack.c.l.b16 %v291
    %v1230 = vunpack.c.h.b16 %v291
    %v1231 = vunpack.c.l.b16 %v292
    %v1232 = vunpack.c.h.b16 %v292
    %v1233 = vunpack.c.l.b16 %v293
    %v1234 = vunpack.c.h.b16 %v293
    %v1235 = vunpack.c.l.b16 %v294
    %v1236 = vunpack.c.h.b16 %v294
    %v1237 = vunpack.c.l.b16 %v295
    %v1238 = vunpack.c.h.b16 %v295
    %v1239 = vunpack.c.l.b16 %v296
    %v1240 = vunpack.c.h.b16 %v296
    %v1241 = vunpack.c.l.b16 %v297
    %v1242 = vunpack.c.h.b16 %v297
    %v1243 = vunpack.c.l.b16 %v298
    %v1244 = vunpack.c.h.b16 %v298
    %v1245 = vunpack.c.l.b16 %v299
    %v1246 = vunpack.c.h.b16 %v299
    %v1247 = vunpack.c.l.b16 %v300
    %v1248 = vunpack.c.h.b16 %v300
    %v1249 = vunpack.c.l.b16 %v301
    %v1250 = vunpack.c.h.b16 %v301
    %v1251 = vunpack.c.l.b16 %v302
    %v1252 = vunpack.c.h.b16 %v302
    %v1253 = vunpack.c.l.b16 %v303
    %v1254 = vunpack.c.h.b16 %v303
    %v1255 = vunpack.c.l.b16 %v304
    %v1256 = vunpack.c.h.b16 %v304
    %v1257 = vunpack.c.l.b16 %v305
    %v1258 = vunpack.c.h.b16 %v305
    %v1259 = vunpack.c.l.b16 %v306
    %v1260 = vunpack.c.h.b16 %v306
    %v1261 = vunpack.c.l.b16 %v307
    %v1262 = vunpack.c.h.b16 %v307
    %v1263 = vunpack.c.l.b16 %v308
    %v1264 = vunpack.c.h.b16 %v308
    %v1265 = vunpack.c.l.b16 %v309
    %v1266 = vunpack.c.h.b16 %v309
    %v1267 = vunpack.c.l.b16 %v310
    %v1268 = vunpack.c.h.b16 %v310
    %v1269 = vunpack.c.l.b16 %v311
    %v1270 = vunpack.c.h.b16 %v311
    %v1271 = vunpack.c.l.b16 %v312
    %v1272 = vunpack.c.h.b16 %v312
    %v1273 = vunpack.c.l.b16 %v313
    %v1274 = vunpack.c.h.b16 %v313
    %v1275 = vunpack.c.l.b16 %v314
    %v1276 = vunpack.c.h.b16 %v314
    %v1277 = vunpack.c.l.b16 %v315
    %v1278 = vunpack.c.h.b16 %v315
    %v1279 = vunpack.c.l.b16 %v316
    %v1280 = vunpack.c.h.b16 %v316
    %v1281 = vunpack.c.l.b16 %v317
    %v1282 = vunpack.c.h.b16 %v317
    %v1283 = vunpack.c.l.b16 %v318
    %v1284 = vunpack.c.h.b16 %v318
    %v1285 = vunpack.c.l.b16 %v319
    %v1286 = vunpack.c.h.b16 %v319
    %v1287 = vunpack.c.l.b16 %v320
    %v1288 = vunpack.c.h.b16 %v320
    %v1289 = vunpack.c.l.b16 %v321
    %v1290 = vunpack.c.h.b16 %v321
    %v1291 = vunpack.c.l.b16 %v322
    %v1292 = vunpack.c.h.b16 %v322
    %v1293 = vunpack.c.l.b16 %v323
    %v1294 = vunpack.c.h.b16 %v323
    %v1295 = vunpack.c.l.b16 %v324
    %v1296 = vunpack.c.h.b16 %v324
    %v1297 = vunpack.c.l.b16 %v325
    %v1298 = vunpack.c.h.b16 %v325
    %v1299 = vunpack.c.l.b16 %v326
    %v1300 = vunpack.c.h.b16 %v326
    %v1301 = vunpack.c.l.b16 %v327
    %v1302 = vunpack.c.h.b16 %v327
    %v1303 = vunpack.c.l.b16 %v328
    %v1304 = vunpack.c.h.b16 %v328
    %v1305 = vunpack.c.l.b16 %v329
    %v1306 = vunpack.c.h.b16 %v329
    %v1307 = vunpack.c.l.b16 %v330
    %v1308 = vunpack.c.h.b16 %v330
    %v1309 = vunpack.c.l.b16 %v331
    %v1310 = vunpack.c.h.b16 %v331
    %v1311 = vunpack.c.l.b16 %v332
    %v1312 = vunpack.c.h.b16 %v332
    %v1313 = vunpack.c.l.b16 %v333
    %v1314 = vunpack.c.h.b16 %v333
    %v1315 = vunpack.c.l.b16 %v334
    %v1316 = vunpack.c.h.b16 %v334
    %v1317 = vunpack.c.l.b16 %v335
    %v1318 = vunpack.c.h.b16 %v335
    %v1319 = vunpack.c.l.b16 %v336
    %v1320 = vunpack.c.h.b16 %v336
    %v1321 = vunpack.c.l.b16 %v337
    %v1322 = vunpack.c.h.b16 %v337
    %v1323 = vunpack.c.l.b16 %v338
    %v1324 = vunpack.c.h.b16 %v338
    %v1325 = vunpack.c.l.b16 %v339
    %v1326 = vunpack.c.h.b16 %v339
    %v1327 = vunpack.c.l.b16 %v340
    %v1328 = vunpack.c.h.b16 %v340
    %v1329 = vunpack.c.l.b16 %v341
    %v1330 = vunpack.c.h.b16 %v341
    %v1331 = vunpack.c.l.b16 %v342
    %v1332 = vunpack.c.h.b16 %v342
    %v1333 = vunpack.c.l.b16 %v343
    %v1334 = vunpack.c.h.b16 %v343
    %v1335 = vunpack.c.l.b16 %v344
    %v1336 = vunpack.c.h.b16 %v344
    %v1337 = vunpack.c.l.b16 %v345
    %v1338 = vunpack.c.h.b16 %v345
    %v1339 = vunpack.c.l.b16 %v346
    %v1340 = vunpack.c.h.b16 %v346
    %v1341 = vunpack.c.l.b16 %v347
    %v1342 = vunpack.c.h.b16 %v347
    %v1343 = vunpack.c.l.b16 %v348
    %v1344 = vunpack.c.h.b16 %v348
    %v1345 = vunpack.c.l.b16 %v349
    %v1346 = vunpack.c.h.b16 %v349
    %v1347 = vunpack.c.l.b16 %v350
    %v1348 = vunpack.c.h.b16 %v350
    %v1349 = vunpack.c.l.b16 %v351
    %v1350 = vunpack.c.h.b16 %v351
    %v1351 = vunpack.c.l.b16 %v352
    %v1352 = vunpack.c.h.b16 %v352
    %v1353 = vunpack.c.l.b16 %v353
    %v1354 = vunpack.c.h.b16 %v353
    %v1355 = vunpack.c.l.b16 %v354
    %v1356 = vunpack.c.h.b16 %v354
    %v1357 = vunpack.c.l.b16 %v355
    %v1358 = vunpack.c.h.b16 %v355
    %v1359 = vunpack.c.l.b16 %v356
    %v1360 = vunpack.c.h.b16 %v356
    %v1361 = vunpack.c.l.b16 %v357
    %v1362 = vunpack.c.h.b16 %v357
    %v1363 = vunpack.c.l.b16 %v358
    %v1364 = vunpack.c.h.b16 %v358
    %v1365 = vunpack.c.l.b16 %v359
    %v1366 = vunpack.c.h.b16 %v359
    %v1367 = vunpack.c.l.b16 %v360
    %v1368 = vunpack.c.h.b16 %v360
    %v1369 = vunpack.c.l.b16 %v361
    %v1370 = vunpack.c.h.b16 %v361
    %v1371 = vunpack.c.l.b16 %v362
    %v1372 = vunpack.c.h.b16 %v362
    %v1373 = vunpack.c.l.b16 %v363
    %v1374 = vunpack.c.h.b16 %v363
    %v1375 = vunpack.c.l.b16 %v364
    %v1376 = vunpack.c.h.b16 %v364
    %v1377 = vunpack.c.l.b16 %v365
    %v1378 = vunpack.c.h.b16 %v365
    %v1379 = vunpack.c.l.b16 %v366
    %v1380 = vunpack.c.h.b16 %v366
    %v1381 = vunpack.c.l.b16 %v367
    %v1382 = vunpack.c.h.b16 %v367
    %v1383 = vunpack.c.l.b16 %v368
    %v1384 = vunpack.c.h.b16 %v368
    %v1385 = vunpack.c.l.b16 %v369
    %v1386 = vunpack.c.h.b16 %v369
    %v1387 = vunpack.c.l.b16 %v370
    %v1388 = vunpack.c.h.b16 %v370
    %v1389 = vunpack.c.l.b16 %v371
    %v1390 = vunpack.c.h.b16 %v371
    %v1391 = vunpack.c.l.b16 %v372
    %v1392 = vunpack.c.h.b16 %v372
    %v1393 = vunpack.c.l.b16 %v373
    %v1394 = vunpack.c.h.b16 %v373
    %v1395 = vunpack.c.l.b16 %v374
    %v1396 = vunpack.c.h.b16 %v374
    %v1397 = vunpack.c.l.b16 %v375
    %v1398 = vunpack.c.h.b16 %v375
    %v1399 = vunpack.c.l.b16 %v376
    %v1400 = vunpack.c.h.b16 %v376
    %v1401 = vunpack.c.l.b16 %v377
    %v1402 = vunpack.c.h.b16 %v377
    %v1403 = vunpack.c.l.b16 %v378
    %v1404 = vunpack.c.h.b16 %v378
    %v1405 = vunpack.c.l.b16 %v379
    %v1406 = vunpack.c.h.b16 %v379
    %v1407 = vunpack.c.l.b16 %v380
    %v1408 = vunpack.c.h.b16 %v380
    %v1409 = vunpack.c.l.b16 %v381
    %v1410 = vunpack.c.h.b16 %v381
    %v1411 = vunpack.c.l.b16 %v382
    %v1412 = vunpack.c.h.b16 %v382
    %v1413 = vunpack.c.l.b16 %v383
    %v1414 = vunpack.c.h.b16 %v383
    %v1415 = vunpack.c.l.b16 %v384
    %v1416 = vunpack.c.h.b16 %v384
    %v1417 = vunpack.c.l.b16 %v385
    %v1418 = vunpack.c.h.b16 %v385
    %v1419 = vunpack.c.l.b16 %v386
    %v1420 = vunpack.c.h.b16 %v386
    %v1421 = vunpack.c.l.b16 %v387
    %v1422 = vunpack.c.h.b16 %v387
    %v1423 = vunpack.c.l.b16 %v388
    %v1424 = vunpack.c.h.b16 %v388
    %v1425 = vunpack.c.l.b16 %v389
    %v1426 = vunpack.c.h.b16 %v389
    %v1427 = vunpack.c.l.b16 %v390
    %v1428 = vunpack.c.h.b16 %v390
    %v1429 = vunpack.c.l.b16 %v391
    %v1430 = vunpack.c.h.b16 %v391
    %v1431 = vunpack.c.l.b16 %v392
    %v1432 = vunpack.c.h.b16 %v392
    %v1433 = vunpack.c.l.b16 %v393
    %v1434 = vunpack.c.h.b16 %v393
    %v1435 = vunpack.c.l.b16 %v394
    %v1436 = vunpack.c.h.b16 %v394
    %v1437 = vunpack.c.l.b16 %v395
    %v1438 = vunpack.c.h.b16 %v395
    %v1439 = vunpack.c.l.b16 %v396
    %v1440 = vunpack.c.h.b16 %v396
    %v1441 = vunpack.c.l.b16 %v397
    %v1442 = vunpack.c.h.b16 %v397
    %v1443 = vunpack.c.l.b16 %v398
    %v1444 = vunpack.c.h.b16 %v398
    %v1445 = vunpack.c.l.b16 %v399
    %v1446 = vunpack.c.h.b16 %v399
    %v1447 = vunpack.c.l.b16 %v400
    %v1448 = vunpack.c.h.b16 %v400
    %v1449 = vunpack.c.l.b16 %v401
    %v1450 = vunpack.c.h.b16 %v401
    %v1451 = vunpack.c.l.b16 %v402
    %v1452 = vunpack.c.h.b16 %v402
    %v1453 = vunpack.c.l.b16 %v403
    %v1454 = vunpack.c.h.b16 %v403
    %v1455 = vunpack.c.l.b16 %v404
    %v1456 = vunpack.c.h.b16 %v404
    %v1457 = vunpack.c.l.b16 %v405
    %v1458 = vunpack.c.h.b16 %v405
    %v1459 = vunpack.c.l.b16 %v406
    %v1460 = vunpack.c.h.b16 %v406
    %v1461 = vunpack.c.l.b16 %v407
    %v1462 = vunpack.c.h.b16 %v407
    %v1463 = vunpack.c.l.b16 %v408
    %v1464 = vunpack.c.h.b16 %v408
    %v1465 = vunpack.c.l.b16 %v409
    %v1466 = vunpack.c.h.b16 %v409
    %v1467 = vunpack.c.l.b16 %v410
    %v1468 = vunpack.c.h.b16 %v410
    %v1469 = vunpack.c.l.b16 %v411
    %v1470 = vunpack.c.h.b16 %v411
    %v1471 = vunpack.c.l.b16 %v412
    %v1472 = vunpack.c.h.b16 %v412
    %v1473 = vunpack.c.l.b16 %v413
    %v1474 = vunpack.c.h.b16 %v413
    %v1475 = vunpack.c.l.b16 %v414
    %v1476 = vunpack.c.h.b16 %v414
    %v1477 = vunpack.c.l.b16 %v415
    %v1478 = vunpack.c.h.b16 %v415
    %v1479 = vunpack.c.l.b16 %v416
    %v1480 = vunpack.c.h.b16 %v416
    %v1481 = vunpack.c.l.b16 %v417
    %v1482 = vunpack.c.h.b16 %v417
    %v1483 = vunpack.c.l.b16 %v418
    %v1484 = vunpack.c.h.b16 %v418
    %v1485 = vunpack.c.l.b16 %v419
    %v1486 = vunpack.c.h.b16 %v419
    %v1487 = vunpack.c.l.b16 %v420
    %v1488 = vunpack.c.h.b16 %v420
    %v1489 = vunpack.c.l.b16 %v421
    %v1490 = vunpack.c.h.b16 %v421
    %v1491 = vunpack.c.l.b16 %v422
    %v1492 = vunpack.c.h.b16 %v422
    %v1493 = vunpack.c.l.b16 %v423
    %v1494 = vunpack.c.h.b16 %v423
    %v1495 = vunpack.c.l.b16 %v424
    %v1496 = vunpack.c.h.b16 %v424
    %v1497 = vunpack.c.l.b16 %v425
    %v1498 = vunpack.c.h.b16 %v425
    %v1499 = vunpack.c.l.b16 %v426
    %v1500 = vunpack.c.h.b16 %v426
    %v1501 = vunpack.c.l.b16 %v427
    %v1502 = vunpack.c.h.b16 %v427
    %v1503 = vunpack.c.l.b16 %v428
    %v1504 = vunpack.c.h.b16 %v428
    %v1505 = vunpack.c.l.b16 %v429
    %v1506 = vunpack.c.h.b16 %v429
    %v1507 = vunpack.c.l.b16 %v430
    %v1508 = vunpack.c.h.b16 %v430
    %v1509 = vunpack.c.l.b16 %v431
    %v1510 = vunpack.c.h.b16 %v431
    %v1511 = vunpack.c.l.b16 %v432
    %v1512 = vunpack.c.h.b16 %v432
    %v1513 = vunpack.c.l.b16 %v433
    %v1514 = vunpack.c.h.b16 %v433
    %v1515 = vunpack.c.l.b16 %v434
    %v1516 = vunpack.c.h.b16 %v434
    %v1517 = vunpack.c.l.b16 %v435
    %v1518 = vunpack.c.h.b16 %v435
    %v1519 = vunpack.c.l.b16 %v436
    %v1520 = vunpack.c.h.b16 %v436
    %v1521 = vunpack.c.l.b16 %v437
    %v1522 = vunpack.c.h.b16 %v437
    %v1523 = vunpack.c.l.b16 %v438
    %v1524 = vunpack.c.h.b16 %v438
    %v1525 = vunpack.c.l.b16 %v439
    %v1526 = vunpack.c.h.b16 %v439
    %v1527 = vunpack.c.l.b16 %v440
    %v1528 = vunpack.c.h.b16 %v440
    %v1529 = vunpack.c.l.b16 %v441
    %v1530 = vunpack.c.h.b16 %v441
    %v1531 = vunpack.c.l.b16 %v442
    %v1532 = vunpack.c.h.b16 %v442
    %v1533 = vunpack.c.l.b16 %v443
    %v1534 = vunpack.c.h.b16 %v443
    %v1535 = vunpack.c.l.b16 %v444
    %v1536 = vunpack.c.h.b16 %v444
    %v1537 = vunpack.c.l.b16 %v445
    %v1538 = vunpack.c.h.b16 %v445
    %v1539 = vunpack.c.l.b16 %v446
    %v1540 = vunpack.c.h.b16 %v446
    %v1541 = vunpack.c.l.b16 %v447
    %v1542 = vunpack.c.h.b16 %v447
    %v1543 = vunpack.c.l.b16 %v448
    %v1544 = vunpack.c.h.b16 %v448
    %v1545 = vunpack.c.l.b16 %v449
    %v1546 = vunpack.c.h.b16 %v449
    %v1547 = vunpack.c.l.b16 %v450
    %v1548 = vunpack.c.h.b16 %v450
    %v1549 = vunpack.c.l.b16 %v451
    %v1550 = vunpack.c.h.b16 %v451
    %v1551 = vunpack.c.l.b16 %v452
    %v1552 = vunpack.c.h.b16 %v452
    %v1553 = vunpack.c.l.b16 %v453
    %v1554 = vunpack.c.h.b16 %v453
    %v1555 = vunpack.c.l.b16 %v454
    %v1556 = vunpack.c.h.b16 %v454
    %v1557 = vunpack.c.l.b16 %v455
    %v1558 = vunpack.c.h.b16 %v455
    %v1559 = vunpack.c.l.b16 %v456
    %v1560 = vunpack.c.h.b16 %v456
    %v1561 = vunpack.c.l.b16 %v457
    %v1562 = vunpack.c.h.b16 %v457
    %v1563 = vunpack.c.l.b16 %v458
    %v1564 = vunpack.c.h.b16 %v458
    %v1565 = vunpack.c.l.b16 %v459
    %v1566 = vunpack.c.h.b16 %v459
    %v1567 = vunpack.c.l.b16 %v460
    %v1568 = vunpack.c.h.b16 %v460
    %v1569 = vunpack.c.l.b16 %v461
    %v1570 = vunpack.c.h.b16 %v461
    %v1571 = vunpack.c.l.b16 %v462
    %v1572 = vunpack.c.h.b16 %v462
    %v1573 = vunpack.c.l.b16 %v463
    %v1574 = vunpack.c.h.b16 %v463
    %v1575 = vunpack.c.l.b16 %v464
    %v1576 = vunpack.c.h.b16 %v464
    %v1577 = vunpack.c.l.b16 %v465
    %v1578 = vunpack.c.h.b16 %v465
    %v1579 = vunpack.c.l.b16 %v466
    %v1580 = vunpack.c.h.b16 %v466
    %v1581 = vunpack.c.l.b16 %v467
    %v1582 = vunpack.c.h.b16 %v467
    %v1583 = vunpack.c.l.b16 %v468
    %v1584 = vunpack.c.h.b16 %v468
    %v1585 = vunpack.c.l.b16 %v469
    %v1586 = vunpack.c.h.b16 %v469
    %v1587 = vunpack.c.l.b16 %v470
    %v1588 = vunpack.c.h.b16 %v470
    %v1589 = vunpack.c.l.b16 %v471
    %v1590 = vunpack.c.h.b16 %v471
    %v1591 = vunpack.c.l.b16 %v472
    %v1592 = vunpack.c.h.b16 %v472
    %v1593 = vunpack.c.l.b16 %v473
    %v1594 = vunpack.c.h.b16 %v473
    %v1595 = vunpack.c.l.b16 %v474
    %v1596 = vunpack.c.h.b16 %v474
    %v1597 = vunpack.c.l.b16 %v475
    %v1598 = vunpack.c.h.b16 %v475
    %v1599 = vunpack.c.l.b16 %v476
    %v1600 = vunpack.c.h.b16 %v476
    %v1601 = vunpack.c.l.b16 %v477
    %v1602 = vunpack.c.h.b16 %v477
    %v1603 = vunpack.c.l.b16 %v478
    %v1604 = vunpack.c.h.b16 %v478
    %v1605 = vunpack.c.l.b16 %v479
    %v1606 = vunpack.c.h.b16 %v479
    %v1607 = vunpack.c.l.b16 %v480
    %v1608 = vunpack.c.h.b16 %v480
    %v1609 = vunpack.c.l.b16 %v481
    %v1610 = vunpack.c.h.b16 %v481
    %v1611 = vunpack.c.l.b16 %v482
    %v1612 = vunpack.c.h.b16 %v482
    %v1613 = vunpack.c.l.b16 %v483
    %v1614 = vunpack.c.h.b16 %v483
    %v1615 = vunpack.c.l.b16 %v484
    %v1616 = vunpack.c.h.b16 %v484
    %v1617 = vunpack.c.l.b16 %v485
    %v1618 = vunpack.c.h.b16 %v485
    %v1619 = vunpack.c.l.b16 %v486
    %v1620 = vunpack.c.h.b16 %v486
    %v1621 = vunpack.c.l.b16 %v487
    %v1622 = vunpack.c.h.b16 %v487
    %v1623 = vunpack.c.l.b16 %v488
    %v1624 = vunpack.c.h.b16 %v488
    %v1625 = vunpack.c.l.b16 %v489
    %v1626 = vunpack.c.h.b16 %v489
    %v1627 = vunpack.c.l.b16 %v490
    %v1628 = vunpack.c.h.b16 %v490
    %v1629 = vunpack.c.l.b16 %v491
    %v1630 = vunpack.c.h.b16 %v491
    %v1631 = vunpack.c.l.b16 %v492
    %v1632 = vunpack.c.h.b16 %v492
    %v1633 = vunpack.c.l.b16 %v493
    %v1634 = vunpack.c.h.b16 %v493
    %v1635 = vunpack.c.l.b16 %v494
    %v1636 = vunpack.c.h.b16 %v494
    %v1637 = vunpack.c.l.b16 %v495
    %v1638 = vunpack.c.h.b16 %v495
    %v1639 = vunpack.c.l.b16 %v496
    %v1640 = vunpack.c.h.b16 %v496
    %v1641 = vunpack.c.l.b16 %v497
    %v1642 = vunpack.c.h.b16 %v497
    %v1643 = vunpack.c.l.b16 %v498
    %v1644 = vunpack.c.h.b16 %v498
    %v1645 = vunpack.c.l.b16 %v499
    %v1646 = vunpack.c.h.b16 %v499
    %v1647 = vunpack.c.l.b16 %v500
    %v1648 = vunpack.c.h.b16 %v500
    %v1649 = vunpack.c.l.b16 %v501
    %v1650 = vunpack.c.h.b16 %v501
    %v1651 = vunpack.c.l.b16 %v502
    %v1652 = vunpack.c.h.b16 %v502
    %v1653 = vunpack.c.l.b16 %v503
    %v1654 = vunpack.c.h.b16 %v503
    %v1655 = vunpack.c.l.b16 %v504
    %v1656 = vunpack.c.h.b16 %v504
    %v1657 = vunpack.c.l.b16 %v505
    %v1658 = vunpack.c.h.b16 %v505
    %v1659 = vunpack.c.l.b16 %v506
    %v1660 = vunpack.c.h.b16 %v506
    %v1661 = vunpack.c.l.b16 %v507
    %v1662 = vunpack.c.h.b16 %v507
    %v1663 = vunpack.c.l.b16 %v508
    %v1664 = vunpack.c.h.b16 %v508
    %v1665 = vunpack.c.l.b16 %v509
    %v1666 = vunpack.c.h.b16 %v509
    %v1667 = vunpack.c.l.b16 %v510
    %v1668 = vunpack.c.h.b16 %v510
    %v1669 = vunpack.c.l.b16 %v511
    %v1670 = vunpack.c.h.b16 %v511
    %v1671 = vunpack.c.l.b16 %v512
    %v1672 = vunpack.c.h.b16 %v512
    %v1673 = vunpack.c.l.b16 %v513
    %v1674 = vunpack.c.h.b16 %v513
    %v1675 = vunpack.c.l.b16 %v514
    %v1676 = vunpack.c.h.b16 %v514
    %v1677 = vunpack.c.l.b16 %v515
    %v1678 = vunpack.c.h.b16 %v515
    %v1679 = vunpack.c.l.b16 %v516
    %v1680 = vunpack.c.h.b16 %v516
    %v1681 = vunpack.c.l.b16 %v517
    %v1682 = vunpack.c.h.b16 %v517
    %v1683 = vunpack.c.l.b16 %v518
    %v1684 = vunpack.c.h.b16 %v518
    %v1685 = vunpack.c.l.b16 %v519
    %v1686 = vunpack.c.h.b16 %v519
    %v1687 = vunpack.c.l.b16 %v520
    %v1688 = vunpack.c.h.b16 %v520
    %v1689 = vunpack.c.l.b16 %v521
    %v1690 = vunpack.c.h.b16 %v521
    %v1691 = vunpack.c.l.b16 %v522
    %v1692 = vunpack.c.h.b16 %v522
    %v1693 = vunpack.c.l.b16 %v523
    %v1694 = vunpack.c.h.b16 %v523
    %v1695 = vunpack.c.l.b16 %v524
    %v1696 = vunpack.c.h.b16 %v524
    %v1697 = vunpack.c.l.b16 %v525
    %v1698 = vunpack.c.h.b16 %v525
    %v1699 = vunpack.c.l.b16 %v526
    %v1700 = vunpack.c.h.b16 %v526
    %v1701 = vunpack.c.l.b16 %v527
    %v1702 = vunpack.c.h.b16 %v527
    %v1703 = vunpack.c.l.b16 %v528
    %v1704 = vunpack.c.h.b16 %v528
    %v1705 = vunpack.c.l.b16 %v529
    %v1706 = vunpack.c.h.b16 %v529
    %v1707 = vunpack.c.l.b16 %v530
    %v1708 = vunpack.c.h.b16 %v530
    %v1709 = vunpack.c.l.b16 %v531
    %v1710 = vunpack.c.h.b16 %v531
    %v1711 = vunpack.c.l.b16 %v532
    %v1712 = vunpack.c.h.b16 %v532
    %v1713 = vunpack.c.l.b16 %v533
    %v1714 = vunpack.c.h.b16 %v533
    %v1715 = vunpack.c.l.b16 %v534
    %v1716 = vunpack.c.h.b16 %v534
    %v1717 = vunpack.c.l.b16 %v535
    %v1718 = vunpack.c.h.b16 %v535
    %v1719 = vunpack.c.l.b16 %v536
    %v1720 = vunpack.c.h.b16 %v536
    %v1721 = vunpack.c.l.b16 %v537
    %v1722 = vunpack.c.h.b16 %v537
    %v1723 = vunpack.c.l.b16 %v538
    %v1724 = vunpack.c.h.b16 %v538
    %v1725 = vunpack.c.l.b16 %v539
    %v1726 = vunpack.c.h.b16 %v539
    %v1727 = vunpack.c.l.b16 %v540
    %v1728 = vunpack.c.h.b16 %v540
    %v1729 = vunpack.c.l.b16 %v541
    %v1730 = vunpack.c.h.b16 %v541
    %v1731 = vunpack.c.l.b16 %v542
    %v1732 = vunpack.c.h.b16 %v542
    %v1733 = vunpack.c.l.b16 %v543
    %v1734 = vunpack.c.h.b16 %v543
    %v1735 = vunpack.c.l.b16 %v544
    %v1736 = vunpack.c.h.b16 %v544
    %v1737 = vunpack.c.l.b16 %v545
    %v1738 = vunpack.c.h.b16 %v545
    %v1739 = vunpack.c.l.b16 %v546
    %v1740 = vunpack.c.h.b16 %v546
    %v1741 = vunpack.c.l.b16 %v547
    %v1742 = vunpack.c.h.b16 %v547
    %v1743 = vunpack.c.l.b16 %v548
    %v1744 = vunpack.c.h.b16 %v548
    %v1745 = vunpack.c.l.b16 %v549
    %v1746 = vunpack.c.h.b16 %v549
    %v1747 = vunpack.c.l.b16 %v550
    %v1748 = vunpack.c.h.b16 %v550
    %v1749 = vunpack.c.l.b16 %v551
    %v1750 = vunpack.c.h.b16 %v551
    %v1751 = vunpack.c.l.b16 %v552
    %v1752 = vunpack.c.h.b16 %v552
    %v1753 = vunpack.c.l.b16 %v553
    %v1754 = vunpack.c.h.b16 %v553
    %v1755 = vunpack.c.l.b16 %v554
    %v1756 = vunpack.c.h.b16 %v554
    %v1757 = vunpack.c.l.b16 %v555
    %v1758 = vunpack.c.h.b16 %v555
    %v1759 = vunpack.c.l.b16 %v556
    %v1760 = vunpack.c.h.b16 %v556
    %v1761 = vunpack.c.l.b16 %v557
    %v1762 = vunpack.c.h.b16 %v557
    %v1763 = vunpack.c.l.b16 %v558
    %v1764 = vunpack.c.h.b16 %v558
    %v1765 = vunpack.c.l.b16 %v559
    %v1766 = vunpack.c.h.b16 %v559
    %v1767 = vunpack.c.l.b16 %v560
    %v1768 = vunpack.c.h.b16 %v560
    %v1769 = vunpack.c.l.b16 %v561
    %v1770 = vunpack.c.h.b16 %v561
    %v1771 = vunpack.c.l.b16 %v562
    %v1772 = vunpack.c.h.b16 %v562
    %v1773 = vunpack.c.l.b16 %v563
    %v1774 = vunpack.c.h.b16 %v563
    %v1775 = vunpack.c.l.b16 %v564
    %v1776 = vunpack.c.h.b16 %v564
    %v1777 = vunpack.c.l.b16 %v565
    %v1778 = vunpack.c.h.b16 %v565
    %v1779 = vunpack.c.l.b16 %v566
    %v1780 = vunpack.c.h.b16 %v566
    %v1781 = vunpack.c.l.b16 %v567
    %v1782 = vunpack.c.h.b16 %v567
    %v1783 = vunpack.c.l.b16 %v568
    %v1784 = vunpack.c.h.b16 %v568
    %v1785 = vunpack.c.l.b16 %v569
    %v1786 = vunpack.c.h.b16 %v569
    %v1787 = vunpack.c.l.b16 %v570
    %v1788 = vunpack.c.h.b16 %v570
    %v1789 = vunpack.c.l.b16 %v571
    %v1790 = vunpack.c.h.b16 %v571
    %v1791 = vunpack.c.l.b16 %v572
    %v1792 = vunpack.c.h.b16 %v572
    %v1793 = vunpack.c.l.b16 %v573
    %v1794 = vunpack.c.h.b16 %v573
    %v1795 = vunpack.c.l.b16 %v574
    %v1796 = vunpack.c.h.b16 %v574
    %v1797 = vunpack.c.l.b16 %v575
    %v1798 = vunpack.c.h.b16 %v575
    %v1799 = vunpack.c.l.b16 %v576
    %v1800 = vunpack.c.h.b16 %v576
    %v1801 = vunpack.c.l.b16 %v577
    %v1802 = vunpack.c.h.b16 %v577
    %v1803 = vunpack.c.l.b16 %v578
    %v1804 = vunpack.c.h.b16 %v578
    %v1805 = vunpack.c.l.b16 %v579
    %v1806 = vunpack.c.h.b16 %v579
    %v1807 = vunpack.c.l.b16 %v580
    %v1808 = vunpack.c.h.b16 %v580
    %v1809 = vunpack.c.l.b16 %v581
    %v1810 = vunpack.c.h.b16 %v581
    %v1811 = vunpack.c.l.b16 %v582
    %v1812 = vunpack.c.h.b16 %v582
    %v1813 = vunpack.c.l.b16 %v583
    %v1814 = vunpack.c.h.b16 %v583
    %v1815 = vunpack.c.l.b16 %v584
    %v1816 = vunpack.c.h.b16 %v584
    %v1817 = vunpack.c.l.b16 %v585
    %v1818 = vunpack.c.h.b16 %v585
    %v1819 = vunpack.c.l.b16 %v586
    %v1820 = vunpack.c.h.b16 %v586
    %v1821 = vunpack.c.l.b16 %v587
    %v1822 = vunpack.c.h.b16 %v587
    %v1823 = vunpack.c.l.b16 %v588
    %v1824 = vunpack.c.h.b16 %v588
    %v1825 = vunpack.c.l.b16 %v589
    %v1826 = vunpack.c.h.b16 %v589
    %v1827 = vunpack.c.l.b16 %v590
    %v1828 = vunpack.c.h.b16 %v590
    %v1829 = vunpack.c.l.b16 %v591
    %v1830 = vunpack.c.h.b16 %v591
    %v1831 = vunpack.c.l.b16 %v592
    %v1832 = vunpack.c.h.b16 %v592
    %v1833 = vunpack.c.l.b16 %v593
    %v1834 = vunpack.c.h.b16 %v593
    %v1835 = vunpack.c.l.b16 %v594
    %v1836 = vunpack.c.h.b16 %v594
    %v1837 = vunpack.c.l.b16 %v595
    %v1838 = vunpack.c.h.b16 %v595
    %v1839 = vunpack.c.l.b16 %v596
    %v1840 = vunpack.c.h.b16 %v596
    %v1841 = vunpack.c.l.b16 %v597
    %v1842 = vunpack.c.h.b16 %v597
    %v1843 = vunpack.c.l.b16 %v598
    %v1844 = vunpack.c.h.b16 %v598
    %v1845 = vunpack.c.l.b16 %v599
    %v1846 = vunpack.c.h.b16 %v599
    %v1847 = vunpack.c.l.b16 %v600
    %v1848 = vunpack.c.h.b16 %v600
    %v1849 = vunpack.c.l.b16 %v601
    %v1850 = vunpack.c.h.b16 %v601
    %v1851 = vunpack.c.l.b16 %v602
    %v1852 = vunpack.c.h.b16 %v602
    %v1853 = vunpack.c.l.b16 %v603
    %v1854 = vunpack.c.h.b16 %v603
    %v1855 = vunpack.c.l.b16 %v604
    %v1856 = vunpack.c.h.b16 %v604
    %v1857 = vunpack.c.l.b16 %v605
    %v1858 = vunpack.c.h.b16 %v605
    %v1859 = vunpack.c.l.b16 %v606
    %v1860 = vunpack.c.h.b16 %v606
    %v1861 = vunpack.c.l.b16 %v607
    %v1862 = vunpack.c.h.b16 %v607
    %v1863 = vunpack.c.l.b16 %v608
    %v1864 = vunpack.c.h.b16 %v608
    %v1865 = vunpack.c.l.b16 %v609
    %v1866 = vunpack.c.h.b16 %v609
    %v1867 = vunpack.c.l.b16 %v610
    %v1868 = vunpack.c.h.b16 %v610
    %v1869 = vunpack.c.l.b16 %v611
    %v1870 = vunpack.c.h.b16 %v611
    %v1871 = vunpack.c.l.b16 %v612
    %v1872 = vunpack.c.h.b16 %v612
    %v1873 = vunpack.c.l.b16 %v613
    %v1874 = vunpack.c.h.b16 %v613
    %v1875 = vunpack.c.l.b16 %v614
    %v1876 = vunpack.c.h.b16 %v614
    %v1877 = vunpack.c.l.b16 %v615
    %v1878 = vunpack.c.h.b16 %v615
    %v1879 = vunpack.c.l.b16 %v616
    %v1880 = vunpack.c.h.b16 %v616
    %v1881 = vunpack.c.l.b16 %v617
    %v1882 = vunpack.c.h.b16 %v617
    %v1883 = vunpack.c.l.b16 %v618
    %v1884 = vunpack.c.h.b16 %v618
    %v1885 = vunpack.c.l.b16 %v619
    %v1886 = vunpack.c.h.b16 %v619
    %v1887 = vunpack.c.l.b16 %v620
    %v1888 = vunpack.c.h.b16 %v620
    %v1889 = vunpack.c.l.b16 %v621
    %v1890 = vunpack.c.h.b16 %v621
    %v1891 = vunpack.c.l.b16 %v622
    %v1892 = vunpack.c.h.b16 %v622
    %v1893 = vunpack.c.l.b16 %v623
    %v1894 = vunpack.c.h.b16 %v623
    %v1895 = vunpack.c.l.b16 %v624
    %v1896 = vunpack.c.h.b16 %v624
    %v1897 = vunpack.c.l.b16 %v625
    %v1898 = vunpack.c.h.b16 %v625
    %v1899 = vunpack.c.l.b16 %v626
    %v1900 = vunpack.c.h.b16 %v626
    %v1901 = vunpack.c.l.b16 %v627
    %v1902 = vunpack.c.h.b16 %v627
    %v1903 = vunpack.c.l.b16 %v628
    %v1904 = vunpack.c.h.b16 %v628
    %v1905 = vunpack.c.l.b16 %v629
    %v1906 = vunpack.c.h.b16 %v629
    %v1907 = vunpack.c.l.b16 %v630
    %v1908 = vunpack.c.h.b16 %v630
    %v1909 = vunpack.c.l.b16 %v631
    %v1910 = vunpack.c.h.b16 %v631
    %v1911 = vunpack.c.l.b16 %v632
    %v1912 = vunpack.c.h.b16 %v632
    %v1913 = vunpack.c.l.b16 %v633
    %v1914 = vunpack.c.h.b16 %v633
    %v1915 = vunpack.c.l.b16 %v634
    %v1916 = vunpack.c.h.b16 %v634
    %v1917 = vunpack.c.l.b16 %v635
    %v1918 = vunpack.c.h.b16 %v635
    %v1919 = vunpack.c.l.b16 %v636
    %v1920 = vunpack.c.h.b16 %v636
    %v1921 = vunpack.c.l.b16 %v637
    %v1922 = vunpack.c.h.b16 %v637
    %v1923 = vunpack.c.l.b16 %v638
    %v1924 = vunpack.c.h.b16 %v638
    %v1925 = vunpack.c.l.b16 %v639
    %v1926 = vunpack.c.h.b16 %v639
    %v1927 = vunpack.c.l.b16 %v640
    %v1928 = vunpack.c.h.b16 %v640
    %v1929 = vunpack.c.l.b16 %v641
    %v1930 = vunpack.c.h.b16 %v641
    %v1931 = vunpack.c.l.b16 %v642
    %v1932 = vunpack.c.h.b16 %v642
    %v1933 = vunpack.c.l.b16 %v643
    %v1934 = vunpack.c.h.b16 %v643
    %v1935 = vunpack.c.l.b16 %v644
    %v1936 = vunpack.c.h.b16 %v644
    %v1937 = vunpack.c.l.b16 %v645
    %v1938 = vunpack.c.h.b16 %v645
    %v1939 = vunpack.c.l.b16 %v646
    %v1940 = vunpack.c.h.b16 %v646
    %v1941 = vunpack.c.l.b16 %v647
    %v1942 = vunpack.c.h.b16 %v647
    %v1943 = vunpack.c.l.b16 %v648
    %v1944 = vunpack.c.h.b16 %v648
    %v1945 = vunpack.c.l.b16 %v649
    %v1946 = vunpack.c.h.b16 %v649
    %v1947 = vunpack.c.l.b16 %v650
    %v1948 = vunpack.c.h.b16 %v650
    %v1949 = vunpack.c.l.b16 %v651
    %v1950 = vunpack.c.h.b16 %v651
    %v1951 = vunpack.c.l.b16 %v652
    %v1952 = vunpack.c.h.b16 %v652
    %v1953 = vunpack.c.l.b16 %v653
    %v1954 = vunpack.c.h.b16 %v653
    %v1955 = vunpack.c.l.b16 %v654
    %v1956 = vunpack.c.h.b16 %v654
    %v1957 = vunpack.c.l.b16 %v655
    %v1958 = vunpack.c.h.b16 %v655
    %v1959 = vunpack.c.l.b16 %v656
    %v1960 = vunpack.c.h.b16 %v656
    %v1961 = vunpack.c.l.b16 %v657
    %v1962 = vunpack.c.h.b16 %v657
    %v1963 = vunpack.c.l.b16 %v658
    %v1964 = vunpack.c.h.b16 %v658
    %v1965 = vunpack.c.l.b16 %v659
    %v1966 = vunpack.c.h.b16 %v659
    %v1967 = vunpack.c.l.b16 %v660
    %v1968 = vunpack.c.h.b16 %v660
    %v1969 = vunpack.c.l.b16 %v661
    %v1970 = vunpack.c.h.b16 %v661
    %v1971 = vunpack.c.l.b16 %v662
    %v1972 = vunpack.c.h.b16 %v662
    %v1973 = vunpack.c.l.b16 %v663
    %v1974 = vunpack.c.h.b16 %v663
    %v1975 = vunpack.c.l.b16 %v664
    %v1976 = vunpack.c.h.b16 %v664
    %v1977 = vunpack.c.l.b16 %v665
    %v1978 = vunpack.c.h.b16 %v665
    %v1979 = vunpack.c.l.b16 %v666
    %v1980 = vunpack.c.h.b16 %v666
    %v1981 = vunpack.c.l.b16 %v667
    %v1982 = vunpack.c.h.b16 %v667
    %v1983 = vunpack.c.l.b16 %v668
    %v1984 = vunpack.c.h.b16 %v668
    %v1985 = vunpack.c.l.b16 %v669
    %v1986 = vunpack.c.h.b16 %v669
    %v1987 = vunpack.c.l.b16 %v670
    %v1988 = vunpack.c.h.b16 %v670
    %v1989 = vunpack.c.l.b16 %v671
    %v1990 = vunpack.c.h.b16 %v671
    %v1991 = vunpack.c.l.b16 %v672
    %v1992 = vunpack.c.h.b16 %v672
    %v1993 = vunpack.c.l.b16 %v673
    %v1994 = vunpack.c.h.b16 %v673
    %v1995 = vunpack.c.l.b16 %v674
    %v1996 = vunpack.c.h.b16 %v674
    %v1997 = vunpack.c.l.b16 %v675
    %v1998 = vunpack.c.h.b16 %v675
    %v1999 = vunpack.c.l.b16 %v676
    %v2000 = vunpack.c.h.b16 %v676
    %v2001 = vunpack.c.l.b16 %v677
    %v2002 = vunpack.c.h.b16 %v677
    %v2003 = vunpack.c.l.b16 %v678
    %v2004 = vunpack.c.h.b16 %v678
    %v2005 = vunpack.c.l.b16 %v679
    %v2006 = vunpack.c.h.b16 %v679
    %v2007 = vunpack.c.l.b16 %v680
    %v2008 = vunpack.c.h.b16 %v680
    %v2009 = vunpack.c.l.b16 %v681
    %v2010 = vunpack.c.h.b16 %v681
    %v2011 = vunpack.c.l.b16 %v682
    %v2012 = vunpack.c.h.b16 %v682
    %v2013 = vunpack.c.l.b16 %v683
    %v2014 = vunpack.c.h.b16 %v683
    %v2015 = vunpack.c.l.b16 %v684
    %v2016 = vunpack.c.h.b16 %v684
    %v2017 = vunpack.c.l.b16 %v685
    %v2018 = vunpack.c.h.b16 %v685
    %v2019 = vunpack.c.l.b16 %v686
    %v2020 = vunpack.c.h.b16 %v686
    %v2021 = vunpack.c.l.b16 %v687
    %v2022 = vunpack.c.h.b16 %v687
    %v2023 = vunpack.c.l.b16 %v688
    %v2024 = vunpack.c.h.b16 %v688
    %v2025 = vunpack.c.l.b16 %v689
    %v2026 = vunpack.c.h.b16 %v689
    %v2027 = vunpack.c.l.b16 %v690
    %v2028 = vunpack.c.h.b16 %v690
    %v2029 = vunpack.c.l.b16 %v691
    %v2030 = vunpack.c.h.b16 %v691
    %v2031 = vunpack.c.l.b16 %v692
    %v2032 = vunpack.c.h.b16 %v692
    %v2033 = vunpack.c.l.b16 %v693
    %v2034 = vunpack.c.h.b16 %v693
    %v2035 = vunpack.c.l.b16 %v694
    %v2036 = vunpack.c.h.b16 %v694
    %v2037 = vunpack.c.l.b16 %v695
    %v2038 = vunpack.c.h.b16 %v695
    %v2039 = vunpack.c.l.b16 %v696
    %v2040 = vunpack.c.h.b16 %v696
    %v2041 = vunpack.c.l.b16 %v697
    %v2042 = vunpack.c.h.b16 %v697
    %v2043 = vunpack.c.l.b16 %v698
    %v2044 = vunpack.c.h.b16 %v698
    %v2045 = vunpack.c.l.b16 %v699
    %v2046 = vunpack.c.h.b16 %v699
    %v2047 = vunpack.c.l.b16 %v700
    %v2048 = vunpack.c.h.b16 %v700
    %v2049 = vunpack.c.l.b16 %v701
    %v2050 = vunpack.c.h.b16 %v701
    %v2051 = vunpack.c.l.b16 %v702
    %v2052 = vunpack.c.h.b16 %v702
    %v2053 = vunpack.c.l.b16 %v703
    %v2054 = vunpack.c.h.b16 %v703
    %v2055 = vunpack.c.l.b16 %v704
    %v2056 = vunpack.c.h.b16 %v704
    %v2057 = vunpack.c.l.b16 %v705
    %v2058 = vunpack.c.h.b16 %v705
    %v2059 = vunpack.c.l.b16 %v706
    %v2060 = vunpack.c.h.b16 %v706
    %v2061 = vunpack.c.l.b16 %v707
    %v2062 = vunpack.c.h.b16 %v707
    %v2063 = vunpack.c.l.b16 %v708
    %v2064 = vunpack.c.h.b16 %v708
    %v2065 = vunpack.c.l.b16 %v709
    %v2066 = vunpack.c.h.b16 %v709
    %v2067 = vunpack.c.l.b16 %v710
    %v2068 = vunpack.c.h.b16 %v710
    %v2069 = vunpack.c.l.b16 %v711
    %v2070 = vunpack.c.h.b16 %v711
    %v2071 = vunpack.c.l.b16 %v712
    %v2072 = vunpack.c.h.b16 %v712
    %v2073 = vunpack.c.l.b16 %v713
    %v2074 = vunpack.c.h.b16 %v713
    %v2075 = vunpack.c.l.b16 %v714
    %v2076 = vunpack.c.h.b16 %v714
    %v2077 = vunpack.c.l.b16 %v715
    %v2078 = vunpack.c.h.b16 %v715
    %v2079 = vunpack.c.l.b16 %v716
    %v2080 = vunpack.c.h.b16 %v716
    %v2081 = vunpack.c.l.b16 %v717
    %v2082 = vunpack.c.h.b16 %v717
    %v2083 = vunpack.c.l.b16 %v718
    %v2084 = vunpack.c.h.b16 %v718
    %v2085 = vunpack.c.l.b16 %v719
    %v2086 = vunpack.c.h.b16 %v719
    %v2087 = vunpack.c.l.b16 %v720
    %v2088 = vunpack.c.h.b16 %v720
    %v2089 = vunpack.c.l.b16 %v721
    %v2090 = vunpack.c.h.b16 %v721
    %v2091 = vunpack.c.l.b16 %v722
    %v2092 = vunpack.c.h.b16 %v722
    %v2093 = vpack.c.b16 %v1205, %v1197
    %v2094 = vpack.c.b16 %v1206, %v1198
    %v2095 = vpack.c.b16 %v1207, %v1199
    %v2096 = vpack.c.b16 %v1208, %v1200
    %v2097 = vpack.c.b16 %v1209, %v1201
    %v2098 = vpack.c.b16 %v1210, %v1202
    %v2099 = vpack.c.b16 %v1211, %v1203
    %v2100 = vpack.c.b16 %v1212, %v1204
    %v2101 = vpack.c.b16 %v1221, %v1213
    %v2102 = vpack.c.b16 %v1222, %v1214
    %v2103 = vpack.c.b16 %v1223, %v1215
    %v2104 = vpack.c.b16 %v1224, %v1216
    %v2105 = vpack.c.b16 %v1225, %v1217
    %v2106 = vpack.c.b16 %v1226, %v1218
    %v2107 = vpack.c.b16 %v1227, %v1219
    %v2108 = vpack.c.b16 %v1228, %v1220
    %v2109 = vpack.c.b16 %v1237, %v1229
    %v2110 = vpack.c.b16 %v1238, %v1230
    %v2111 = vpack.c.b16 %v1239, %v1231
    %v2112 = vpack.c.b16 %v1240, %v1232
    %v2113 = vpack.c.b16 %v1241, %v1233
    %v2114 = vpack.c.b16 %v1242, %v1234
    %v2115 = vpack.c.b16 %v1243, %v1235
    %v2116 = vpack.c.b16 %v1244, %v1236
    %v2117 = vpack.c.b16 %v1253, %v1245
    %v2118 = vpack.c.b16 %v1254, %v1246
    %v2119 = vpack.c.b16 %v1255, %v1247
    %v2120 = vpack.c.b16 %v1256, %v1248
    %v2121 = vpack.c.b16 %v1257, %v1249
    %v2122 = vpack.c.b16 %v1258, %v1250
    %v2123 = vpack.c.b16 %v1259, %v1251
    %v2124 = vpack.c.b16 %v1260, %v1252
    %v2125 = vpack.c.b16 %v1269, %v1261
    %v2126 = vpack.c.b16 %v1270, %v1262
    %v2127 = vpack.c.b16 %v1271, %v1263
    %v2128 = vpack.c.b16 %v1272, %v1264
    %v2129 = vpack.c.b16 %v1273, %v1265
    %v2130 = vpack.c.b16 %v1274, %v1266
    %v2131 = vpack.c.b16 %v1275, %v1267
    %v2132 = vpack.c.b16 %v1276, %v1268
    %v2133 = vpack.c.b16 %v1285, %v1277
    %v2134 = vpack.c.b16 %v1286, %v1278
    %v2135 = vpack.c.b16 %v1287, %v1279
    %v2136 = vpack.c.b16 %v1288, %v1280
    %v2137 = vpack.c.b16 %v1289, %v1281
    %v2138 = vpack.c.b16 %v1290, %v1282
    %v2139 = vpack.c.b16 %v1291, %v1283
    %v2140 = vpack.c.b16 %v1292, %v1284
    %v2141 = vpack.c.b16 %v1301, %v1293
    %v2142 = vpack.c.b16 %v1302, %v1294
    %v2143 = vpack.c.b16 %v1303, %v1295
    %v2144 = vpack.c.b16 %v1304, %v1296
    %v2145 = vpack.c.b16 %v1305, %v1297
    %v2146 = vpack.c.b16 %v1306, %v1298
    %v2147 = vpack.c.b16 %v1307, %v1299
    %v2148 = vpack.c.b16 %v1308, %v1300
    %v2149 = vpack.c.b16 %v1317, %v1309
    %v2150 = vpack.c.b16 %v1318, %v1310
    %v2151 = vpack.c.b16 %v1319, %v1311
    %v2152 = vpack.c.b16 %v1320, %v1312
    %v2153 = vpack.c.b16 %v1321, %v1313
    %v2154 = vpack.c.b16 %v1322, %v1314
    %v2155 = vpack.c.b16 %v1323, %v1315
    %v2156 = vpack.c.b16 %v1324, %v1316
    %v2157 = vpack.c.b16 %v1333, %v1325
    %v2158 = vpack.c.b16 %v1334, %v1326
    %v2159 = vpack.c.b16 %v1335, %v1327
    %v2160 = vpack.c.b16 %v1336, %v1328
    %v2161 = vpack.c.b16 %v1337, %v1329
    %v2162 = vpack.c.b16 %v1338, %v1330
    %v2163 = vpack.c.b16 %v1339, %v1331
    %v2164 = vpack.c.b16 %v1340, %v1332
    %v2165 = vpack.c.b16 %v1349, %v1341
    %v2166 = vpack.c.b16 %v1350, %v1342
    %v2167 = vpack.c.b16 %v1351, %v1343
    %v2168 = vpack.c.b16 %v1352, %v1344
    %v2169 = vpack.c.b16 %v1353, %v1345
    %v2170 = vpack.c.b16 %v1354, %v1346
    %v2171 = vpack.c.b16 %v1355, %v1347
    %v2172 = vpack.c.b16 %v1356, %v1348
    %v2173 = vpack.c.b16 %v1365, %v1357
    %v2174 = vpack.c.b16 %v1366, %v1358
    %v2175 = vpack.c.b16 %v1367, %v1359
    %v2176 = vpack.c.b16 %v1368, %v1360
    %v2177 = vpack.c.b16 %v1369, %v1361
    %v2178 = vpack.c.b16 %v1370, %v1362
    %v2179 = vpack.c.b16 %v1371, %v1363
    %v2180 = vpack.c.b16 %v1372, %v1364
    %v2181 = vpack.c.b16 %v1381, %v1373
    %v2182 = vpack.c.b16 %v1382, %v1374
    %v2183 = vpack.c.b16 %v1383, %v1375
    %v2184 = vpack.c.b16 %v1384, %v1376
    %v2185 = vpack.c.b16 %v1385, %v1377
    %v2186 = vpack.c.b16 %v1386, %v1378
    %v2187 = vpack.c.b16 %v1387, %v1379
    %v2188 = vpack.c.b16 %v1388, %v1380
    %v2189 = vpack.c.b16 %v1397, %v1389
    %v2190 = vpack.c.b16 %v1398, %v1390
    %v2191 = vpack.c.b16 %v1399, %v1391
    %v2192 = vpack.c.b16 %v1400, %v1392
    %v2193 = vpack.c.b16 %v1401, %v1393
    %v2194 = vpack.c.b16 %v1402, %v1394
    %v2195 = vpack.c.b16 %v1403, %v1395
    %v2196 = vpack.c.b16 %v1404, %v1396
    %v2197 = vpack.c.b16 %v1413, %v1405
    %v2198 = vpack.c.b16 %v1414, %v1406
    %v2199 = vpack.c.b16 %v1415, %v1407
    %v2200 = vpack.c.b16 %v1416, %v1408
    %v2201 = vpack.c.b16 %v1417, %v1409
    %v2202 = vpack.c.b16 %v1418, %v1410
    %v2203 = vpack.c.b16 %v1419, %v1411
    %v2204 = vpack.c.b16 %v1420, %v1412
    %v2205 = vpack.c.b16 %v1429, %v1421
    %v2206 = vpack.c.b16 %v1430, %v1422
    %v2207 = vpack.c.b16 %v1431, %v1423
    %v2208 = vpack.c.b16 %v1432, %v1424
    %v2209 = vpack.c.b16 %v1433, %v1425
    %v2210 = vpack.c.b16 %v1434, %v1426
    %v2211 = vpack.c.b16 %v1435, %v1427
    %v2212 = vpack.c.b16 %v1436, %v1428
    %v2213 = vpack.c.b16 %v1445, %v1437
    %v2214 = vpack.c.b16 %v1446, %v1438
    %v2215 = vpack.c.b16 %v1447, %v1439
    %v2216 = vpack.c.b16 %v1448, %v1440
    %v2217 = vpack.c.b16 %v1449, %v1441
    %v2218 = vpack.c.b16 %v1450, %v1442
    %v2219 = vpack.c.b16 %v1451, %v1443
    %v2220 = vpack.c.b16 %v1452, %v1444
    %v2221 = vpack.c.b16 %v1461, %v1453
    %v2222 = vpack.c.b16 %v1462, %v1454
    %v2223 = vpack.c.b16 %v1463, %v1455
    %v2224 = vpack.c.b16 %v1464, %v1456
    %v2225 = vpack.c.b16 %v1465, %v1457
    %v2226 = vpack.c.b16 %v1466, %v1458
    %v2227 = vpack.c.b16 %v1467, %v1459
    %v2228 = vpack.c.b16 %v1468, %v1460
    %v2229 = vpack.c.b16 %v1477, %v1469
    %v2230 = vpack.c.b16 %v1478, %v1470
    %v2231 = vpack.c.b16 %v1479, %v1471
    %v2232 = vpack.c.b16 %v1480, %v1472
    %v2233 = vpack.c.b16 %v1481, %v1473
    %v2234 = vpack.c.b16 %v1482, %v1474
    %v2235 = vpack.c.b16 %v1483, %v1475
    %v2236 = vpack.c.b16 %v1484, %v1476
    %v2237 = vpack.c.b16 %v1493, %v1485
    %v2238 = vpack.c.b16 %v1494, %v1486
    %v2239 = vpack.c.b16 %v1495, %v1487
    %v2240 = vpack.c.b16 %v1496, %v1488
    %v2241 = vpack.c.b16 %v1497, %v1489
    %v2242 = vpack.c.b16 %v1498, %v1490
    %v2243 = vpack.c.b16 %v1499, %v1491
    %v2244 = vpack.c.b16 %v1500, %v1492
    %v2245 = vpack.c.b16 %v1509, %v1501
    %v2246 = vpack.c.b16 %v1510, %v1502
    %v2247 = vpack.c.b16 %v1511, %v1503
    %v2248 = vpack.c.b16 %v1512, %v1504
    %v2249 = vpack.c.b16 %v1513, %v1505
    %v2250 = vpack.c.b16 %v1514, %v1506
    %v2251 = vpack.c.b16 %v1515, %v1507
    %v2252 = vpack.c.b16 %v1516, %v1508
    %v2253 = vpack.c.b16 %v1525, %v1517
    %v2254 = vpack.c.b16 %v1526, %v1518
    %v2255 = vpack.c.b16 %v1527, %v1519
    %v2256 = vpack.c.b16 %v1528, %v1520
    %v2257 = vpack.c.b16 %v1529, %v1521
    %v2258 = vpack.c.b16 %v1530, %v1522
    %v2259 = vpack.c.b16 %v1531, %v1523
    %v2260 = vpack.c.b16 %v1532, %v1524
    %v2261 = vpack.c.b16 %v1541, %v1533
    %v2262 = vpack.c.b16 %v1542, %v1534
    %v2263 = vpack.c.b16 %v1543, %v1535
    %v2264 = vpack.c.b16 %v1544, %v1536
    %v2265 = vpack.c.b16 %v1545, %v1537
    %v2266 = vpack.c.b16 %v1546, %v1538
    %v2267 = vpack.c.b16 %v1547, %v1539
    %v2268 = vpack.c.b16 %v1548, %v1540
    %v2269 = vpack.c.b16 %v1557, %v1549
    %v2270 = vpack.c.b16 %v1558, %v1550
    %v2271 = vpack.c.b16 %v1559, %v1551
    %v2272 = vpack.c.b16 %v1560, %v1552
    %v2273 = vpack.c.b16 %v1561, %v1553
    %v2274 = vpack.c.b16 %v1562, %v1554
    %v2275 = vpack.c.b16 %v1563, %v1555
    %v2276 = vpack.c.b16 %v1564, %v1556
    %v2277 = vpack.c.b16 %v1573, %v1565
    %v2278 = vpack.c.b16 %v1574, %v1566
    %v2279 = vpack.c.b16 %v1575, %v1567
    %v2280 = vpack.c.b16 %v1576, %v1568
    %v2281 = vpack.c.b16 %v1577, %v1569
    %v2282 = vpack.c.b16 %v1578, %v1570
    %v2283 = vpack.c.b16 %v1579, %v1571
    %v2284 = vpack.c.b16 %v1580, %v1572
    %v2285 = vpack.c.b16 %v1589, %v1581
    %v2286 = vpack.c.b16 %v1590, %v1582
    %v2287 = vpack.c.b16 %v1591, %v1583
    %v2288 = vpack.c.b16 %v1592, %v1584
    %v2289 = vpack.c.b16 %v1593, %v1585
    %v2290 = vpack.c.b16 %v1594, %v1586
    %v2291 = vpack.c.b16 %v1595, %v1587
    %v2292 = vpack.c.b16 %v1596, %v1588
    %v2293 = vpack.c.b16 %v1605, %v1597
    %v2294 = vpack.c.b16 %v1606, %v1598
    %v2295 = vpack.c.b16 %v1607, %v1599
    %v2296 = vpack.c.b16 %v1608, %v1600
    %v2297 = vpack.c.b16 %v1609, %v1601
    %v2298 = vpack.c.b16 %v1610, %v1602
    %v2299 = vpack.c.b16 %v1611, %v1603
    %v2300 = vpack.c.b16 %v1612, %v1604
    %v2301 = vpack.c.b16 %v1621, %v1613
    %v2302 = vpack.c.b16 %v1622, %v1614
    %v2303 = vpack.c.b16 %v1623, %v1615
    %v2304 = vpack.c.b16 %v1624, %v1616
    %v2305 = vpack.c.b16 %v1625, %v1617
    %v2306 = vpack.c.b16 %v1626, %v1618
    %v2307 = vpack.c.b16 %v1627, %v1619
    %v2308 = vpack.c.b16 %v1628, %v1620
    %v2309 = vpack.c.b16 %v1637, %v1629
    %v2310 = vpack.c.b16 %v1638, %v1630
    %v2311 = vpack.c.b16 %v1639, %v1631
    %v2312 = vpack.c.b16 %v1640, %v1632
    %v2313 = vpack.c.b16 %v1641, %v1633
    %v2314 = vpack.c.b16 %v1642, %v1634
    %v2315 = vpack.c.b16 %v1643, %v1635
    %v2316 = vpack.c.b16 %v1644, %v1636
    %v2317 = vpack.c.b16 %v1653, %v1645
    %v2318 = vpack.c.b16 %v1654, %v1646
    %v2319 = vpack.c.b16 %v1655, %v1647
    %v2320 = vpack.c.b16 %v1656, %v1648
    %v2321 = vpack.c.b16 %v1657, %v1649
    %v2322 = vpack.c.b16 %v1658, %v1650
    %v2323 = vpack.c.b16 %v1659, %v1651
    %v2324 = vpack.c.b16 %v1660, %v1652
    %v2325 = vpack.c.b16 %v1669, %v1661
    %v2326 = vpack.c.b16 %v1670, %v1662
    %v2327 = vpack.c.b16 %v1671, %v1663
    %v2328 = vpack.c.b16 %v1672, %v1664
    %v2329 = vpack.c.b16 %v1673, %v1665
    %v2330 = vpack.c.b16 %v1674, %v1666
    %v2331 = vpack.c.b16 %v1675, %v1667
    %v2332 = vpack.c.b16 %v1676, %v1668
    %v2333 = vpack.c.b16 %v1685, %v1677
    %v2334 = vpack.c.b16 %v1686, %v1678
    %v2335 = vpack.c.b16 %v1687, %v1679
    %v2336 = vpack.c.b16 %v1688, %v1680
    %v2337 = vpack.c.b16 %v1689, %v1681
    %v2338 = vpack.c.b16 %v1690, %v1682
    %v2339 = vpack.c.b16 %v1691, %v1683
    %v2340 = vpack.c.b16 %v1692, %v1684
    %v2341 = vpack.c.b16 %v1701, %v1693
    %v2342 = vpack.c.b16 %v1702, %v1694
    %v2343 = vpack.c.b16 %v1703, %v1695
    %v2344 = vpack.c.b16 %v1704, %v1696
    %v2345 = vpack.c.b16 %v1705, %v1697
    %v2346 = vpack.c.b16 %v1706, %v1698
    %v2347 = vpack.c.b16 %v1707, %v1699
    %v2348 = vpack.c.b16 %v1708, %v1700
    %v2349 = vpack.c.b16 %v1717, %v1709
    %v2350 = vpack.c.b16 %v1718, %v1710
    %v2351 = vpack.c.b16 %v1719, %v1711
    %v2352 = vpack.c.b16 %v1720, %v1712
    %v2353 = vpack.c.b16 %v1721, %v1713
    %v2354 = vpack.c.b16 %v1722, %v1714
    %v2355 = vpack.c.b16 %v1723, %v1715
    %v2356 = vpack.c.b16 %v1724, %v1716
    %v2357 = vpack.c.b16 %v1733, %v1725
    %v2358 = vpack.c.b16 %v1734, %v1726
    %v2359 = vpack.c.b16 %v1735, %v1727
    %v2360 = vpack.c.b16 %v1736, %v1728
    %v2361 = vpack.c.b16 %v1737, %v1729
    %v2362 = vpack.c.b16 %v1738, %v1730
    %v2363 = vpack.c.b16 %v1739, %v1731
    %v2364 = vpack.c.b16 %v1740, %v1732
    %v2365 = vpack.c.b16 %v1749, %v1741
    %v2366 = vpack.c.b16 %v1750, %v1742
    %v2367 = vpack.c.b16 %v1751, %v1743
    %v2368 = vpack.c.b16 %v1752, %v1744
    %v2369 = vpack.c.b16 %v1753, %v1745
    %v2370 = vpack.c.b16 %v1754, %v1746
    %v2371 = vpack.c.b16 %v1755, %v1747
    %v2372 = vpack.c.b16 %v1756, %v1748
    %v2373 = vpack.c.b16 %v1765, %v1757
    %v2374 = vpack.c.b16 %v1766, %v1758
    %v2375 = vpack.c.b16 %v1767, %v1759
    %v2376 = vpack.c.b16 %v1768, %v1760
    %v2377 = vpack.c.b16 %v1769, %v1761
    %v2378 = vpack.c.b16 %v1770, %v1762
    %v2379 = vpack.c.b16 %v1771, %v1763
    %v2380 = vpack.c.b16 %v1772, %v1764
    %v2381 = vpack.c.b16 %v1781, %v1773
    %v2382 = vpack.c.b16 %v1782, %v1774
    %v2383 = vpack.c.b16 %v1783, %v1775
    %v2384 = vpack.c.b16 %v1784, %v1776
    %v2385 = vpack.c.b16 %v1785, %v1777
    %v2386 = vpack.c.b16 %v1786, %v1778
    %v2387 = vpack.c.b16 %v1787, %v1779
    %v2388 = vpack.c.b16 %v1788, %v1780
    %v2389 = vpack.c.b16 %v1797, %v1789
    %v2390 = vpack.c.b16 %v1798, %v1790
    %v2391 = vpack.c.b16 %v1799, %v1791
    %v2392 = vpack.c.b16 %v1800, %v1792
    %v2393 = vpack.c.b16 %v1801, %v1793
    %v2394 = vpack.c.b16 %v1802, %v1794
    %v2395 = vpack.c.b16 %v1803, %v1795
    %v2396 = vpack.c.b16 %v1804, %v1796
    %v2397 = vpack.c.b16 %v1813, %v1805
    %v2398 = vpack.c.b16 %v1814, %v1806
    %v2399 = vpack.c.b16 %v1815, %v1807
    %v2400 = vpack.c.b16 %v1816, %v1808
    %v2401 = vpack.c.b16 %v1817, %v1809
    %v2402 = vpack.c.b16 %v1818, %v1810
    %v2403 = vpack.c.b16 %v1819, %v1811
    %v2404 = vpack.c.b16 %v1820, %v1812
    %v2405 = vpack.c.b16 %v1829, %v1821
    %v2406 = vpack.c.b16 %v1830, %v1822
    %v2407 = vpack.c.b16 %v1831, %v1823
    %v2408 = vpack.c.b16 %v1832, %v1824
    %v2409 = vpack.c.b16 %v1833, %v1825
    %v2410 = vpack.c.b16 %v1834, %v1826
    %v2411 = vpack.c.b16 %v1835, %v1827
    %v2412 = vpack.c.b16 %v1836, %v1828
    %v2413 = vpack.c.b16 %v1845, %v1837
    %v2414 = vpack.c.b16 %v1846, %v1838
    %v2415 = vpack.c.b16 %v1847, %v1839
    %v2416 = vpack.c.b16 %v1848, %v1840
    %v2417 = vpack.c.b16 %v1849, %v1841
    %v2418 = vpack.c.b16 %v1850, %v1842
    %v2419 = vpack.c.b16 %v1851, %v1843
    %v2420 = vpack.c.b16 %v1852, %v1844
    %v2421 = vpack.c.b16 %v1861, %v1853
    %v2422 = vpack.c.b16 %v1862, %v1854
    %v2423 = vpack.c.b16 %v1863, %v1855
    %v2424 = vpack.c.b16 %v1864, %v1856
    %v2425 = vpack.c.b16 %v1865, %v1857
    %v2426 = vpack.c.b16 %v1866, %v1858
    %v2427 = vpack.c.b16 %v1867, %v1859
    %v2428 = vpack.c.b16 %v1868, %v1860
    %v2429 = vpack.c.b16 %v1877, %v1869
    %v2430 = vpack.c.b16 %v1878, %v1870
    %v2431 = vpack.c.b16 %v1879, %v1871
    %v2432 = vpack.c.b16 %v1880, %v1872
    %v2433 = vpack.c.b16 %v1881, %v1873
    %v2434 = vpack.c.b16 %v1882, %v1874
    %v2435 = vpack.c.b16 %v1883, %v1875
    %v2436 = vpack.c.b16 %v1884, %v1876
    %v2437 = vpack.c.b16 %v1893, %v1885
    %v2438 = vpack.c.b16 %v1894, %v1886
    %v2439 = vpack.c.b16 %v1895, %v1887
    %v2440 = vpack.c.b16 %v1896, %v1888
    %v2441 = vpack.c.b16 %v1897, %v1889
    %v2442 = vpack.c.b16 %v1898, %v1890
    %v2443 = vpack.c.b16 %v1899, %v1891
    %v2444 = vpack.c.b16 %v1900, %v1892
    %v2445 = vpack.c.b16 %v1909, %v1901
    %v2446 = vpack.c.b16 %v1910, %v1902
    %v2447 = vpack.c.b16 %v1911, %v1903
    %v2448 = vpack.c.b16 %v1912, %v1904
    %v2449 = vpack.c.b16 %v1913, %v1905
    %v2450 = vpack.c.b16 %v1914, %v1906
    %v2451 = vpack.c.b16 %v1915, %v1907
    %v2452 = vpack.c.b16 %v1916, %v1908
    %v2453 = vpack.c.b16 %v1925, %v1917
    %v2454 = vpack.c.b16 %v1926, %v1918
    %v2455 = vpack.c.b16 %v1927, %v1919
    %v2456 = vpack.c.b16 %v1928, %v1920
    %v2457 = vpack.c.b16 %v1929, %v1921
    %v2458 = vpack.c.b16 %v1930, %v1922
    %v2459 = vpack.c.b16 %v1931, %v1923
    %v2460 = vpack.c.b16 %v1932, %v1924
    %v2461 = vpack.c.b16 %v1941, %v1933
    %v2462 = vpack.c.b16 %v1942, %v1934
    %v2463 = vpack.c.b16 %v1943, %v1935
    %v2464 = vpack.c.b16 %v1944, %v1936
    %v2465 = vpack.c.b16 %v1945, %v1937
    %v2466 = vpack.c.b16 %v1946, %v1938
    %v2467 = vpack.c.b16 %v1947, %v1939
    %v2468 = vpack.c.b16 %v1948, %v1940
    %v2469 = vpack.c.b16 %v1957, %v1949
    %v2470 = vpack.c.b16 %v1958, %v1950
    %v2471 = vpack.c.b16 %v1959, %v1951
    %v2472 = vpack.c.b16 %v1960, %v1952
    %v2473 = vpack.c.b16 %v1961, %v1953
    %v2474 = vpack.c.b16 %v1962, %v1954
    %v2475 = vpack.c.b16 %v1963, %v1955
    %v2476 = vpack.c.b16 %v1964, %v1956
    %v2477 = vpack.c.b16 %v1973, %v1965
    %v2478 = vpack.c.b16 %v1974, %v1966
    %v2479 = vpack.c.b16 %v1975, %v1967
    %v2480 = vpack.c.b16 %v1976, %v1968
    %v2481 = vpack.c.b16 %v1977, %v1969
    %v2482 = vpack.c.b16 %v1978, %v1970
    %v2483 = vpack.c.b16 %v1979, %v1971
    %v2484 = vpack.c.b16 %v1980, %v1972
    %v2485 = vpack.c.b16 %v1989, %v1981
    %v2486 = vpack.c.b16 %v1990, %v1982
    %v2487 = vpack.c.b16 %v1991, %v1983
    %v2488 = vpack.c.b16 %v1992, %v1984
    %v2489 = vpack.c.b16 %v1993, %v1985
    %v2490 = vpack.c.b16 %v1994, %v1986
    %v2491 = vpack.c.b16 %v1995, %v1987
    %v2492 = vpack.c.b16 %v1996, %v1988
    %v2493 = vpack.c.b16 %v2005, %v1997
    %v2494 = vpack.c.b16 %v2006, %v1998
    %v2495 = vpack.c.b16 %v2007, %v1999
    %v2496 = vpack.c.b16 %v2008, %v2000
    %v2497 = vpack.c.b16 %v2009, %v2001
    %v2498 = vpack.c.b16 %v2010, %v2002
    %v2499 = vpack.c.b16 %v2011, %v2003
    %v2500 = vpack.c.b16 %v2012, %v2004
    %v2501 = vpack.c.b16 %v2021, %v2013
    %v2502 = vpack.c.b16 %v2022, %v2014
    %v2503 = vpack.c.b16 %v2023, %v2015
    %v2504 = vpack.c.b16 %v2024, %v2016
    %v2505 = vpack.c.b16 %v2025, %v2017
    %v2506 = vpack.c.b16 %v2026, %v2018
    %v2507 = vpack.c.b16 %v2027, %v2019
    %v2508 = vpack.c.b16 %v2028, %v2020
    %v2509 = vpack.c.b16 %v2037, %v2029
    %v2510 = vpack.c.b16 %v2038, %v2030
    %v2511 = vpack.c.b16 %v2039, %v2031
    %v2512 = vpack.c.b16 %v2040, %v2032
    %v2513 = vpack.c.b16 %v2041, %v2033
    %v2514 = vpack.c.b16 %v2042, %v2034
    %v2515 = vpack.c.b16 %v2043, %v2035
    %v2516 = vpack.c.b16 %v2044, %v2036
    %v2517 = vpack.c.b16 %v2053, %v2045
    %v2518 = vpack.c.b16 %v2054, %v2046
    %v2519 = vpack.c.b16 %v2055, %v2047
    %v2520 = vpack.c.b16 %v2056, %v2048
    %v2521 = vpack.c.b16 %v2057, %v2049
    %v2522 = vpack.c.b16 %v2058, %v2050
    %v2523 = vpack.c.b16 %v2059, %v2051
    %v2524 = vpack.c.b16 %v2060, %v2052
    %v2525 = vpack.c.b16 %v2069, %v2061
    %v2526 = vpack.c.b16 %v2070, %v2062
    %v2527 = vpack.c.b16 %v2071, %v2063
    %v2528 = vpack.c.b16 %v2072, %v2064
    %v2529 = vpack.c.b16 %v2073, %v2065
    %v2530 = vpack.c.b16 %v2074, %v2066
    %v2531 = vpack.c.b16 %v2075, %v2067
    %v2532 = vpack.c.b16 %v2076, %v2068
    %v2533 = vpack.c.b16 %v2085, %v2077
    %v2534 = vpack.c.b16 %v2086, %v2078
    %v2535 = vpack.c.b16 %v2087, %v2079
    %v2536 = vpack.c.b16 %v2088, %v2080
    %v2537 = vpack.c.b16 %v2089, %v2081
    %v2538 = vpack.c.b16 %v2090, %v2082
    %v2539 = vpack.c.b16 %v2091, %v2083
    %v2540 = vpack.c.b16 %v2092, %v2084
    %2989 = vmatprep.subr.bf16.mxu0 %v2094
    %2990 = vmatpush1.bf16.msra.mxu0 %v2093
    %2991 = vmatprep.subr.bf16.mxu0 %v2102
    %2992 = vmatpush1.bf16.msra.mxu0 %v2101
    %2993 = vmatprep.subr.bf16.mxu0 %v2110
    %2994 = vmatpush1.bf16.msra.mxu0 %v2109
    %2995 = vmatprep.subr.bf16.mxu0 %v2118
    %2996 = vmatpush1.bf16.msra.mxu0 %v2117
    %2997 = vmatprep.subr.bf16.mxu0 %v2126
    %2998 = vmatpush1.bf16.msra.mxu0 %v2125
    %2999 = vmatprep.subr.bf16.mxu0 %v2134
    %3000 = vmatpush1.bf16.msra.mxu0 %v2133
    %3001 = vmatprep.subr.bf16.mxu0 %v2142
    %3002 = vmatpush1.bf16.msra.mxu0 %v2141
    %3003 = vmatprep.subr.bf16.mxu0 %v2150
    %3004 = vmatpush1.bf16.msra.mxu0 %v2149
    %3005 = vmatprep.subr.bf16.mxu0 %v2158
    %3006 = vmatpush1.bf16.msra.mxu0 %v2157
    %3007 = vmatprep.subr.bf16.mxu0 %v2166
    %3008 = vmatpush1.bf16.msra.mxu0 %v2165
    %3009 = vmatprep.subr.bf16.mxu0 %v2174
    %3010 = vmatpush1.bf16.msra.mxu0 %v2173
    %3011 = vmatprep.subr.bf16.mxu0 %v2182
    %3012 = vmatpush1.bf16.msra.mxu0 %v2181
    %3013 = vmatprep.subr.bf16.mxu0 %v2190
    %3014 = vmatpush1.bf16.msra.mxu0 %v2189
    %3015 = vmatprep.subr.bf16.mxu0 %v2198
    %3016 = vmatpush1.bf16.msra.mxu0 %v2197
    %3017 = vmatprep.subr.bf16.mxu0 %v2206
    %3018 = vmatpush1.bf16.msra.mxu0 %v2205
    %3019 = vmatprep.subr.bf16.mxu0 %v2214
    %3020 = vmatpush1.bf16.msra.mxu0 %v2213
    %3021 = vmatprep.mubr.bf16.mxu0 %v736
    %3022 = vmatmul.mubr.bf16.gmra.mrb[0].mxu0 %v735
    %v3023 = vpop.f32.mrb[0].mxu0
    %v3024 = vadd.f32 0.0, %v3023
    %v3025 = vpop.f32.mrb[0].mxu0
    %v3026 = vadd.f32 0.0, %v3025
    %v3027 = vpop.f32.mrb[0].mxu0
    %v3028 = vpop.f32.mrb[0].mxu0
    %3029 = vdwg.mxu0
    %3030 = vmatprep.subr.bf16.mxu0 %v2222
    %3031 = vmatpush1.bf16.msra.mxu0 %v2221
    %3032 = vmatprep.subr.bf16.mxu0 %v2230
    %3033 = vmatpush1.bf16.msra.mxu0 %v2229
    %3034 = vmatprep.subr.bf16.mxu0 %v2238
    %3035 = vmatpush1.bf16.msra.mxu0 %v2237
    %3036 = vmatprep.subr.bf16.mxu0 %v2246
    %3037 = vmatpush1.bf16.msra.mxu0 %v2245
    %3038 = vmatprep.subr.bf16.mxu0 %v2254
    %3039 = vmatpush1.bf16.msra.mxu0 %v2253
    %3040 = vmatprep.subr.bf16.mxu0 %v2262
    %3041 = vmatpush1.bf16.msra.mxu0 %v2261
    %3042 = vmatprep.subr.bf16.mxu0 %v2270
    %3043 = vmatpush1.bf16.msra.mxu0 %v2269
    %3044 = vmatprep.subr.bf16.mxu0 %v2278
    %3045 = vmatpush1.bf16.msra.mxu0 %v2277
    %3046 = vmatprep.subr.bf16.mxu0 %v2286
    %3047 = vmatpush1.bf16.msra.mxu0 %v2285
    %3048 = vmatprep.subr.bf16.mxu0 %v2294
    %3049 = vmatpush1.bf16.msra.mxu0 %v2293
    %3050 = vmatprep.subr.bf16.mxu0 %v2302
    %3051 = vmatpush1.bf16.msra.mxu0 %v2301
    %3052 = vmatprep.subr.bf16.mxu0 %v2310
    %3053 = vmatpush1.bf16.msra.mxu0 %v2309
    %3054 = vmatprep.subr.bf16.mxu0 %v2318
    %3055 = vmatpush1.bf16.msra.mxu0 %v2317
    %3056 = vmatprep.subr.bf16.mxu0 %v2326
    %3057 = vmatpush1.bf16.msra.mxu0 %v2325
    %3058 = vmatprep.subr.bf16.mxu0 %v2334
    %3059 = vmatpush1.bf16.msra.mxu0 %v2333
    %3060 = vmatprep.subr.bf16.mxu0 %v2342
    %3061 = vmatpush1.bf16.msra.mxu0 %v2341
    %3062 = vmatprep.mubr.bf16.mxu0 %v738
    %3063 = vmatmul.mubr.bf16.gmra.mrb[0].mxu0 %v737
    %v3064 = vpop.f32.mrb[0].mxu0
    %v3065 = vadd.f32 %v3024, %v3064
    %v3066 = vpop.f32.mrb[0].mxu0
    %v3067 = vadd.f32 %v3026, %v3066
    %v3068 = vpop.f32.mrb[0].mxu0
    %v3069 = vpop.f32.mrb[0].mxu0
    %3070 = vdwg.mxu0
    %3071 = vmatprep.subr.bf16.mxu0 %v2350
    %3072 = vmatpush1.bf16.msra.mxu0 %v2349
    %3073 = vmatprep.subr.bf16.mxu0 %v2358
    %3074 = vmatpush1.bf16.msra.mxu0 %v2357
    %3075 = vmatprep.subr.bf16.mxu0 %v2366
    %3076 = vmatpush1.bf16.msra.mxu0 %v2365
    %3077 = vmatprep.subr.bf16.mxu0 %v2374
    %3078 = vmatpush1.bf16.msra.mxu0 %v2373
    %3079 = vmatprep.subr.bf16.mxu0 %v2382
    %3080 = vmatpush1.bf16.msra.mxu0 %v2381
    %3081 = vmatprep.subr.bf16.mxu0 %v2390
    %3082 = vmatpush1.bf16.msra.mxu0 %v2389
    %3083 = vmatprep.subr.bf16.mxu0 %v2398
    %3084 = vmatpush1.bf16.msra.mxu0 %v2397
    %3085 = vmatprep.subr.bf16.mxu0 %v2406
    %3086 = vmatpush1.bf16.msra.mxu0 %v2405
    %3087 = vmatprep.subr.bf16.mxu0 %v2414
    %3088 = vmatpush1.bf16.msra.mxu0 %v2413
    %3089 = vmatprep.subr.bf16.mxu0 %v2422
    %3090 = vmatpush1.bf16.msra.mxu0 %v2421
    %3091 = vmatprep.subr.bf16.mxu0 %v2430
    %3092 = vmatpush1.bf16.msra.mxu0 %v2429
    %3093 = vmatprep.subr.bf16.mxu0 %v2438
    %3094 = vmatpush1.bf16.msra.mxu0 %v2437
    %3095 = vmatprep.subr.bf16.mxu0 %v2446
    %3096 = vmatpush1.bf16.msra.mxu0 %v2445
    %3097 = vmatprep.subr.bf16.mxu0 %v2454
    %3098 = vmatpush1.bf16.msra.mxu0 %v2453
    %3099 = vmatprep.subr.bf16.mxu0 %v2462
    %3100 = vmatpush1.bf16.msra.mxu0 %v2461
    %3101 = vmatprep.subr.bf16.mxu0 %v2470
    %3102 = vmatpush1.bf16.msra.mxu0 %v2469
    %3103 = vmatprep.mubr.bf16.mxu0 %v740
    %3104 = vmatmul.mubr.bf16.gmra.mrb[0].mxu0 %v739
    %v3105 = vpop.f32.mrb[0].mxu0
    %v3106 = vadd.f32 %v3065, %v3105
    %v3107 = vpop.f32.mrb[0].mxu0
    %v3108 = vadd.f32 %v3067, %v3107
    %v3109 = vpop.f32.mrb[0].mxu0
    %v3110 = vpop.f32.mrb[0].mxu0
    %3111 = vdwg.mxu0
    %3112 = vmatprep.subr.bf16.mxu0 %v2478
    %3113 = vmatpush1.bf16.msra.mxu0 %v2477
    %3114 = vmatprep.subr.bf16.mxu0 %v2486
    %3115 = vmatpush1.bf16.msra.mxu0 %v2485
    %3116 = vmatprep.subr.bf16.mxu0 %v2494
    %3117 = vmatpush1.bf16.msra.mxu0 %v2493
    %3118 = vmatprep.subr.bf16.mxu0 %v2502
    %3119 = vmatpush1.bf16.msra.mxu0 %v2501
    %3120 = vmatprep.subr.bf16.mxu0 %v2510
    %3121 = vmatpush1.bf16.msra.mxu0 %v2509
    %3122 = vmatprep.subr.bf16.mxu0 %v2518
    %3123 = vmatpush1.bf16.msra.mxu0 %v2517
    %3124 = vmatprep.subr.bf16.mxu0 %v2526
    %3125 = vmatpush1.bf16.msra.mxu0 %v2525
    %3126 = vmatprep.subr.bf16.mxu0 %v2534
    %3127 = vmatpush1.bf16.msra.mxu0 %v2533
    %3128 = vmatprep.subr.bf16.mxu0 0
    %3129 = vmatpush1.bf16.msra.mxu0 0
    %3130 = vmatprep.subr.bf16.mxu0 0
    %3131 = vmatpush1.bf16.msra.mxu0 0
    %3132 = vmatprep.subr.bf16.mxu0 0
    %3133 = vmatpush1.bf16.msra.mxu0 0
    %3134 = vmatprep.subr.bf16.mxu0 0
    %3135 = vmatpush1.bf16.msra.mxu0 0
    %3136 = vmatprep.subr.bf16.mxu0 0
    %3137 = vmatpush1.bf16.msra.mxu0 0
    %3138 = vmatprep.subr.bf16.mxu0 0
    %3139 = vmatpush1.bf16.msra.mxu0 0
    %3140 = vmatprep.subr.bf16.mxu0 0
    %3141 = vmatpush1.bf16.msra.mxu0 0
    %3142 = vmatprep.subr.bf16.mxu0 0
    %3143 = vmatpush1.bf16.msra.mxu0 0
    %3144 = vmatprep.mubr.bf16.mxu0 0
    %3145 = vmatmul.mubr.bf16.gmra.mrb[0].mxu0 %v741
    %v3146 = vpop.f32.mrb[0].mxu0
    %v3147 = vadd.f32 %v3106, %v3146
    %v3148 = vpop.f32.mrb[0].mxu0
    %v3149 = vadd.f32 %v3108, %v3148
    %v3150 = vpop.f32.mrb[0].mxu0
    %v3151 = vpop.f32.mrb[0].mxu0
    %3152 = vdwg.mxu0
    %3153 = vmatprep.subr.bf16.mxu0 %v2096
    %3154 = vmatpush1.bf16.msra.mxu0 %v2095
    %3155 = vmatprep.subr.bf16.mxu0 %v2104
    %3156 = vmatpush1.bf16.msra.mxu0 %v2103
    %3157 = vmatprep.subr.bf16.mxu0 %v2112
    %3158 = vmatpush1.bf16.msra.mxu0 %v2111
    %3159 = vmatprep.subr.bf16.mxu0 %v2120
    %3160 = vmatpush1.bf16.msra.mxu0 %v2119
    %3161 = vmatprep.subr.bf16.mxu0 %v2128
    %3162 = vmatpush1.bf16.msra.mxu0 %v2127
    %3163 = vmatprep.subr.bf16.mxu0 %v2136
    %3164 = vmatpush1.bf16.msra.mxu0 %v2135
    %3165 = vmatprep.subr.bf16.mxu0 %v2144
    %3166 = vmatpush1.bf16.msra.mxu0 %v2143
    %3167 = vmatprep.subr.bf16.mxu0 %v2152
    %3168 = vmatpush1.bf16.msra.mxu0 %v2151
    %3169 = vmatprep.subr.bf16.mxu0 %v2160
    %3170 = vmatpush1.bf16.msra.mxu0 %v2159
    %3171 = vmatprep.subr.bf16.mxu0 %v2168
    %3172 = vmatpush1.bf16.msra.mxu0 %v2167
    %3173 = vmatprep.subr.bf16.mxu0 %v2176
    %3174 = vmatpush1.bf16.msra.mxu0 %v2175
    %3175 = vmatprep.subr.bf16.mxu0 %v2184
    %3176 = vmatpush1.bf16.msra.mxu0 %v2183
    %3177 = vmatprep.subr.bf16.mxu0 %v2192
    %3178 = vmatpush1.bf16.msra.mxu0 %v2191
    %3179 = vmatprep.subr.bf16.mxu0 %v2200
    %3180 = vmatpush1.bf16.msra.mxu0 %v2199
    %3181 = vmatprep.subr.bf16.mxu0 %v2208
    %3182 = vmatpush1.bf16.msra.mxu0 %v2207
    %3183 = vmatprep.subr.bf16.mxu0 %v2216
    %3184 = vmatpush1.bf16.msra.mxu0 %v2215
    %3185 = vmatprep.mubr.bf16.mxu0 %v736
    %3186 = vmatmul.mubr.bf16.gmra.mrb[0].mxu0 %v735
    %v3187 = vpop.f32.mrb[0].mxu0
    %v3188 = vadd.f32 0.0, %v3187
    %v3189 = vpop.f32.mrb[0].mxu0
    %v3190 = vadd.f32 0.0, %v3189
    %v3191 = vpop.f32.mrb[0].mxu0
    %v3192 = vpop.f32.mrb[0].mxu0
    %3193 = vdwg.mxu0
    %3194 = vmatprep.subr.bf16.mxu0 %v2224
    %3195 = vmatpush1.bf16.msra.mxu0 %v2223
    %3196 = vmatprep.subr.bf16.mxu0 %v2232
    %3197 = vmatpush1.bf16.msra.mxu0 %v2231
    %3198 = vmatprep.subr.bf16.mxu0 %v2240
    %3199 = vmatpush1.bf16.msra.mxu0 %v2239
    %3200 = vmatprep.subr.bf16.mxu0 %v2248
    %3201 = vmatpush1.bf16.msra.mxu0 %v2247
    %3202 = vmatprep.subr.bf16.mxu0 %v2256
    %3203 = vmatpush1.bf16.msra.mxu0 %v2255
    %3204 = vmatprep.subr.bf16.mxu0 %v2264
    %3205 = vmatpush1.bf16.msra.mxu0 %v2263
    %3206 = vmatprep.subr.bf16.mxu0 %v2272
    %3207 = vmatpush1.bf16.msra.mxu0 %v2271
    %3208 = vmatprep.subr.bf16.mxu0 %v2280
    %3209 = vmatpush1.bf16.msra.mxu0 %v2279
    %3210 = vmatprep.subr.bf16.mxu0 %v2288
    %3211 = vmatpush1.bf16.msra.mxu0 %v2287
    %3212 = vmatprep.subr.bf16.mxu0 %v2296
    %3213 = vmatpush1.bf16.msra.mxu0 %v2295
    %3214 = vmatprep.subr.bf16.mxu0 %v2304
    %3215 = vmatpush1.bf16.msra.mxu0 %v2303
    %3216 = vmatprep.subr.bf16.mxu0 %v2312
    %3217 = vmatpush1.bf16.msra.mxu0 %v2311
    %3218 = vmatprep.subr.bf16.mxu0 %v2320
    %3219 = vmatpush1.bf16.msra.mxu0 %v2319
    %3220 = vmatprep.subr.bf16.mxu0 %v2328
    %3221 = vmatpush1.bf16.msra.mxu0 %v2327
    %3222 = vmatprep.subr.bf16.mxu0 %v2336
    %3223 = vmatpush1.bf16.msra.mxu0 %v2335
    %3224 = vmatprep.subr.bf16.mxu0 %v2344
    %3225 = vmatpush1.bf16.msra.mxu0 %v2343
    %3226 = vmatprep.mubr.bf16.mxu0 %v738
    %3227 = vmatmul.mubr.bf16.gmra.mrb[0].mxu0 %v737
    %v3228 = vpop.f32.mrb[0].mxu0
    %v3229 = vadd.f32 %v3188, %v3228
    %v3230 = vpop.f32.mrb[0].mxu0
    %v3231 = vadd.f32 %v3190, %v3230
    %v3232 = vpop.f32.mrb[0].mxu0
    %v3233 = vpop.f32.mrb[0].mxu0
    %3234 = vdwg.mxu0
    %3235 = vmatprep.subr.bf16.mxu0 %v2352
    %3236 = vmatpush1.bf16.msra.mxu0 %v2351
    %3237 = vmatprep.subr.bf16.mxu0 %v2360
    %3238 = vmatpush1.bf16.msra.mxu0 %v2359
    %3239 = vmatprep.subr.bf16.mxu0 %v2368
    %3240 = vmatpush1.bf16.msra.mxu0 %v2367
    %3241 = vmatprep.subr.bf16.mxu0 %v2376
    %3242 = vmatpush1.bf16.msra.mxu0 %v2375
    %3243 = vmatprep.subr.bf16.mxu0 %v2384
    %3244 = vmatpush1.bf16.msra.mxu0 %v2383
    %3245 = vmatprep.subr.bf16.mxu0 %v2392
    %3246 = vmatpush1.bf16.msra.mxu0 %v2391
    %3247 = vmatprep.subr.bf16.mxu0 %v2400
    %3248 = vmatpush1.bf16.msra.mxu0 %v2399
    %3249 = vmatprep.subr.bf16.mxu0 %v2408
    %3250 = vmatpush1.bf16.msra.mxu0 %v2407
    %3251 = vmatprep.subr.bf16.mxu0 %v2416
    %3252 = vmatpush1.bf16.msra.mxu0 %v2415
    %3253 = vmatprep.subr.bf16.mxu0 %v2424
    %3254 = vmatpush1.bf16.msra.mxu0 %v2423
    %3255 = vmatprep.subr.bf16.mxu0 %v2432
    %3256 = vmatpush1.bf16.msra.mxu0 %v2431
    %3257 = vmatprep.subr.bf16.mxu0 %v2440
    %3258 = vmatpush1.bf16.msra.mxu0 %v2439
    %3259 = vmatprep.subr.bf16.mxu0 %v2448
    %3260 = vmatpush1.bf16.msra.mxu0 %v2447
    %3261 = vmatprep.subr.bf16.mxu0 %v2456
    %3262 = vmatpush1.bf16.msra.mxu0 %v2455
    %3263 = vmatprep.subr.bf16.mxu0 %v2464
    %3264 = vmatpush1.bf16.msra.mxu0 %v2463
    %3265 = vmatprep.subr.bf16.mxu0 %v2472
    %3266 = vmatpush1.bf16.msra.mxu0 %v2471
    %3267 = vmatprep.mubr.bf16.mxu0 %v740
    %3268 = vmatmul.mubr.bf16.gmra.mrb[0].mxu0 %v739
    %v3269 = vpop.f32.mrb[0].mxu0
    %v3270 = vadd.f32 %v3229, %v3269
    %v3271 = vpop.f32.mrb[0].mxu0
    %v3272 = vadd.f32 %v3231, %v3271
    %v3273 = vpop.f32.mrb[0].mxu0
    %v3274 = vpop.f32.mrb[0].mxu0
    %3275 = vdwg.mxu0
    %3276 = vmatprep.subr.bf16.mxu0 %v2480
    %3277 = vmatpush1.bf16.msra.mxu0 %v2479
    %3278 = vmatprep.subr.bf16.mxu0 %v2488
    %3279 = vmatpush1.bf16.msra.mxu0 %v2487
    %3280 = vmatprep.subr.bf16.mxu0 %v2496
    %3281 = vmatpush1.bf16.msra.mxu0 %v2495
    %3282 = vmatprep.subr.bf16.mxu0 %v2504
    %3283 = vmatpush1.bf16.msra.mxu0 %v2503
    %3284 = vmatprep.subr.bf16.mxu0 %v2512
    %3285 = vmatpush1.bf16.msra.mxu0 %v2511
    %3286 = vmatprep.subr.bf16.mxu0 %v2520
    %3287 = vmatpush1.bf16.msra.mxu0 %v2519
    %3288 = vmatprep.subr.bf16.mxu0 %v2528
    %3289 = vmatpush1.bf16.msra.mxu0 %v2527
    %3290 = vmatprep.subr.bf16.mxu0 %v2536
    %3291 = vmatpush1.bf16.msra.mxu0 %v2535
    %3292 = vmatprep.subr.bf16.mxu0 0
    %3293 = vmatpush1.bf16.msra.mxu0 0
    %3294 = vmatprep.subr.bf16.mxu0 0
    %3295 = vmatpush1.bf16.msra.mxu0 0
    %3296 = vmatprep.subr.bf16.mxu0 0
    %3297 = vmatpush1.bf16.msra.mxu0 0
    %3298 = vmatprep.subr.bf16.mxu0 0
    %3299 = vmatpush1.bf16.msra.mxu0 0
    %3300 = vmatprep.subr.bf16.mxu0 0
    %3301 = vmatpush1.bf16.msra.mxu0 0
    %3302 = vmatprep.subr.bf16.mxu0 0
    %3303 = vmatpush1.bf16.msra.mxu0 0
    %3304 = vmatprep.subr.bf16.mxu0 0
    %3305 = vmatpush1.bf16.msra.mxu0 0
    %3306 = vmatprep.subr.bf16.mxu0 0
    %3307 = vmatpush1.bf16.msra.mxu0 0
    %3308 = vmatprep.mubr.bf16.mxu0 0
    %3309 = vmatmul.mubr.bf16.gmra.mrb[0].mxu0 %v741
    %v3310 = vpop.f32.mrb[0].mxu0
    %v3311 = vadd.f32 %v3270, %v3310
    %v3312 = vpop.f32.mrb[0].mxu0
    %v3313 = vadd.f32 %v3272, %v3312
    %v3314 = vpop.f32.mrb[0].mxu0
    %v3315 = vpop.f32.mrb[0].mxu0
    %3316 = vdwg.mxu0
    %3317 = vmatprep.subr.bf16.mxu0 %v2098
    %3318 = vmatpush1.bf16.msra.mxu0 %v2097
    %3319 = vmatprep.subr.bf16.mxu0 %v2106
    %3320 = vmatpush1.bf16.msra.mxu0 %v2105
    %3321 = vmatprep.subr.bf16.mxu0 %v2114
    %3322 = vmatpush1.bf16.msra.mxu0 %v2113
    %3323 = vmatprep.subr.bf16.mxu0 %v2122
    %3324 = vmatpush1.bf16.msra.mxu0 %v2121
    %3325 = vmatprep.subr.bf16.mxu0 %v2130
    %3326 = vmatpush1.bf16.msra.mxu0 %v2129
    %3327 = vmatprep.subr.bf16.mxu0 %v2138
    %3328 = vmatpush1.bf16.msra.mxu0 %v2137
    %3329 = vmatprep.subr.bf16.mxu0 %v2146
    %3330 = vmatpush1.bf16.msra.mxu0 %v2145
    %3331 = vmatprep.subr.bf16.mxu0 %v2154
    %3332 = vmatpush1.bf16.msra.mxu0 %v2153
    %3333 = vmatprep.subr.bf16.mxu0 %v2162
    %3334 = vmatpush1.bf16.msra.mxu0 %v2161
    %3335 = vmatprep.subr.bf16.mxu0 %v2170
    %3336 = vmatpush1.bf16.msra.mxu0 %v2169
    %3337 = vmatprep.subr.bf16.mxu0 %v2178
    %3338 = vmatpush1.bf16.msra.mxu0 %v2177
    %3339 = vmatprep.subr.bf16.mxu0 %v2186
    %3340 = vmatpush1.bf16.msra.mxu0 %v2185
    %3341 = vmatprep.subr.bf16.mxu0 %v2194
    %3342 = vmatpush1.bf16.msra.mxu0 %v2193
    %3343 = vmatprep.subr.bf16.mxu0 %v2202
    %3344 = vmatpush1.bf16.msra.mxu0 %v2201
    %3345 = vmatprep.subr.bf16.mxu0 %v2210
    %3346 = vmatpush1.bf16.msra.mxu0 %v2209
    %3347 = vmatprep.subr.bf16.mxu0 %v2218
    %3348 = vmatpush1.bf16.msra.mxu0 %v2217
    %3349 = vmatprep.mubr.bf16.mxu0 %v736
    %3350 = vmatmul.mubr.bf16.gmra.mrb[0].mxu0 %v735
    %v3351 = vpop.f32.mrb[0].mxu0
    %v3352 = vadd.f32 0.0, %v3351
    %v3353 = vpop.f32.mrb[0].mxu0
    %v3354 = vadd.f32 0.0, %v3353
    %v3355 = vpop.f32.mrb[0].mxu0
    %v3356 = vpop.f32.mrb[0].mxu0
    %3357 = vdwg.mxu0
    %3358 = vmatprep.subr.bf16.mxu0 %v2226
    %3359 = vmatpush1.bf16.msra.mxu0 %v2225
    %3360 = vmatprep.subr.bf16.mxu0 %v2234
    %3361 = vmatpush1.bf16.msra.mxu0 %v2233
    %3362 = vmatprep.subr.bf16.mxu0 %v2242
    %3363 = vmatpush1.bf16.msra.mxu0 %v2241
    %3364 = vmatprep.subr.bf16.mxu0 %v2250
    %3365 = vmatpush1.bf16.msra.mxu0 %v2249
    %3366 = vmatprep.subr.bf16.mxu0 %v2258
    %3367 = vmatpush1.bf16.msra.mxu0 %v2257
    %3368 = vmatprep.subr.bf16.mxu0 %v2266
    %3369 = vmatpush1.bf16.msra.mxu0 %v2265
    %3370 = vmatprep.subr.bf16.mxu0 %v2274
    %3371 = vmatpush1.bf16.msra.mxu0 %v2273
    %3372 = vmatprep.subr.bf16.mxu0 %v2282
    %3373 = vmatpush1.bf16.msra.mxu0 %v2281
    %3374 = vmatprep.subr.bf16.mxu0 %v2290
    %3375 = vmatpush1.bf16.msra.mxu0 %v2289
    %3376 = vmatprep.subr.bf16.mxu0 %v2298
    %3377 = vmatpush1.bf16.msra.mxu0 %v2297
    %3378 = vmatprep.subr.bf16.mxu0 %v2306
    %3379 = vmatpush1.bf16.msra.mxu0 %v2305
    %3380 = vmatprep.subr.bf16.mxu0 %v2314
    %3381 = vmatpush1.bf16.msra.mxu0 %v2313
    %3382 = vmatprep.subr.bf16.mxu0 %v2322
    %3383 = vmatpush1.bf16.msra.mxu0 %v2321
    %3384 = vmatprep.subr.bf16.mxu0 %v2330
    %3385 = vmatpush1.bf16.msra.mxu0 %v2329
    %3386 = vmatprep.subr.bf16.mxu0 %v2338
    %3387 = vmatpush1.bf16.msra.mxu0 %v2337
    %3388 = vmatprep.subr.bf16.mxu0 %v2346
    %3389 = vmatpush1.bf16.msra.mxu0 %v2345
    %3390 = vmatprep.mubr.bf16.mxu0 %v738
    %3391 = vmatmul.mubr.bf16.gmra.mrb[0].mxu0 %v737
    %v3392 = vpop.f32.mrb[0].mxu0
    %v3393 = vadd.f32 %v3352, %v3392
    %v3394 = vpop.f32.mrb[0].mxu0
    %v3395 = vadd.f32 %v3354, %v3394
    %v3396 = vpop.f32.mrb[0].mxu0
    %v3397 = vpop.f32.mrb[0].mxu0
    %3398 = vdwg.mxu0
    %3399 = vmatprep.subr.bf16.mxu0 %v2354
    %3400 = vmatpush1.bf16.msra.mxu0 %v2353
    %3401 = vmatprep.subr.bf16.mxu0 %v2362
    %3402 = vmatpush1.bf16.msra.mxu0 %v2361
    %3403 = vmatprep.subr.bf16.mxu0 %v2370
    %3404 = vmatpush1.bf16.msra.mxu0 %v2369
    %3405 = vmatprep.subr.bf16.mxu0 %v2378
    %3406 = vmatpush1.bf16.msra.mxu0 %v2377
    %3407 = vmatprep.subr.bf16.mxu0 %v2386
    %3408 = vmatpush1.bf16.msra.mxu0 %v2385
    %3409 = vmatprep.subr.bf16.mxu0 %v2394
    %3410 = vmatpush1.bf16.msra.mxu0 %v2393
    %3411 = vmatprep.subr.bf16.mxu0 %v2402
    %3412 = vmatpush1.bf16.msra.mxu0 %v2401
    %3413 = vmatprep.subr.bf16.mxu0 %v2410
    %3414 = vmatpush1.bf16.msra.mxu0 %v2409
    %3415 = vmatprep.subr.bf16.mxu0 %v2418
    %3416 = vmatpush1.bf16.msra.mxu0 %v2417
    %3417 = vmatprep.subr.bf16.mxu0 %v2426
    %3418 = vmatpush1.bf16.msra.mxu0 %v2425
    %3419 = vmatprep.subr.bf16.mxu0 %v2434
    %3420 = vmatpush1.bf16.msra.mxu0 %v2433
    %3421 = vmatprep.subr.bf16.mxu0 %v2442
    %3422 = vmatpush1.bf16.msra.mxu0 %v2441
    %3423 = vmatprep.subr.bf16.mxu0 %v2450
    %3424 = vmatpush1.bf16.msra.mxu0 %v2449
    %3425 = vmatprep.subr.bf16.mxu0 %v2458
    %3426 = vmatpush1.bf16.msra.mxu0 %v2457
    %3427 = vmatprep.subr.bf16.mxu0 %v2466
    %3428 = vmatpush1.bf16.msra.mxu0 %v2465
    %3429 = vmatprep.subr.bf16.mxu0 %v2474
    %3430 = vmatpush1.bf16.msra.mxu0 %v2473
    %3431 = vmatprep.mubr.bf16.mxu0 %v740
    %3432 = vmatmul.mubr.bf16.gmra.mrb[0].mxu0 %v739
    %v3433 = vpop.f32.mrb[0].mxu0
    %v3434 = vadd.f32 %v3393, %v3433
    %v3435 = vpop.f32.mrb[0].mxu0
    %v3436 = vadd.f32 %v3395, %v3435
    %v3437 = vpop.f32.mrb[0].mxu0
    %v3438 = vpop.f32.mrb[0].mxu0
    %3439 = vdwg.mxu0
    %3440 = vmatprep.subr.bf16.mxu0 %v2482
    %3441 = vmatpush1.bf16.msra.mxu0 %v2481
    %3442 = vmatprep.subr.bf16.mxu0 %v2490
    %3443 = vmatpush1.bf16.msra.mxu0 %v2489
    %3444 = vmatprep.subr.bf16.mxu0 %v2498
    %3445 = vmatpush1.bf16.msra.mxu0 %v2497
    %3446 = vmatprep.subr.bf16.mxu0 %v2506
    %3447 = vmatpush1.bf16.msra.mxu0 %v2505
    %3448 = vmatprep.subr.bf16.mxu0 %v2514
    %3449 = vmatpush1.bf16.msra.mxu0 %v2513
    %3450 = vmatprep.subr.bf16.mxu0 %v2522
    %3451 = vmatpush1.bf16.msra.mxu0 %v2521
    %3452 = vmatprep.subr.bf16.mxu0 %v2530
    %3453 = vmatpush1.bf16.msra.mxu0 %v2529
    %3454 = vmatprep.subr.bf16.mxu0 %v2538
    %3455 = vmatpush1.bf16.msra.mxu0 %v2537
    %3456 = vmatprep.subr.bf16.mxu0 0
    %3457 = vmatpush1.bf16.msra.mxu0 0
    %3458 = vmatprep.subr.bf16.mxu0 0
    %3459 = vmatpush1.bf16.msra.mxu0 0
    %3460 = vmatprep.subr.bf16.mxu0 0
    %3461 = vmatpush1.bf16.msra.mxu0 0
    %3462 = vmatprep.subr.bf16.mxu0 0
    %3463 = vmatpush1.bf16.msra.mxu0 0
    %3464 = vmatprep.subr.bf16.mxu0 0
    %3465 = vmatpush1.bf16.msra.mxu0 0
    %3466 = vmatprep.subr.bf16.mxu0 0
    %3467 = vmatpush1.bf16.msra.mxu0 0
    %3468 = vmatprep.subr.bf16.mxu0 0
    %3469 = vmatpush1.bf16.msra.mxu0 0
    %3470 = vmatprep.subr.bf16.mxu0 0
    %3471 = vmatpush1.bf16.msra.mxu0 0
    %3472 = vmatprep.mubr.bf16.mxu0 0
    %3473 = vmatmul.mubr.bf16.gmra.mrb[0].mxu0 %v741
    %v3474 = vpop.f32.mrb[0].mxu0
    %v3475 = vadd.f32 %v3434, %v3474
    %v3476 = vpop.f32.mrb[0].mxu0
    %v3477 = vadd.f32 %v3436, %v3476
    %v3478 = vpop.f32.mrb[0].mxu0
    %v3479 = vpop.f32.mrb[0].mxu0
    %3480 = vdwg.mxu0
    %3481 = vmatprep.subr.bf16.mxu0 %v2100
    %3482 = vmatpush1.bf16.msra.mxu0 %v2099
    %3483 = vmatprep.subr.bf16.mxu0 %v2108
    %3484 = vmatpush1.bf16.msra.mxu0 %v2107
    %3485 = vmatprep.subr.bf16.mxu0 %v2116
    %3486 = vmatpush1.bf16.msra.mxu0 %v2115
    %3487 = vmatprep.subr.bf16.mxu0 %v2124
    %3488 = vmatpush1.bf16.msra.mxu0 %v2123
    %3489 = vmatprep.subr.bf16.mxu0 %v2132
    %3490 = vmatpush1.bf16.msra.mxu0 %v2131
    %3491 = vmatprep.subr.bf16.mxu0 %v2140
    %3492 = vmatpush1.bf16.msra.mxu0 %v2139
    %3493 = vmatprep.subr.bf16.mxu0 %v2148
    %3494 = vmatpush1.bf16.msra.mxu0 %v2147
    %3495 = vmatprep.subr.bf16.mxu0 %v2156
    %3496 = vmatpush1.bf16.msra.mxu0 %v2155
    %3497 = vmatprep.subr.bf16.mxu0 %v2164
    %3498 = vmatpush1.bf16.msra.mxu0 %v2163
    %3499 = vmatprep.subr.bf16.mxu0 %v2172
    %3500 = vmatpush1.bf16.msra.mxu0 %v2171
    %3501 = vmatprep.subr.bf16.mxu0 %v2180
    %3502 = vmatpush1.bf16.msra.mxu0 %v2179
    %3503 = vmatprep.subr.bf16.mxu0 %v2188
    %3504 = vmatpush1.bf16.msra.mxu0 %v2187
    %3505 = vmatprep.subr.bf16.mxu0 %v2196
    %3506 = vmatpush1.bf16.msra.mxu0 %v2195
    %3507 = vmatprep.subr.bf16.mxu0 %v2204
    %3508 = vmatpush1.bf16.msra.mxu0 %v2203
    %3509 = vmatprep.subr.bf16.mxu0 %v2212
    %3510 = vmatpush1.bf16.msra.mxu0 %v2211
    %3511 = vmatprep.subr.bf16.mxu0 %v2220
    %3512 = vmatpush1.bf16.msra.mxu0 %v2219
    %3513 = vmatprep.mubr.bf16.mxu0 %v736
    %3514 = vmatmul.mubr.bf16.gmra.mrb[0].mxu0 %v735
    %v3515 = vpop.f32.mrb[0].mxu0
    %v3516 = vadd.f32 0.0, %v3515
    %v3517 = vpop.f32.mrb[0].mxu0
    %v3518 = vadd.f32 0.0, %v3517
    %v3519 = vpop.f32.mrb[0].mxu0
    %v3520 = vpop.f32.mrb[0].mxu0
    %3521 = vdwg.mxu0
    %3522 = vmatprep.subr.bf16.mxu0 %v2228
    %3523 = vmatpush1.bf16.msra.mxu0 %v2227
    %3524 = vmatprep.subr.bf16.mxu0 %v2236
    %3525 = vmatpush1.bf16.msra.mxu0 %v2235
    %3526 = vmatprep.subr.bf16.mxu0 %v2244
    %3527 = vmatpush1.bf16.msra.mxu0 %v2243
    %3528 = vmatprep.subr.bf16.mxu0 %v2252
    %3529 = vmatpush1.bf16.msra.mxu0 %v2251
    %3530 = vmatprep.subr.bf16.mxu0 %v2260
    %3531 = vmatpush1.bf16.msra.mxu0 %v2259
    %3532 = vmatprep.subr.bf16.mxu0 %v2268
    %3533 = vmatpush1.bf16.msra.mxu0 %v2267
    %3534 = vmatprep.subr.bf16.mxu0 %v2276
    %3535 = vmatpush1.bf16.msra.mxu0 %v2275
    %3536 = vmatprep.subr.bf16.mxu0 %v2284
    %3537 = vmatpush1.bf16.msra.mxu0 %v2283
    %3538 = vmatprep.subr.bf16.mxu0 %v2292
    %3539 = vmatpush1.bf16.msra.mxu0 %v2291
    %3540 = vmatprep.subr.bf16.mxu0 %v2300
    %3541 = vmatpush1.bf16.msra.mxu0 %v2299
    %3542 = vmatprep.subr.bf16.mxu0 %v2308
    %3543 = vmatpush1.bf16.msra.mxu0 %v2307
    %3544 = vmatprep.subr.bf16.mxu0 %v2316
    %3545 = vmatpush1.bf16.msra.mxu0 %v2315
    %3546 = vmatprep.subr.bf16.mxu0 %v2324
    %3547 = vmatpush1.bf16.msra.mxu0 %v2323
    %3548 = vmatprep.subr.bf16.mxu0 %v2332
    %3549 = vmatpush1.bf16.msra.mxu0 %v2331
    %3550 = vmatprep.subr.bf16.mxu0 %v2340
    %3551 = vmatpush1.bf16.msra.mxu0 %v2339
    %3552 = vmatprep.subr.bf16.mxu0 %v2348
    %3553 = vmatpush1.bf16.msra.mxu0 %v2347
    %3554 = vmatprep.mubr.bf16.mxu0 %v738
    %3555 = vmatmul.mubr.bf16.gmra.mrb[0].mxu0 %v737
    %v3556 = vpop.f32.mrb[0].mxu0
    %v3557 = vadd.f32 %v3516, %v3556
    %v3558 = vpop.f32.mrb[0].mxu0
    %v3559 = vadd.f32 %v3518, %v3558
    %v3560 = vpop.f32.mrb[0].mxu0
    %v3561 = vpop.f32.mrb[0].mxu0
    %3562 = vdwg.mxu0
    %3563 = vmatprep.subr.bf16.mxu0 %v2356
    %3564 = vmatpush1.bf16.msra.mxu0 %v2355
    %3565 = vmatprep.subr.bf16.mxu0 %v2364
    %3566 = vmatpush1.bf16.msra.mxu0 %v2363
    %3567 = vmatprep.subr.bf16.mxu0 %v2372
    %3568 = vmatpush1.bf16.msra.mxu0 %v2371
    %3569 = vmatprep.subr.bf16.mxu0 %v2380
    %3570 = vmatpush1.bf16.msra.mxu0 %v2379
    %3571 = vmatprep.subr.bf16.mxu0 %v2388
    %3572 = vmatpush1.bf16.msra.mxu0 %v2387
    %3573 = vmatprep.subr.bf16.mxu0 %v2396
    %3574 = vmatpush1.bf16.msra.mxu0 %v2395
    %3575 = vmatprep.subr.bf16.mxu0 %v2404
    %3576 = vmatpush1.bf16.msra.mxu0 %v2403
    %3577 = vmatprep.subr.bf16.mxu0 %v2412
    %3578 = vmatpush1.bf16.msra.mxu0 %v2411
    %3579 = vmatprep.subr.bf16.mxu0 %v2420
    %3580 = vmatpush1.bf16.msra.mxu0 %v2419
    %3581 = vmatprep.subr.bf16.mxu0 %v2428
    %3582 = vmatpush1.bf16.msra.mxu0 %v2427
    %3583 = vmatprep.subr.bf16.mxu0 %v2436
    %3584 = vmatpush1.bf16.msra.mxu0 %v2435
    %3585 = vmatprep.subr.bf16.mxu0 %v2444
    %3586 = vmatpush1.bf16.msra.mxu0 %v2443
    %3587 = vmatprep.subr.bf16.mxu0 %v2452
    %3588 = vmatpush1.bf16.msra.mxu0 %v2451
    %3589 = vmatprep.subr.bf16.mxu0 %v2460
    %3590 = vmatpush1.bf16.msra.mxu0 %v2459
    %3591 = vmatprep.subr.bf16.mxu0 %v2468
    %3592 = vmatpush1.bf16.msra.mxu0 %v2467
    %3593 = vmatprep.subr.bf16.mxu0 %v2476
    %3594 = vmatpush1.bf16.msra.mxu0 %v2475
    %3595 = vmatprep.mubr.bf16.mxu0 %v740
    %3596 = vmatmul.mubr.bf16.gmra.mrb[0].mxu0 %v739
    %v3597 = vpop.f32.mrb[0].mxu0
    %v3598 = vadd.f32 %v3557, %v3597
    %v3599 = vpop.f32.mrb[0].mxu0
    %v3600 = vadd.f32 %v3559, %v3599
    %v3601 = vpop.f32.mrb[0].mxu0
    %v3602 = vpop.f32.mrb[0].mxu0
    %3603 = vdwg.mxu0
    %3604 = vmatprep.subr.bf16.mxu0 %v2484
    %3605 = vmatpush1.bf16.msra.mxu0 %v2483
    %3606 = vmatprep.subr.bf16.mxu0 %v2492
    %3607 = vmatpush1.bf16.msra.mxu0 %v2491
    %3608 = vmatprep.subr.bf16.mxu0 %v2500
    %3609 = vmatpush1.bf16.msra.mxu0 %v2499
    %3610 = vmatprep.subr.bf16.mxu0 %v2508
    %3611 = vmatpush1.bf16.msra.mxu0 %v2507
    %3612 = vmatprep.subr.bf16.mxu0 %v2516
    %3613 = vmatpush1.bf16.msra.mxu0 %v2515
    %3614 = vmatprep.subr.bf16.mxu0 %v2524
    %3615 = vmatpush1.bf16.msra.mxu0 %v2523
    %3616 = vmatprep.subr.bf16.mxu0 %v2532
    %3617 = vmatpush1.bf16.msra.mxu0 %v2531
    %3618 = vmatprep.subr.bf16.mxu0 %v2540
    %3619 = vmatpush1.bf16.msra.mxu0 %v2539
    %3620 = vmatprep.subr.bf16.mxu0 0
    %3621 = vmatpush1.bf16.msra.mxu0 0
    %3622 = vmatprep.subr.bf16.mxu0 0
    %3623 = vmatpush1.bf16.msra.mxu0 0
    %3624 = vmatprep.subr.bf16.mxu0 0
    %3625 = vmatpush1.bf16.msra.mxu0 0
    %3626 = vmatprep.subr.bf16.mxu0 0
    %3627 = vmatpush1.bf16.msra.mxu0 0
    %3628 = vmatprep.subr.bf16.mxu0 0
    %3629 = vmatpush1.bf16.msra.mxu0 0
    %3630 = vmatprep.subr.bf16.mxu0 0
    %3631 = vmatpush1.bf16.msra.mxu0 0
    %3632 = vmatprep.subr.bf16.mxu0 0
    %3633 = vmatpush1.bf16.msra.mxu0 0
    %3634 = vmatprep.subr.bf16.mxu0 0
    %3635 = vmatpush1.bf16.msra.mxu0 0
    %3636 = vmatprep.mubr.bf16.mxu0 0
    %3637 = vmatmul.mubr.bf16.gmra.mrb[0].mxu0 %v741
    %v3638 = vpop.f32.mrb[0].mxu0
    %v3639 = vadd.f32 %v3598, %v3638
    %v3640 = vpop.f32.mrb[0].mxu0
    %v3641 = vadd.f32 %v3600, %v3640
    %v3642 = vpop.f32.mrb[0].mxu0
    %v3643 = vpop.f32.mrb[0].mxu0
    %3644 = vdwg.mxu0
    %v3645 = vpack.c.bf16 %v3147, %v3147
    %v3646 = vpack.c.bf16 %v3149, %v3149
    %v3647 = vpack.c.bf16 %v3311, %v3311
    %v3648 = vpack.c.bf16 %v3313, %v3313
    %v3649 = vpack.c.bf16 %v3475, %v3475
    %v3650 = vpack.c.bf16 %v3477, %v3477
    %v3651 = vpack.c.bf16 %v3639, %v3639
    %v3652 = vpack.c.bf16 %v3641, %v3641
    %v3654 = vlaneseq
    %v3655 = vshrl.u32 %v3654, 7
    %v3656 = vsub.s32 0, %v3655
    %v3657 = vrot.slane %v723, %v3656
    %v3658 = vlaneseq
    %v3659 = vshrl.u32 %v3658, 7
    %v3660 = vsub.s32 1, %v3659
    %v3661 = vrot.slane %v723, %v3660
    %v3662 = vlaneseq
    %v3663 = vshrl.u32 %v3662, 7
    %v3664 = vsub.s32 2, %v3663
    %v3665 = vrot.slane %v723, %v3664
    %v3666 = vlaneseq
    %v3667 = vshrl.u32 %v3666, 7
    %v3668 = vsub.s32 3, %v3667
    %v3669 = vrot.slane %v723, %v3668
    %v3670 = vlaneseq
    %v3671 = vshrl.u32 %v3670, 7
    %v3672 = vsub.s32 4, %v3671
    %v3673 = vrot.slane %v723, %v3672
    %v3674 = vlaneseq
    %v3675 = vshrl.u32 %v3674, 7
    %v3676 = vsub.s32 5, %v3675
    %v3677 = vrot.slane %v723, %v3676
    %v3678 = vlaneseq
    %v3679 = vshrl.u32 %v3678, 7
    %v3680 = vsub.s32 6, %v3679
    %v3681 = vrot.slane %v723, %v3680
    %v3682 = vlaneseq
    %v3683 = vshrl.u32 %v3682, 7
    %v3684 = vsub.s32 7, %v3683
    %v3685 = vrot.slane %v723, %v3684
    %v3694 = vpack.c.bf16 %v3657, %v3657
    %v3695 = vpack.c.bf16 %v3661, %v3661
    %v3696 = vpack.c.bf16 %v3665, %v3665
    %v3697 = vpack.c.bf16 %v3669, %v3669
    %v3698 = vpack.c.bf16 %v3673, %v3673
    %v3699 = vpack.c.bf16 %v3677, %v3677
    %v3700 = vpack.c.bf16 %v3681, %v3681
    %v3701 = vpack.c.bf16 %v3685, %v3685
    %v3703 = vpack.i.b16 %v3694, %v3694
    %v3705 = vlaneseq
    %v3706 = vshrl.u32 %v3705, 7
    %v3707 = vsub.s32 0, %v3706
    %v3708 = vrot.slane %v3703, %v3707
    %v3710 = vpack.i.b16 %v3695, %v3695
    %v3712 = vlaneseq
    %v3713 = vshrl.u32 %v3712, 7
    %v3714 = vsub.s32 0, %v3713
    %v3715 = vrot.slane %v3710, %v3714
    %v3717 = vpack.i.b16 %v3696, %v3696
    %v3719 = vlaneseq
    %v3720 = vshrl.u32 %v3719, 7
    %v3721 = vsub.s32 0, %v3720
    %v3722 = vrot.slane %v3717, %v3721
    %v3724 = vpack.i.b16 %v3697, %v3697
    %v3726 = vlaneseq
    %v3727 = vshrl.u32 %v3726, 7
    %v3728 = vsub.s32 0, %v3727
    %v3729 = vrot.slane %v3724, %v3728
    %v3731 = vpack.i.b16 %v3698, %v3698
    %v3733 = vlaneseq
    %v3734 = vshrl.u32 %v3733, 7
    %v3735 = vsub.s32 0, %v3734
    %v3736 = vrot.slane %v3731, %v3735
    %v3738 = vpack.i.b16 %v3699, %v3699
    %v3740 = vlaneseq
    %v3741 = vshrl.u32 %v3740, 7
    %v3742 = vsub.s32 0, %v3741
    %v3743 = vrot.slane %v3738, %v3742
    %v3745 = vpack.i.b16 %v3700, %v3700
    %v3747 = vlaneseq
    %v3748 = vshrl.u32 %v3747, 7
    %v3749 = vsub.s32 0, %v3748
    %v3750 = vrot.slane %v3745, %v3749
    %v3752 = vpack.i.b16 %v3701, %v3701
    %v3754 = vlaneseq
    %v3755 = vshrl.u32 %v3754, 7
    %v3756 = vsub.s32 0, %v3755
    %v3757 = vrot.slane %v3752, %v3756
    %v3758 = vadd.bf16 %v3645, %v3708
    %v3759 = vadd.bf16 %v3646, %v3715
    %v3760 = vadd.bf16 %v3647, %v3722
    %v3761 = vadd.bf16 %v3648, %v3729
    %v3762 = vadd.bf16 %v3649, %v3736
    %v3763 = vadd.bf16 %v3650, %v3743
    %v3764 = vadd.bf16 %v3651, %v3750
    %v3765 = vadd.bf16 %v3652, %v3757
    %v3766 = vmul.bf16 %v3758, 1009007652
    %v3767 = vmul.bf16 %v3759, 1009007652
    %v3768 = vmul.bf16 %v3760, 1009007652
    %v3769 = vmul.bf16 %v3761, 1009007652
    %v3770 = vmul.bf16 %v3762, 1009007652
    %v3771 = vmul.bf16 %v3763, 1009007652
    %v3772 = vmul.bf16 %v3764, 1009007652
    %v3773 = vmul.bf16 %v3765, 1009007652
    %v3774 = vmax.bf16 %v3758, %v3766
    %v3775 = vmax.bf16 %v3759, %v3767
    %v3776 = vmax.bf16 %v3760, %v3768
    %v3777 = vmax.bf16 %v3761, %v3769
    %v3778 = vmax.bf16 %v3762, %v3770
    %v3779 = vmax.bf16 %v3763, %v3771
    %v3780 = vmax.bf16 %v3764, %v3772
    %v3781 = vmax.bf16 %v3765, %v3773
    %v3782 = vld [vmem:[#allocation8] sm:$0xff]
    %v3783 = vld [vmem:[#allocation8 + $0x8] sm:$0xff]
    %v3784 = vld [vmem:[#allocation8 + $0x10] sm:$0xff]
    %v3785 = vld [vmem:[#allocation8 + $0x18] sm:$0xff]
    %v3786 = vld [vmem:[#allocation8 + $0x20] sm:$0xff]
    %v3787 = vld [vmem:[#allocation8 + $0x28] sm:$0xff]
    %v3788 = vld [vmem:[#allocation8 + $0x30] sm:$0xff]
    %v3789 = vld [vmem:[#allocation8 + $0x38] sm:$0xff]
    %v3790 = vld [vmem:[#allocation8 + $0x40] sm:$0xff]
    %v3791 = vld [vmem:[#allocation8 + $0x48] sm:$0xff]
    %v3792 = vld [vmem:[#allocation8 + $0x50] sm:$0xff]
    %v3793 = vld [vmem:[#allocation8 + $0x58] sm:$0xff]
    %v3794 = vld [vmem:[#allocation8 + $0x60] sm:$0xff]
    %v3795 = vld [vmem:[#allocation8 + $0x68] sm:$0xff]
    %v3796 = vld [vmem:[#allocation8 + $0x70] sm:$0xff]
    %v3797 = vld [vmem:[#allocation8 + $0x78] sm:$0xff]
    %v3798 = vld [vmem:[#allocation8 + $0x80] sm:$0xff]
    %v3799 = vld [vmem:[#allocation8 + $0x88] sm:$0xff]
    %v3800 = vld [vmem:[#allocation8 + $0x90] sm:$0xff]
    %v3801 = vld [vmem:[#allocation8 + $0x98] sm:$0xff]
    %v3802 = vld [vmem:[#allocation8 + $0xa0] sm:$0xff]
    %v3803 = vld [vmem:[#allocation8 + $0xa8] sm:$0xff]
    %v3804 = vld [vmem:[#allocation8 + $0xb0] sm:$0xff]
    %v3805 = vld [vmem:[#allocation8 + $0xb8] sm:$0xff]
    %v3806 = vld [vmem:[#allocation8 + $0xc0] sm:$0xff]
    %v3807 = vld [vmem:[#allocation8 + $0xc8] sm:$0xff]
    %v3808 = vld [vmem:[#allocation8 + $0xd0] sm:$0xff]
    %v3809 = vld [vmem:[#allocation8 + $0xd8] sm:$0xff]
    %v3810 = vld [vmem:[#allocation8 + $0xe0] sm:$0xff]
    %v3811 = vld [vmem:[#allocation8 + $0xe8] sm:$0xff]
    %v3812 = vld [vmem:[#allocation8 + $0xf0] sm:$0xff]
    %v3813 = vld [vmem:[#allocation8 + $0xf8] sm:$0xff]
    %v3814 = vld [vmem:[#allocation8 + $0x100] sm:$0xff]
    %v3815 = vld [vmem:[#allocation8 + $0x108] sm:$0xff]
    %v3816 = vld [vmem:[#allocation8 + $0x110] sm:$0xff]
    %v3817 = vld [vmem:[#allocation8 + $0x118] sm:$0xff]
    %v3818 = vld [vmem:[#allocation8 + $0x120] sm:$0xff]
    %v3819 = vld [vmem:[#allocation8 + $0x128] sm:$0xff]
    %v3820 = vld [vmem:[#allocation8 + $0x130] sm:$0xff]
    %v3821 = vld [vmem:[#allocation8 + $0x138] sm:$0xff]
    %v3822 = vld [vmem:[#allocation8 + $0x140] sm:$0xff]
    %v3823 = vld [vmem:[#allocation8 + $0x148] sm:$0xff]
    %v3824 = vld [vmem:[#allocation8 + $0x150] sm:$0xff]
    %v3825 = vld [vmem:[#allocation8 + $0x158] sm:$0xff]
    %v3826 = vld [vmem:[#allocation8 + $0x160] sm:$0xff]
    %v3827 = vld [vmem:[#allocation8 + $0x168] sm:$0xff]
    %v3828 = vld [vmem:[#allocation8 + $0x170] sm:$0xff]
    %v3829 = vld [vmem:[#allocation8 + $0x178] sm:$0xff]
    %v3830 = vld [vmem:[#allocation8 + $0x180] sm:$0xff]
    %v3831 = vld [vmem:[#allocation8 + $0x188] sm:$0xff]
    %v3832 = vld [vmem:[#allocation8 + $0x190] sm:$0xff]
    %v3833 = vld [vmem:[#allocation8 + $0x198] sm:$0xff]
    %v3834 = vld [vmem:[#allocation8 + $0x1a0] sm:$0xff]
    %v3835 = vld [vmem:[#allocation8 + $0x1a8] sm:$0xff]
    %v3836 = vld [vmem:[#allocation8 + $0x1b0] sm:$0xff]
    %v3837 = vld [vmem:[#allocation8 + $0x1b8] sm:$0xff]
    %v3838 = vld [vmem:[#allocation8 + $0x1c0] sm:$0xff]
    %v3839 = vld [vmem:[#allocation8 + $0x1c8] sm:$0xff]
    %v3840 = vld [vmem:[#allocation8 + $0x1d0] sm:$0xff]
    %v3841 = vld [vmem:[#allocation8 + $0x1d8] sm:$0xff]
    %v3842 = vld [vmem:[#allocation8 + $0x1e0] sm:$0xff]
    %v3843 = vld [vmem:[#allocation8 + $0x1e8] sm:$0xff]
    %v3844 = vld [vmem:[#allocation8 + $0x1f0] sm:$0xff]
    %v3845 = vld [vmem:[#allocation8 + $0x1f8] sm:$0xff]
    %v3846 = vld [vmem:[#allocation8 + $0x200] sm:$0xff]
    %v3847 = vld [vmem:[#allocation8 + $0x208] sm:$0xff]
    %v3848 = vld [vmem:[#allocation8 + $0x210] sm:$0xff]
    %v3849 = vld [vmem:[#allocation8 + $0x218] sm:$0xff]
    %v3850 = vld [vmem:[#allocation8 + $0x220] sm:$0xff]
    %v3851 = vld [vmem:[#allocation8 + $0x228] sm:$0xff]
    %v3852 = vld [vmem:[#allocation8 + $0x230] sm:$0xff]
    %v3853 = vld [vmem:[#allocation8 + $0x238] sm:$0xff]
    %v3854 = vld [vmem:[#allocation8 + $0x240] sm:$0xff]
    %v3855 = vld [vmem:[#allocation8 + $0x248] sm:$0xff]
    %v3856 = vld [vmem:[#allocation8 + $0x250] sm:$0xff]
    %v3857 = vld [vmem:[#allocation8 + $0x258] sm:$0xff]
    %v3858 = vld [vmem:[#allocation8 + $0x260] sm:$0xff]
    %v3859 = vld [vmem:[#allocation8 + $0x268] sm:$0xff]
    %v3860 = vld [vmem:[#allocation8 + $0x270] sm:$0xff]
    %v3861 = vld [vmem:[#allocation8 + $0x278] sm:$0xff]
    %v3862 = vld [vmem:[#allocation8 + $0x280] sm:$0xff]
    %v3863 = vld [vmem:[#allocation8 + $0x288] sm:$0xff]
    %v3864 = vld [vmem:[#allocation8 + $0x290] sm:$0xff]
    %v3865 = vld [vmem:[#allocation8 + $0x298] sm:$0xff]
    %v3866 = vld [vmem:[#allocation8 + $0x2a0] sm:$0xff]
    %v3867 = vld [vmem:[#allocation8 + $0x2a8] sm:$0xff]
    %v3868 = vld [vmem:[#allocation8 + $0x2b0] sm:$0xff]
    %v3869 = vld [vmem:[#allocation8 + $0x2b8] sm:$0xff]
    %v3870 = vld [vmem:[#allocation8 + $0x2c0] sm:$0xff]
    %v3871 = vld [vmem:[#allocation8 + $0x2c8] sm:$0xff]
    %v3872 = vld [vmem:[#allocation8 + $0x2d0] sm:$0xff]
    %v3873 = vld [vmem:[#allocation8 + $0x2d8] sm:$0xff]
    %v3874 = vld [vmem:[#allocation8 + $0x2e0] sm:$0xff]
    %v3875 = vld [vmem:[#allocation8 + $0x2e8] sm:$0xff]
    %v3876 = vld [vmem:[#allocation8 + $0x2f0] sm:$0xff]
    %v3877 = vld [vmem:[#allocation8 + $0x2f8] sm:$0xff]
    %v3878 = vld [vmem:[#allocation8 + $0x300] sm:$0xff]
    %v3879 = vld [vmem:[#allocation8 + $0x308] sm:$0xff]
    %v3880 = vld [vmem:[#allocation8 + $0x310] sm:$0xff]
    %v3881 = vld [vmem:[#allocation8 + $0x318] sm:$0xff]
    %v3882 = vld [vmem:[#allocation8 + $0x320] sm:$0xff]
    %v3883 = vld [vmem:[#allocation8 + $0x328] sm:$0xff]
    %v3884 = vld [vmem:[#allocation8 + $0x330] sm:$0xff]
    %v3885 = vld [vmem:[#allocation8 + $0x338] sm:$0xff]
    %v3886 = vld [vmem:[#allocation8 + $0x340] sm:$0xff]
    %v3887 = vld [vmem:[#allocation8 + $0x348] sm:$0xff]
    %v3888 = vld [vmem:[#allocation8 + $0x350] sm:$0xff]
    %v3889 = vld [vmem:[#allocation8 + $0x358] sm:$0xff]
    %v3890 = vld [vmem:[#allocation8 + $0x360] sm:$0xff]
    %v3891 = vld [vmem:[#allocation8 + $0x368] sm:$0xff]
    %v3892 = vld [vmem:[#allocation8 + $0x370] sm:$0xff]
    %v3893 = vld [vmem:[#allocation8 + $0x378] sm:$0xff]
    %v3894 = vld [vmem:[#allocation8 + $0x380] sm:$0xff]
    %v3895 = vld [vmem:[#allocation8 + $0x388] sm:$0xff]
    %v3896 = vld [vmem:[#allocation8 + $0x390] sm:$0xff]
    %v3897 = vld [vmem:[#allocation8 + $0x398] sm:$0xff]
    %v3898 = vld [vmem:[#allocation8 + $0x3a0] sm:$0xff]
    %v3899 = vld [vmem:[#allocation8 + $0x3a8] sm:$0xff]
    %v3900 = vld [vmem:[#allocation8 + $0x3b0] sm:$0xff]
    %v3901 = vld [vmem:[#allocation8 + $0x3b8] sm:$0xff]
    %v3902 = vld [vmem:[#allocation8 + $0x3c0] sm:$0xff]
    %v3903 = vld [vmem:[#allocation8 + $0x3c8] sm:$0xff]
    %v3904 = vld [vmem:[#allocation8 + $0x3d0] sm:$0xff]
    %v3905 = vld [vmem:[#allocation8 + $0x3d8] sm:$0xff]
    %v3906 = vld [vmem:[#allocation8 + $0x3e0] sm:$0xff]
    %v3907 = vld [vmem:[#allocation8 + $0x3e8] sm:$0xff]
    %v3908 = vld [vmem:[#allocation8 + $0x3f0] sm:$0xff]
    %v3909 = vld [vmem:[#allocation8 + $0x3f8] sm:$0xff]
    %v3910 = vld [vmem:[#allocation8 + $0x400] sm:$0xff]
    %v3911 = vld [vmem:[#allocation8 + $0x408] sm:$0xff]
    %v3912 = vld [vmem:[#allocation8 + $0x410] sm:$0xff]
    %v3913 = vld [vmem:[#allocation8 + $0x418] sm:$0xff]
    %v3914 = vld [vmem:[#allocation8 + $0x420] sm:$0xff]
    %v3915 = vld [vmem:[#allocation8 + $0x428] sm:$0xff]
    %v3916 = vld [vmem:[#allocation8 + $0x430] sm:$0xff]
    %v3917 = vld [vmem:[#allocation8 + $0x438] sm:$0xff]
    %v3918 = vld [vmem:[#allocation8 + $0x440] sm:$0xff]
    %v3919 = vld [vmem:[#allocation8 + $0x448] sm:$0xff]
    %v3920 = vld [vmem:[#allocation8 + $0x450] sm:$0xff]
    %v3921 = vld [vmem:[#allocation8 + $0x458] sm:$0xff]
    %v3922 = vld [vmem:[#allocation8 + $0x460] sm:$0xff]
    %v3923 = vld [vmem:[#allocation8 + $0x468] sm:$0xff]
    %v3924 = vld [vmem:[#allocation8 + $0x470] sm:$0xff]
    %v3925 = vld [vmem:[#allocation8 + $0x478] sm:$0xff]
    %v3926 = vld [vmem:[#allocation8 + $0x480] sm:$0xff]
    %v3927 = vld [vmem:[#allocation8 + $0x488] sm:$0xff]
    %v3928 = vld [vmem:[#allocation8 + $0x490] sm:$0xff]
    %v3929 = vld [vmem:[#allocation8 + $0x498] sm:$0xff]
    %v3930 = vld [vmem:[#allocation8 + $0x4a0] sm:$0xff]
    %v3931 = vld [vmem:[#allocation8 + $0x4a8] sm:$0xff]
    %v3932 = vld [vmem:[#allocation8 + $0x4b0] sm:$0xff]
    %v3933 = vld [vmem:[#allocation8 + $0x4b8] sm:$0xff]
    %v3934 = vld [vmem:[#allocation8 + $0x4c0] sm:$0xff]
    %v3935 = vld [vmem:[#allocation8 + $0x4c8] sm:$0xff]
    %v3936 = vld [vmem:[#allocation8 + $0x4d0] sm:$0xff]
    %v3937 = vld [vmem:[#allocation8 + $0x4d8] sm:$0xff]
    %v3938 = vld [vmem:[#allocation8 + $0x4e0] sm:$0xff]
    %v3939 = vld [vmem:[#allocation8 + $0x4e8] sm:$0xff]
    %v3940 = vld [vmem:[#allocation8 + $0x4f0] sm:$0xff]
    %v3941 = vld [vmem:[#allocation8 + $0x4f8] sm:$0xff]
    %v3942 = vld [vmem:[#allocation8 + $0x500] sm:$0xff]
    %v3943 = vld [vmem:[#allocation8 + $0x508] sm:$0xff]
    %v3944 = vld [vmem:[#allocation8 + $0x510] sm:$0xff]
    %v3945 = vld [vmem:[#allocation8 + $0x518] sm:$0xff]
    %v3946 = vld [vmem:[#allocation8 + $0x520] sm:$0xff]
    %v3947 = vld [vmem:[#allocation8 + $0x528] sm:$0xff]
    %v3948 = vld [vmem:[#allocation8 + $0x530] sm:$0xff]
    %v3949 = vld [vmem:[#allocation8 + $0x538] sm:$0xff]
    %v3950 = vld [vmem:[#allocation8 + $0x540] sm:$0xff]
    %v3951 = vld [vmem:[#allocation8 + $0x548] sm:$0xff]
    %v3952 = vld [vmem:[#allocation8 + $0x550] sm:$0xff]
    %v3953 = vld [vmem:[#allocation8 + $0x558] sm:$0xff]
    %v3954 = vld [vmem:[#allocation8 + $0x560] sm:$0xff]
    %v3955 = vld [vmem:[#allocation8 + $0x568] sm:$0xff]
    %v3956 = vld [vmem:[#allocation8 + $0x570] sm:$0xff]
    %v3957 = vld [vmem:[#allocation8 + $0x578] sm:$0xff]
    %v3958 = vld [vmem:[#allocation8 + $0x580] sm:$0xff]
    %v3959 = vld [vmem:[#allocation8 + $0x588] sm:$0xff]
    %v3960 = vld [vmem:[#allocation8 + $0x590] sm:$0xff]
    %v3961 = vld [vmem:[#allocation8 + $0x598] sm:$0xff]
    %v3962 = vld [vmem:[#allocation8 + $0x5a0] sm:$0xff]
    %v3963 = vld [vmem:[#allocation8 + $0x5a8] sm:$0xff]
    %v3964 = vld [vmem:[#allocation8 + $0x5b0] sm:$0xff]
    %v3965 = vld [vmem:[#allocation8 + $0x5b8] sm:$0xff]
    %v3966 = vld [vmem:[#allocation8 + $0x5c0] sm:$0xff]
    %v3967 = vld [vmem:[#allocation8 + $0x5c8] sm:$0xff]
    %v3968 = vld [vmem:[#allocation8 + $0x5d0] sm:$0xff]
    %v3969 = vld [vmem:[#allocation8 + $0x5d8] sm:$0xff]
    %v3970 = vld [vmem:[#allocation8 + $0x5e0] sm:$0xff]
    %v3971 = vld [vmem:[#allocation8 + $0x5e8] sm:$0xff]
    %v3972 = vld [vmem:[#allocation8 + $0x5f0] sm:$0xff]
    %v3973 = vld [vmem:[#allocation8 + $0x5f8] sm:$0xff]
    %v3974 = vld [vmem:[#allocation8 + $0x600] sm:$0xff]
    %v3975 = vld [vmem:[#allocation8 + $0x608] sm:$0xff]
    %v3976 = vld [vmem:[#allocation8 + $0x610] sm:$0xff]
    %v3977 = vld [vmem:[#allocation8 + $0x618] sm:$0xff]
    %v3978 = vld [vmem:[#allocation8 + $0x620] sm:$0xff]
    %v3979 = vld [vmem:[#allocation8 + $0x628] sm:$0xff]
    %v3980 = vld [vmem:[#allocation8 + $0x630] sm:$0xff]
    %v3981 = vld [vmem:[#allocation8 + $0x638] sm:$0xff]
    %v3982 = vld [vmem:[#allocation8 + $0x640] sm:$0xff]
    %v3983 = vld [vmem:[#allocation8 + $0x648] sm:$0xff]
    %v3984 = vld [vmem:[#allocation8 + $0x650] sm:$0xff]
    %v3985 = vld [vmem:[#allocation8 + $0x658] sm:$0xff]
    %v3986 = vld [vmem:[#allocation8 + $0x660] sm:$0xff]
    %v3987 = vld [vmem:[#allocation8 + $0x668] sm:$0xff]
    %v3988 = vld [vmem:[#allocation8 + $0x670] sm:$0xff]
    %v3989 = vld [vmem:[#allocation8 + $0x678] sm:$0xff]
    %v3990 = vld [vmem:[#allocation8 + $0x680] sm:$0xff]
    %v3991 = vld [vmem:[#allocation8 + $0x688] sm:$0xff]
    %v3992 = vld [vmem:[#allocation8 + $0x690] sm:$0xff]
    %v3993 = vld [vmem:[#allocation8 + $0x698] sm:$0xff]
    %v3994 = vld [vmem:[#allocation8 + $0x6a0] sm:$0xff]
    %v3995 = vld [vmem:[#allocation8 + $0x6a8] sm:$0xff]
    %v3996 = vld [vmem:[#allocation8 + $0x6b0] sm:$0xff]
    %v3997 = vld [vmem:[#allocation8 + $0x6b8] sm:$0xff]
    %v3998 = vld [vmem:[#allocation8 + $0x6c0] sm:$0xff]
    %v3999 = vld [vmem:[#allocation8 + $0x6c8] sm:$0xff]
    %v4000 = vld [vmem:[#allocation8 + $0x6d0] sm:$0xff]
    %v4001 = vld [vmem:[#allocation8 + $0x6d8] sm:$0xff]
    %v4002 = vld [vmem:[#allocation8 + $0x6e0] sm:$0xff]
    %v4003 = vld [vmem:[#allocation8 + $0x6e8] sm:$0xff]
    %v4004 = vld [vmem:[#allocation8 + $0x6f0] sm:$0xff]
    %v4005 = vld [vmem:[#allocation8 + $0x6f8] sm:$0xff]
    %v4006 = vld [vmem:[#allocation8 + $0x700] sm:$0xff]
    %v4007 = vld [vmem:[#allocation8 + $0x708] sm:$0xff]
    %v4008 = vld [vmem:[#allocation8 + $0x710] sm:$0xff]
    %v4009 = vld [vmem:[#allocation8 + $0x718] sm:$0xff]
    %v4010 = vld [vmem:[#allocation8 + $0x720] sm:$0xff]
    %v4011 = vld [vmem:[#allocation8 + $0x728] sm:$0xff]
    %v4012 = vld [vmem:[#allocation8 + $0x730] sm:$0xff]
    %v4013 = vld [vmem:[#allocation8 + $0x738] sm:$0xff]
    %v4014 = vld [vmem:[#allocation8 + $0x740] sm:$0xff]
    %v4015 = vld [vmem:[#allocation8 + $0x748] sm:$0xff]
    %v4016 = vld [vmem:[#allocation8 + $0x750] sm:$0xff]
    %v4017 = vld [vmem:[#allocation8 + $0x758] sm:$0xff]
    %v4018 = vld [vmem:[#allocation8 + $0x760] sm:$0xff]
    %v4019 = vld [vmem:[#allocation8 + $0x768] sm:$0xff]
    %v4020 = vld [vmem:[#allocation8 + $0x770] sm:$0xff]
    %v4021 = vld [vmem:[#allocation8 + $0x778] sm:$0xff]
    %v4022 = vld [vmem:[#allocation8 + $0x780] sm:$0xff]
    %v4023 = vld [vmem:[#allocation8 + $0x788] sm:$0xff]
    %v4024 = vld [vmem:[#allocation8 + $0x790] sm:$0xff]
    %v4025 = vld [vmem:[#allocation8 + $0x798] sm:$0xff]
    %v4026 = vld [vmem:[#allocation8 + $0x7a0] sm:$0xff]
    %v4027 = vld [vmem:[#allocation8 + $0x7a8] sm:$0xff]
    %v4028 = vld [vmem:[#allocation8 + $0x7b0] sm:$0xff]
    %v4029 = vld [vmem:[#allocation8 + $0x7b8] sm:$0xff]
    %v4030 = vld [vmem:[#allocation8 + $0x7c0] sm:$0xff]
    %v4031 = vld [vmem:[#allocation8 + $0x7c8] sm:$0xff]
    %v4032 = vld [vmem:[#allocation8 + $0x7d0] sm:$0xff]
    %v4033 = vld [vmem:[#allocation8 + $0x7d8] sm:$0xff]
    %v4034 = vld [vmem:[#allocation8 + $0x7e0] sm:$0xff]
    %v4035 = vld [vmem:[#allocation8 + $0x7e8] sm:$0xff]
    %v4036 = vld [vmem:[#allocation8 + $0x7f0] sm:$0xff]
    %v4037 = vld [vmem:[#allocation8 + $0x7f8] sm:$0xff]
    %v4038 = vld [vmem:[#allocation10] sm:$0xf]
    %v4295 = vunpack.c.l.b16 %v3782
    %v4296 = vunpack.c.h.b16 %v3782
    %v4297 = vunpack.c.l.b16 %v3783
    %v4298 = vunpack.c.h.b16 %v3783
    %v4299 = vunpack.c.l.b16 %v3784
    %v4300 = vunpack.c.h.b16 %v3784
    %v4301 = vunpack.c.l.b16 %v3785
    %v4302 = vunpack.c.h.b16 %v3785
    %v4303 = vunpack.c.l.b16 %v3786
    %v4304 = vunpack.c.h.b16 %v3786
    %v4305 = vunpack.c.l.b16 %v3787
    %v4306 = vunpack.c.h.b16 %v3787
    %v4307 = vunpack.c.l.b16 %v3788
    %v4308 = vunpack.c.h.b16 %v3788
    %v4309 = vunpack.c.l.b16 %v3789
    %v4310 = vunpack.c.h.b16 %v3789
    %v4311 = vunpack.c.l.b16 %v3790
    %v4312 = vunpack.c.h.b16 %v3790
    %v4313 = vunpack.c.l.b16 %v3791
    %v4314 = vunpack.c.h.b16 %v3791
    %v4315 = vunpack.c.l.b16 %v3792
    %v4316 = vunpack.c.h.b16 %v3792
    %v4317 = vunpack.c.l.b16 %v3793
    %v4318 = vunpack.c.h.b16 %v3793
    %v4319 = vunpack.c.l.b16 %v3794
    %v4320 = vunpack.c.h.b16 %v3794
    %v4321 = vunpack.c.l.b16 %v3795
    %v4322 = vunpack.c.h.b16 %v3795
    %v4323 = vunpack.c.l.b16 %v3796
    %v4324 = vunpack.c.h.b16 %v3796
    %v4325 = vunpack.c.l.b16 %v3797
    %v4326 = vunpack.c.h.b16 %v3797
    %v4327 = vunpack.c.l.b16 %v3798
    %v4328 = vunpack.c.h.b16 %v3798
    %v4329 = vunpack.c.l.b16 %v3799
    %v4330 = vunpack.c.h.b16 %v3799
    %v4331 = vunpack.c.l.b16 %v3800
    %v4332 = vunpack.c.h.b16 %v3800
    %v4333 = vunpack.c.l.b16 %v3801
    %v4334 = vunpack.c.h.b16 %v3801
    %v4335 = vunpack.c.l.b16 %v3802
    %v4336 = vunpack.c.h.b16 %v3802
    %v4337 = vunpack.c.l.b16 %v3803
    %v4338 = vunpack.c.h.b16 %v3803
    %v4339 = vunpack.c.l.b16 %v3804
    %v4340 = vunpack.c.h.b16 %v3804
    %v4341 = vunpack.c.l.b16 %v3805
    %v4342 = vunpack.c.h.b16 %v3805
    %v4343 = vunpack.c.l.b16 %v3806
    %v4344 = vunpack.c.h.b16 %v3806
    %v4345 = vunpack.c.l.b16 %v3807
    %v4346 = vunpack.c.h.b16 %v3807
    %v4347 = vunpack.c.l.b16 %v3808
    %v4348 = vunpack.c.h.b16 %v3808
    %v4349 = vunpack.c.l.b16 %v3809
    %v4350 = vunpack.c.h.b16 %v3809
    %v4351 = vunpack.c.l.b16 %v3810
    %v4352 = vunpack.c.h.b16 %v3810
    %v4353 = vunpack.c.l.b16 %v3811
    %v4354 = vunpack.c.h.b16 %v3811
    %v4355 = vunpack.c.l.b16 %v3812
    %v4356 = vunpack.c.h.b16 %v3812
    %v4357 = vunpack.c.l.b16 %v3813
    %v4358 = vunpack.c.h.b16 %v3813
    %v4359 = vunpack.c.l.b16 %v3814
    %v4360 = vunpack.c.h.b16 %v3814
    %v4361 = vunpack.c.l.b16 %v3815
    %v4362 = vunpack.c.h.b16 %v3815
    %v4363 = vunpack.c.l.b16 %v3816
    %v4364 = vunpack.c.h.b16 %v3816
    %v4365 = vunpack.c.l.b16 %v3817
    %v4366 = vunpack.c.h.b16 %v3817
    %v4367 = vunpack.c.l.b16 %v3818
    %v4368 = vunpack.c.h.b16 %v3818
    %v4369 = vunpack.c.l.b16 %v3819
    %v4370 = vunpack.c.h.b16 %v3819
    %v4371 = vunpack.c.l.b16 %v3820
    %v4372 = vunpack.c.h.b16 %v3820
    %v4373 = vunpack.c.l.b16 %v3821
    %v4374 = vunpack.c.h.b16 %v3821
    %v4375 = vunpack.c.l.b16 %v3822
    %v4376 = vunpack.c.h.b16 %v3822
    %v4377 = vunpack.c.l.b16 %v3823
    %v4378 = vunpack.c.h.b16 %v3823
    %v4379 = vunpack.c.l.b16 %v3824
    %v4380 = vunpack.c.h.b16 %v3824
    %v4381 = vunpack.c.l.b16 %v3825
    %v4382 = vunpack.c.h.b16 %v3825
    %v4383 = vunpack.c.l.b16 %v3826
    %v4384 = vunpack.c.h.b16 %v3826
    %v4385 = vunpack.c.l.b16 %v3827
    %v4386 = vunpack.c.h.b16 %v3827
    %v4387 = vunpack.c.l.b16 %v3828
    %v4388 = vunpack.c.h.b16 %v3828
    %v4389 = vunpack.c.l.b16 %v3829
    %v4390 = vunpack.c.h.b16 %v3829
    %v4391 = vunpack.c.l.b16 %v3830
    %v4392 = vunpack.c.h.b16 %v3830
    %v4393 = vunpack.c.l.b16 %v3831
    %v4394 = vunpack.c.h.b16 %v3831
    %v4395 = vunpack.c.l.b16 %v3832
    %v4396 = vunpack.c.h.b16 %v3832
    %v4397 = vunpack.c.l.b16 %v3833
    %v4398 = vunpack.c.h.b16 %v3833
    %v4399 = vunpack.c.l.b16 %v3834
    %v4400 = vunpack.c.h.b16 %v3834
    %v4401 = vunpack.c.l.b16 %v3835
    %v4402 = vunpack.c.h.b16 %v3835
    %v4403 = vunpack.c.l.b16 %v3836
    %v4404 = vunpack.c.h.b16 %v3836
    %v4405 = vunpack.c.l.b16 %v3837
    %v4406 = vunpack.c.h.b16 %v3837
    %v4407 = vunpack.c.l.b16 %v3838
    %v4408 = vunpack.c.h.b16 %v3838
    %v4409 = vunpack.c.l.b16 %v3839
    %v4410 = vunpack.c.h.b16 %v3839
    %v4411 = vunpack.c.l.b16 %v3840
    %v4412 = vunpack.c.h.b16 %v3840
    %v4413 = vunpack.c.l.b16 %v3841
    %v4414 = vunpack.c.h.b16 %v3841
    %v4415 = vunpack.c.l.b16 %v3842
    %v4416 = vunpack.c.h.b16 %v3842
    %v4417 = vunpack.c.l.b16 %v3843
    %v4418 = vunpack.c.h.b16 %v3843
    %v4419 = vunpack.c.l.b16 %v3844
    %v4420 = vunpack.c.h.b16 %v3844
    %v4421 = vunpack.c.l.b16 %v3845
    %v4422 = vunpack.c.h.b16 %v3845
    %v4423 = vunpack.c.l.b16 %v3846
    %v4424 = vunpack.c.h.b16 %v3846
    %v4425 = vunpack.c.l.b16 %v3847
    %v4426 = vunpack.c.h.b16 %v3847
    %v4427 = vunpack.c.l.b16 %v3848
    %v4428 = vunpack.c.h.b16 %v3848
    %v4429 = vunpack.c.l.b16 %v3849
    %v4430 = vunpack.c.h.b16 %v3849
    %v4431 = vunpack.c.l.b16 %v3850
    %v4432 = vunpack.c.h.b16 %v3850
    %v4433 = vunpack.c.l.b16 %v3851
    %v4434 = vunpack.c.h.b16 %v3851
    %v4435 = vunpack.c.l.b16 %v3852
    %v4436 = vunpack.c.h.b16 %v3852
    %v4437 = vunpack.c.l.b16 %v3853
    %v4438 = vunpack.c.h.b16 %v3853
    %v4439 = vunpack.c.l.b16 %v3854
    %v4440 = vunpack.c.h.b16 %v3854
    %v4441 = vunpack.c.l.b16 %v3855
    %v4442 = vunpack.c.h.b16 %v3855
    %v4443 = vunpack.c.l.b16 %v3856
    %v4444 = vunpack.c.h.b16 %v3856
    %v4445 = vunpack.c.l.b16 %v3857
    %v4446 = vunpack.c.h.b16 %v3857
    %v4447 = vunpack.c.l.b16 %v3858
    %v4448 = vunpack.c.h.b16 %v3858
    %v4449 = vunpack.c.l.b16 %v3859
    %v4450 = vunpack.c.h.b16 %v3859
    %v4451 = vunpack.c.l.b16 %v3860
    %v4452 = vunpack.c.h.b16 %v3860
    %v4453 = vunpack.c.l.b16 %v3861
    %v4454 = vunpack.c.h.b16 %v3861
    %v4455 = vunpack.c.l.b16 %v3862
    %v4456 = vunpack.c.h.b16 %v3862
    %v4457 = vunpack.c.l.b16 %v3863
    %v4458 = vunpack.c.h.b16 %v3863
    %v4459 = vunpack.c.l.b16 %v3864
    %v4460 = vunpack.c.h.b16 %v3864
    %v4461 = vunpack.c.l.b16 %v3865
    %v4462 = vunpack.c.h.b16 %v3865
    %v4463 = vunpack.c.l.b16 %v3866
    %v4464 = vunpack.c.h.b16 %v3866
    %v4465 = vunpack.c.l.b16 %v3867
    %v4466 = vunpack.c.h.b16 %v3867
    %v4467 = vunpack.c.l.b16 %v3868
    %v4468 = vunpack.c.h.b16 %v3868
    %v4469 = vunpack.c.l.b16 %v3869
    %v4470 = vunpack.c.h.b16 %v3869
    %v4471 = vunpack.c.l.b16 %v3870
    %v4472 = vunpack.c.h.b16 %v3870
    %v4473 = vunpack.c.l.b16 %v3871
    %v4474 = vunpack.c.h.b16 %v3871
    %v4475 = vunpack.c.l.b16 %v3872
    %v4476 = vunpack.c.h.b16 %v3872
    %v4477 = vunpack.c.l.b16 %v3873
    %v4478 = vunpack.c.h.b16 %v3873
    %v4479 = vunpack.c.l.b16 %v3874
    %v4480 = vunpack.c.h.b16 %v3874
    %v4481 = vunpack.c.l.b16 %v3875
    %v4482 = vunpack.c.h.b16 %v3875
    %v4483 = vunpack.c.l.b16 %v3876
    %v4484 = vunpack.c.h.b16 %v3876
    %v4485 = vunpack.c.l.b16 %v3877
    %v4486 = vunpack.c.h.b16 %v3877
    %v4487 = vunpack.c.l.b16 %v3878
    %v4488 = vunpack.c.h.b16 %v3878
    %v4489 = vunpack.c.l.b16 %v3879
    %v4490 = vunpack.c.h.b16 %v3879
    %v4491 = vunpack.c.l.b16 %v3880
    %v4492 = vunpack.c.h.b16 %v3880
    %v4493 = vunpack.c.l.b16 %v3881
    %v4494 = vunpack.c.h.b16 %v3881
    %v4495 = vunpack.c.l.b16 %v3882
    %v4496 = vunpack.c.h.b16 %v3882
    %v4497 = vunpack.c.l.b16 %v3883
    %v4498 = vunpack.c.h.b16 %v3883
    %v4499 = vunpack.c.l.b16 %v3884
    %v4500 = vunpack.c.h.b16 %v3884
    %v4501 = vunpack.c.l.b16 %v3885
    %v4502 = vunpack.c.h.b16 %v3885
    %v4503 = vunpack.c.l.b16 %v3886
    %v4504 = vunpack.c.h.b16 %v3886
    %v4505 = vunpack.c.l.b16 %v3887
    %v4506 = vunpack.c.h.b16 %v3887
    %v4507 = vunpack.c.l.b16 %v3888
    %v4508 = vunpack.c.h.b16 %v3888
    %v4509 = vunpack.c.l.b16 %v3889
    %v4510 = vunpack.c.h.b16 %v3889
    %v4511 = vunpack.c.l.b16 %v3890
    %v4512 = vunpack.c.h.b16 %v3890
    %v4513 = vunpack.c.l.b16 %v3891
    %v4514 = vunpack.c.h.b16 %v3891
    %v4515 = vunpack.c.l.b16 %v3892
    %v4516 = vunpack.c.h.b16 %v3892
    %v4517 = vunpack.c.l.b16 %v3893
    %v4518 = vunpack.c.h.b16 %v3893
    %v4519 = vunpack.c.l.b16 %v3894
    %v4520 = vunpack.c.h.b16 %v3894
    %v4521 = vunpack.c.l.b16 %v3895
    %v4522 = vunpack.c.h.b16 %v3895
    %v4523 = vunpack.c.l.b16 %v3896
    %v4524 = vunpack.c.h.b16 %v3896
    %v4525 = vunpack.c.l.b16 %v3897
    %v4526 = vunpack.c.h.b16 %v3897
    %v4527 = vunpack.c.l.b16 %v3898
    %v4528 = vunpack.c.h.b16 %v3898
    %v4529 = vunpack.c.l.b16 %v3899
    %v4530 = vunpack.c.h.b16 %v3899
    %v4531 = vunpack.c.l.b16 %v3900
    %v4532 = vunpack.c.h.b16 %v3900
    %v4533 = vunpack.c.l.b16 %v3901
    %v4534 = vunpack.c.h.b16 %v3901
    %v4535 = vunpack.c.l.b16 %v3902
    %v4536 = vunpack.c.h.b16 %v3902
    %v4537 = vunpack.c.l.b16 %v3903
    %v4538 = vunpack.c.h.b16 %v3903
    %v4539 = vunpack.c.l.b16 %v3904
    %v4540 = vunpack.c.h.b16 %v3904
    %v4541 = vunpack.c.l.b16 %v3905
    %v4542 = vunpack.c.h.b16 %v3905
    %v4543 = vunpack.c.l.b16 %v3906
    %v4544 = vunpack.c.h.b16 %v3906
    %v4545 = vunpack.c.l.b16 %v3907
    %v4546 = vunpack.c.h.b16 %v3907
    %v4547 = vunpack.c.l.b16 %v3908
    %v4548 = vunpack.c.h.b16 %v3908
    %v4549 = vunpack.c.l.b16 %v3909
    %v4550 = vunpack.c.h.b16 %v3909
    %v4551 = vunpack.c.l.b16 %v3910
    %v4552 = vunpack.c.h.b16 %v3910
    %v4553 = vunpack.c.l.b16 %v3911
    %v4554 = vunpack.c.h.b16 %v3911
    %v4555 = vunpack.c.l.b16 %v3912
    %v4556 = vunpack.c.h.b16 %v3912
    %v4557 = vunpack.c.l.b16 %v3913
    %v4558 = vunpack.c.h.b16 %v3913
    %v4559 = vunpack.c.l.b16 %v3914
    %v4560 = vunpack.c.h.b16 %v3914
    %v4561 = vunpack.c.l.b16 %v3915
    %v4562 = vunpack.c.h.b16 %v3915
    %v4563 = vunpack.c.l.b16 %v3916
    %v4564 = vunpack.c.h.b16 %v3916
    %v4565 = vunpack.c.l.b16 %v3917
    %v4566 = vunpack.c.h.b16 %v3917
    %v4567 = vunpack.c.l.b16 %v3918
    %v4568 = vunpack.c.h.b16 %v3918
    %v4569 = vunpack.c.l.b16 %v3919
    %v4570 = vunpack.c.h.b16 %v3919
    %v4571 = vunpack.c.l.b16 %v3920
    %v4572 = vunpack.c.h.b16 %v3920
    %v4573 = vunpack.c.l.b16 %v3921
    %v4574 = vunpack.c.h.b16 %v3921
    %v4575 = vunpack.c.l.b16 %v3922
    %v4576 = vunpack.c.h.b16 %v3922
    %v4577 = vunpack.c.l.b16 %v3923
    %v4578 = vunpack.c.h.b16 %v3923
    %v4579 = vunpack.c.l.b16 %v3924
    %v4580 = vunpack.c.h.b16 %v3924
    %v4581 = vunpack.c.l.b16 %v3925
    %v4582 = vunpack.c.h.b16 %v3925
    %v4583 = vunpack.c.l.b16 %v3926
    %v4584 = vunpack.c.h.b16 %v3926
    %v4585 = vunpack.c.l.b16 %v3927
    %v4586 = vunpack.c.h.b16 %v3927
    %v4587 = vunpack.c.l.b16 %v3928
    %v4588 = vunpack.c.h.b16 %v3928
    %v4589 = vunpack.c.l.b16 %v3929
    %v4590 = vunpack.c.h.b16 %v3929
    %v4591 = vunpack.c.l.b16 %v3930
    %v4592 = vunpack.c.h.b16 %v3930
    %v4593 = vunpack.c.l.b16 %v3931
    %v4594 = vunpack.c.h.b16 %v3931
    %v4595 = vunpack.c.l.b16 %v3932
    %v4596 = vunpack.c.h.b16 %v3932
    %v4597 = vunpack.c.l.b16 %v3933
    %v4598 = vunpack.c.h.b16 %v3933
    %v4599 = vunpack.c.l.b16 %v3934
    %v4600 = vunpack.c.h.b16 %v3934
    %v4601 = vunpack.c.l.b16 %v3935
    %v4602 = vunpack.c.h.b16 %v3935
    %v4603 = vunpack.c.l.b16 %v3936
    %v4604 = vunpack.c.h.b16 %v3936
    %v4605 = vunpack.c.l.b16 %v3937
    %v4606 = vunpack.c.h.b16 %v3937
    %v4607 = vunpack.c.l.b16 %v3938
    %v4608 = vunpack.c.h.b16 %v3938
    %v4609 = vunpack.c.l.b16 %v3939
    %v4610 = vunpack.c.h.b16 %v3939
    %v4611 = vunpack.c.l.b16 %v3940
    %v4612 = vunpack.c.h.b16 %v3940
    %v4613 = vunpack.c.l.b16 %v3941
    %v4614 = vunpack.c.h.b16 %v3941
    %v4615 = vunpack.c.l.b16 %v3942
    %v4616 = vunpack.c.h.b16 %v3942
    %v4617 = vunpack.c.l.b16 %v3943
    %v4618 = vunpack.c.h.b16 %v3943
    %v4619 = vunpack.c.l.b16 %v3944
    %v4620 = vunpack.c.h.b16 %v3944
    %v4621 = vunpack.c.l.b16 %v3945
    %v4622 = vunpack.c.h.b16 %v3945
    %v4623 = vunpack.c.l.b16 %v3946
    %v4624 = vunpack.c.h.b16 %v3946
    %v4625 = vunpack.c.l.b16 %v3947
    %v4626 = vunpack.c.h.b16 %v3947
    %v4627 = vunpack.c.l.b16 %v3948
    %v4628 = vunpack.c.h.b16 %v3948
    %v4629 = vunpack.c.l.b16 %v3949
    %v4630 = vunpack.c.h.b16 %v3949
    %v4631 = vunpack.c.l.b16 %v3950
    %v4632 = vunpack.c.h.b16 %v3950
    %v4633 = vunpack.c.l.b16 %v3951
    %v4634 = vunpack.c.h.b16 %v3951
    %v4635 = vunpack.c.l.b16 %v3952
    %v4636 = vunpack.c.h.b16 %v3952
    %v4637 = vunpack.c.l.b16 %v3953
    %v4638 = vunpack.c.h.b16 %v3953
    %v4639 = vunpack.c.l.b16 %v3954
    %v4640 = vunpack.c.h.b16 %v3954
    %v4641 = vunpack.c.l.b16 %v3955
    %v4642 = vunpack.c.h.b16 %v3955
    %v4643 = vunpack.c.l.b16 %v3956
    %v4644 = vunpack.c.h.b16 %v3956
    %v4645 = vunpack.c.l.b16 %v3957
    %v4646 = vunpack.c.h.b16 %v3957
    %v4647 = vunpack.c.l.b16 %v3958
    %v4648 = vunpack.c.h.b16 %v3958
    %v4649 = vunpack.c.l.b16 %v3959
    %v4650 = vunpack.c.h.b16 %v3959
    %v4651 = vunpack.c.l.b16 %v3960
    %v4652 = vunpack.c.h.b16 %v3960
    %v4653 = vunpack.c.l.b16 %v3961
    %v4654 = vunpack.c.h.b16 %v3961
    %v4655 = vunpack.c.l.b16 %v3962
    %v4656 = vunpack.c.h.b16 %v3962
    %v4657 = vunpack.c.l.b16 %v3963
    %v4658 = vunpack.c.h.b16 %v3963
    %v4659 = vunpack.c.l.b16 %v3964
    %v4660 = vunpack.c.h.b16 %v3964
    %v4661 = vunpack.c.l.b16 %v3965
    %v4662 = vunpack.c.h.b16 %v3965
    %v4663 = vunpack.c.l.b16 %v3966
    %v4664 = vunpack.c.h.b16 %v3966
    %v4665 = vunpack.c.l.b16 %v3967
    %v4666 = vunpack.c.h.b16 %v3967
    %v4667 = vunpack.c.l.b16 %v3968
    %v4668 = vunpack.c.h.b16 %v3968
    %v4669 = vunpack.c.l.b16 %v3969
    %v4670 = vunpack.c.h.b16 %v3969
    %v4671 = vunpack.c.l.b16 %v3970
    %v4672 = vunpack.c.h.b16 %v3970
    %v4673 = vunpack.c.l.b16 %v3971
    %v4674 = vunpack.c.h.b16 %v3971
    %v4675 = vunpack.c.l.b16 %v3972
    %v4676 = vunpack.c.h.b16 %v3972
    %v4677 = vunpack.c.l.b16 %v3973
    %v4678 = vunpack.c.h.b16 %v3973
    %v4679 = vunpack.c.l.b16 %v3974
    %v4680 = vunpack.c.h.b16 %v3974
    %v4681 = vunpack.c.l.b16 %v3975
    %v4682 = vunpack.c.h.b16 %v3975
    %v4683 = vunpack.c.l.b16 %v3976
    %v4684 = vunpack.c.h.b16 %v3976
    %v4685 = vunpack.c.l.b16 %v3977
    %v4686 = vunpack.c.h.b16 %v3977
    %v4687 = vunpack.c.l.b16 %v3978
    %v4688 = vunpack.c.h.b16 %v3978
    %v4689 = vunpack.c.l.b16 %v3979
    %v4690 = vunpack.c.h.b16 %v3979
    %v4691 = vunpack.c.l.b16 %v3980
    %v4692 = vunpack.c.h.b16 %v3980
    %v4693 = vunpack.c.l.b16 %v3981
    %v4694 = vunpack.c.h.b16 %v3981
    %v4695 = vunpack.c.l.b16 %v3982
    %v4696 = vunpack.c.h.b16 %v3982
    %v4697 = vunpack.c.l.b16 %v3983
    %v4698 = vunpack.c.h.b16 %v3983
    %v4699 = vunpack.c.l.b16 %v3984
    %v4700 = vunpack.c.h.b16 %v3984
    %v4701 = vunpack.c.l.b16 %v3985
    %v4702 = vunpack.c.h.b16 %v3985
    %v4703 = vunpack.c.l.b16 %v3986
    %v4704 = vunpack.c.h.b16 %v3986
    %v4705 = vunpack.c.l.b16 %v3987
    %v4706 = vunpack.c.h.b16 %v3987
    %v4707 = vunpack.c.l.b16 %v3988
    %v4708 = vunpack.c.h.b16 %v3988
    %v4709 = vunpack.c.l.b16 %v3989
    %v4710 = vunpack.c.h.b16 %v3989
    %v4711 = vunpack.c.l.b16 %v3990
    %v4712 = vunpack.c.h.b16 %v3990
    %v4713 = vunpack.c.l.b16 %v3991
    %v4714 = vunpack.c.h.b16 %v3991
    %v4715 = vunpack.c.l.b16 %v3992
    %v4716 = vunpack.c.h.b16 %v3992
    %v4717 = vunpack.c.l.b16 %v3993
    %v4718 = vunpack.c.h.b16 %v3993
    %v4719 = vunpack.c.l.b16 %v3994
    %v4720 = vunpack.c.h.b16 %v3994
    %v4721 = vunpack.c.l.b16 %v3995
    %v4722 = vunpack.c.h.b16 %v3995
    %v4723 = vunpack.c.l.b16 %v3996
    %v4724 = vunpack.c.h.b16 %v3996
    %v4725 = vunpack.c.l.b16 %v3997
    %v4726 = vunpack.c.h.b16 %v3997
    %v4727 = vunpack.c.l.b16 %v3998
    %v4728 = vunpack.c.h.b16 %v3998
    %v4729 = vunpack.c.l.b16 %v3999
    %v4730 = vunpack.c.h.b16 %v3999
    %v4731 = vunpack.c.l.b16 %v4000
    %v4732 = vunpack.c.h.b16 %v4000
    %v4733 = vunpack.c.l.b16 %v4001
    %v4734 = vunpack.c.h.b16 %v4001
    %v4735 = vunpack.c.l.b16 %v4002
    %v4736 = vunpack.c.h.b16 %v4002
    %v4737 = vunpack.c.l.b16 %v4003
    %v4738 = vunpack.c.h.b16 %v4003
    %v4739 = vunpack.c.l.b16 %v4004
    %v4740 = vunpack.c.h.b16 %v4004
    %v4741 = vunpack.c.l.b16 %v4005
    %v4742 = vunpack.c.h.b16 %v4005
    %v4743 = vunpack.c.l.b16 %v4006
    %v4744 = vunpack.c.h.b16 %v4006
    %v4745 = vunpack.c.l.b16 %v4007
    %v4746 = vunpack.c.h.b16 %v4007
    %v4747 = vunpack.c.l.b16 %v4008
    %v4748 = vunpack.c.h.b16 %v4008
    %v4749 = vunpack.c.l.b16 %v4009
    %v4750 = vunpack.c.h.b16 %v4009
    %v4751 = vunpack.c.l.b16 %v4010
    %v4752 = vunpack.c.h.b16 %v4010
    %v4753 = vunpack.c.l.b16 %v4011
    %v4754 = vunpack.c.h.b16 %v4011
    %v4755 = vunpack.c.l.b16 %v4012
    %v4756 = vunpack.c.h.b16 %v4012
    %v4757 = vunpack.c.l.b16 %v4013
    %v4758 = vunpack.c.h.b16 %v4013
    %v4759 = vunpack.c.l.b16 %v4014
    %v4760 = vunpack.c.h.b16 %v4014
    %v4761 = vunpack.c.l.b16 %v4015
    %v4762 = vunpack.c.h.b16 %v4015
    %v4763 = vunpack.c.l.b16 %v4016
    %v4764 = vunpack.c.h.b16 %v4016
    %v4765 = vunpack.c.l.b16 %v4017
    %v4766 = vunpack.c.h.b16 %v4017
    %v4767 = vunpack.c.l.b16 %v4018
    %v4768 = vunpack.c.h.b16 %v4018
    %v4769 = vunpack.c.l.b16 %v4019
    %v4770 = vunpack.c.h.b16 %v4019
    %v4771 = vunpack.c.l.b16 %v4020
    %v4772 = vunpack.c.h.b16 %v4020
    %v4773 = vunpack.c.l.b16 %v4021
    %v4774 = vunpack.c.h.b16 %v4021
    %v4775 = vunpack.c.l.b16 %v4022
    %v4776 = vunpack.c.h.b16 %v4022
    %v4777 = vunpack.c.l.b16 %v4023
    %v4778 = vunpack.c.h.b16 %v4023
    %v4779 = vunpack.c.l.b16 %v4024
    %v4780 = vunpack.c.h.b16 %v4024
    %v4781 = vunpack.c.l.b16 %v4025
    %v4782 = vunpack.c.h.b16 %v4025
    %v4783 = vunpack.c.l.b16 %v4026
    %v4784 = vunpack.c.h.b16 %v4026
    %v4785 = vunpack.c.l.b16 %v4027
    %v4786 = vunpack.c.h.b16 %v4027
    %v4787 = vunpack.c.l.b16 %v4028
    %v4788 = vunpack.c.h.b16 %v4028
    %v4789 = vunpack.c.l.b16 %v4029
    %v4790 = vunpack.c.h.b16 %v4029
    %v4791 = vunpack.c.l.b16 %v4030
    %v4792 = vunpack.c.h.b16 %v4030
    %v4793 = vunpack.c.l.b16 %v4031
    %v4794 = vunpack.c.h.b16 %v4031
    %v4795 = vunpack.c.l.b16 %v4032
    %v4796 = vunpack.c.h.b16 %v4032
    %v4797 = vunpack.c.l.b16 %v4033
    %v4798 = vunpack.c.h.b16 %v4033
    %v4799 = vunpack.c.l.b16 %v4034
    %v4800 = vunpack.c.h.b16 %v4034
    %v4801 = vunpack.c.l.b16 %v4035
    %v4802 = vunpack.c.h.b16 %v4035
    %v4803 = vunpack.c.l.b16 %v4036
    %v4804 = vunpack.c.h.b16 %v4036
    %v4805 = vunpack.c.l.b16 %v4037
    %v4806 = vunpack.c.h.b16 %v4037
    %v4807 = vpack.c.b16 %v4299, %v4295
    %v4808 = vpack.c.b16 %v4300, %v4296
    %v4809 = vpack.c.b16 %v4301, %v4297
    %v4810 = vpack.c.b16 %v4302, %v4298
    %v4811 = vpack.c.b16 %v4307, %v4303
    %v4812 = vpack.c.b16 %v4308, %v4304
    %v4813 = vpack.c.b16 %v4309, %v4305
    %v4814 = vpack.c.b16 %v4310, %v4306
    %v4815 = vpack.c.b16 %v4315, %v4311
    %v4816 = vpack.c.b16 %v4316, %v4312
    %v4817 = vpack.c.b16 %v4317, %v4313
    %v4818 = vpack.c.b16 %v4318, %v4314
    %v4819 = vpack.c.b16 %v4323, %v4319
    %v4820 = vpack.c.b16 %v4324, %v4320
    %v4821 = vpack.c.b16 %v4325, %v4321
    %v4822 = vpack.c.b16 %v4326, %v4322
    %v4823 = vpack.c.b16 %v4331, %v4327
    %v4824 = vpack.c.b16 %v4332, %v4328
    %v4825 = vpack.c.b16 %v4333, %v4329
    %v4826 = vpack.c.b16 %v4334, %v4330
    %v4827 = vpack.c.b16 %v4339, %v4335
    %v4828 = vpack.c.b16 %v4340, %v4336
    %v4829 = vpack.c.b16 %v4341, %v4337
    %v4830 = vpack.c.b16 %v4342, %v4338
    %v4831 = vpack.c.b16 %v4347, %v4343
    %v4832 = vpack.c.b16 %v4348, %v4344
    %v4833 = vpack.c.b16 %v4349, %v4345
    %v4834 = vpack.c.b16 %v4350, %v4346
    %v4835 = vpack.c.b16 %v4355, %v4351
    %v4836 = vpack.c.b16 %v4356, %v4352
    %v4837 = vpack.c.b16 %v4357, %v4353
    %v4838 = vpack.c.b16 %v4358, %v4354
    %v4839 = vpack.c.b16 %v4363, %v4359
    %v4840 = vpack.c.b16 %v4364, %v4360
    %v4841 = vpack.c.b16 %v4365, %v4361
    %v4842 = vpack.c.b16 %v4366, %v4362
    %v4843 = vpack.c.b16 %v4371, %v4367
    %v4844 = vpack.c.b16 %v4372, %v4368
    %v4845 = vpack.c.b16 %v4373, %v4369
    %v4846 = vpack.c.b16 %v4374, %v4370
    %v4847 = vpack.c.b16 %v4379, %v4375
    %v4848 = vpack.c.b16 %v4380, %v4376
    %v4849 = vpack.c.b16 %v4381, %v4377
    %v4850 = vpack.c.b16 %v4382, %v4378
    %v4851 = vpack.c.b16 %v4387, %v4383
    %v4852 = vpack.c.b16 %v4388, %v4384
    %v4853 = vpack.c.b16 %v4389, %v4385
    %v4854 = vpack.c.b16 %v4390, %v4386
    %v4855 = vpack.c.b16 %v4395, %v4391
    %v4856 = vpack.c.b16 %v4396, %v4392
    %v4857 = vpack.c.b16 %v4397, %v4393
    %v4858 = vpack.c.b16 %v4398, %v4394
    %v4859 = vpack.c.b16 %v4403, %v4399
    %v4860 = vpack.c.b16 %v4404, %v4400
    %v4861 = vpack.c.b16 %v4405, %v4401
    %v4862 = vpack.c.b16 %v4406, %v4402
    %v4863 = vpack.c.b16 %v4411, %v4407
    %v4864 = vpack.c.b16 %v4412, %v4408
    %v4865 = vpack.c.b16 %v4413, %v4409
    %v4866 = vpack.c.b16 %v4414, %v4410
    %v4867 = vpack.c.b16 %v4419, %v4415
    %v4868 = vpack.c.b16 %v4420, %v4416
    %v4869 = vpack.c.b16 %v4421, %v4417
    %v4870 = vpack.c.b16 %v4422, %v4418
    %v4871 = vpack.c.b16 %v4427, %v4423
    %v4872 = vpack.c.b16 %v4428, %v4424
    %v4873 = vpack.c.b16 %v4429, %v4425
    %v4874 = vpack.c.b16 %v4430, %v4426
    %v4875 = vpack.c.b16 %v4435, %v4431
    %v4876 = vpack.c.b16 %v4436, %v4432
    %v4877 = vpack.c.b16 %v4437, %v4433
    %v4878 = vpack.c.b16 %v4438, %v4434
    %v4879 = vpack.c.b16 %v4443, %v4439
    %v4880 = vpack.c.b16 %v4444, %v4440
    %v4881 = vpack.c.b16 %v4445, %v4441
    %v4882 = vpack.c.b16 %v4446, %v4442
    %v4883 = vpack.c.b16 %v4451, %v4447
    %v4884 = vpack.c.b16 %v4452, %v4448
    %v4885 = vpack.c.b16 %v4453, %v4449
    %v4886 = vpack.c.b16 %v4454, %v4450
    %v4887 = vpack.c.b16 %v4459, %v4455
    %v4888 = vpack.c.b16 %v4460, %v4456
    %v4889 = vpack.c.b16 %v4461, %v4457
    %v4890 = vpack.c.b16 %v4462, %v4458
    %v4891 = vpack.c.b16 %v4467, %v4463
    %v4892 = vpack.c.b16 %v4468, %v4464
    %v4893 = vpack.c.b16 %v4469, %v4465
    %v4894 = vpack.c.b16 %v4470, %v4466
    %v4895 = vpack.c.b16 %v4475, %v4471
    %v4896 = vpack.c.b16 %v4476, %v4472
    %v4897 = vpack.c.b16 %v4477, %v4473
    %v4898 = vpack.c.b16 %v4478, %v4474
    %v4899 = vpack.c.b16 %v4483, %v4479
    %v4900 = vpack.c.b16 %v4484, %v4480
    %v4901 = vpack.c.b16 %v4485, %v4481
    %v4902 = vpack.c.b16 %v4486, %v4482
    %v4903 = vpack.c.b16 %v4491, %v4487
    %v4904 = vpack.c.b16 %v4492, %v4488
    %v4905 = vpack.c.b16 %v4493, %v4489
    %v4906 = vpack.c.b16 %v4494, %v4490
    %v4907 = vpack.c.b16 %v4499, %v4495
    %v4908 = vpack.c.b16 %v4500, %v4496
    %v4909 = vpack.c.b16 %v4501, %v4497
    %v4910 = vpack.c.b16 %v4502, %v4498
    %v4911 = vpack.c.b16 %v4507, %v4503
    %v4912 = vpack.c.b16 %v4508, %v4504
    %v4913 = vpack.c.b16 %v4509, %v4505
    %v4914 = vpack.c.b16 %v4510, %v4506
    %v4915 = vpack.c.b16 %v4515, %v4511
    %v4916 = vpack.c.b16 %v4516, %v4512
    %v4917 = vpack.c.b16 %v4517, %v4513
    %v4918 = vpack.c.b16 %v4518, %v4514
    %v4919 = vpack.c.b16 %v4523, %v4519
    %v4920 = vpack.c.b16 %v4524, %v4520
    %v4921 = vpack.c.b16 %v4525, %v4521
    %v4922 = vpack.c.b16 %v4526, %v4522
    %v4923 = vpack.c.b16 %v4531, %v4527
    %v4924 = vpack.c.b16 %v4532, %v4528
    %v4925 = vpack.c.b16 %v4533, %v4529
    %v4926 = vpack.c.b16 %v4534, %v4530
    %v4927 = vpack.c.b16 %v4539, %v4535
    %v4928 = vpack.c.b16 %v4540, %v4536
    %v4929 = vpack.c.b16 %v4541, %v4537
    %v4930 = vpack.c.b16 %v4542, %v4538
    %v4931 = vpack.c.b16 %v4547, %v4543
    %v4932 = vpack.c.b16 %v4548, %v4544
    %v4933 = vpack.c.b16 %v4549, %v4545
    %v4934 = vpack.c.b16 %v4550, %v4546
    %v4935 = vpack.c.b16 %v4555, %v4551
    %v4936 = vpack.c.b16 %v4556, %v4552
    %v4937 = vpack.c.b16 %v4557, %v4553
    %v4938 = vpack.c.b16 %v4558, %v4554
    %v4939 = vpack.c.b16 %v4563, %v4559
    %v4940 = vpack.c.b16 %v4564, %v4560
    %v4941 = vpack.c.b16 %v4565, %v4561
    %v4942 = vpack.c.b16 %v4566, %v4562
    %v4943 = vpack.c.b16 %v4571, %v4567
    %v4944 = vpack.c.b16 %v4572, %v4568
    %v4945 = vpack.c.b16 %v4573, %v4569
    %v4946 = vpack.c.b16 %v4574, %v4570
    %v4947 = vpack.c.b16 %v4579, %v4575
    %v4948 = vpack.c.b16 %v4580, %v4576
    %v4949 = vpack.c.b16 %v4581, %v4577
    %v4950 = vpack.c.b16 %v4582, %v4578
    %v4951 = vpack.c.b16 %v4587, %v4583
    %v4952 = vpack.c.b16 %v4588, %v4584
    %v4953 = vpack.c.b16 %v4589, %v4585
    %v4954 = vpack.c.b16 %v4590, %v4586
    %v4955 = vpack.c.b16 %v4595, %v4591
    %v4956 = vpack.c.b16 %v4596, %v4592
    %v4957 = vpack.c.b16 %v4597, %v4593
    %v4958 = vpack.c.b16 %v4598, %v4594
    %v4959 = vpack.c.b16 %v4603, %v4599
    %v4960 = vpack.c.b16 %v4604, %v4600
    %v4961 = vpack.c.b16 %v4605, %v4601
    %v4962 = vpack.c.b16 %v4606, %v4602
    %v4963 = vpack.c.b16 %v4611, %v4607
    %v4964 = vpack.c.b16 %v4612, %v4608
    %v4965 = vpack.c.b16 %v4613, %v4609
    %v4966 = vpack.c.b16 %v4614, %v4610
    %v4967 = vpack.c.b16 %v4619, %v4615
    %v4968 = vpack.c.b16 %v4620, %v4616
    %v4969 = vpack.c.b16 %v4621, %v4617
    %v4970 = vpack.c.b16 %v4622, %v4618
    %v4971 = vpack.c.b16 %v4627, %v4623
    %v4972 = vpack.c.b16 %v4628, %v4624
    %v4973 = vpack.c.b16 %v4629, %v4625
    %v4974 = vpack.c.b16 %v4630, %v4626
    %v4975 = vpack.c.b16 %v4635, %v4631
    %v4976 = vpack.c.b16 %v4636, %v4632
    %v4977 = vpack.c.b16 %v4637, %v4633
    %v4978 = vpack.c.b16 %v4638, %v4634
    %v4979 = vpack.c.b16 %v4643, %v4639
    %v4980 = vpack.c.b16 %v4644, %v4640
    %v4981 = vpack.c.b16 %v4645, %v4641
    %v4982 = vpack.c.b16 %v4646, %v4642
    %v4983 = vpack.c.b16 %v4651, %v4647
    %v4984 = vpack.c.b16 %v4652, %v4648
    %v4985 = vpack.c.b16 %v4653, %v4649
    %v4986 = vpack.c.b16 %v4654, %v4650
    %v4987 = vpack.c.b16 %v4659, %v4655
    %v4988 = vpack.c.b16 %v4660, %v4656
    %v4989 = vpack.c.b16 %v4661, %v4657
    %v4990 = vpack.c.b16 %v4662, %v4658
    %v4991 = vpack.c.b16 %v4667, %v4663
    %v4992 = vpack.c.b16 %v4668, %v4664
    %v4993 = vpack.c.b16 %v4669, %v4665
    %v4994 = vpack.c.b16 %v4670, %v4666
    %v4995 = vpack.c.b16 %v4675, %v4671
    %v4996 = vpack.c.b16 %v4676, %v4672
    %v4997 = vpack.c.b16 %v4677, %v4673
    %v4998 = vpack.c.b16 %v4678, %v4674
    %v4999 = vpack.c.b16 %v4683, %v4679
    %v5000 = vpack.c.b16 %v4684, %v4680
    %v5001 = vpack.c.b16 %v4685, %v4681
    %v5002 = vpack.c.b16 %v4686, %v4682
    %v5003 = vpack.c.b16 %v4691, %v4687
    %v5004 = vpack.c.b16 %v4692, %v4688
    %v5005 = vpack.c.b16 %v4693, %v4689
    %v5006 = vpack.c.b16 %v4694, %v4690
    %v5007 = vpack.c.b16 %v4699, %v4695
    %v5008 = vpack.c.b16 %v4700, %v4696
    %v5009 = vpack.c.b16 %v4701, %v4697
    %v5010 = vpack.c.b16 %v4702, %v4698
    %v5011 = vpack.c.b16 %v4707, %v4703
    %v5012 = vpack.c.b16 %v4708, %v4704
    %v5013 = vpack.c.b16 %v4709, %v4705
    %v5014 = vpack.c.b16 %v4710, %v4706
    %v5015 = vpack.c.b16 %v4715, %v4711
    %v5016 = vpack.c.b16 %v4716, %v4712
    %v5017 = vpack.c.b16 %v4717, %v4713
    %v5018 = vpack.c.b16 %v4718, %v4714
    %v5019 = vpack.c.b16 %v4723, %v4719
    %v5020 = vpack.c.b16 %v4724, %v4720
    %v5021 = vpack.c.b16 %v4725, %v4721
    %v5022 = vpack.c.b16 %v4726, %v4722
    %v5023 = vpack.c.b16 %v4731, %v4727
    %v5024 = vpack.c.b16 %v4732, %v4728
    %v5025 = vpack.c.b16 %v4733, %v4729
    %v5026 = vpack.c.b16 %v4734, %v4730
    %v5027 = vpack.c.b16 %v4739, %v4735
    %v5028 = vpack.c.b16 %v4740, %v4736
    %v5029 = vpack.c.b16 %v4741, %v4737
    %v5030 = vpack.c.b16 %v4742, %v4738
    %v5031 = vpack.c.b16 %v4747, %v4743
    %v5032 = vpack.c.b16 %v4748, %v4744
    %v5033 = vpack.c.b16 %v4749, %v4745
    %v5034 = vpack.c.b16 %v4750, %v4746
    %v5035 = vpack.c.b16 %v4755, %v4751
    %v5036 = vpack.c.b16 %v4756, %v4752
    %v5037 = vpack.c.b16 %v4757, %v4753
    %v5038 = vpack.c.b16 %v4758, %v4754
    %v5039 = vpack.c.b16 %v4763, %v4759
    %v5040 = vpack.c.b16 %v4764, %v4760
    %v5041 = vpack.c.b16 %v4765, %v4761
    %v5042 = vpack.c.b16 %v4766, %v4762
    %v5043 = vpack.c.b16 %v4771, %v4767
    %v5044 = vpack.c.b16 %v4772, %v4768
    %v5045 = vpack.c.b16 %v4773, %v4769
    %v5046 = vpack.c.b16 %v4774, %v4770
    %v5047 = vpack.c.b16 %v4779, %v4775
    %v5048 = vpack.c.b16 %v4780, %v4776
    %v5049 = vpack.c.b16 %v4781, %v4777
    %v5050 = vpack.c.b16 %v4782, %v4778
    %v5051 = vpack.c.b16 %v4787, %v4783
    %v5052 = vpack.c.b16 %v4788, %v4784
    %v5053 = vpack.c.b16 %v4789, %v4785
    %v5054 = vpack.c.b16 %v4790, %v4786
    %v5055 = vpack.c.b16 %v4795, %v4791
    %v5056 = vpack.c.b16 %v4796, %v4792
    %v5057 = vpack.c.b16 %v4797, %v4793
    %v5058 = vpack.c.b16 %v4798, %v4794
    %v5059 = vpack.c.b16 %v4803, %v4799
    %v5060 = vpack.c.b16 %v4804, %v4800
    %v5061 = vpack.c.b16 %v4805, %v4801
    %v5062 = vpack.c.b16 %v4806, %v4802
    %5319 = vmatprep.subr.bf16.mxu0 %v4808
    %5320 = vmatpush1.bf16.msra.mxu0 %v4807
    %5321 = vmatprep.subr.bf16.mxu0 %v4812
    %5322 = vmatpush1.bf16.msra.mxu0 %v4811
    %5323 = vmatprep.subr.bf16.mxu0 %v4816
    %5324 = vmatpush1.bf16.msra.mxu0 %v4815
    %5325 = vmatprep.subr.bf16.mxu0 %v4820
    %5326 = vmatpush1.bf16.msra.mxu0 %v4819
    %5327 = vmatprep.subr.bf16.mxu0 %v4824
    %5328 = vmatpush1.bf16.msra.mxu0 %v4823
    %5329 = vmatprep.subr.bf16.mxu0 %v4828
    %5330 = vmatpush1.bf16.msra.mxu0 %v4827
    %5331 = vmatprep.subr.bf16.mxu0 %v4832
    %5332 = vmatpush1.bf16.msra.mxu0 %v4831
    %5333 = vmatprep.subr.bf16.mxu0 %v4836
    %5334 = vmatpush1.bf16.msra.mxu0 %v4835
    %5335 = vmatprep.subr.bf16.mxu0 %v4840
    %5336 = vmatpush1.bf16.msra.mxu0 %v4839
    %5337 = vmatprep.subr.bf16.mxu0 %v4844
    %5338 = vmatpush1.bf16.msra.mxu0 %v4843
    %5339 = vmatprep.subr.bf16.mxu0 %v4848
    %5340 = vmatpush1.bf16.msra.mxu0 %v4847
    %5341 = vmatprep.subr.bf16.mxu0 %v4852
    %5342 = vmatpush1.bf16.msra.mxu0 %v4851
    %5343 = vmatprep.subr.bf16.mxu0 %v4856
    %5344 = vmatpush1.bf16.msra.mxu0 %v4855
    %5345 = vmatprep.subr.bf16.mxu0 %v4860
    %5346 = vmatpush1.bf16.msra.mxu0 %v4859
    %5347 = vmatprep.subr.bf16.mxu0 %v4864
    %5348 = vmatpush1.bf16.msra.mxu0 %v4863
    %5349 = vmatprep.subr.bf16.mxu0 %v4868
    %5350 = vmatpush1.bf16.msra.mxu0 %v4867
    %5351 = vmatprep.mubr.bf16.mxu0 %v3775
    %5352 = vmatmul.mubr.bf16.gmra.mrb[0].mxu0 %v3774
    %v5353 = vpop.f32.mrb[0].mxu0
    %v5354 = vadd.f32 0.0, %v5353
    %v5355 = vpop.f32.mrb[0].mxu0
    %v5356 = vadd.f32 0.0, %v5355
    %v5357 = vpop.f32.mrb[0].mxu0
    %v5358 = vpop.f32.mrb[0].mxu0
    %5359 = vdwg.mxu0
    %5360 = vmatprep.subr.bf16.mxu0 %v4872
    %5361 = vmatpush1.bf16.msra.mxu0 %v4871
    %5362 = vmatprep.subr.bf16.mxu0 %v4876
    %5363 = vmatpush1.bf16.msra.mxu0 %v4875
    %5364 = vmatprep.subr.bf16.mxu0 %v4880
    %5365 = vmatpush1.bf16.msra.mxu0 %v4879
    %5366 = vmatprep.subr.bf16.mxu0 %v4884
    %5367 = vmatpush1.bf16.msra.mxu0 %v4883
    %5368 = vmatprep.subr.bf16.mxu0 %v4888
    %5369 = vmatpush1.bf16.msra.mxu0 %v4887
    %5370 = vmatprep.subr.bf16.mxu0 %v4892
    %5371 = vmatpush1.bf16.msra.mxu0 %v4891
    %5372 = vmatprep.subr.bf16.mxu0 %v4896
    %5373 = vmatpush1.bf16.msra.mxu0 %v4895
    %5374 = vmatprep.subr.bf16.mxu0 %v4900
    %5375 = vmatpush1.bf16.msra.mxu0 %v4899
    %5376 = vmatprep.subr.bf16.mxu0 %v4904
    %5377 = vmatpush1.bf16.msra.mxu0 %v4903
    %5378 = vmatprep.subr.bf16.mxu0 %v4908
    %5379 = vmatpush1.bf16.msra.mxu0 %v4907
    %5380 = vmatprep.subr.bf16.mxu0 %v4912
    %5381 = vmatpush1.bf16.msra.mxu0 %v4911
    %5382 = vmatprep.subr.bf16.mxu0 %v4916
    %5383 = vmatpush1.bf16.msra.mxu0 %v4915
    %5384 = vmatprep.subr.bf16.mxu0 %v4920
    %5385 = vmatpush1.bf16.msra.mxu0 %v4919
    %5386 = vmatprep.subr.bf16.mxu0 %v4924
    %5387 = vmatpush1.bf16.msra.mxu0 %v4923
    %5388 = vmatprep.subr.bf16.mxu0 %v4928
    %5389 = vmatpush1.bf16.msra.mxu0 %v4927
    %5390 = vmatprep.subr.bf16.mxu0 %v4932
    %5391 = vmatpush1.bf16.msra.mxu0 %v4931
    %5392 = vmatprep.mubr.bf16.mxu0 %v3777
    %5393 = vmatmul.mubr.bf16.gmra.mrb[0].mxu0 %v3776
    %v5394 = vpop.f32.mrb[0].mxu0
    %v5395 = vadd.f32 %v5354, %v5394
    %v5396 = vpop.f32.mrb[0].mxu0
    %v5397 = vadd.f32 %v5356, %v5396
    %v5398 = vpop.f32.mrb[0].mxu0
    %v5399 = vpop.f32.mrb[0].mxu0
    %5400 = vdwg.mxu0
    %5401 = vmatprep.subr.bf16.mxu0 %v4936
    %5402 = vmatpush1.bf16.msra.mxu0 %v4935
    %5403 = vmatprep.subr.bf16.mxu0 %v4940
    %5404 = vmatpush1.bf16.msra.mxu0 %v4939
    %5405 = vmatprep.subr.bf16.mxu0 %v4944
    %5406 = vmatpush1.bf16.msra.mxu0 %v4943
    %5407 = vmatprep.subr.bf16.mxu0 %v4948
    %5408 = vmatpush1.bf16.msra.mxu0 %v4947
    %5409 = vmatprep.subr.bf16.mxu0 %v4952
    %5410 = vmatpush1.bf16.msra.mxu0 %v4951
    %5411 = vmatprep.subr.bf16.mxu0 %v4956
    %5412 = vmatpush1.bf16.msra.mxu0 %v4955
    %5413 = vmatprep.subr.bf16.mxu0 %v4960
    %5414 = vmatpush1.bf16.msra.mxu0 %v4959
    %5415 = vmatprep.subr.bf16.mxu0 %v4964
    %5416 = vmatpush1.bf16.msra.mxu0 %v4963
    %5417 = vmatprep.subr.bf16.mxu0 %v4968
    %5418 = vmatpush1.bf16.msra.mxu0 %v4967
    %5419 = vmatprep.subr.bf16.mxu0 %v4972
    %5420 = vmatpush1.bf16.msra.mxu0 %v4971
    %5421 = vmatprep.subr.bf16.mxu0 %v4976
    %5422 = vmatpush1.bf16.msra.mxu0 %v4975
    %5423 = vmatprep.subr.bf16.mxu0 %v4980
    %5424 = vmatpush1.bf16.msra.mxu0 %v4979
    %5425 = vmatprep.subr.bf16.mxu0 %v4984
    %5426 = vmatpush1.bf16.msra.mxu0 %v4983
    %5427 = vmatprep.subr.bf16.mxu0 %v4988
    %5428 = vmatpush1.bf16.msra.mxu0 %v4987
    %5429 = vmatprep.subr.bf16.mxu0 %v4992
    %5430 = vmatpush1.bf16.msra.mxu0 %v4991
    %5431 = vmatprep.subr.bf16.mxu0 %v4996
    %5432 = vmatpush1.bf16.msra.mxu0 %v4995
    %5433 = vmatprep.mubr.bf16.mxu0 %v3779
    %5434 = vmatmul.mubr.bf16.gmra.mrb[0].mxu0 %v3778
    %v5435 = vpop.f32.mrb[0].mxu0
    %v5436 = vadd.f32 %v5395, %v5435
    %v5437 = vpop.f32.mrb[0].mxu0
    %v5438 = vadd.f32 %v5397, %v5437
    %v5439 = vpop.f32.mrb[0].mxu0
    %v5440 = vpop.f32.mrb[0].mxu0
    %5441 = vdwg.mxu0
    %5442 = vmatprep.subr.bf16.mxu0 %v5000
    %5443 = vmatpush1.bf16.msra.mxu0 %v4999
    %5444 = vmatprep.subr.bf16.mxu0 %v5004
    %5445 = vmatpush1.bf16.msra.mxu0 %v5003
    %5446 = vmatprep.subr.bf16.mxu0 %v5008
    %5447 = vmatpush1.bf16.msra.mxu0 %v5007
    %5448 = vmatprep.subr.bf16.mxu0 %v5012
    %5449 = vmatpush1.bf16.msra.mxu0 %v5011
    %5450 = vmatprep.subr.bf16.mxu0 %v5016
    %5451 = vmatpush1.bf16.msra.mxu0 %v5015
    %5452 = vmatprep.subr.bf16.mxu0 %v5020
    %5453 = vmatpush1.bf16.msra.mxu0 %v5019
    %5454 = vmatprep.subr.bf16.mxu0 %v5024
    %5455 = vmatpush1.bf16.msra.mxu0 %v5023
    %5456 = vmatprep.subr.bf16.mxu0 %v5028
    %5457 = vmatpush1.bf16.msra.mxu0 %v5027
    %5458 = vmatprep.subr.bf16.mxu0 %v5032
    %5459 = vmatpush1.bf16.msra.mxu0 %v5031
    %5460 = vmatprep.subr.bf16.mxu0 %v5036
    %5461 = vmatpush1.bf16.msra.mxu0 %v5035
    %5462 = vmatprep.subr.bf16.mxu0 %v5040
    %5463 = vmatpush1.bf16.msra.mxu0 %v5039
    %5464 = vmatprep.subr.bf16.mxu0 %v5044
    %5465 = vmatpush1.bf16.msra.mxu0 %v5043
    %5466 = vmatprep.subr.bf16.mxu0 %v5048
    %5467 = vmatpush1.bf16.msra.mxu0 %v5047
    %5468 = vmatprep.subr.bf16.mxu0 %v5052
    %5469 = vmatpush1.bf16.msra.mxu0 %v5051
    %5470 = vmatprep.subr.bf16.mxu0 %v5056
    %5471 = vmatpush1.bf16.msra.mxu0 %v5055
    %5472 = vmatprep.subr.bf16.mxu0 %v5060
    %5473 = vmatpush1.bf16.msra.mxu0 %v5059
    %5474 = vmatprep.mubr.bf16.mxu0 %v3781
    %5475 = vmatmul.mubr.bf16.gmra.mrb[0].mxu0 %v3780
    %v5476 = vpop.f32.mrb[0].mxu0
    %v5477 = vadd.f32 %v5436, %v5476
    %v5478 = vpop.f32.mrb[0].mxu0
    %v5479 = vadd.f32 %v5438, %v5478
    %v5480 = vpop.f32.mrb[0].mxu0
    %v5481 = vpop.f32.mrb[0].mxu0
    %5482 = vdwg.mxu0
    %5483 = vmatprep.subr.bf16.mxu0 %v4810
    %5484 = vmatpush1.bf16.msra.mxu0 %v4809
    %5485 = vmatprep.subr.bf16.mxu0 %v4814
    %5486 = vmatpush1.bf16.msra.mxu0 %v4813
    %5487 = vmatprep.subr.bf16.mxu0 %v4818
    %5488 = vmatpush1.bf16.msra.mxu0 %v4817
    %5489 = vmatprep.subr.bf16.mxu0 %v4822
    %5490 = vmatpush1.bf16.msra.mxu0 %v4821
    %5491 = vmatprep.subr.bf16.mxu0 %v4826
    %5492 = vmatpush1.bf16.msra.mxu0 %v4825
    %5493 = vmatprep.subr.bf16.mxu0 %v4830
    %5494 = vmatpush1.bf16.msra.mxu0 %v4829
    %5495 = vmatprep.subr.bf16.mxu0 %v4834
    %5496 = vmatpush1.bf16.msra.mxu0 %v4833
    %5497 = vmatprep.subr.bf16.mxu0 %v4838
    %5498 = vmatpush1.bf16.msra.mxu0 %v4837
    %5499 = vmatprep.subr.bf16.mxu0 %v4842
    %5500 = vmatpush1.bf16.msra.mxu0 %v4841
    %5501 = vmatprep.subr.bf16.mxu0 %v4846
    %5502 = vmatpush1.bf16.msra.mxu0 %v4845
    %5503 = vmatprep.subr.bf16.mxu0 %v4850
    %5504 = vmatpush1.bf16.msra.mxu0 %v4849
    %5505 = vmatprep.subr.bf16.mxu0 %v4854
    %5506 = vmatpush1.bf16.msra.mxu0 %v4853
    %5507 = vmatprep.subr.bf16.mxu0 %v4858
    %5508 = vmatpush1.bf16.msra.mxu0 %v4857
    %5509 = vmatprep.subr.bf16.mxu0 %v4862
    %5510 = vmatpush1.bf16.msra.mxu0 %v4861
    %5511 = vmatprep.subr.bf16.mxu0 %v4866
    %5512 = vmatpush1.bf16.msra.mxu0 %v4865
    %5513 = vmatprep.subr.bf16.mxu0 %v4870
    %5514 = vmatpush1.bf16.msra.mxu0 %v4869
    %5515 = vmatprep.mubr.bf16.mxu0 %v3775
    %5516 = vmatmul.mubr.bf16.gmra.mrb[0].mxu0 %v3774
    %v5517 = vpop.f32.mrb[0].mxu0
    %v5518 = vadd.f32 0.0, %v5517
    %v5519 = vpop.f32.mrb[0].mxu0
    %v5520 = vadd.f32 0.0, %v5519
    %v5521 = vpop.f32.mrb[0].mxu0
    %v5522 = vpop.f32.mrb[0].mxu0
    %5523 = vdwg.mxu0
    %5524 = vmatprep.subr.bf16.mxu0 %v4874
    %5525 = vmatpush1.bf16.msra.mxu0 %v4873
    %5526 = vmatprep.subr.bf16.mxu0 %v4878
    %5527 = vmatpush1.bf16.msra.mxu0 %v4877
    %5528 = vmatprep.subr.bf16.mxu0 %v4882
    %5529 = vmatpush1.bf16.msra.mxu0 %v4881
    %5530 = vmatprep.subr.bf16.mxu0 %v4886
    %5531 = vmatpush1.bf16.msra.mxu0 %v4885
    %5532 = vmatprep.subr.bf16.mxu0 %v4890
    %5533 = vmatpush1.bf16.msra.mxu0 %v4889
    %5534 = vmatprep.subr.bf16.mxu0 %v4894
    %5535 = vmatpush1.bf16.msra.mxu0 %v4893
    %5536 = vmatprep.subr.bf16.mxu0 %v4898
    %5537 = vmatpush1.bf16.msra.mxu0 %v4897
    %5538 = vmatprep.subr.bf16.mxu0 %v4902
    %5539 = vmatpush1.bf16.msra.mxu0 %v4901
    %5540 = vmatprep.subr.bf16.mxu0 %v4906
    %5541 = vmatpush1.bf16.msra.mxu0 %v4905
    %5542 = vmatprep.subr.bf16.mxu0 %v4910
    %5543 = vmatpush1.bf16.msra.mxu0 %v4909
    %5544 = vmatprep.subr.bf16.mxu0 %v4914
    %5545 = vmatpush1.bf16.msra.mxu0 %v4913
    %5546 = vmatprep.subr.bf16.mxu0 %v4918
    %5547 = vmatpush1.bf16.msra.mxu0 %v4917
    %5548 = vmatprep.subr.bf16.mxu0 %v4922
    %5549 = vmatpush1.bf16.msra.mxu0 %v4921
    %5550 = vmatprep.subr.bf16.mxu0 %v4926
    %5551 = vmatpush1.bf16.msra.mxu0 %v4925
    %5552 = vmatprep.subr.bf16.mxu0 %v4930
    %5553 = vmatpush1.bf16.msra.mxu0 %v4929
    %5554 = vmatprep.subr.bf16.mxu0 %v4934
    %5555 = vmatpush1.bf16.msra.mxu0 %v4933
    %5556 = vmatprep.mubr.bf16.mxu0 %v3777
    %5557 = vmatmul.mubr.bf16.gmra.mrb[0].mxu0 %v3776
    %v5558 = vpop.f32.mrb[0].mxu0
    %v5559 = vadd.f32 %v5518, %v5558
    %v5560 = vpop.f32.mrb[0].mxu0
    %v5561 = vadd.f32 %v5520, %v5560
    %v5562 = vpop.f32.mrb[0].mxu0
    %v5563 = vpop.f32.mrb[0].mxu0
    %5564 = vdwg.mxu0
    %5565 = vmatprep.subr.bf16.mxu0 %v4938
    %5566 = vmatpush1.bf16.msra.mxu0 %v4937
    %5567 = vmatprep.subr.bf16.mxu0 %v4942
    %5568 = vmatpush1.bf16.msra.mxu0 %v4941
    %5569 = vmatprep.subr.bf16.mxu0 %v4946
    %5570 = vmatpush1.bf16.msra.mxu0 %v4945
    %5571 = vmatprep.subr.bf16.mxu0 %v4950
    %5572 = vmatpush1.bf16.msra.mxu0 %v4949
    %5573 = vmatprep.subr.bf16.mxu0 %v4954
    %5574 = vmatpush1.bf16.msra.mxu0 %v4953
    %5575 = vmatprep.subr.bf16.mxu0 %v4958
    %5576 = vmatpush1.bf16.msra.mxu0 %v4957
    %5577 = vmatprep.subr.bf16.mxu0 %v4962
    %5578 = vmatpush1.bf16.msra.mxu0 %v4961
    %5579 = vmatprep.subr.bf16.mxu0 %v4966
    %5580 = vmatpush1.bf16.msra.mxu0 %v4965
    %5581 = vmatprep.subr.bf16.mxu0 %v4970
    %5582 = vmatpush1.bf16.msra.mxu0 %v4969
    %5583 = vmatprep.subr.bf16.mxu0 %v4974
    %5584 = vmatpush1.bf16.msra.mxu0 %v4973
    %5585 = vmatprep.subr.bf16.mxu0 %v4978
    %5586 = vmatpush1.bf16.msra.mxu0 %v4977
    %5587 = vmatprep.subr.bf16.mxu0 %v4982
    %5588 = vmatpush1.bf16.msra.mxu0 %v4981
    %5589 = vmatprep.subr.bf16.mxu0 %v4986
    %5590 = vmatpush1.bf16.msra.mxu0 %v4985
    %5591 = vmatprep.subr.bf16.mxu0 %v4990
    %5592 = vmatpush1.bf16.msra.mxu0 %v4989
    %5593 = vmatprep.subr.bf16.mxu0 %v4994
    %5594 = vmatpush1.bf16.msra.mxu0 %v4993
    %5595 = vmatprep.subr.bf16.mxu0 %v4998
    %5596 = vmatpush1.bf16.msra.mxu0 %v4997
    %5597 = vmatprep.mubr.bf16.mxu0 %v3779
    %5598 = vmatmul.mubr.bf16.gmra.mrb[0].mxu0 %v3778
    %v5599 = vpop.f32.mrb[0].mxu0
    %v5600 = vadd.f32 %v5559, %v5599
    %v5601 = vpop.f32.mrb[0].mxu0
    %v5602 = vadd.f32 %v5561, %v5601
    %v5603 = vpop.f32.mrb[0].mxu0
    %v5604 = vpop.f32.mrb[0].mxu0
    %5605 = vdwg.mxu0
    %5606 = vmatprep.subr.bf16.mxu0 %v5002
    %5607 = vmatpush1.bf16.msra.mxu0 %v5001
    %5608 = vmatprep.subr.bf16.mxu0 %v5006
    %5609 = vmatpush1.bf16.msra.mxu0 %v5005
    %5610 = vmatprep.subr.bf16.mxu0 %v5010
    %5611 = vmatpush1.bf16.msra.mxu0 %v5009
    %5612 = vmatprep.subr.bf16.mxu0 %v5014
    %5613 = vmatpush1.bf16.msra.mxu0 %v5013
    %5614 = vmatprep.subr.bf16.mxu0 %v5018
    %5615 = vmatpush1.bf16.msra.mxu0 %v5017
    %5616 = vmatprep.subr.bf16.mxu0 %v5022
    %5617 = vmatpush1.bf16.msra.mxu0 %v5021
    %5618 = vmatprep.subr.bf16.mxu0 %v5026
    %5619 = vmatpush1.bf16.msra.mxu0 %v5025
    %5620 = vmatprep.subr.bf16.mxu0 %v5030
    %5621 = vmatpush1.bf16.msra.mxu0 %v5029
    %5622 = vmatprep.subr.bf16.mxu0 %v5034
    %5623 = vmatpush1.bf16.msra.mxu0 %v5033
    %5624 = vmatprep.subr.bf16.mxu0 %v5038
    %5625 = vmatpush1.bf16.msra.mxu0 %v5037
    %5626 = vmatprep.subr.bf16.mxu0 %v5042
    %5627 = vmatpush1.bf16.msra.mxu0 %v5041
    %5628 = vmatprep.subr.bf16.mxu0 %v5046
    %5629 = vmatpush1.bf16.msra.mxu0 %v5045
    %5630 = vmatprep.subr.bf16.mxu0 %v5050
    %5631 = vmatpush1.bf16.msra.mxu0 %v5049
    %5632 = vmatprep.subr.bf16.mxu0 %v5054
    %5633 = vmatpush1.bf16.msra.mxu0 %v5053
    %5634 = vmatprep.subr.bf16.mxu0 %v5058
    %5635 = vmatpush1.bf16.msra.mxu0 %v5057
    %5636 = vmatprep.subr.bf16.mxu0 %v5062
    %5637 = vmatpush1.bf16.msra.mxu0 %v5061
    %5638 = vmatprep.mubr.bf16.mxu0 %v3781
    %5639 = vmatmul.mubr.bf16.gmra.mrb[0].mxu0 %v3780
    %v5640 = vpop.f32.mrb[0].mxu0
    %v5641 = vadd.f32 %v5600, %v5640
    %v5642 = vpop.f32.mrb[0].mxu0
    %v5643 = vadd.f32 %v5602, %v5642
    %v5644 = vpop.f32.mrb[0].mxu0
    %v5645 = vpop.f32.mrb[0].mxu0
    %5646 = vdwg.mxu0
    %v5647 = vpack.c.bf16 %v5477, %v5477
    %v5648 = vpack.c.bf16 %v5479, %v5479
    %v5649 = vpack.c.bf16 %v5641, %v5641
    %v5650 = vpack.c.bf16 %v5643, %v5643
    %v5652 = vlaneseq
    %v5653 = vshrl.u32 %v5652, 7
    %v5654 = vsub.s32 0, %v5653
    %v5655 = vrot.slane %v4038, %v5654
    %v5656 = vlaneseq
    %v5657 = vshrl.u32 %v5656, 7
    %v5658 = vsub.s32 1, %v5657
    %v5659 = vrot.slane %v4038, %v5658
    %v5660 = vlaneseq
    %v5661 = vshrl.u32 %v5660, 7
    %v5662 = vsub.s32 2, %v5661
    %v5663 = vrot.slane %v4038, %v5662
    %v5664 = vlaneseq
    %v5665 = vshrl.u32 %v5664, 7
    %v5666 = vsub.s32 3, %v5665
    %v5667 = vrot.slane %v4038, %v5666
    %v5672 = vpack.c.bf16 %v5655, %v5655
    %v5673 = vpack.c.bf16 %v5659, %v5659
    %v5674 = vpack.c.bf16 %v5663, %v5663
    %v5675 = vpack.c.bf16 %v5667, %v5667
    %v5677 = vpack.i.b16 %v5672, %v5672
    %v5679 = vlaneseq
    %v5680 = vshrl.u32 %v5679, 7
    %v5681 = vsub.s32 0, %v5680
    %v5682 = vrot.slane %v5677, %v5681
    %v5684 = vpack.i.b16 %v5673, %v5673
    %v5686 = vlaneseq
    %v5687 = vshrl.u32 %v5686, 7
    %v5688 = vsub.s32 0, %v5687
    %v5689 = vrot.slane %v5684, %v5688
    %v5691 = vpack.i.b16 %v5674, %v5674
    %v5693 = vlaneseq
    %v5694 = vshrl.u32 %v5693, 7
    %v5695 = vsub.s32 0, %v5694
    %v5696 = vrot.slane %v5691, %v5695
    %v5698 = vpack.i.b16 %v5675, %v5675
    %v5700 = vlaneseq
    %v5701 = vshrl.u32 %v5700, 7
    %v5702 = vsub.s32 0, %v5701
    %v5703 = vrot.slane %v5698, %v5702
    %v5704 = vadd.bf16 %v5647, %v5682
    %v5705 = vadd.bf16 %v5648, %v5689
    %v5706 = vadd.bf16 %v5649, %v5696
    %v5707 = vadd.bf16 %v5650, %v5703
    %v5708 = vmul.bf16 %v5704, 1009007652
    %v5709 = vmul.bf16 %v5705, 1009007652
    %v5710 = vmul.bf16 %v5706, 1009007652
    %v5711 = vmul.bf16 %v5707, 1009007652
    %v5712 = vmax.bf16 %v5704, %v5708
    %v5713 = vmax.bf16 %v5705, %v5709
    %v5714 = vmax.bf16 %v5706, %v5710
    %v5715 = vmax.bf16 %v5707, %v5711
    %v5716 = vld [vmem:[#allocation11] sm:$0xff]
    %v5717 = vld [vmem:[#allocation11 + $0x8] sm:$0xff]
    %v5718 = vld [vmem:[#allocation11 + $0x10] sm:$0xff]
    %v5719 = vld [vmem:[#allocation11 + $0x18] sm:$0xff]
    %v5720 = vld [vmem:[#allocation11 + $0x20] sm:$0xff]
    %v5721 = vld [vmem:[#allocation11 + $0x28] sm:$0xff]
    %v5722 = vld [vmem:[#allocation11 + $0x30] sm:$0xff]
    %v5723 = vld [vmem:[#allocation11 + $0x38] sm:$0xff]
    %v5724 = vld [vmem:[#allocation11 + $0x40] sm:$0xff]
    %v5725 = vld [vmem:[#allocation11 + $0x48] sm:$0xff]
    %v5726 = vld [vmem:[#allocation11 + $0x50] sm:$0xff]
    %v5727 = vld [vmem:[#allocation11 + $0x58] sm:$0xff]
    %v5728 = vld [vmem:[#allocation11 + $0x60] sm:$0xff]
    %v5729 = vld [vmem:[#allocation11 + $0x68] sm:$0xff]
    %v5730 = vld [vmem:[#allocation11 + $0x70] sm:$0xff]
    %v5731 = vld [vmem:[#allocation11 + $0x78] sm:$0xff]
    %v5732 = vld [vmem:[#allocation11 + $0x80] sm:$0xff]
    %v5733 = vld [vmem:[#allocation11 + $0x88] sm:$0xff]
    %v5734 = vld [vmem:[#allocation11 + $0x90] sm:$0xff]
    %v5735 = vld [vmem:[#allocation11 + $0x98] sm:$0xff]
    %v5736 = vld [vmem:[#allocation11 + $0xa0] sm:$0xff]
    %v5737 = vld [vmem:[#allocation11 + $0xa8] sm:$0xff]
    %v5738 = vld [vmem:[#allocation11 + $0xb0] sm:$0xff]
    %v5739 = vld [vmem:[#allocation11 + $0xb8] sm:$0xff]
    %v5740 = vld [vmem:[#allocation11 + $0xc0] sm:$0xff]
    %v5741 = vld [vmem:[#allocation11 + $0xc8] sm:$0xff]
    %v5742 = vld [vmem:[#allocation11 + $0xd0] sm:$0xff]
    %v5743 = vld [vmem:[#allocation11 + $0xd8] sm:$0xff]
    %v5744 = vld [vmem:[#allocation11 + $0xe0] sm:$0xff]
    %v5745 = vld [vmem:[#allocation11 + $0xe8] sm:$0xff]
    %v5746 = vld [vmem:[#allocation11 + $0xf0] sm:$0xff]
    %v5747 = vld [vmem:[#allocation11 + $0xf8] sm:$0xff]
    %v5748 = vld [vmem:[#allocation11 + $0x100] sm:$0xff]
    %v5749 = vld [vmem:[#allocation11 + $0x108] sm:$0xff]
    %v5750 = vld [vmem:[#allocation11 + $0x110] sm:$0xff]
    %v5751 = vld [vmem:[#allocation11 + $0x118] sm:$0xff]
    %v5752 = vld [vmem:[#allocation11 + $0x120] sm:$0xff]
    %v5753 = vld [vmem:[#allocation11 + $0x128] sm:$0xff]
    %v5754 = vld [vmem:[#allocation11 + $0x130] sm:$0xff]
    %v5755 = vld [vmem:[#allocation11 + $0x138] sm:$0xff]
    %v5756 = vld [vmem:[#allocation11 + $0x140] sm:$0xff]
    %v5757 = vld [vmem:[#allocation11 + $0x148] sm:$0xff]
    %v5758 = vld [vmem:[#allocation11 + $0x150] sm:$0xff]
    %v5759 = vld [vmem:[#allocation11 + $0x158] sm:$0xff]
    %v5760 = vld [vmem:[#allocation11 + $0x160] sm:$0xff]
    %v5761 = vld [vmem:[#allocation11 + $0x168] sm:$0xff]
    %v5762 = vld [vmem:[#allocation11 + $0x170] sm:$0xff]
    %v5763 = vld [vmem:[#allocation11 + $0x178] sm:$0xff]
    %v5764 = vld [vmem:[#allocation11 + $0x180] sm:$0xff]
    %v5765 = vld [vmem:[#allocation11 + $0x188] sm:$0xff]
    %v5766 = vld [vmem:[#allocation11 + $0x190] sm:$0xff]
    %v5767 = vld [vmem:[#allocation11 + $0x198] sm:$0xff]
    %v5768 = vld [vmem:[#allocation11 + $0x1a0] sm:$0xff]
    %v5769 = vld [vmem:[#allocation11 + $0x1a8] sm:$0xff]
    %v5770 = vld [vmem:[#allocation11 + $0x1b0] sm:$0xff]
    %v5771 = vld [vmem:[#allocation11 + $0x1b8] sm:$0xff]
    %v5772 = vld [vmem:[#allocation11 + $0x1c0] sm:$0xff]
    %v5773 = vld [vmem:[#allocation11 + $0x1c8] sm:$0xff]
    %v5774 = vld [vmem:[#allocation11 + $0x1d0] sm:$0xff]
    %v5775 = vld [vmem:[#allocation11 + $0x1d8] sm:$0xff]
    %v5776 = vld [vmem:[#allocation11 + $0x1e0] sm:$0xff]
    %v5777 = vld [vmem:[#allocation11 + $0x1e8] sm:$0xff]
    %v5778 = vld [vmem:[#allocation11 + $0x1f0] sm:$0xff]
    %v5779 = vld [vmem:[#allocation11 + $0x1f8] sm:$0xff]
    %v5780 = vld [vmem:[#allocation13] sm:$0x3]
    %v5845 = vunpack.c.l.b16 %v5716
    %v5846 = vunpack.c.h.b16 %v5716
    %v5847 = vunpack.c.l.b16 %v5717
    %v5848 = vunpack.c.h.b16 %v5717
    %v5849 = vunpack.c.l.b16 %v5718
    %v5850 = vunpack.c.h.b16 %v5718
    %v5851 = vunpack.c.l.b16 %v5719
    %v5852 = vunpack.c.h.b16 %v5719
    %v5853 = vunpack.c.l.b16 %v5720
    %v5854 = vunpack.c.h.b16 %v5720
    %v5855 = vunpack.c.l.b16 %v5721
    %v5856 = vunpack.c.h.b16 %v5721
    %v5857 = vunpack.c.l.b16 %v5722
    %v5858 = vunpack.c.h.b16 %v5722
    %v5859 = vunpack.c.l.b16 %v5723
    %v5860 = vunpack.c.h.b16 %v5723
    %v5861 = vunpack.c.l.b16 %v5724
    %v5862 = vunpack.c.h.b16 %v5724
    %v5863 = vunpack.c.l.b16 %v5725
    %v5864 = vunpack.c.h.b16 %v5725
    %v5865 = vunpack.c.l.b16 %v5726
    %v5866 = vunpack.c.h.b16 %v5726
    %v5867 = vunpack.c.l.b16 %v5727
    %v5868 = vunpack.c.h.b16 %v5727
    %v5869 = vunpack.c.l.b16 %v5728
    %v5870 = vunpack.c.h.b16 %v5728
    %v5871 = vunpack.c.l.b16 %v5729
    %v5872 = vunpack.c.h.b16 %v5729
    %v5873 = vunpack.c.l.b16 %v5730
    %v5874 = vunpack.c.h.b16 %v5730
    %v5875 = vunpack.c.l.b16 %v5731
    %v5876 = vunpack.c.h.b16 %v5731
    %v5877 = vunpack.c.l.b16 %v5732
    %v5878 = vunpack.c.h.b16 %v5732
    %v5879 = vunpack.c.l.b16 %v5733
    %v5880 = vunpack.c.h.b16 %v5733
    %v5881 = vunpack.c.l.b16 %v5734
    %v5882 = vunpack.c.h.b16 %v5734
    %v5883 = vunpack.c.l.b16 %v5735
    %v5884 = vunpack.c.h.b16 %v5735
    %v5885 = vunpack.c.l.b16 %v5736
    %v5886 = vunpack.c.h.b16 %v5736
    %v5887 = vunpack.c.l.b16 %v5737
    %v5888 = vunpack.c.h.b16 %v5737
    %v5889 = vunpack.c.l.b16 %v5738
    %v5890 = vunpack.c.h.b16 %v5738
    %v5891 = vunpack.c.l.b16 %v5739
    %v5892 = vunpack.c.h.b16 %v5739
    %v5893 = vunpack.c.l.b16 %v5740
    %v5894 = vunpack.c.h.b16 %v5740
    %v5895 = vunpack.c.l.b16 %v5741
    %v5896 = vunpack.c.h.b16 %v5741
    %v5897 = vunpack.c.l.b16 %v5742
    %v5898 = vunpack.c.h.b16 %v5742
    %v5899 = vunpack.c.l.b16 %v5743
    %v5900 = vunpack.c.h.b16 %v5743
    %v5901 = vunpack.c.l.b16 %v5744
    %v5902 = vunpack.c.h.b16 %v5744
    %v5903 = vunpack.c.l.b16 %v5745
    %v5904 = vunpack.c.h.b16 %v5745
    %v5905 = vunpack.c.l.b16 %v5746
    %v5906 = vunpack.c.h.b16 %v5746
    %v5907 = vunpack.c.l.b16 %v5747
    %v5908 = vunpack.c.h.b16 %v5747
    %v5909 = vunpack.c.l.b16 %v5748
    %v5910 = vunpack.c.h.b16 %v5748
    %v5911 = vunpack.c.l.b16 %v5749
    %v5912 = vunpack.c.h.b16 %v5749
    %v5913 = vunpack.c.l.b16 %v5750
    %v5914 = vunpack.c.h.b16 %v5750
    %v5915 = vunpack.c.l.b16 %v5751
    %v5916 = vunpack.c.h.b16 %v5751
    %v5917 = vunpack.c.l.b16 %v5752
    %v5918 = vunpack.c.h.b16 %v5752
    %v5919 = vunpack.c.l.b16 %v5753
    %v5920 = vunpack.c.h.b16 %v5753
    %v5921 = vunpack.c.l.b16 %v5754
    %v5922 = vunpack.c.h.b16 %v5754
    %v5923 = vunpack.c.l.b16 %v5755
    %v5924 = vunpack.c.h.b16 %v5755
    %v5925 = vunpack.c.l.b16 %v5756
    %v5926 = vunpack.c.h.b16 %v5756
    %v5927 = vunpack.c.l.b16 %v5757
    %v5928 = vunpack.c.h.b16 %v5757
    %v5929 = vunpack.c.l.b16 %v5758
    %v5930 = vunpack.c.h.b16 %v5758
    %v5931 = vunpack.c.l.b16 %v5759
    %v5932 = vunpack.c.h.b16 %v5759
    %v5933 = vunpack.c.l.b16 %v5760
    %v5934 = vunpack.c.h.b16 %v5760
    %v5935 = vunpack.c.l.b16 %v5761
    %v5936 = vunpack.c.h.b16 %v5761
    %v5937 = vunpack.c.l.b16 %v5762
    %v5938 = vunpack.c.h.b16 %v5762
    %v5939 = vunpack.c.l.b16 %v5763
    %v5940 = vunpack.c.h.b16 %v5763
    %v5941 = vunpack.c.l.b16 %v5764
    %v5942 = vunpack.c.h.b16 %v5764
    %v5943 = vunpack.c.l.b16 %v5765
    %v5944 = vunpack.c.h.b16 %v5765
    %v5945 = vunpack.c.l.b16 %v5766
    %v5946 = vunpack.c.h.b16 %v5766
    %v5947 = vunpack.c.l.b16 %v5767
    %v5948 = vunpack.c.h.b16 %v5767
    %v5949 = vunpack.c.l.b16 %v5768
    %v5950 = vunpack.c.h.b16 %v5768
    %v5951 = vunpack.c.l.b16 %v5769
    %v5952 = vunpack.c.h.b16 %v5769
    %v5953 = vunpack.c.l.b16 %v5770
    %v5954 = vunpack.c.h.b16 %v5770
    %v5955 = vunpack.c.l.b16 %v5771
    %v5956 = vunpack.c.h.b16 %v5771
    %v5957 = vunpack.c.l.b16 %v5772
    %v5958 = vunpack.c.h.b16 %v5772
    %v5959 = vunpack.c.l.b16 %v5773
    %v5960 = vunpack.c.h.b16 %v5773
    %v5961 = vunpack.c.l.b16 %v5774
    %v5962 = vunpack.c.h.b16 %v5774
    %v5963 = vunpack.c.l.b16 %v5775
    %v5964 = vunpack.c.h.b16 %v5775
    %v5965 = vunpack.c.l.b16 %v5776
    %v5966 = vunpack.c.h.b16 %v5776
    %v5967 = vunpack.c.l.b16 %v5777
    %v5968 = vunpack.c.h.b16 %v5777
    %v5969 = vunpack.c.l.b16 %v5778
    %v5970 = vunpack.c.h.b16 %v5778
    %v5971 = vunpack.c.l.b16 %v5779
    %v5972 = vunpack.c.h.b16 %v5779
    %v5973 = vpack.c.b16 %v5847, %v5845
    %v5974 = vpack.c.b16 %v5848, %v5846
    %v5975 = vpack.c.b16 %v5851, %v5849
    %v5976 = vpack.c.b16 %v5852, %v5850
    %v5977 = vpack.c.b16 %v5855, %v5853
    %v5978 = vpack.c.b16 %v5856, %v5854
    %v5979 = vpack.c.b16 %v5859, %v5857
    %v5980 = vpack.c.b16 %v5860, %v5858
    %v5981 = vpack.c.b16 %v5863, %v5861
    %v5982 = vpack.c.b16 %v5864, %v5862
    %v5983 = vpack.c.b16 %v5867, %v5865
    %v5984 = vpack.c.b16 %v5868, %v5866
    %v5985 = vpack.c.b16 %v5871, %v5869
    %v5986 = vpack.c.b16 %v5872, %v5870
    %v5987 = vpack.c.b16 %v5875, %v5873
    %v5988 = vpack.c.b16 %v5876, %v5874
    %v5989 = vpack.c.b16 %v5879, %v5877
    %v5990 = vpack.c.b16 %v5880, %v5878
    %v5991 = vpack.c.b16 %v5883, %v5881
    %v5992 = vpack.c.b16 %v5884, %v5882
    %v5993 = vpack.c.b16 %v5887, %v5885
    %v5994 = vpack.c.b16 %v5888, %v5886
    %v5995 = vpack.c.b16 %v5891, %v5889
    %v5996 = vpack.c.b16 %v5892, %v5890
    %v5997 = vpack.c.b16 %v5895, %v5893
    %v5998 = vpack.c.b16 %v5896, %v5894
    %v5999 = vpack.c.b16 %v5899, %v5897
    %v6000 = vpack.c.b16 %v5900, %v5898
    %v6001 = vpack.c.b16 %v5903, %v5901
    %v6002 = vpack.c.b16 %v5904, %v5902
    %v6003 = vpack.c.b16 %v5907, %v5905
    %v6004 = vpack.c.b16 %v5908, %v5906
    %v6005 = vpack.c.b16 %v5911, %v5909
    %v6006 = vpack.c.b16 %v5912, %v5910
    %v6007 = vpack.c.b16 %v5915, %v5913
    %v6008 = vpack.c.b16 %v5916, %v5914
    %v6009 = vpack.c.b16 %v5919, %v5917
    %v6010 = vpack.c.b16 %v5920, %v5918
    %v6011 = vpack.c.b16 %v5923, %v5921
    %v6012 = vpack.c.b16 %v5924, %v5922
    %v6013 = vpack.c.b16 %v5927, %v5925
    %v6014 = vpack.c.b16 %v5928, %v5926
    %v6015 = vpack.c.b16 %v5931, %v5929
    %v6016 = vpack.c.b16 %v5932, %v5930
    %v6017 = vpack.c.b16 %v5935, %v5933
    %v6018 = vpack.c.b16 %v5936, %v5934
    %v6019 = vpack.c.b16 %v5939, %v5937
    %v6020 = vpack.c.b16 %v5940, %v5938
    %v6021 = vpack.c.b16 %v5943, %v5941
    %v6022 = vpack.c.b16 %v5944, %v5942
    %v6023 = vpack.c.b16 %v5947, %v5945
    %v6024 = vpack.c.b16 %v5948, %v5946
    %v6025 = vpack.c.b16 %v5951, %v5949
    %v6026 = vpack.c.b16 %v5952, %v5950
    %v6027 = vpack.c.b16 %v5955, %v5953
    %v6028 = vpack.c.b16 %v5956, %v5954
    %v6029 = vpack.c.b16 %v5959, %v5957
    %v6030 = vpack.c.b16 %v5960, %v5958
    %v6031 = vpack.c.b16 %v5963, %v5961
    %v6032 = vpack.c.b16 %v5964, %v5962
    %v6033 = vpack.c.b16 %v5967, %v5965
    %v6034 = vpack.c.b16 %v5968, %v5966
    %v6035 = vpack.c.b16 %v5971, %v5969
    %v6036 = vpack.c.b16 %v5972, %v5970
    %6101 = vmatprep.subr.bf16.mxu0 %v5974
    %6102 = vmatpush1.bf16.msra.mxu0 %v5973
    %6103 = vmatprep.subr.bf16.mxu0 %v5976
    %6104 = vmatpush1.bf16.msra.mxu0 %v5975
    %6105 = vmatprep.subr.bf16.mxu0 %v5978
    %6106 = vmatpush1.bf16.msra.mxu0 %v5977
    %6107 = vmatprep.subr.bf16.mxu0 %v5980
    %6108 = vmatpush1.bf16.msra.mxu0 %v5979
    %6109 = vmatprep.subr.bf16.mxu0 %v5982
    %6110 = vmatpush1.bf16.msra.mxu0 %v5981
    %6111 = vmatprep.subr.bf16.mxu0 %v5984
    %6112 = vmatpush1.bf16.msra.mxu0 %v5983
    %6113 = vmatprep.subr.bf16.mxu0 %v5986
    %6114 = vmatpush1.bf16.msra.mxu0 %v5985
    %6115 = vmatprep.subr.bf16.mxu0 %v5988
    %6116 = vmatpush1.bf16.msra.mxu0 %v5987
    %6117 = vmatprep.subr.bf16.mxu0 %v5990
    %6118 = vmatpush1.bf16.msra.mxu0 %v5989
    %6119 = vmatprep.subr.bf16.mxu0 %v5992
    %6120 = vmatpush1.bf16.msra.mxu0 %v5991
    %6121 = vmatprep.subr.bf16.mxu0 %v5994
    %6122 = vmatpush1.bf16.msra.mxu0 %v5993
    %6123 = vmatprep.subr.bf16.mxu0 %v5996
    %6124 = vmatpush1.bf16.msra.mxu0 %v5995
    %6125 = vmatprep.subr.bf16.mxu0 %v5998
    %6126 = vmatpush1.bf16.msra.mxu0 %v5997
    %6127 = vmatprep.subr.bf16.mxu0 %v6000
    %6128 = vmatpush1.bf16.msra.mxu0 %v5999
    %6129 = vmatprep.subr.bf16.mxu0 %v6002
    %6130 = vmatpush1.bf16.msra.mxu0 %v6001
    %6131 = vmatprep.subr.bf16.mxu0 %v6004
    %6132 = vmatpush1.bf16.msra.mxu0 %v6003
    %6133 = vmatprep.mubr.bf16.mxu0 %v5713
    %6134 = vmatmul.mubr.bf16.gmra.mrb[0].mxu0 %v5712
    %v6135 = vpop.f32.mrb[0].mxu0
    %v6136 = vadd.f32 0.0, %v6135
    %v6137 = vpop.f32.mrb[0].mxu0
    %v6138 = vadd.f32 0.0, %v6137
    %v6139 = vpop.f32.mrb[0].mxu0
    %v6140 = vpop.f32.mrb[0].mxu0
    %6141 = vdwg.mxu0
    %6142 = vmatprep.subr.bf16.mxu0 %v6006
    %6143 = vmatpush1.bf16.msra.mxu0 %v6005
    %6144 = vmatprep.subr.bf16.mxu0 %v6008
    %6145 = vmatpush1.bf16.msra.mxu0 %v6007
    %6146 = vmatprep.subr.bf16.mxu0 %v6010
    %6147 = vmatpush1.bf16.msra.mxu0 %v6009
    %6148 = vmatprep.subr.bf16.mxu0 %v6012
    %6149 = vmatpush1.bf16.msra.mxu0 %v6011
    %6150 = vmatprep.subr.bf16.mxu0 %v6014
    %6151 = vmatpush1.bf16.msra.mxu0 %v6013
    %6152 = vmatprep.subr.bf16.mxu0 %v6016
    %6153 = vmatpush1.bf16.msra.mxu0 %v6015
    %6154 = vmatprep.subr.bf16.mxu0 %v6018
    %6155 = vmatpush1.bf16.msra.mxu0 %v6017
    %6156 = vmatprep.subr.bf16.mxu0 %v6020
    %6157 = vmatpush1.bf16.msra.mxu0 %v6019
    %6158 = vmatprep.subr.bf16.mxu0 %v6022
    %6159 = vmatpush1.bf16.msra.mxu0 %v6021
    %6160 = vmatprep.subr.bf16.mxu0 %v6024
    %6161 = vmatpush1.bf16.msra.mxu0 %v6023
    %6162 = vmatprep.subr.bf16.mxu0 %v6026
    %6163 = vmatpush1.bf16.msra.mxu0 %v6025
    %6164 = vmatprep.subr.bf16.mxu0 %v6028
    %6165 = vmatpush1.bf16.msra.mxu0 %v6027
    %6166 = vmatprep.subr.bf16.mxu0 %v6030
    %6167 = vmatpush1.bf16.msra.mxu0 %v6029
    %6168 = vmatprep.subr.bf16.mxu0 %v6032
    %6169 = vmatpush1.bf16.msra.mxu0 %v6031
    %6170 = vmatprep.subr.bf16.mxu0 %v6034
    %6171 = vmatpush1.bf16.msra.mxu0 %v6033
    %6172 = vmatprep.subr.bf16.mxu0 %v6036
    %6173 = vmatpush1.bf16.msra.mxu0 %v6035
    %6174 = vmatprep.mubr.bf16.mxu0 %v5715
    %6175 = vmatmul.mubr.bf16.gmra.mrb[0].mxu0 %v5714
    %v6176 = vpop.f32.mrb[0].mxu0
    %v6177 = vadd.f32 %v6136, %v6176
    %v6178 = vpop.f32.mrb[0].mxu0
    %v6179 = vadd.f32 %v6138, %v6178
    %v6180 = vpop.f32.mrb[0].mxu0
    %v6181 = vpop.f32.mrb[0].mxu0
    %6182 = vdwg.mxu0
    %v6183 = vpack.c.bf16 %v6177, %v6177
    %v6184 = vpack.c.bf16 %v6179, %v6179
    %v6186 = vlaneseq
    %v6187 = vshrl.u32 %v6186, 7
    %v6188 = vsub.s32 0, %v6187
    %v6189 = vrot.slane %v5780, %v6188
    %v6190 = vlaneseq
    %v6191 = vshrl.u32 %v6190, 7
    %v6192 = vsub.s32 1, %v6191
    %v6193 = vrot.slane %v5780, %v6192
    %v6196 = vpack.c.bf16 %v6189, %v6189
    %v6197 = vpack.c.bf16 %v6193, %v6193
    %v6199 = vpack.i.b16 %v6196, %v6196
    %v6201 = vlaneseq
    %v6202 = vshrl.u32 %v6201, 7
    %v6203 = vsub.s32 0, %v6202
    %v6204 = vrot.slane %v6199, %v6203
    %v6206 = vpack.i.b16 %v6197, %v6197
    %v6208 = vlaneseq
    %v6209 = vshrl.u32 %v6208, 7
    %v6210 = vsub.s32 0, %v6209
    %v6211 = vrot.slane %v6206, %v6210
    %v6212 = vadd.bf16 %v6183, %v6204
    %v6213 = vadd.bf16 %v6184, %v6211
    %v6214 = vmul.bf16 %v6212, 1009007652
    %v6215 = vmul.bf16 %v6213, 1009007652
    %v6216 = vmax.bf16 %v6212, %v6214
    %v6217 = vmax.bf16 %v6213, %v6215
    %v6218 = vld [vmem:[#allocation14] sm:$0xf]
    %v6219 = vld [vmem:[#allocation14 + $0x4] sm:$0xf]
    %v6220 = vld [vmem:[#allocation14 + $0x8] sm:$0xf]
    %v6221 = vld [vmem:[#allocation14 + $0xc] sm:$0xf]
    %v6222 = vld [vmem:[#allocation14 + $0x10] sm:$0xf]
    %v6223 = vld [vmem:[#allocation14 + $0x14] sm:$0xf]
    %v6224 = vld [vmem:[#allocation14 + $0x18] sm:$0xf]
    %v6225 = vld [vmem:[#allocation14 + $0x1c] sm:$0xf]
    %v6226 = vld [vmem:[#allocation14 + $0x20] sm:$0xf]
    %v6227 = vld [vmem:[#allocation14 + $0x24] sm:$0xf]
    %v6228 = vld [vmem:[#allocation14 + $0x28] sm:$0xf]
    %v6229 = vld [vmem:[#allocation14 + $0x2c] sm:$0xf]
    %v6230 = vld [vmem:[#allocation14 + $0x30] sm:$0xf]
    %v6231 = vld [vmem:[#allocation14 + $0x34] sm:$0xf]
    %v6232 = vld [vmem:[#allocation14 + $0x38] sm:$0xf]
    %v6233 = vld [vmem:[#allocation14 + $0x3c] sm:$0xf]
    %v6234 = vld [vmem:[#allocation14 + $0x40] sm:$0xf]
    %v6235 = vld [vmem:[#allocation14 + $0x44] sm:$0xf]
    %v6236 = vld [vmem:[#allocation14 + $0x48] sm:$0xf]
    %v6237 = vld [vmem:[#allocation14 + $0x4c] sm:$0xf]
    %v6238 = vld [vmem:[#allocation14 + $0x50] sm:$0xf]
    %v6239 = vld [vmem:[#allocation14 + $0x54] sm:$0xf]
    %v6240 = vld [vmem:[#allocation14 + $0x58] sm:$0xf]
    %v6241 = vld [vmem:[#allocation14 + $0x5c] sm:$0xf]
    %v6242 = vld [vmem:[#allocation14 + $0x60] sm:$0xf]
    %v6243 = vld [vmem:[#allocation14 + $0x64] sm:$0xf]
    %v6244 = vld [vmem:[#allocation14 + $0x68] sm:$0xf]
    %v6245 = vld [vmem:[#allocation14 + $0x6c] sm:$0xf]
    %v6246 = vld [vmem:[#allocation14 + $0x70] sm:$0xf]
    %v6247 = vld [vmem:[#allocation14 + $0x74] sm:$0xf]
    %v6248 = vld [vmem:[#allocation14 + $0x78] sm:$0xf]
    %v6249 = vld [vmem:[#allocation14 + $0x7c] sm:$0xf]
    %v6250 = vld [vmem:[#allocation16] sm:$0x1]
    %v6283 = vunpack.c.l.b16 %v6218
    %v6284 = vunpack.c.l.b16 %v6219
    %v6285 = vunpack.c.l.b16 %v6220
    %v6286 = vunpack.c.l.b16 %v6221
    %v6287 = vunpack.c.l.b16 %v6222
    %v6288 = vunpack.c.l.b16 %v6223
    %v6289 = vunpack.c.l.b16 %v6224
    %v6290 = vunpack.c.l.b16 %v6225
    %v6291 = vunpack.c.l.b16 %v6226
    %v6292 = vunpack.c.l.b16 %v6227
    %v6293 = vunpack.c.l.b16 %v6228
    %v6294 = vunpack.c.l.b16 %v6229
    %v6295 = vunpack.c.l.b16 %v6230
    %v6296 = vunpack.c.l.b16 %v6231
    %v6297 = vunpack.c.l.b16 %v6232
    %v6298 = vunpack.c.l.b16 %v6233
    %v6299 = vunpack.c.l.b16 %v6234
    %v6300 = vunpack.c.l.b16 %v6235
    %v6301 = vunpack.c.l.b16 %v6236
    %v6302 = vunpack.c.l.b16 %v6237
    %v6303 = vunpack.c.l.b16 %v6238
    %v6304 = vunpack.c.l.b16 %v6239
    %v6305 = vunpack.c.l.b16 %v6240
    %v6306 = vunpack.c.l.b16 %v6241
    %v6307 = vunpack.c.l.b16 %v6242
    %v6308 = vunpack.c.l.b16 %v6243
    %v6309 = vunpack.c.l.b16 %v6244
    %v6310 = vunpack.c.l.b16 %v6245
    %v6311 = vunpack.c.l.b16 %v6246
    %v6312 = vunpack.c.l.b16 %v6247
    %v6313 = vunpack.c.l.b16 %v6248
    %v6314 = vunpack.c.l.b16 %v6249
    %v6315 = vpack.c.b16 %v6284, %v6283
    %v6316 = vpack.c.b16 %v6286, %v6285
    %v6317 = vpack.c.b16 %v6288, %v6287
    %v6318 = vpack.c.b16 %v6290, %v6289
    %v6319 = vpack.c.b16 %v6292, %v6291
    %v6320 = vpack.c.b16 %v6294, %v6293
    %v6321 = vpack.c.b16 %v6296, %v6295
    %v6322 = vpack.c.b16 %v6298, %v6297
    %v6323 = vpack.c.b16 %v6300, %v6299
    %v6324 = vpack.c.b16 %v6302, %v6301
    %v6325 = vpack.c.b16 %v6304, %v6303
    %v6326 = vpack.c.b16 %v6306, %v6305
    %v6327 = vpack.c.b16 %v6308, %v6307
    %v6328 = vpack.c.b16 %v6310, %v6309
    %v6329 = vpack.c.b16 %v6312, %v6311
    %v6330 = vpack.c.b16 %v6314, %v6313
    %6347 = vmatprep.subr.bf16.mxu0 0
    %6348 = vmatpush1.bf16.msra.mxu0 %v6315
    %6349 = vmatprep.subr.bf16.mxu0 0
    %6350 = vmatpush1.bf16.msra.mxu0 %v6316
    %6351 = vmatprep.subr.bf16.mxu0 0
    %6352 = vmatpush1.bf16.msra.mxu0 %v6317
    %6353 = vmatprep.subr.bf16.mxu0 0
    %6354 = vmatpush1.bf16.msra.mxu0 %v6318
    %6355 = vmatprep.subr.bf16.mxu0 0
    %6356 = vmatpush1.bf16.msra.mxu0 %v6319
    %6357 = vmatprep.subr.bf16.mxu0 0
    %6358 = vmatpush1.bf16.msra.mxu0 %v6320
    %6359 = vmatprep.subr.bf16.mxu0 0
    %6360 = vmatpush1.bf16.msra.mxu0 %v6321
    %6361 = vmatprep.subr.bf16.mxu0 0
    %6362 = vmatpush1.bf16.msra.mxu0 %v6322
    %6363 = vmatprep.subr.bf16.mxu0 0
    %6364 = vmatpush1.bf16.msra.mxu0 %v6323
    %6365 = vmatprep.subr.bf16.mxu0 0
    %6366 = vmatpush1.bf16.msra.mxu0 %v6324
    %6367 = vmatprep.subr.bf16.mxu0 0
    %6368 = vmatpush1.bf16.msra.mxu0 %v6325
    %6369 = vmatprep.subr.bf16.mxu0 0
    %6370 = vmatpush1.bf16.msra.mxu0 %v6326
    %6371 = vmatprep.subr.bf16.mxu0 0
    %6372 = vmatpush1.bf16.msra.mxu0 %v6327
    %6373 = vmatprep.subr.bf16.mxu0 0
    %6374 = vmatpush1.bf16.msra.mxu0 %v6328
    %6375 = vmatprep.subr.bf16.mxu0 0
    %6376 = vmatpush1.bf16.msra.mxu0 %v6329
    %6377 = vmatprep.subr.bf16.mxu0 0
    %6378 = vmatpush1.bf16.msra.mxu0 %v6330
    %6379 = vmatprep.mubr.bf16.mxu0 %v6217
    %6380 = vmatmul.mubr.bf16.gmra.mrb[0].mxu0 %v6216
    %v6381 = vpop.f32.mrb[0].mxu0
    %v6382 = vadd.f32 0.0, %v6381
    %v6383 = vpop.f32.mrb[0].mxu0
    %v6384 = vpop.f32.mrb[0].mxu0
    %v6385 = vpop.f32.mrb[0].mxu0
    %6386 = vdwg.mxu0
    %v6387 = vpack.c.bf16 %v6382, %v6382
    %v6388 = vpack.c.bf16 %v6250, %v6250
    %v6390 = vpack.i.b16 %v6388, %v6388
    %v6392 = vlaneseq
    %v6393 = vshrl.u32 %v6392, 7
    %v6394 = vsub.s32 0, %v6393
    %v6395 = vrot.slane %v6390, %v6394
    %v6396 = vadd.bf16 %v6387, %v6395
    %v6397 = vld [vmem:[#allocation17] sm:$0xff]
    %v6398 = vld [vmem:[#allocation17 + $0x8] sm:$0xff]
    %v6399 = vld [vmem:[#allocation17 + $0x10] sm:$0xff]
    %v6400 = vld [vmem:[#allocation17 + $0x18] sm:$0xff]
    %v6401 = vld [vmem:[#allocation17 + $0x20] sm:$0xff]
    %v6402 = vld [vmem:[#allocation17 + $0x28] sm:$0xff]
    %v6403 = vld [vmem:[#allocation17 + $0x30] sm:$0xff]
    %v6404 = vld [vmem:[#allocation17 + $0x38] sm:$0xff]
    %v6405 = vld [vmem:[#allocation17 + $0x40] sm:$0xff]
    %v6406 = vld [vmem:[#allocation17 + $0x48] sm:$0xff]
    %v6407 = vld [vmem:[#allocation17 + $0x50] sm:$0xff]
    %v6408 = vld [vmem:[#allocation17 + $0x58] sm:$0xff]
    %v6409 = vld [vmem:[#allocation17 + $0x60] sm:$0xff]
    %v6410 = vld [vmem:[#allocation17 + $0x68] sm:$0xff]
    %v6411 = vld [vmem:[#allocation17 + $0x70] sm:$0xff]
    %v6412 = vld [vmem:[#allocation17 + $0x78] sm:$0xff]
    %v6413 = vld [vmem:[#allocation19] sm:$0x3]
    %v6430 = vunpack.c.l.b16 %v6397
    %v6431 = vunpack.c.h.b16 %v6397
    %v6432 = vunpack.c.l.b16 %v6398
    %v6433 = vunpack.c.h.b16 %v6398
    %v6434 = vunpack.c.l.b16 %v6399
    %v6435 = vunpack.c.h.b16 %v6399
    %v6436 = vunpack.c.l.b16 %v6400
    %v6437 = vunpack.c.h.b16 %v6400
    %v6438 = vunpack.c.l.b16 %v6401
    %v6439 = vunpack.c.h.b16 %v6401
    %v6440 = vunpack.c.l.b16 %v6402
    %v6441 = vunpack.c.h.b16 %v6402
    %v6442 = vunpack.c.l.b16 %v6403
    %v6443 = vunpack.c.h.b16 %v6403
    %v6444 = vunpack.c.l.b16 %v6404
    %v6445 = vunpack.c.h.b16 %v6404
    %v6446 = vunpack.c.l.b16 %v6405
    %v6447 = vunpack.c.h.b16 %v6405
    %v6448 = vunpack.c.l.b16 %v6406
    %v6449 = vunpack.c.h.b16 %v6406
    %v6450 = vunpack.c.l.b16 %v6407
    %v6451 = vunpack.c.h.b16 %v6407
    %v6452 = vunpack.c.l.b16 %v6408
    %v6453 = vunpack.c.h.b16 %v6408
    %v6454 = vunpack.c.l.b16 %v6409
    %v6455 = vunpack.c.h.b16 %v6409
    %v6456 = vunpack.c.l.b16 %v6410
    %v6457 = vunpack.c.h.b16 %v6410
    %v6458 = vunpack.c.l.b16 %v6411
    %v6459 = vunpack.c.h.b16 %v6411
    %v6460 = vunpack.c.l.b16 %v6412
    %v6461 = vunpack.c.h.b16 %v6412
    %v6462 = vpack.c.b16 %v6432, %v6430
    %v6463 = vpack.c.b16 %v6433, %v6431
    %v6464 = vpack.c.b16 %v6436, %v6434
    %v6465 = vpack.c.b16 %v6437, %v6435
    %v6466 = vpack.c.b16 %v6440, %v6438
    %v6467 = vpack.c.b16 %v6441, %v6439
    %v6468 = vpack.c.b16 %v6444, %v6442
    %v6469 = vpack.c.b16 %v6445, %v6443
    %v6470 = vpack.c.b16 %v6448, %v6446
    %v6471 = vpack.c.b16 %v6449, %v6447
    %v6472 = vpack.c.b16 %v6452, %v6450
    %v6473 = vpack.c.b16 %v6453, %v6451
    %v6474 = vpack.c.b16 %v6456, %v6454
    %v6475 = vpack.c.b16 %v6457, %v6455
    %v6476 = vpack.c.b16 %v6460, %v6458
    %v6477 = vpack.c.b16 %v6461, %v6459
    %6494 = vmatprep.subr.bf16.mxu0 %v6463
    %6495 = vmatpush1.bf16.msra.mxu0 %v6462
    %6496 = vmatprep.subr.bf16.mxu0 %v6465
    %6497 = vmatpush1.bf16.msra.mxu0 %v6464
    %6498 = vmatprep.subr.bf16.mxu0 %v6467
    %6499 = vmatpush1.bf16.msra.mxu0 %v6466
    %6500 = vmatprep.subr.bf16.mxu0 %v6469
    %6501 = vmatpush1.bf16.msra.mxu0 %v6468
    %6502 = vmatprep.subr.bf16.mxu0 %v6471
    %6503 = vmatpush1.bf16.msra.mxu0 %v6470
    %6504 = vmatprep.subr.bf16.mxu0 %v6473
    %6505 = vmatpush1.bf16.msra.mxu0 %v6472
    %6506 = vmatprep.subr.bf16.mxu0 %v6475
    %6507 = vmatpush1.bf16.msra.mxu0 %v6474
    %6508 = vmatprep.subr.bf16.mxu0 %v6477
    %6509 = vmatpush1.bf16.msra.mxu0 %v6476
    %6510 = vmatprep.subr.bf16.mxu0 0
    %6511 = vmatpush1.bf16.msra.mxu0 0
    %6512 = vmatprep.subr.bf16.mxu0 0
    %6513 = vmatpush1.bf16.msra.mxu0 0
    %6514 = vmatprep.subr.bf16.mxu0 0
    %6515 = vmatpush1.bf16.msra.mxu0 0
    %6516 = vmatprep.subr.bf16.mxu0 0
    %6517 = vmatpush1.bf16.msra.mxu0 0
    %6518 = vmatprep.subr.bf16.mxu0 0
    %6519 = vmatpush1.bf16.msra.mxu0 0
    %6520 = vmatprep.subr.bf16.mxu0 0
    %6521 = vmatpush1.bf16.msra.mxu0 0
    %6522 = vmatprep.subr.bf16.mxu0 0
    %6523 = vmatpush1.bf16.msra.mxu0 0
    %6524 = vmatprep.subr.bf16.mxu0 0
    %6525 = vmatpush1.bf16.msra.mxu0 0
    %6526 = vmatprep.mubr.bf16.mxu0 0
    %6527 = vmatmul.mubr.bf16.gmra.mrb[0].mxu0 %v6396
    %v6528 = vpop.f32.mrb[0].mxu0
    %v6529 = vadd.f32 0.0, %v6528
    %v6530 = vpop.f32.mrb[0].mxu0
    %v6531 = vadd.f32 0.0, %v6530
    %v6532 = vpop.f32.mrb[0].mxu0
    %v6533 = vpop.f32.mrb[0].mxu0
    %6534 = vdwg.mxu0
    %v6535 = vpack.c.bf16 %v6529, %v6529
    %v6536 = vpack.c.bf16 %v6531, %v6531
    %v6538 = vlaneseq
    %v6539 = vshrl.u32 %v6538, 7
    %v6540 = vsub.s32 0, %v6539
    %v6541 = vrot.slane %v6413, %v6540
    %v6542 = vlaneseq
    %v6543 = vshrl.u32 %v6542, 7
    %v6544 = vsub.s32 1, %v6543
    %v6545 = vrot.slane %v6413, %v6544
    %v6548 = vpack.c.bf16 %v6541, %v6541
    %v6549 = vpack.c.bf16 %v6545, %v6545
    %v6551 = vpack.i.b16 %v6548, %v6548
    %v6553 = vlaneseq
    %v6554 = vshrl.u32 %v6553, 7
    %v6555 = vsub.s32 0, %v6554
    %v6556 = vrot.slane %v6551, %v6555
    %v6558 = vpack.i.b16 %v6549, %v6549
    %v6560 = vlaneseq
    %v6561 = vshrl.u32 %v6560, 7
    %v6562 = vsub.s32 0, %v6561
    %v6563 = vrot.slane %v6558, %v6562
    %v6564 = vadd.bf16 %v6535, %v6556
    %v6565 = vadd.bf16 %v6536, %v6563
    %v6566 = vmul.bf16 %v6564, 1009007652
    %v6567 = vmul.bf16 %v6565, 1009007652
    %v6568 = vmax.bf16 %v6564, %v6566
    %v6569 = vmax.bf16 %v6565, %v6567
    %v6570 = vld [vmem:[#allocation20] sm:$0xff]
    %v6571 = vld [vmem:[#allocation20 + $0x8] sm:$0xff]
    %v6572 = vld [vmem:[#allocation20 + $0x10] sm:$0xff]
    %v6573 = vld [vmem:[#allocation20 + $0x18] sm:$0xff]
    %v6574 = vld [vmem:[#allocation20 + $0x20] sm:$0xff]
    %v6575 = vld [vmem:[#allocation20 + $0x28] sm:$0xff]
    %v6576 = vld [vmem:[#allocation20 + $0x30] sm:$0xff]
    %v6577 = vld [vmem:[#allocation20 + $0x38] sm:$0xff]
    %v6578 = vld [vmem:[#allocation20 + $0x40] sm:$0xff]
    %v6579 = vld [vmem:[#allocation20 + $0x48] sm:$0xff]
    %v6580 = vld [vmem:[#allocation20 + $0x50] sm:$0xff]
    %v6581 = vld [vmem:[#allocation20 + $0x58] sm:$0xff]
    %v6582 = vld [vmem:[#allocation20 + $0x60] sm:$0xff]
    %v6583 = vld [vmem:[#allocation20 + $0x68] sm:$0xff]
    %v6584 = vld [vmem:[#allocation20 + $0x70] sm:$0xff]
    %v6585 = vld [vmem:[#allocation20 + $0x78] sm:$0xff]
    %v6586 = vld [vmem:[#allocation20 + $0x80] sm:$0xff]
    %v6587 = vld [vmem:[#allocation20 + $0x88] sm:$0xff]
    %v6588 = vld [vmem:[#allocation20 + $0x90] sm:$0xff]
    %v6589 = vld [vmem:[#allocation20 + $0x98] sm:$0xff]
    %v6590 = vld [vmem:[#allocation20 + $0xa0] sm:$0xff]
    %v6591 = vld [vmem:[#allocation20 + $0xa8] sm:$0xff]
    %v6592 = vld [vmem:[#allocation20 + $0xb0] sm:$0xff]
    %v6593 = vld [vmem:[#allocation20 + $0xb8] sm:$0xff]
    %v6594 = vld [vmem:[#allocation20 + $0xc0] sm:$0xff]
    %v6595 = vld [vmem:[#allocation20 + $0xc8] sm:$0xff]
    %v6596 = vld [vmem:[#allocation20 + $0xd0] sm:$0xff]
    %v6597 = vld [vmem:[#allocation20 + $0xd8] sm:$0xff]
    %v6598 = vld [vmem:[#allocation20 + $0xe0] sm:$0xff]
    %v6599 = vld [vmem:[#allocation20 + $0xe8] sm:$0xff]
    %v6600 = vld [vmem:[#allocation20 + $0xf0] sm:$0xff]
    %v6601 = vld [vmem:[#allocation20 + $0xf8] sm:$0xff]
    %v6602 = vld [vmem:[#allocation20 + $0x100] sm:$0xff]
    %v6603 = vld [vmem:[#allocation20 + $0x108] sm:$0xff]
    %v6604 = vld [vmem:[#allocation20 + $0x110] sm:$0xff]
    %v6605 = vld [vmem:[#allocation20 + $0x118] sm:$0xff]
    %v6606 = vld [vmem:[#allocation20 + $0x120] sm:$0xff]
    %v6607 = vld [vmem:[#allocation20 + $0x128] sm:$0xff]
    %v6608 = vld [vmem:[#allocation20 + $0x130] sm:$0xff]
    %v6609 = vld [vmem:[#allocation20 + $0x138] sm:$0xff]
    %v6610 = vld [vmem:[#allocation20 + $0x140] sm:$0xff]
    %v6611 = vld [vmem:[#allocation20 + $0x148] sm:$0xff]
    %v6612 = vld [vmem:[#allocation20 + $0x150] sm:$0xff]
    %v6613 = vld [vmem:[#allocation20 + $0x158] sm:$0xff]
    %v6614 = vld [vmem:[#allocation20 + $0x160] sm:$0xff]
    %v6615 = vld [vmem:[#allocation20 + $0x168] sm:$0xff]
    %v6616 = vld [vmem:[#allocation20 + $0x170] sm:$0xff]
    %v6617 = vld [vmem:[#allocation20 + $0x178] sm:$0xff]
    %v6618 = vld [vmem:[#allocation20 + $0x180] sm:$0xff]
    %v6619 = vld [vmem:[#allocation20 + $0x188] sm:$0xff]
    %v6620 = vld [vmem:[#allocation20 + $0x190] sm:$0xff]
    %v6621 = vld [vmem:[#allocation20 + $0x198] sm:$0xff]
    %v6622 = vld [vmem:[#allocation20 + $0x1a0] sm:$0xff]
    %v6623 = vld [vmem:[#allocation20 + $0x1a8] sm:$0xff]
    %v6624 = vld [vmem:[#allocation20 + $0x1b0] sm:$0xff]
    %v6625 = vld [vmem:[#allocation20 + $0x1b8] sm:$0xff]
    %v6626 = vld [vmem:[#allocation20 + $0x1c0] sm:$0xff]
    %v6627 = vld [vmem:[#allocation20 + $0x1c8] sm:$0xff]
    %v6628 = vld [vmem:[#allocation20 + $0x1d0] sm:$0xff]
    %v6629 = vld [vmem:[#allocation20 + $0x1d8] sm:$0xff]
    %v6630 = vld [vmem:[#allocation20 + $0x1e0] sm:$0xff]
    %v6631 = vld [vmem:[#allocation20 + $0x1e8] sm:$0xff]
    %v6632 = vld [vmem:[#allocation20 + $0x1f0] sm:$0xff]
    %v6633 = vld [vmem:[#allocation20 + $0x1f8] sm:$0xff]
    %v6634 = vld [vmem:[#allocation22] sm:$0xf]
    %v6699 = vunpack.c.l.b16 %v6570
    %v6700 = vunpack.c.h.b16 %v6570
    %v6701 = vunpack.c.l.b16 %v6571
    %v6702 = vunpack.c.h.b16 %v6571
    %v6703 = vunpack.c.l.b16 %v6572
    %v6704 = vunpack.c.h.b16 %v6572
    %v6705 = vunpack.c.l.b16 %v6573
    %v6706 = vunpack.c.h.b16 %v6573
    %v6707 = vunpack.c.l.b16 %v6574
    %v6708 = vunpack.c.h.b16 %v6574
    %v6709 = vunpack.c.l.b16 %v6575
    %v6710 = vunpack.c.h.b16 %v6575
    %v6711 = vunpack.c.l.b16 %v6576
    %v6712 = vunpack.c.h.b16 %v6576
    %v6713 = vunpack.c.l.b16 %v6577
    %v6714 = vunpack.c.h.b16 %v6577
    %v6715 = vunpack.c.l.b16 %v6578
    %v6716 = vunpack.c.h.b16 %v6578
    %v6717 = vunpack.c.l.b16 %v6579
    %v6718 = vunpack.c.h.b16 %v6579
    %v6719 = vunpack.c.l.b16 %v6580
    %v6720 = vunpack.c.h.b16 %v6580
    %v6721 = vunpack.c.l.b16 %v6581
    %v6722 = vunpack.c.h.b16 %v6581
    %v6723 = vunpack.c.l.b16 %v6582
    %v6724 = vunpack.c.h.b16 %v6582
    %v6725 = vunpack.c.l.b16 %v6583
    %v6726 = vunpack.c.h.b16 %v6583
    %v6727 = vunpack.c.l.b16 %v6584
    %v6728 = vunpack.c.h.b16 %v6584
    %v6729 = vunpack.c.l.b16 %v6585
    %v6730 = vunpack.c.h.b16 %v6585
    %v6731 = vunpack.c.l.b16 %v6586
    %v6732 = vunpack.c.h.b16 %v6586
    %v6733 = vunpack.c.l.b16 %v6587
    %v6734 = vunpack.c.h.b16 %v6587
    %v6735 = vunpack.c.l.b16 %v6588
    %v6736 = vunpack.c.h.b16 %v6588
    %v6737 = vunpack.c.l.b16 %v6589
    %v6738 = vunpack.c.h.b16 %v6589
    %v6739 = vunpack.c.l.b16 %v6590
    %v6740 = vunpack.c.h.b16 %v6590
    %v6741 = vunpack.c.l.b16 %v6591
    %v6742 = vunpack.c.h.b16 %v6591
    %v6743 = vunpack.c.l.b16 %v6592
    %v6744 = vunpack.c.h.b16 %v6592
    %v6745 = vunpack.c.l.b16 %v6593
    %v6746 = vunpack.c.h.b16 %v6593
    %v6747 = vunpack.c.l.b16 %v6594
    %v6748 = vunpack.c.h.b16 %v6594
    %v6749 = vunpack.c.l.b16 %v6595
    %v6750 = vunpack.c.h.b16 %v6595
    %v6751 = vunpack.c.l.b16 %v6596
    %v6752 = vunpack.c.h.b16 %v6596
    %v6753 = vunpack.c.l.b16 %v6597
    %v6754 = vunpack.c.h.b16 %v6597
    %v6755 = vunpack.c.l.b16 %v6598
    %v6756 = vunpack.c.h.b16 %v6598
    %v6757 = vunpack.c.l.b16 %v6599
    %v6758 = vunpack.c.h.b16 %v6599
    %v6759 = vunpack.c.l.b16 %v6600
    %v6760 = vunpack.c.h.b16 %v6600
    %v6761 = vunpack.c.l.b16 %v6601
    %v6762 = vunpack.c.h.b16 %v6601
    %v6763 = vunpack.c.l.b16 %v6602
    %v6764 = vunpack.c.h.b16 %v6602
    %v6765 = vunpack.c.l.b16 %v6603
    %v6766 = vunpack.c.h.b16 %v6603
    %v6767 = vunpack.c.l.b16 %v6604
    %v6768 = vunpack.c.h.b16 %v6604
    %v6769 = vunpack.c.l.b16 %v6605
    %v6770 = vunpack.c.h.b16 %v6605
    %v6771 = vunpack.c.l.b16 %v6606
    %v6772 = vunpack.c.h.b16 %v6606
    %v6773 = vunpack.c.l.b16 %v6607
    %v6774 = vunpack.c.h.b16 %v6607
    %v6775 = vunpack.c.l.b16 %v6608
    %v6776 = vunpack.c.h.b16 %v6608
    %v6777 = vunpack.c.l.b16 %v6609
    %v6778 = vunpack.c.h.b16 %v6609
    %v6779 = vunpack.c.l.b16 %v6610
    %v6780 = vunpack.c.h.b16 %v6610
    %v6781 = vunpack.c.l.b16 %v6611
    %v6782 = vunpack.c.h.b16 %v6611
    %v6783 = vunpack.c.l.b16 %v6612
    %v6784 = vunpack.c.h.b16 %v6612
    %v6785 = vunpack.c.l.b16 %v6613
    %v6786 = vunpack.c.h.b16 %v6613
    %v6787 = vunpack.c.l.b16 %v6614
    %v6788 = vunpack.c.h.b16 %v6614
    %v6789 = vunpack.c.l.b16 %v6615
    %v6790 = vunpack.c.h.b16 %v6615
    %v6791 = vunpack.c.l.b16 %v6616
    %v6792 = vunpack.c.h.b16 %v6616
    %v6793 = vunpack.c.l.b16 %v6617
    %v6794 = vunpack.c.h.b16 %v6617
    %v6795 = vunpack.c.l.b16 %v6618
    %v6796 = vunpack.c.h.b16 %v6618
    %v6797 = vunpack.c.l.b16 %v6619
    %v6798 = vunpack.c.h.b16 %v6619
    %v6799 = vunpack.c.l.b16 %v6620
    %v6800 = vunpack.c.h.b16 %v6620
    %v6801 = vunpack.c.l.b16 %v6621
    %v6802 = vunpack.c.h.b16 %v6621
    %v6803 = vunpack.c.l.b16 %v6622
    %v6804 = vunpack.c.h.b16 %v6622
    %v6805 = vunpack.c.l.b16 %v6623
    %v6806 = vunpack.c.h.b16 %v6623
    %v6807 = vunpack.c.l.b16 %v6624
    %v6808 = vunpack.c.h.b16 %v6624
    %v6809 = vunpack.c.l.b16 %v6625
    %v6810 = vunpack.c.h.b16 %v6625
    %v6811 = vunpack.c.l.b16 %v6626
    %v6812 = vunpack.c.h.b16 %v6626
    %v6813 = vunpack.c.l.b16 %v6627
    %v6814 = vunpack.c.h.b16 %v6627
    %v6815 = vunpack.c.l.b16 %v6628
    %v6816 = vunpack.c.h.b16 %v6628
    %v6817 = vunpack.c.l.b16 %v6629
    %v6818 = vunpack.c.h.b16 %v6629
    %v6819 = vunpack.c.l.b16 %v6630
    %v6820 = vunpack.c.h.b16 %v6630
    %v6821 = vunpack.c.l.b16 %v6631
    %v6822 = vunpack.c.h.b16 %v6631
    %v6823 = vunpack.c.l.b16 %v6632
    %v6824 = vunpack.c.h.b16 %v6632
    %v6825 = vunpack.c.l.b16 %v6633
    %v6826 = vunpack.c.h.b16 %v6633
    %v6827 = vpack.c.b16 %v6703, %v6699
    %v6828 = vpack.c.b16 %v6704, %v6700
    %v6829 = vpack.c.b16 %v6705, %v6701
    %v6830 = vpack.c.b16 %v6706, %v6702
    %v6831 = vpack.c.b16 %v6711, %v6707
    %v6832 = vpack.c.b16 %v6712, %v6708
    %v6833 = vpack.c.b16 %v6713, %v6709
    %v6834 = vpack.c.b16 %v6714, %v6710
    %v6835 = vpack.c.b16 %v6719, %v6715
    %v6836 = vpack.c.b16 %v6720, %v6716
    %v6837 = vpack.c.b16 %v6721, %v6717
    %v6838 = vpack.c.b16 %v6722, %v6718
    %v6839 = vpack.c.b16 %v6727, %v6723
    %v6840 = vpack.c.b16 %v6728, %v6724
    %v6841 = vpack.c.b16 %v6729, %v6725
    %v6842 = vpack.c.b16 %v6730, %v6726
    %v6843 = vpack.c.b16 %v6735, %v6731
    %v6844 = vpack.c.b16 %v6736, %v6732
    %v6845 = vpack.c.b16 %v6737, %v6733
    %v6846 = vpack.c.b16 %v6738, %v6734
    %v6847 = vpack.c.b16 %v6743, %v6739
    %v6848 = vpack.c.b16 %v6744, %v6740
    %v6849 = vpack.c.b16 %v6745, %v6741
    %v6850 = vpack.c.b16 %v6746, %v6742
    %v6851 = vpack.c.b16 %v6751, %v6747
    %v6852 = vpack.c.b16 %v6752, %v6748
    %v6853 = vpack.c.b16 %v6753, %v6749
    %v6854 = vpack.c.b16 %v6754, %v6750
    %v6855 = vpack.c.b16 %v6759, %v6755
    %v6856 = vpack.c.b16 %v6760, %v6756
    %v6857 = vpack.c.b16 %v6761, %v6757
    %v6858 = vpack.c.b16 %v6762, %v6758
    %v6859 = vpack.c.b16 %v6767, %v6763
    %v6860 = vpack.c.b16 %v6768, %v6764
    %v6861 = vpack.c.b16 %v6769, %v6765
    %v6862 = vpack.c.b16 %v6770, %v6766
    %v6863 = vpack.c.b16 %v6775, %v6771
    %v6864 = vpack.c.b16 %v6776, %v6772
    %v6865 = vpack.c.b16 %v6777, %v6773
    %v6866 = vpack.c.b16 %v6778, %v6774
    %v6867 = vpack.c.b16 %v6783, %v6779
    %v6868 = vpack.c.b16 %v6784, %v6780
    %v6869 = vpack.c.b16 %v6785, %v6781
    %v6870 = vpack.c.b16 %v6786, %v6782
    %v6871 = vpack.c.b16 %v6791, %v6787
    %v6872 = vpack.c.b16 %v6792, %v6788
    %v6873 = vpack.c.b16 %v6793, %v6789
    %v6874 = vpack.c.b16 %v6794, %v6790
    %v6875 = vpack.c.b16 %v6799, %v6795
    %v6876 = vpack.c.b16 %v6800, %v6796
    %v6877 = vpack.c.b16 %v6801, %v6797
    %v6878 = vpack.c.b16 %v6802, %v6798
    %v6879 = vpack.c.b16 %v6807, %v6803
    %v6880 = vpack.c.b16 %v6808, %v6804
    %v6881 = vpack.c.b16 %v6809, %v6805
    %v6882 = vpack.c.b16 %v6810, %v6806
    %v6883 = vpack.c.b16 %v6815, %v6811
    %v6884 = vpack.c.b16 %v6816, %v6812
    %v6885 = vpack.c.b16 %v6817, %v6813
    %v6886 = vpack.c.b16 %v6818, %v6814
    %v6887 = vpack.c.b16 %v6823, %v6819
    %v6888 = vpack.c.b16 %v6824, %v6820
    %v6889 = vpack.c.b16 %v6825, %v6821
    %v6890 = vpack.c.b16 %v6826, %v6822
    %6955 = vmatprep.subr.bf16.mxu0 %v6828
    %6956 = vmatpush1.bf16.msra.mxu0 %v6827
    %6957 = vmatprep.subr.bf16.mxu0 %v6832
    %6958 = vmatpush1.bf16.msra.mxu0 %v6831
    %6959 = vmatprep.subr.bf16.mxu0 %v6836
    %6960 = vmatpush1.bf16.msra.mxu0 %v6835
    %6961 = vmatprep.subr.bf16.mxu0 %v6840
    %6962 = vmatpush1.bf16.msra.mxu0 %v6839
    %6963 = vmatprep.subr.bf16.mxu0 %v6844
    %6964 = vmatpush1.bf16.msra.mxu0 %v6843
    %6965 = vmatprep.subr.bf16.mxu0 %v6848
    %6966 = vmatpush1.bf16.msra.mxu0 %v6847
    %6967 = vmatprep.subr.bf16.mxu0 %v6852
    %6968 = vmatpush1.bf16.msra.mxu0 %v6851
    %6969 = vmatprep.subr.bf16.mxu0 %v6856
    %6970 = vmatpush1.bf16.msra.mxu0 %v6855
    %6971 = vmatprep.subr.bf16.mxu0 %v6860
    %6972 = vmatpush1.bf16.msra.mxu0 %v6859
    %6973 = vmatprep.subr.bf16.mxu0 %v6864
    %6974 = vmatpush1.bf16.msra.mxu0 %v6863
    %6975 = vmatprep.subr.bf16.mxu0 %v6868
    %6976 = vmatpush1.bf16.msra.mxu0 %v6867
    %6977 = vmatprep.subr.bf16.mxu0 %v6872
    %6978 = vmatpush1.bf16.msra.mxu0 %v6871
    %6979 = vmatprep.subr.bf16.mxu0 %v6876
    %6980 = vmatpush1.bf16.msra.mxu0 %v6875
    %6981 = vmatprep.subr.bf16.mxu0 %v6880
    %6982 = vmatpush1.bf16.msra.mxu0 %v6879
    %6983 = vmatprep.subr.bf16.mxu0 %v6884
    %6984 = vmatpush1.bf16.msra.mxu0 %v6883
    %6985 = vmatprep.subr.bf16.mxu0 %v6888
    %6986 = vmatpush1.bf16.msra.mxu0 %v6887
    %6987 = vmatprep.mubr.bf16.mxu0 %v6569
    %6988 = vmatmul.mubr.bf16.gmra.mrb[0].mxu0 %v6568
    %v6989 = vpop.f32.mrb[0].mxu0
    %v6990 = vadd.f32 0.0, %v6989
    %v6991 = vpop.f32.mrb[0].mxu0
    %v6992 = vadd.f32 0.0, %v6991
    %v6993 = vpop.f32.mrb[0].mxu0
    %v6994 = vpop.f32.mrb[0].mxu0
    %6995 = vdwg.mxu0
    %6996 = vmatprep.subr.bf16.mxu0 %v6830
    %6997 = vmatpush1.bf16.msra.mxu0 %v6829
    %6998 = vmatprep.subr.bf16.mxu0 %v6834
    %6999 = vmatpush1.bf16.msra.mxu0 %v6833
    %7000 = vmatprep.subr.bf16.mxu0 %v6838
    %7001 = vmatpush1.bf16.msra.mxu0 %v6837
    %7002 = vmatprep.subr.bf16.mxu0 %v6842
    %7003 = vmatpush1.bf16.msra.mxu0 %v6841
    %7004 = vmatprep.subr.bf16.mxu0 %v6846
    %7005 = vmatpush1.bf16.msra.mxu0 %v6845
    %7006 = vmatprep.subr.bf16.mxu0 %v6850
    %7007 = vmatpush1.bf16.msra.mxu0 %v6849
    %7008 = vmatprep.subr.bf16.mxu0 %v6854
    %7009 = vmatpush1.bf16.msra.mxu0 %v6853
    %7010 = vmatprep.subr.bf16.mxu0 %v6858
    %7011 = vmatpush1.bf16.msra.mxu0 %v6857
    %7012 = vmatprep.subr.bf16.mxu0 %v6862
    %7013 = vmatpush1.bf16.msra.mxu0 %v6861
    %7014 = vmatprep.subr.bf16.mxu0 %v6866
    %7015 = vmatpush1.bf16.msra.mxu0 %v6865
    %7016 = vmatprep.subr.bf16.mxu0 %v6870
    %7017 = vmatpush1.bf16.msra.mxu0 %v6869
    %7018 = vmatprep.subr.bf16.mxu0 %v6874
    %7019 = vmatpush1.bf16.msra.mxu0 %v6873
    %7020 = vmatprep.subr.bf16.mxu0 %v6878
    %7021 = vmatpush1.bf16.msra.mxu0 %v6877
    %7022 = vmatprep.subr.bf16.mxu0 %v6882
    %7023 = vmatpush1.bf16.msra.mxu0 %v6881
    %7024 = vmatprep.subr.bf16.mxu0 %v6886
    %7025 = vmatpush1.bf16.msra.mxu0 %v6885
    %7026 = vmatprep.subr.bf16.mxu0 %v6890
    %7027 = vmatpush1.bf16.msra.mxu0 %v6889
    %7028 = vmatprep.mubr.bf16.mxu0 %v6569
    %7029 = vmatmul.mubr.bf16.gmra.mrb[0].mxu0 %v6568
    %v7030 = vpop.f32.mrb[0].mxu0
    %v7031 = vadd.f32 0.0, %v7030
    %v7032 = vpop.f32.mrb[0].mxu0
    %v7033 = vadd.f32 0.0, %v7032
    %v7034 = vpop.f32.mrb[0].mxu0
    %v7035 = vpop.f32.mrb[0].mxu0
    %7036 = vdwg.mxu0
    %v7037 = vpack.c.bf16 %v6990, %v6990
    %v7038 = vpack.c.bf16 %v6992, %v6992
    %v7039 = vpack.c.bf16 %v7031, %v7031
    %v7040 = vpack.c.bf16 %v7033, %v7033
    %v7042 = vlaneseq
    %v7043 = vshrl.u32 %v7042, 7
    %v7044 = vsub.s32 0, %v7043
    %v7045 = vrot.slane %v6634, %v7044
    %v7046 = vlaneseq
    %v7047 = vshrl.u32 %v7046, 7
    %v7048 = vsub.s32 1, %v7047
    %v7049 = vrot.slane %v6634, %v7048
    %v7050 = vlaneseq
    %v7051 = vshrl.u32 %v7050, 7
    %v7052 = vsub.s32 2, %v7051
    %v7053 = vrot.slane %v6634, %v7052
    %v7054 = vlaneseq
    %v7055 = vshrl.u32 %v7054, 7
    %v7056 = vsub.s32 3, %v7055
    %v7057 = vrot.slane %v6634, %v7056
    %v7062 = vpack.c.bf16 %v7045, %v7045
    %v7063 = vpack.c.bf16 %v7049, %v7049
    %v7064 = vpack.c.bf16 %v7053, %v7053
    %v7065 = vpack.c.bf16 %v7057, %v7057
    %v7067 = vpack.i.b16 %v7062, %v7062
    %v7069 = vlaneseq
    %v7070 = vshrl.u32 %v7069, 7
    %v7071 = vsub.s32 0, %v7070
    %v7072 = vrot.slane %v7067, %v7071
    %v7074 = vpack.i.b16 %v7063, %v7063
    %v7076 = vlaneseq
    %v7077 = vshrl.u32 %v7076, 7
    %v7078 = vsub.s32 0, %v7077
    %v7079 = vrot.slane %v7074, %v7078
    %v7081 = vpack.i.b16 %v7064, %v7064
    %v7083 = vlaneseq
    %v7084 = vshrl.u32 %v7083, 7
    %v7085 = vsub.s32 0, %v7084
    %v7086 = vrot.slane %v7081, %v7085
    %v7088 = vpack.i.b16 %v7065, %v7065
    %v7090 = vlaneseq
    %v7091 = vshrl.u32 %v7090, 7
    %v7092 = vsub.s32 0, %v7091
    %v7093 = vrot.slane %v7088, %v7092
    %v7094 = vadd.bf16 %v7037, %v7072
    %v7095 = vadd.bf16 %v7038, %v7079
    %v7096 = vadd.bf16 %v7039, %v7086
    %v7097 = vadd.bf16 %v7040, %v7093
    %v7098 = vmul.bf16 %v7094, 1009007652
    %v7099 = vmul.bf16 %v7095, 1009007652
    %v7100 = vmul.bf16 %v7096, 1009007652
    %v7101 = vmul.bf16 %v7097, 1009007652
    %v7102 = vmax.bf16 %v7094, %v7098
    %v7103 = vmax.bf16 %v7095, %v7099
    %v7104 = vmax.bf16 %v7096, %v7100
    %v7105 = vmax.bf16 %v7097, %v7101
    %v7106 = vld [vmem:[#allocation23] sm:$0xff]
    %v7107 = vld [vmem:[#allocation23 + $0x8] sm:$0xff]
    %v7108 = vld [vmem:[#allocation23 + $0x10] sm:$0xff]
    %v7109 = vld [vmem:[#allocation23 + $0x18] sm:$0xff]
    %v7110 = vld [vmem:[#allocation23 + $0x20] sm:$0xff]
    %v7111 = vld [vmem:[#allocation23 + $0x28] sm:$0xff]
    %v7112 = vld [vmem:[#allocation23 + $0x30] sm:$0xff]
    %v7113 = vld [vmem:[#allocation23 + $0x38] sm:$0xff]
    %v7114 = vld [vmem:[#allocation23 + $0x40] sm:$0xff]
    %v7115 = vld [vmem:[#allocation23 + $0x48] sm:$0xff]
    %v7116 = vld [vmem:[#allocation23 + $0x50] sm:$0xff]
    %v7117 = vld [vmem:[#allocation23 + $0x58] sm:$0xff]
    %v7118 = vld [vmem:[#allocation23 + $0x60] sm:$0xff]
    %v7119 = vld [vmem:[#allocation23 + $0x68] sm:$0xff]
    %v7120 = vld [vmem:[#allocation23 + $0x70] sm:$0xff]
    %v7121 = vld [vmem:[#allocation23 + $0x78] sm:$0xff]
    %v7122 = vld [vmem:[#allocation23 + $0x80] sm:$0xff]
    %v7123 = vld [vmem:[#allocation23 + $0x88] sm:$0xff]
    %v7124 = vld [vmem:[#allocation23 + $0x90] sm:$0xff]
    %v7125 = vld [vmem:[#allocation23 + $0x98] sm:$0xff]
    %v7126 = vld [vmem:[#allocation23 + $0xa0] sm:$0xff]
    %v7127 = vld [vmem:[#allocation23 + $0xa8] sm:$0xff]
    %v7128 = vld [vmem:[#allocation23 + $0xb0] sm:$0xff]
    %v7129 = vld [vmem:[#allocation23 + $0xb8] sm:$0xff]
    %v7130 = vld [vmem:[#allocation23 + $0xc0] sm:$0xff]
    %v7131 = vld [vmem:[#allocation23 + $0xc8] sm:$0xff]
    %v7132 = vld [vmem:[#allocation23 + $0xd0] sm:$0xff]
    %v7133 = vld [vmem:[#allocation23 + $0xd8] sm:$0xff]
    %v7134 = vld [vmem:[#allocation23 + $0xe0] sm:$0xff]
    %v7135 = vld [vmem:[#allocation23 + $0xe8] sm:$0xff]
    %v7136 = vld [vmem:[#allocation23 + $0xf0] sm:$0xff]
    %v7137 = vld [vmem:[#allocation23 + $0xf8] sm:$0xff]
    %v7138 = vld [vmem:[#allocation23 + $0x100] sm:$0xff]
    %v7139 = vld [vmem:[#allocation23 + $0x108] sm:$0xff]
    %v7140 = vld [vmem:[#allocation23 + $0x110] sm:$0xff]
    %v7141 = vld [vmem:[#allocation23 + $0x118] sm:$0xff]
    %v7142 = vld [vmem:[#allocation23 + $0x120] sm:$0xff]
    %v7143 = vld [vmem:[#allocation23 + $0x128] sm:$0xff]
    %v7144 = vld [vmem:[#allocation23 + $0x130] sm:$0xff]
    %v7145 = vld [vmem:[#allocation23 + $0x138] sm:$0xff]
    %v7146 = vld [vmem:[#allocation23 + $0x140] sm:$0xff]
    %v7147 = vld [vmem:[#allocation23 + $0x148] sm:$0xff]
    %v7148 = vld [vmem:[#allocation23 + $0x150] sm:$0xff]
    %v7149 = vld [vmem:[#allocation23 + $0x158] sm:$0xff]
    %v7150 = vld [vmem:[#allocation23 + $0x160] sm:$0xff]
    %v7151 = vld [vmem:[#allocation23 + $0x168] sm:$0xff]
    %v7152 = vld [vmem:[#allocation23 + $0x170] sm:$0xff]
    %v7153 = vld [vmem:[#allocation23 + $0x178] sm:$0xff]
    %v7154 = vld [vmem:[#allocation23 + $0x180] sm:$0xff]
    %v7155 = vld [vmem:[#allocation23 + $0x188] sm:$0xff]
    %v7156 = vld [vmem:[#allocation23 + $0x190] sm:$0xff]
    %v7157 = vld [vmem:[#allocation23 + $0x198] sm:$0xff]
    %v7158 = vld [vmem:[#allocation23 + $0x1a0] sm:$0xff]
    %v7159 = vld [vmem:[#allocation23 + $0x1a8] sm:$0xff]
    %v7160 = vld [vmem:[#allocation23 + $0x1b0] sm:$0xff]
    %v7161 = vld [vmem:[#allocation23 + $0x1b8] sm:$0xff]
    %v7162 = vld [vmem:[#allocation23 + $0x1c0] sm:$0xff]
    %v7163 = vld [vmem:[#allocation23 + $0x1c8] sm:$0xff]
    %v7164 = vld [vmem:[#allocation23 + $0x1d0] sm:$0xff]
    %v7165 = vld [vmem:[#allocation23 + $0x1d8] sm:$0xff]
    %v7166 = vld [vmem:[#allocation23 + $0x1e0] sm:$0xff]
    %v7167 = vld [vmem:[#allocation23 + $0x1e8] sm:$0xff]
    %v7168 = vld [vmem:[#allocation23 + $0x1f0] sm:$0xff]
    %v7169 = vld [vmem:[#allocation23 + $0x1f8] sm:$0xff]
    %v7170 = vld [vmem:[#allocation23 + $0x200] sm:$0xff]
    %v7171 = vld [vmem:[#allocation23 + $0x208] sm:$0xff]
    %v7172 = vld [vmem:[#allocation23 + $0x210] sm:$0xff]
    %v7173 = vld [vmem:[#allocation23 + $0x218] sm:$0xff]
    %v7174 = vld [vmem:[#allocation23 + $0x220] sm:$0xff]
    %v7175 = vld [vmem:[#allocation23 + $0x228] sm:$0xff]
    %v7176 = vld [vmem:[#allocation23 + $0x230] sm:$0xff]
    %v7177 = vld [vmem:[#allocation23 + $0x238] sm:$0xff]
    %v7178 = vld [vmem:[#allocation23 + $0x240] sm:$0xff]
    %v7179 = vld [vmem:[#allocation23 + $0x248] sm:$0xff]
    %v7180 = vld [vmem:[#allocation23 + $0x250] sm:$0xff]
    %v7181 = vld [vmem:[#allocation23 + $0x258] sm:$0xff]
    %v7182 = vld [vmem:[#allocation23 + $0x260] sm:$0xff]
    %v7183 = vld [vmem:[#allocation23 + $0x268] sm:$0xff]
    %v7184 = vld [vmem:[#allocation23 + $0x270] sm:$0xff]
    %v7185 = vld [vmem:[#allocation23 + $0x278] sm:$0xff]
    %v7186 = vld [vmem:[#allocation23 + $0x280] sm:$0xff]
    %v7187 = vld [vmem:[#allocation23 + $0x288] sm:$0xff]
    %v7188 = vld [vmem:[#allocation23 + $0x290] sm:$0xff]
    %v7189 = vld [vmem:[#allocation23 + $0x298] sm:$0xff]
    %v7190 = vld [vmem:[#allocation23 + $0x2a0] sm:$0xff]
    %v7191 = vld [vmem:[#allocation23 + $0x2a8] sm:$0xff]
    %v7192 = vld [vmem:[#allocation23 + $0x2b0] sm:$0xff]
    %v7193 = vld [vmem:[#allocation23 + $0x2b8] sm:$0xff]
    %v7194 = vld [vmem:[#allocation23 + $0x2c0] sm:$0xff]
    %v7195 = vld [vmem:[#allocation23 + $0x2c8] sm:$0xff]
    %v7196 = vld [vmem:[#allocation23 + $0x2d0] sm:$0xff]
    %v7197 = vld [vmem:[#allocation23 + $0x2d8] sm:$0xff]
    %v7198 = vld [vmem:[#allocation23 + $0x2e0] sm:$0xff]
    %v7199 = vld [vmem:[#allocation23 + $0x2e8] sm:$0xff]
    %v7200 = vld [vmem:[#allocation23 + $0x2f0] sm:$0xff]
    %v7201 = vld [vmem:[#allocation23 + $0x2f8] sm:$0xff]
    %v7202 = vld [vmem:[#allocation23 + $0x300] sm:$0xff]
    %v7203 = vld [vmem:[#allocation23 + $0x308] sm:$0xff]
    %v7204 = vld [vmem:[#allocation23 + $0x310] sm:$0xff]
    %v7205 = vld [vmem:[#allocation23 + $0x318] sm:$0xff]
    %v7206 = vld [vmem:[#allocation23 + $0x320] sm:$0xff]
    %v7207 = vld [vmem:[#allocation23 + $0x328] sm:$0xff]
    %v7208 = vld [vmem:[#allocation23 + $0x330] sm:$0xff]
    %v7209 = vld [vmem:[#allocation23 + $0x338] sm:$0xff]
    %v7210 = vld [vmem:[#allocation23 + $0x340] sm:$0xff]
    %v7211 = vld [vmem:[#allocation23 + $0x348] sm:$0xff]
    %v7212 = vld [vmem:[#allocation23 + $0x350] sm:$0xff]
    %v7213 = vld [vmem:[#allocation23 + $0x358] sm:$0xff]
    %v7214 = vld [vmem:[#allocation23 + $0x360] sm:$0xff]
    %v7215 = vld [vmem:[#allocation23 + $0x368] sm:$0xff]
    %v7216 = vld [vmem:[#allocation23 + $0x370] sm:$0xff]
    %v7217 = vld [vmem:[#allocation23 + $0x378] sm:$0xff]
    %v7218 = vld [vmem:[#allocation23 + $0x380] sm:$0xff]
    %v7219 = vld [vmem:[#allocation23 + $0x388] sm:$0xff]
    %v7220 = vld [vmem:[#allocation23 + $0x390] sm:$0xff]
    %v7221 = vld [vmem:[#allocation23 + $0x398] sm:$0xff]
    %v7222 = vld [vmem:[#allocation23 + $0x3a0] sm:$0xff]
    %v7223 = vld [vmem:[#allocation23 + $0x3a8] sm:$0xff]
    %v7224 = vld [vmem:[#allocation23 + $0x3b0] sm:$0xff]
    %v7225 = vld [vmem:[#allocation23 + $0x3b8] sm:$0xff]
    %v7226 = vld [vmem:[#allocation23 + $0x3c0] sm:$0xff]
    %v7227 = vld [vmem:[#allocation23 + $0x3c8] sm:$0xff]
    %v7228 = vld [vmem:[#allocation23 + $0x3d0] sm:$0xff]
    %v7229 = vld [vmem:[#allocation23 + $0x3d8] sm:$0xff]
    %v7230 = vld [vmem:[#allocation23 + $0x3e0] sm:$0xff]
    %v7231 = vld [vmem:[#allocation23 + $0x3e8] sm:$0xff]
    %v7232 = vld [vmem:[#allocation23 + $0x3f0] sm:$0xff]
    %v7233 = vld [vmem:[#allocation23 + $0x3f8] sm:$0xff]
    %v7234 = vld [vmem:[#allocation23 + $0x400] sm:$0xff]
    %v7235 = vld [vmem:[#allocation23 + $0x408] sm:$0xff]
    %v7236 = vld [vmem:[#allocation23 + $0x410] sm:$0xff]
    %v7237 = vld [vmem:[#allocation23 + $0x418] sm:$0xff]
    %v7238 = vld [vmem:[#allocation23 + $0x420] sm:$0xff]
    %v7239 = vld [vmem:[#allocation23 + $0x428] sm:$0xff]
    %v7240 = vld [vmem:[#allocation23 + $0x430] sm:$0xff]
    %v7241 = vld [vmem:[#allocation23 + $0x438] sm:$0xff]
    %v7242 = vld [vmem:[#allocation23 + $0x440] sm:$0xff]
    %v7243 = vld [vmem:[#allocation23 + $0x448] sm:$0xff]
    %v7244 = vld [vmem:[#allocation23 + $0x450] sm:$0xff]
    %v7245 = vld [vmem:[#allocation23 + $0x458] sm:$0xff]
    %v7246 = vld [vmem:[#allocation23 + $0x460] sm:$0xff]
    %v7247 = vld [vmem:[#allocation23 + $0x468] sm:$0xff]
    %v7248 = vld [vmem:[#allocation23 + $0x470] sm:$0xff]
    %v7249 = vld [vmem:[#allocation23 + $0x478] sm:$0xff]
    %v7250 = vld [vmem:[#allocation23 + $0x480] sm:$0xff]
    %v7251 = vld [vmem:[#allocation23 + $0x488] sm:$0xff]
    %v7252 = vld [vmem:[#allocation23 + $0x490] sm:$0xff]
    %v7253 = vld [vmem:[#allocation23 + $0x498] sm:$0xff]
    %v7254 = vld [vmem:[#allocation23 + $0x4a0] sm:$0xff]
    %v7255 = vld [vmem:[#allocation23 + $0x4a8] sm:$0xff]
    %v7256 = vld [vmem:[#allocation23 + $0x4b0] sm:$0xff]
    %v7257 = vld [vmem:[#allocation23 + $0x4b8] sm:$0xff]
    %v7258 = vld [vmem:[#allocation23 + $0x4c0] sm:$0xff]
    %v7259 = vld [vmem:[#allocation23 + $0x4c8] sm:$0xff]
    %v7260 = vld [vmem:[#allocation23 + $0x4d0] sm:$0xff]
    %v7261 = vld [vmem:[#allocation23 + $0x4d8] sm:$0xff]
    %v7262 = vld [vmem:[#allocation23 + $0x4e0] sm:$0xff]
    %v7263 = vld [vmem:[#allocation23 + $0x4e8] sm:$0xff]
    %v7264 = vld [vmem:[#allocation23 + $0x4f0] sm:$0xff]
    %v7265 = vld [vmem:[#allocation23 + $0x4f8] sm:$0xff]
    %v7266 = vld [vmem:[#allocation23 + $0x500] sm:$0xff]
    %v7267 = vld [vmem:[#allocation23 + $0x508] sm:$0xff]
    %v7268 = vld [vmem:[#allocation23 + $0x510] sm:$0xff]
    %v7269 = vld [vmem:[#allocation23 + $0x518] sm:$0xff]
    %v7270 = vld [vmem:[#allocation23 + $0x520] sm:$0xff]
    %v7271 = vld [vmem:[#allocation23 + $0x528] sm:$0xff]
    %v7272 = vld [vmem:[#allocation23 + $0x530] sm:$0xff]
    %v7273 = vld [vmem:[#allocation23 + $0x538] sm:$0xff]
    %v7274 = vld [vmem:[#allocation23 + $0x540] sm:$0xff]
    %v7275 = vld [vmem:[#allocation23 + $0x548] sm:$0xff]
    %v7276 = vld [vmem:[#allocation23 + $0x550] sm:$0xff]
    %v7277 = vld [vmem:[#allocation23 + $0x558] sm:$0xff]
    %v7278 = vld [vmem:[#allocation23 + $0x560] sm:$0xff]
    %v7279 = vld [vmem:[#allocation23 + $0x568] sm:$0xff]
    %v7280 = vld [vmem:[#allocation23 + $0x570] sm:$0xff]
    %v7281 = vld [vmem:[#allocation23 + $0x578] sm:$0xff]
    %v7282 = vld [vmem:[#allocation23 + $0x580] sm:$0xff]
    %v7283 = vld [vmem:[#allocation23 + $0x588] sm:$0xff]
    %v7284 = vld [vmem:[#allocation23 + $0x590] sm:$0xff]
    %v7285 = vld [vmem:[#allocation23 + $0x598] sm:$0xff]
    %v7286 = vld [vmem:[#allocation23 + $0x5a0] sm:$0xff]
    %v7287 = vld [vmem:[#allocation23 + $0x5a8] sm:$0xff]
    %v7288 = vld [vmem:[#allocation23 + $0x5b0] sm:$0xff]
    %v7289 = vld [vmem:[#allocation23 + $0x5b8] sm:$0xff]
    %v7290 = vld [vmem:[#allocation23 + $0x5c0] sm:$0xff]
    %v7291 = vld [vmem:[#allocation23 + $0x5c8] sm:$0xff]
    %v7292 = vld [vmem:[#allocation23 + $0x5d0] sm:$0xff]
    %v7293 = vld [vmem:[#allocation23 + $0x5d8] sm:$0xff]
    %v7294 = vld [vmem:[#allocation23 + $0x5e0] sm:$0xff]
    %v7295 = vld [vmem:[#allocation23 + $0x5e8] sm:$0xff]
    %v7296 = vld [vmem:[#allocation23 + $0x5f0] sm:$0xff]
    %v7297 = vld [vmem:[#allocation23 + $0x5f8] sm:$0xff]
    %v7298 = vld [vmem:[#allocation23 + $0x600] sm:$0xff]
    %v7299 = vld [vmem:[#allocation23 + $0x608] sm:$0xff]
    %v7300 = vld [vmem:[#allocation23 + $0x610] sm:$0xff]
    %v7301 = vld [vmem:[#allocation23 + $0x618] sm:$0xff]
    %v7302 = vld [vmem:[#allocation23 + $0x620] sm:$0xff]
    %v7303 = vld [vmem:[#allocation23 + $0x628] sm:$0xff]
    %v7304 = vld [vmem:[#allocation23 + $0x630] sm:$0xff]
    %v7305 = vld [vmem:[#allocation23 + $0x638] sm:$0xff]
    %v7306 = vld [vmem:[#allocation23 + $0x640] sm:$0xff]
    %v7307 = vld [vmem:[#allocation23 + $0x648] sm:$0xff]
    %v7308 = vld [vmem:[#allocation23 + $0x650] sm:$0xff]
    %v7309 = vld [vmem:[#allocation23 + $0x658] sm:$0xff]
    %v7310 = vld [vmem:[#allocation23 + $0x660] sm:$0xff]
    %v7311 = vld [vmem:[#allocation23 + $0x668] sm:$0xff]
    %v7312 = vld [vmem:[#allocation23 + $0x670] sm:$0xff]
    %v7313 = vld [vmem:[#allocation23 + $0x678] sm:$0xff]
    %v7314 = vld [vmem:[#allocation23 + $0x680] sm:$0xff]
    %v7315 = vld [vmem:[#allocation23 + $0x688] sm:$0xff]
    %v7316 = vld [vmem:[#allocation23 + $0x690] sm:$0xff]
    %v7317 = vld [vmem:[#allocation23 + $0x698] sm:$0xff]
    %v7318 = vld [vmem:[#allocation23 + $0x6a0] sm:$0xff]
    %v7319 = vld [vmem:[#allocation23 + $0x6a8] sm:$0xff]
    %v7320 = vld [vmem:[#allocation23 + $0x6b0] sm:$0xff]
    %v7321 = vld [vmem:[#allocation23 + $0x6b8] sm:$0xff]
    %v7322 = vld [vmem:[#allocation23 + $0x6c0] sm:$0xff]
    %v7323 = vld [vmem:[#allocation23 + $0x6c8] sm:$0xff]
    %v7324 = vld [vmem:[#allocation23 + $0x6d0] sm:$0xff]
    %v7325 = vld [vmem:[#allocation23 + $0x6d8] sm:$0xff]
    %v7326 = vld [vmem:[#allocation23 + $0x6e0] sm:$0xff]
    %v7327 = vld [vmem:[#allocation23 + $0x6e8] sm:$0xff]
    %v7328 = vld [vmem:[#allocation23 + $0x6f0] sm:$0xff]
    %v7329 = vld [vmem:[#allocation23 + $0x6f8] sm:$0xff]
    %v7330 = vld [vmem:[#allocation23 + $0x700] sm:$0xff]
    %v7331 = vld [vmem:[#allocation23 + $0x708] sm:$0xff]
    %v7332 = vld [vmem:[#allocation23 + $0x710] sm:$0xff]
    %v7333 = vld [vmem:[#allocation23 + $0x718] sm:$0xff]
    %v7334 = vld [vmem:[#allocation23 + $0x720] sm:$0xff]
    %v7335 = vld [vmem:[#allocation23 + $0x728] sm:$0xff]
    %v7336 = vld [vmem:[#allocation23 + $0x730] sm:$0xff]
    %v7337 = vld [vmem:[#allocation23 + $0x738] sm:$0xff]
    %v7338 = vld [vmem:[#allocation23 + $0x740] sm:$0xff]
    %v7339 = vld [vmem:[#allocation23 + $0x748] sm:$0xff]
    %v7340 = vld [vmem:[#allocation23 + $0x750] sm:$0xff]
    %v7341 = vld [vmem:[#allocation23 + $0x758] sm:$0xff]
    %v7342 = vld [vmem:[#allocation23 + $0x760] sm:$0xff]
    %v7343 = vld [vmem:[#allocation23 + $0x768] sm:$0xff]
    %v7344 = vld [vmem:[#allocation23 + $0x770] sm:$0xff]
    %v7345 = vld [vmem:[#allocation23 + $0x778] sm:$0xff]
    %v7346 = vld [vmem:[#allocation23 + $0x780] sm:$0xff]
    %v7347 = vld [vmem:[#allocation23 + $0x788] sm:$0xff]
    %v7348 = vld [vmem:[#allocation23 + $0x790] sm:$0xff]
    %v7349 = vld [vmem:[#allocation23 + $0x798] sm:$0xff]
    %v7350 = vld [vmem:[#allocation23 + $0x7a0] sm:$0xff]
    %v7351 = vld [vmem:[#allocation23 + $0x7a8] sm:$0xff]
    %v7352 = vld [vmem:[#allocation23 + $0x7b0] sm:$0xff]
    %v7353 = vld [vmem:[#allocation23 + $0x7b8] sm:$0xff]
    %v7354 = vld [vmem:[#allocation23 + $0x7c0] sm:$0xff]
    %v7355 = vld [vmem:[#allocation23 + $0x7c8] sm:$0xff]
    %v7356 = vld [vmem:[#allocation23 + $0x7d0] sm:$0xff]
    %v7357 = vld [vmem:[#allocation23 + $0x7d8] sm:$0xff]
    %v7358 = vld [vmem:[#allocation23 + $0x7e0] sm:$0xff]
    %v7359 = vld [vmem:[#allocation23 + $0x7e8] sm:$0xff]
    %v7360 = vld [vmem:[#allocation23 + $0x7f0] sm:$0xff]
    %v7361 = vld [vmem:[#allocation23 + $0x7f8] sm:$0xff]
    %v7362 = vld [vmem:[#allocation25] sm:$0xff]
    %v7619 = vunpack.c.l.b16 %v7106
    %v7620 = vunpack.c.h.b16 %v7106
    %v7621 = vunpack.c.l.b16 %v7107
    %v7622 = vunpack.c.h.b16 %v7107
    %v7623 = vunpack.c.l.b16 %v7108
    %v7624 = vunpack.c.h.b16 %v7108
    %v7625 = vunpack.c.l.b16 %v7109
    %v7626 = vunpack.c.h.b16 %v7109
    %v7627 = vunpack.c.l.b16 %v7110
    %v7628 = vunpack.c.h.b16 %v7110
    %v7629 = vunpack.c.l.b16 %v7111
    %v7630 = vunpack.c.h.b16 %v7111
    %v7631 = vunpack.c.l.b16 %v7112
    %v7632 = vunpack.c.h.b16 %v7112
    %v7633 = vunpack.c.l.b16 %v7113
    %v7634 = vunpack.c.h.b16 %v7113
    %v7635 = vunpack.c.l.b16 %v7114
    %v7636 = vunpack.c.h.b16 %v7114
    %v7637 = vunpack.c.l.b16 %v7115
    %v7638 = vunpack.c.h.b16 %v7115
    %v7639 = vunpack.c.l.b16 %v7116
    %v7640 = vunpack.c.h.b16 %v7116
    %v7641 = vunpack.c.l.b16 %v7117
    %v7642 = vunpack.c.h.b16 %v7117
    %v7643 = vunpack.c.l.b16 %v7118
    %v7644 = vunpack.c.h.b16 %v7118
    %v7645 = vunpack.c.l.b16 %v7119
    %v7646 = vunpack.c.h.b16 %v7119
    %v7647 = vunpack.c.l.b16 %v7120
    %v7648 = vunpack.c.h.b16 %v7120
    %v7649 = vunpack.c.l.b16 %v7121
    %v7650 = vunpack.c.h.b16 %v7121
    %v7651 = vunpack.c.l.b16 %v7122
    %v7652 = vunpack.c.h.b16 %v7122
    %v7653 = vunpack.c.l.b16 %v7123
    %v7654 = vunpack.c.h.b16 %v7123
    %v7655 = vunpack.c.l.b16 %v7124
    %v7656 = vunpack.c.h.b16 %v7124
    %v7657 = vunpack.c.l.b16 %v7125
    %v7658 = vunpack.c.h.b16 %v7125
    %v7659 = vunpack.c.l.b16 %v7126
    %v7660 = vunpack.c.h.b16 %v7126
    %v7661 = vunpack.c.l.b16 %v7127
    %v7662 = vunpack.c.h.b16 %v7127
    %v7663 = vunpack.c.l.b16 %v7128
    %v7664 = vunpack.c.h.b16 %v7128
    %v7665 = vunpack.c.l.b16 %v7129
    %v7666 = vunpack.c.h.b16 %v7129
    %v7667 = vunpack.c.l.b16 %v7130
    %v7668 = vunpack.c.h.b16 %v7130
    %v7669 = vunpack.c.l.b16 %v7131
    %v7670 = vunpack.c.h.b16 %v7131
    %v7671 = vunpack.c.l.b16 %v7132
    %v7672 = vunpack.c.h.b16 %v7132
    %v7673 = vunpack.c.l.b16 %v7133
    %v7674 = vunpack.c.h.b16 %v7133
    %v7675 = vunpack.c.l.b16 %v7134
    %v7676 = vunpack.c.h.b16 %v7134
    %v7677 = vunpack.c.l.b16 %v7135
    %v7678 = vunpack.c.h.b16 %v7135
    %v7679 = vunpack.c.l.b16 %v7136
    %v7680 = vunpack.c.h.b16 %v7136
    %v7681 = vunpack.c.l.b16 %v7137
    %v7682 = vunpack.c.h.b16 %v7137
    %v7683 = vunpack.c.l.b16 %v7138
    %v7684 = vunpack.c.h.b16 %v7138
    %v7685 = vunpack.c.l.b16 %v7139
    %v7686 = vunpack.c.h.b16 %v7139
    %v7687 = vunpack.c.l.b16 %v7140
    %v7688 = vunpack.c.h.b16 %v7140
    %v7689 = vunpack.c.l.b16 %v7141
    %v7690 = vunpack.c.h.b16 %v7141
    %v7691 = vunpack.c.l.b16 %v7142
    %v7692 = vunpack.c.h.b16 %v7142
    %v7693 = vunpack.c.l.b16 %v7143
    %v7694 = vunpack.c.h.b16 %v7143
    %v7695 = vunpack.c.l.b16 %v7144
    %v7696 = vunpack.c.h.b16 %v7144
    %v7697 = vunpack.c.l.b16 %v7145
    %v7698 = vunpack.c.h.b16 %v7145
    %v7699 = vunpack.c.l.b16 %v7146
    %v7700 = vunpack.c.h.b16 %v7146
    %v7701 = vunpack.c.l.b16 %v7147
    %v7702 = vunpack.c.h.b16 %v7147
    %v7703 = vunpack.c.l.b16 %v7148
    %v7704 = vunpack.c.h.b16 %v7148
    %v7705 = vunpack.c.l.b16 %v7149
    %v7706 = vunpack.c.h.b16 %v7149
    %v7707 = vunpack.c.l.b16 %v7150
    %v7708 = vunpack.c.h.b16 %v7150
    %v7709 = vunpack.c.l.b16 %v7151
    %v7710 = vunpack.c.h.b16 %v7151
    %v7711 = vunpack.c.l.b16 %v7152
    %v7712 = vunpack.c.h.b16 %v7152
    %v7713 = vunpack.c.l.b16 %v7153
    %v7714 = vunpack.c.h.b16 %v7153
    %v7715 = vunpack.c.l.b16 %v7154
    %v7716 = vunpack.c.h.b16 %v7154
    %v7717 = vunpack.c.l.b16 %v7155
    %v7718 = vunpack.c.h.b16 %v7155
    %v7719 = vunpack.c.l.b16 %v7156
    %v7720 = vunpack.c.h.b16 %v7156
    %v7721 = vunpack.c.l.b16 %v7157
    %v7722 = vunpack.c.h.b16 %v7157
    %v7723 = vunpack.c.l.b16 %v7158
    %v7724 = vunpack.c.h.b16 %v7158
    %v7725 = vunpack.c.l.b16 %v7159
    %v7726 = vunpack.c.h.b16 %v7159
    %v7727 = vunpack.c.l.b16 %v7160
    %v7728 = vunpack.c.h.b16 %v7160
    %v7729 = vunpack.c.l.b16 %v7161
    %v7730 = vunpack.c.h.b16 %v7161
    %v7731 = vunpack.c.l.b16 %v7162
    %v7732 = vunpack.c.h.b16 %v7162
    %v7733 = vunpack.c.l.b16 %v7163
    %v7734 = vunpack.c.h.b16 %v7163
    %v7735 = vunpack.c.l.b16 %v7164
    %v7736 = vunpack.c.h.b16 %v7164
    %v7737 = vunpack.c.l.b16 %v7165
    %v7738 = vunpack.c.h.b16 %v7165
    %v7739 = vunpack.c.l.b16 %v7166
    %v7740 = vunpack.c.h.b16 %v7166
    %v7741 = vunpack.c.l.b16 %v7167
    %v7742 = vunpack.c.h.b16 %v7167
    %v7743 = vunpack.c.l.b16 %v7168
    %v7744 = vunpack.c.h.b16 %v7168
    %v7745 = vunpack.c.l.b16 %v7169
    %v7746 = vunpack.c.h.b16 %v7169
    %v7747 = vunpack.c.l.b16 %v7170
    %v7748 = vunpack.c.h.b16 %v7170
    %v7749 = vunpack.c.l.b16 %v7171
    %v7750 = vunpack.c.h.b16 %v7171
    %v7751 = vunpack.c.l.b16 %v7172
    %v7752 = vunpack.c.h.b16 %v7172
    %v7753 = vunpack.c.l.b16 %v7173
    %v7754 = vunpack.c.h.b16 %v7173
    %v7755 = vunpack.c.l.b16 %v7174
    %v7756 = vunpack.c.h.b16 %v7174
    %v7757 = vunpack.c.l.b16 %v7175
    %v7758 = vunpack.c.h.b16 %v7175
    %v7759 = vunpack.c.l.b16 %v7176
    %v7760 = vunpack.c.h.b16 %v7176
    %v7761 = vunpack.c.l.b16 %v7177
    %v7762 = vunpack.c.h.b16 %v7177
    %v7763 = vunpack.c.l.b16 %v7178
    %v7764 = vunpack.c.h.b16 %v7178
    %v7765 = vunpack.c.l.b16 %v7179
    %v7766 = vunpack.c.h.b16 %v7179
    %v7767 = vunpack.c.l.b16 %v7180
    %v7768 = vunpack.c.h.b16 %v7180
    %v7769 = vunpack.c.l.b16 %v7181
    %v7770 = vunpack.c.h.b16 %v7181
    %v7771 = vunpack.c.l.b16 %v7182
    %v7772 = vunpack.c.h.b16 %v7182
    %v7773 = vunpack.c.l.b16 %v7183
    %v7774 = vunpack.c.h.b16 %v7183
    %v7775 = vunpack.c.l.b16 %v7184
    %v7776 = vunpack.c.h.b16 %v7184
    %v7777 = vunpack.c.l.b16 %v7185
    %v7778 = vunpack.c.h.b16 %v7185
    %v7779 = vunpack.c.l.b16 %v7186
    %v7780 = vunpack.c.h.b16 %v7186
    %v7781 = vunpack.c.l.b16 %v7187
    %v7782 = vunpack.c.h.b16 %v7187
    %v7783 = vunpack.c.l.b16 %v7188
    %v7784 = vunpack.c.h.b16 %v7188
    %v7785 = vunpack.c.l.b16 %v7189
    %v7786 = vunpack.c.h.b16 %v7189
    %v7787 = vunpack.c.l.b16 %v7190
    %v7788 = vunpack.c.h.b16 %v7190
    %v7789 = vunpack.c.l.b16 %v7191
    %v7790 = vunpack.c.h.b16 %v7191
    %v7791 = vunpack.c.l.b16 %v7192
    %v7792 = vunpack.c.h.b16 %v7192
    %v7793 = vunpack.c.l.b16 %v7193
    %v7794 = vunpack.c.h.b16 %v7193
    %v7795 = vunpack.c.l.b16 %v7194
    %v7796 = vunpack.c.h.b16 %v7194
    %v7797 = vunpack.c.l.b16 %v7195
    %v7798 = vunpack.c.h.b16 %v7195
    %v7799 = vunpack.c.l.b16 %v7196
    %v7800 = vunpack.c.h.b16 %v7196
    %v7801 = vunpack.c.l.b16 %v7197
    %v7802 = vunpack.c.h.b16 %v7197
    %v7803 = vunpack.c.l.b16 %v7198
    %v7804 = vunpack.c.h.b16 %v7198
    %v7805 = vunpack.c.l.b16 %v7199
    %v7806 = vunpack.c.h.b16 %v7199
    %v7807 = vunpack.c.l.b16 %v7200
    %v7808 = vunpack.c.h.b16 %v7200
    %v7809 = vunpack.c.l.b16 %v7201
    %v7810 = vunpack.c.h.b16 %v7201
    %v7811 = vunpack.c.l.b16 %v7202
    %v7812 = vunpack.c.h.b16 %v7202
    %v7813 = vunpack.c.l.b16 %v7203
    %v7814 = vunpack.c.h.b16 %v7203
    %v7815 = vunpack.c.l.b16 %v7204
    %v7816 = vunpack.c.h.b16 %v7204
    %v7817 = vunpack.c.l.b16 %v7205
    %v7818 = vunpack.c.h.b16 %v7205
    %v7819 = vunpack.c.l.b16 %v7206
    %v7820 = vunpack.c.h.b16 %v7206
    %v7821 = vunpack.c.l.b16 %v7207
    %v7822 = vunpack.c.h.b16 %v7207
    %v7823 = vunpack.c.l.b16 %v7208
    %v7824 = vunpack.c.h.b16 %v7208
    %v7825 = vunpack.c.l.b16 %v7209
    %v7826 = vunpack.c.h.b16 %v7209
    %v7827 = vunpack.c.l.b16 %v7210
    %v7828 = vunpack.c.h.b16 %v7210
    %v7829 = vunpack.c.l.b16 %v7211
    %v7830 = vunpack.c.h.b16 %v7211
    %v7831 = vunpack.c.l.b16 %v7212
    %v7832 = vunpack.c.h.b16 %v7212
    %v7833 = vunpack.c.l.b16 %v7213
    %v7834 = vunpack.c.h.b16 %v7213
    %v7835 = vunpack.c.l.b16 %v7214
    %v7836 = vunpack.c.h.b16 %v7214
    %v7837 = vunpack.c.l.b16 %v7215
    %v7838 = vunpack.c.h.b16 %v7215
    %v7839 = vunpack.c.l.b16 %v7216
    %v7840 = vunpack.c.h.b16 %v7216
    %v7841 = vunpack.c.l.b16 %v7217
    %v7842 = vunpack.c.h.b16 %v7217
    %v7843 = vunpack.c.l.b16 %v7218
    %v7844 = vunpack.c.h.b16 %v7218
    %v7845 = vunpack.c.l.b16 %v7219
    %v7846 = vunpack.c.h.b16 %v7219
    %v7847 = vunpack.c.l.b16 %v7220
    %v7848 = vunpack.c.h.b16 %v7220
    %v7849 = vunpack.c.l.b16 %v7221
    %v7850 = vunpack.c.h.b16 %v7221
    %v7851 = vunpack.c.l.b16 %v7222
    %v7852 = vunpack.c.h.b16 %v7222
    %v7853 = vunpack.c.l.b16 %v7223
    %v7854 = vunpack.c.h.b16 %v7223
    %v7855 = vunpack.c.l.b16 %v7224
    %v7856 = vunpack.c.h.b16 %v7224
    %v7857 = vunpack.c.l.b16 %v7225
    %v7858 = vunpack.c.h.b16 %v7225
    %v7859 = vunpack.c.l.b16 %v7226
    %v7860 = vunpack.c.h.b16 %v7226
    %v7861 = vunpack.c.l.b16 %v7227
    %v7862 = vunpack.c.h.b16 %v7227
    %v7863 = vunpack.c.l.b16 %v7228
    %v7864 = vunpack.c.h.b16 %v7228
    %v7865 = vunpack.c.l.b16 %v7229
    %v7866 = vunpack.c.h.b16 %v7229
    %v7867 = vunpack.c.l.b16 %v7230
    %v7868 = vunpack.c.h.b16 %v7230
    %v7869 = vunpack.c.l.b16 %v7231
    %v7870 = vunpack.c.h.b16 %v7231
    %v7871 = vunpack.c.l.b16 %v7232
    %v7872 = vunpack.c.h.b16 %v7232
    %v7873 = vunpack.c.l.b16 %v7233
    %v7874 = vunpack.c.h.b16 %v7233
    %v7875 = vunpack.c.l.b16 %v7234
    %v7876 = vunpack.c.h.b16 %v7234
    %v7877 = vunpack.c.l.b16 %v7235
    %v7878 = vunpack.c.h.b16 %v7235
    %v7879 = vunpack.c.l.b16 %v7236
    %v7880 = vunpack.c.h.b16 %v7236
    %v7881 = vunpack.c.l.b16 %v7237
    %v7882 = vunpack.c.h.b16 %v7237
    %v7883 = vunpack.c.l.b16 %v7238
    %v7884 = vunpack.c.h.b16 %v7238
    %v7885 = vunpack.c.l.b16 %v7239
    %v7886 = vunpack.c.h.b16 %v7239
    %v7887 = vunpack.c.l.b16 %v7240
    %v7888 = vunpack.c.h.b16 %v7240
    %v7889 = vunpack.c.l.b16 %v7241
    %v7890 = vunpack.c.h.b16 %v7241
    %v7891 = vunpack.c.l.b16 %v7242
    %v7892 = vunpack.c.h.b16 %v7242
    %v7893 = vunpack.c.l.b16 %v7243
    %v7894 = vunpack.c.h.b16 %v7243
    %v7895 = vunpack.c.l.b16 %v7244
    %v7896 = vunpack.c.h.b16 %v7244
    %v7897 = vunpack.c.l.b16 %v7245
    %v7898 = vunpack.c.h.b16 %v7245
    %v7899 = vunpack.c.l.b16 %v7246
    %v7900 = vunpack.c.h.b16 %v7246
    %v7901 = vunpack.c.l.b16 %v7247
    %v7902 = vunpack.c.h.b16 %v7247
    %v7903 = vunpack.c.l.b16 %v7248
    %v7904 = vunpack.c.h.b16 %v7248
    %v7905 = vunpack.c.l.b16 %v7249
    %v7906 = vunpack.c.h.b16 %v7249
    %v7907 = vunpack.c.l.b16 %v7250
    %v7908 = vunpack.c.h.b16 %v7250
    %v7909 = vunpack.c.l.b16 %v7251
    %v7910 = vunpack.c.h.b16 %v7251
    %v7911 = vunpack.c.l.b16 %v7252
    %v7912 = vunpack.c.h.b16 %v7252
    %v7913 = vunpack.c.l.b16 %v7253
    %v7914 = vunpack.c.h.b16 %v7253
    %v7915 = vunpack.c.l.b16 %v7254
    %v7916 = vunpack.c.h.b16 %v7254
    %v7917 = vunpack.c.l.b16 %v7255
    %v7918 = vunpack.c.h.b16 %v7255
    %v7919 = vunpack.c.l.b16 %v7256
    %v7920 = vunpack.c.h.b16 %v7256
    %v7921 = vunpack.c.l.b16 %v7257
    %v7922 = vunpack.c.h.b16 %v7257
    %v7923 = vunpack.c.l.b16 %v7258
    %v7924 = vunpack.c.h.b16 %v7258
    %v7925 = vunpack.c.l.b16 %v7259
    %v7926 = vunpack.c.h.b16 %v7259
    %v7927 = vunpack.c.l.b16 %v7260
    %v7928 = vunpack.c.h.b16 %v7260
    %v7929 = vunpack.c.l.b16 %v7261
    %v7930 = vunpack.c.h.b16 %v7261
    %v7931 = vunpack.c.l.b16 %v7262
    %v7932 = vunpack.c.h.b16 %v7262
    %v7933 = vunpack.c.l.b16 %v7263
    %v7934 = vunpack.c.h.b16 %v7263
    %v7935 = vunpack.c.l.b16 %v7264
    %v7936 = vunpack.c.h.b16 %v7264
    %v7937 = vunpack.c.l.b16 %v7265
    %v7938 = vunpack.c.h.b16 %v7265
    %v7939 = vunpack.c.l.b16 %v7266
    %v7940 = vunpack.c.h.b16 %v7266
    %v7941 = vunpack.c.l.b16 %v7267
    %v7942 = vunpack.c.h.b16 %v7267
    %v7943 = vunpack.c.l.b16 %v7268
    %v7944 = vunpack.c.h.b16 %v7268
    %v7945 = vunpack.c.l.b16 %v7269
    %v7946 = vunpack.c.h.b16 %v7269
    %v7947 = vunpack.c.l.b16 %v7270
    %v7948 = vunpack.c.h.b16 %v7270
    %v7949 = vunpack.c.l.b16 %v7271
    %v7950 = vunpack.c.h.b16 %v7271
    %v7951 = vunpack.c.l.b16 %v7272
    %v7952 = vunpack.c.h.b16 %v7272
    %v7953 = vunpack.c.l.b16 %v7273
    %v7954 = vunpack.c.h.b16 %v7273
    %v7955 = vunpack.c.l.b16 %v7274
    %v7956 = vunpack.c.h.b16 %v7274
    %v7957 = vunpack.c.l.b16 %v7275
    %v7958 = vunpack.c.h.b16 %v7275
    %v7959 = vunpack.c.l.b16 %v7276
    %v7960 = vunpack.c.h.b16 %v7276
    %v7961 = vunpack.c.l.b16 %v7277
    %v7962 = vunpack.c.h.b16 %v7277
    %v7963 = vunpack.c.l.b16 %v7278
    %v7964 = vunpack.c.h.b16 %v7278
    %v7965 = vunpack.c.l.b16 %v7279
    %v7966 = vunpack.c.h.b16 %v7279
    %v7967 = vunpack.c.l.b16 %v7280
    %v7968 = vunpack.c.h.b16 %v7280
    %v7969 = vunpack.c.l.b16 %v7281
    %v7970 = vunpack.c.h.b16 %v7281
    %v7971 = vunpack.c.l.b16 %v7282
    %v7972 = vunpack.c.h.b16 %v7282
    %v7973 = vunpack.c.l.b16 %v7283
    %v7974 = vunpack.c.h.b16 %v7283
    %v7975 = vunpack.c.l.b16 %v7284
    %v7976 = vunpack.c.h.b16 %v7284
    %v7977 = vunpack.c.l.b16 %v7285
    %v7978 = vunpack.c.h.b16 %v7285
    %v7979 = vunpack.c.l.b16 %v7286
    %v7980 = vunpack.c.h.b16 %v7286
    %v7981 = vunpack.c.l.b16 %v7287
    %v7982 = vunpack.c.h.b16 %v7287
    %v7983 = vunpack.c.l.b16 %v7288
    %v7984 = vunpack.c.h.b16 %v7288
    %v7985 = vunpack.c.l.b16 %v7289
    %v7986 = vunpack.c.h.b16 %v7289
    %v7987 = vunpack.c.l.b16 %v7290
    %v7988 = vunpack.c.h.b16 %v7290
    %v7989 = vunpack.c.l.b16 %v7291
    %v7990 = vunpack.c.h.b16 %v7291
    %v7991 = vunpack.c.l.b16 %v7292
    %v7992 = vunpack.c.h.b16 %v7292
    %v7993 = vunpack.c.l.b16 %v7293
    %v7994 = vunpack.c.h.b16 %v7293
    %v7995 = vunpack.c.l.b16 %v7294
    %v7996 = vunpack.c.h.b16 %v7294
    %v7997 = vunpack.c.l.b16 %v7295
    %v7998 = vunpack.c.h.b16 %v7295
    %v7999 = vunpack.c.l.b16 %v7296
    %v8000 = vunpack.c.h.b16 %v7296
    %v8001 = vunpack.c.l.b16 %v7297
    %v8002 = vunpack.c.h.b16 %v7297
    %v8003 = vunpack.c.l.b16 %v7298
    %v8004 = vunpack.c.h.b16 %v7298
    %v8005 = vunpack.c.l.b16 %v7299
    %v8006 = vunpack.c.h.b16 %v7299
    %v8007 = vunpack.c.l.b16 %v7300
    %v8008 = vunpack.c.h.b16 %v7300
    %v8009 = vunpack.c.l.b16 %v7301
    %v8010 = vunpack.c.h.b16 %v7301
    %v8011 = vunpack.c.l.b16 %v7302
    %v8012 = vunpack.c.h.b16 %v7302
    %v8013 = vunpack.c.l.b16 %v7303
    %v8014 = vunpack.c.h.b16 %v7303
    %v8015 = vunpack.c.l.b16 %v7304
    %v8016 = vunpack.c.h.b16 %v7304
    %v8017 = vunpack.c.l.b16 %v7305
    %v8018 = vunpack.c.h.b16 %v7305
    %v8019 = vunpack.c.l.b16 %v7306
    %v8020 = vunpack.c.h.b16 %v7306
    %v8021 = vunpack.c.l.b16 %v7307
    %v8022 = vunpack.c.h.b16 %v7307
    %v8023 = vunpack.c.l.b16 %v7308
    %v8024 = vunpack.c.h.b16 %v7308
    %v8025 = vunpack.c.l.b16 %v7309
    %v8026 = vunpack.c.h.b16 %v7309
    %v8027 = vunpack.c.l.b16 %v7310
    %v8028 = vunpack.c.h.b16 %v7310
    %v8029 = vunpack.c.l.b16 %v7311
    %v8030 = vunpack.c.h.b16 %v7311
    %v8031 = vunpack.c.l.b16 %v7312
    %v8032 = vunpack.c.h.b16 %v7312
    %v8033 = vunpack.c.l.b16 %v7313
    %v8034 = vunpack.c.h.b16 %v7313
    %v8035 = vunpack.c.l.b16 %v7314
    %v8036 = vunpack.c.h.b16 %v7314
    %v8037 = vunpack.c.l.b16 %v7315
    %v8038 = vunpack.c.h.b16 %v7315
    %v8039 = vunpack.c.l.b16 %v7316
    %v8040 = vunpack.c.h.b16 %v7316
    %v8041 = vunpack.c.l.b16 %v7317
    %v8042 = vunpack.c.h.b16 %v7317
    %v8043 = vunpack.c.l.b16 %v7318
    %v8044 = vunpack.c.h.b16 %v7318
    %v8045 = vunpack.c.l.b16 %v7319
    %v8046 = vunpack.c.h.b16 %v7319
    %v8047 = vunpack.c.l.b16 %v7320
    %v8048 = vunpack.c.h.b16 %v7320
    %v8049 = vunpack.c.l.b16 %v7321
    %v8050 = vunpack.c.h.b16 %v7321
    %v8051 = vunpack.c.l.b16 %v7322
    %v8052 = vunpack.c.h.b16 %v7322
    %v8053 = vunpack.c.l.b16 %v7323
    %v8054 = vunpack.c.h.b16 %v7323
    %v8055 = vunpack.c.l.b16 %v7324
    %v8056 = vunpack.c.h.b16 %v7324
    %v8057 = vunpack.c.l.b16 %v7325
    %v8058 = vunpack.c.h.b16 %v7325
    %v8059 = vunpack.c.l.b16 %v7326
    %v8060 = vunpack.c.h.b16 %v7326
    %v8061 = vunpack.c.l.b16 %v7327
    %v8062 = vunpack.c.h.b16 %v7327
    %v8063 = vunpack.c.l.b16 %v7328
    %v8064 = vunpack.c.h.b16 %v7328
    %v8065 = vunpack.c.l.b16 %v7329
    %v8066 = vunpack.c.h.b16 %v7329
    %v8067 = vunpack.c.l.b16 %v7330
    %v8068 = vunpack.c.h.b16 %v7330
    %v8069 = vunpack.c.l.b16 %v7331
    %v8070 = vunpack.c.h.b16 %v7331
    %v8071 = vunpack.c.l.b16 %v7332
    %v8072 = vunpack.c.h.b16 %v7332
    %v8073 = vunpack.c.l.b16 %v7333
    %v8074 = vunpack.c.h.b16 %v7333
    %v8075 = vunpack.c.l.b16 %v7334
    %v8076 = vunpack.c.h.b16 %v7334
    %v8077 = vunpack.c.l.b16 %v7335
    %v8078 = vunpack.c.h.b16 %v7335
    %v8079 = vunpack.c.l.b16 %v7336
    %v8080 = vunpack.c.h.b16 %v7336
    %v8081 = vunpack.c.l.b16 %v7337
    %v8082 = vunpack.c.h.b16 %v7337
    %v8083 = vunpack.c.l.b16 %v7338
    %v8084 = vunpack.c.h.b16 %v7338
    %v8085 = vunpack.c.l.b16 %v7339
    %v8086 = vunpack.c.h.b16 %v7339
    %v8087 = vunpack.c.l.b16 %v7340
    %v8088 = vunpack.c.h.b16 %v7340
    %v8089 = vunpack.c.l.b16 %v7341
    %v8090 = vunpack.c.h.b16 %v7341
    %v8091 = vunpack.c.l.b16 %v7342
    %v8092 = vunpack.c.h.b16 %v7342
    %v8093 = vunpack.c.l.b16 %v7343
    %v8094 = vunpack.c.h.b16 %v7343
    %v8095 = vunpack.c.l.b16 %v7344
    %v8096 = vunpack.c.h.b16 %v7344
    %v8097 = vunpack.c.l.b16 %v7345
    %v8098 = vunpack.c.h.b16 %v7345
    %v8099 = vunpack.c.l.b16 %v7346
    %v8100 = vunpack.c.h.b16 %v7346
    %v8101 = vunpack.c.l.b16 %v7347
    %v8102 = vunpack.c.h.b16 %v7347
    %v8103 = vunpack.c.l.b16 %v7348
    %v8104 = vunpack.c.h.b16 %v7348
    %v8105 = vunpack.c.l.b16 %v7349
    %v8106 = vunpack.c.h.b16 %v7349
    %v8107 = vunpack.c.l.b16 %v7350
    %v8108 = vunpack.c.h.b16 %v7350
    %v8109 = vunpack.c.l.b16 %v7351
    %v8110 = vunpack.c.h.b16 %v7351
    %v8111 = vunpack.c.l.b16 %v7352
    %v8112 = vunpack.c.h.b16 %v7352
    %v8113 = vunpack.c.l.b16 %v7353
    %v8114 = vunpack.c.h.b16 %v7353
    %v8115 = vunpack.c.l.b16 %v7354
    %v8116 = vunpack.c.h.b16 %v7354
    %v8117 = vunpack.c.l.b16 %v7355
    %v8118 = vunpack.c.h.b16 %v7355
    %v8119 = vunpack.c.l.b16 %v7356
    %v8120 = vunpack.c.h.b16 %v7356
    %v8121 = vunpack.c.l.b16 %v7357
    %v8122 = vunpack.c.h.b16 %v7357
    %v8123 = vunpack.c.l.b16 %v7358
    %v8124 = vunpack.c.h.b16 %v7358
    %v8125 = vunpack.c.l.b16 %v7359
    %v8126 = vunpack.c.h.b16 %v7359
    %v8127 = vunpack.c.l.b16 %v7360
    %v8128 = vunpack.c.h.b16 %v7360
    %v8129 = vunpack.c.l.b16 %v7361
    %v8130 = vunpack.c.h.b16 %v7361
    %v8131 = vpack.c.b16 %v7627, %v7619
    %v8132 = vpack.c.b16 %v7628, %v7620
    %v8133 = vpack.c.b16 %v7629, %v7621
    %v8134 = vpack.c.b16 %v7630, %v7622
    %v8135 = vpack.c.b16 %v7631, %v7623
    %v8136 = vpack.c.b16 %v7632, %v7624
    %v8137 = vpack.c.b16 %v7633, %v7625
    %v8138 = vpack.c.b16 %v7634, %v7626
    %v8139 = vpack.c.b16 %v7643, %v7635
    %v8140 = vpack.c.b16 %v7644, %v7636
    %v8141 = vpack.c.b16 %v7645, %v7637
    %v8142 = vpack.c.b16 %v7646, %v7638
    %v8143 = vpack.c.b16 %v7647, %v7639
    %v8144 = vpack.c.b16 %v7648, %v7640
    %v8145 = vpack.c.b16 %v7649, %v7641
    %v8146 = vpack.c.b16 %v7650, %v7642
    %v8147 = vpack.c.b16 %v7659, %v7651
    %v8148 = vpack.c.b16 %v7660, %v7652
    %v8149 = vpack.c.b16 %v7661, %v7653
    %v8150 = vpack.c.b16 %v7662, %v7654
    %v8151 = vpack.c.b16 %v7663, %v7655
    %v8152 = vpack.c.b16 %v7664, %v7656
    %v8153 = vpack.c.b16 %v7665, %v7657
    %v8154 = vpack.c.b16 %v7666, %v7658
    %v8155 = vpack.c.b16 %v7675, %v7667
    %v8156 = vpack.c.b16 %v7676, %v7668
    %v8157 = vpack.c.b16 %v7677, %v7669
    %v8158 = vpack.c.b16 %v7678, %v7670
    %v8159 = vpack.c.b16 %v7679, %v7671
    %v8160 = vpack.c.b16 %v7680, %v7672
    %v8161 = vpack.c.b16 %v7681, %v7673
    %v8162 = vpack.c.b16 %v7682, %v7674
    %v8163 = vpack.c.b16 %v7691, %v7683
    %v8164 = vpack.c.b16 %v7692, %v7684
    %v8165 = vpack.c.b16 %v7693, %v7685
    %v8166 = vpack.c.b16 %v7694, %v7686
    %v8167 = vpack.c.b16 %v7695, %v7687
    %v8168 = vpack.c.b16 %v7696, %v7688
    %v8169 = vpack.c.b16 %v7697, %v7689
    %v8170 = vpack.c.b16 %v7698, %v7690
    %v8171 = vpack.c.b16 %v7707, %v7699
    %v8172 = vpack.c.b16 %v7708, %v7700
    %v8173 = vpack.c.b16 %v7709, %v7701
    %v8174 = vpack.c.b16 %v7710, %v7702
    %v8175 = vpack.c.b16 %v7711, %v7703
    %v8176 = vpack.c.b16 %v7712, %v7704
    %v8177 = vpack.c.b16 %v7713, %v7705
    %v8178 = vpack.c.b16 %v7714, %v7706
    %v8179 = vpack.c.b16 %v7723, %v7715
    %v8180 = vpack.c.b16 %v7724, %v7716
    %v8181 = vpack.c.b16 %v7725, %v7717
    %v8182 = vpack.c.b16 %v7726, %v7718
    %v8183 = vpack.c.b16 %v7727, %v7719
    %v8184 = vpack.c.b16 %v7728, %v7720
    %v8185 = vpack.c.b16 %v7729, %v7721
    %v8186 = vpack.c.b16 %v7730, %v7722
    %v8187 = vpack.c.b16 %v7739, %v7731
    %v8188 = vpack.c.b16 %v7740, %v7732
    %v8189 = vpack.c.b16 %v7741, %v7733
    %v8190 = vpack.c.b16 %v7742, %v7734
    %v8191 = vpack.c.b16 %v7743, %v7735
    %v8192 = vpack.c.b16 %v7744, %v7736
    %v8193 = vpack.c.b16 %v7745, %v7737
    %v8194 = vpack.c.b16 %v7746, %v7738
    %v8195 = vpack.c.b16 %v7755, %v7747
    %v8196 = vpack.c.b16 %v7756, %v7748
    %v8197 = vpack.c.b16 %v7757, %v7749
    %v8198 = vpack.c.b16 %v7758, %v7750
    %v8199 = vpack.c.b16 %v7759, %v7751
    %v8200 = vpack.c.b16 %v7760, %v7752
    %v8201 = vpack.c.b16 %v7761, %v7753
    %v8202 = vpack.c.b16 %v7762, %v7754
    %v8203 = vpack.c.b16 %v7771, %v7763
    %v8204 = vpack.c.b16 %v7772, %v7764
    %v8205 = vpack.c.b16 %v7773, %v7765
    %v8206 = vpack.c.b16 %v7774, %v7766
    %v8207 = vpack.c.b16 %v7775, %v7767
    %v8208 = vpack.c.b16 %v7776, %v7768
    %v8209 = vpack.c.b16 %v7777, %v7769
    %v8210 = vpack.c.b16 %v7778, %v7770
    %v8211 = vpack.c.b16 %v7787, %v7779
    %v8212 = vpack.c.b16 %v7788, %v7780
    %v8213 = vpack.c.b16 %v7789, %v7781
    %v8214 = vpack.c.b16 %v7790, %v7782
    %v8215 = vpack.c.b16 %v7791, %v7783
    %v8216 = vpack.c.b16 %v7792, %v7784
    %v8217 = vpack.c.b16 %v7793, %v7785
    %v8218 = vpack.c.b16 %v7794, %v7786
    %v8219 = vpack.c.b16 %v7803, %v7795
    %v8220 = vpack.c.b16 %v7804, %v7796
    %v8221 = vpack.c.b16 %v7805, %v7797
    %v8222 = vpack.c.b16 %v7806, %v7798
    %v8223 = vpack.c.b16 %v7807, %v7799
    %v8224 = vpack.c.b16 %v7808, %v7800
    %v8225 = vpack.c.b16 %v7809, %v7801
    %v8226 = vpack.c.b16 %v7810, %v7802
    %v8227 = vpack.c.b16 %v7819, %v7811
    %v8228 = vpack.c.b16 %v7820, %v7812
    %v8229 = vpack.c.b16 %v7821, %v7813
    %v8230 = vpack.c.b16 %v7822, %v7814
    %v8231 = vpack.c.b16 %v7823, %v7815
    %v8232 = vpack.c.b16 %v7824, %v7816
    %v8233 = vpack.c.b16 %v7825, %v7817
    %v8234 = vpack.c.b16 %v7826, %v7818
    %v8235 = vpack.c.b16 %v7835, %v7827
    %v8236 = vpack.c.b16 %v7836, %v7828
    %v8237 = vpack.c.b16 %v7837, %v7829
    %v8238 = vpack.c.b16 %v7838, %v7830
    %v8239 = vpack.c.b16 %v7839, %v7831
    %v8240 = vpack.c.b16 %v7840, %v7832
    %v8241 = vpack.c.b16 %v7841, %v7833
    %v8242 = vpack.c.b16 %v7842, %v7834
    %v8243 = vpack.c.b16 %v7851, %v7843
    %v8244 = vpack.c.b16 %v7852, %v7844
    %v8245 = vpack.c.b16 %v7853, %v7845
    %v8246 = vpack.c.b16 %v7854, %v7846
    %v8247 = vpack.c.b16 %v7855, %v7847
    %v8248 = vpack.c.b16 %v7856, %v7848
    %v8249 = vpack.c.b16 %v7857, %v7849
    %v8250 = vpack.c.b16 %v7858, %v7850
    %v8251 = vpack.c.b16 %v7867, %v7859
    %v8252 = vpack.c.b16 %v7868, %v7860
    %v8253 = vpack.c.b16 %v7869, %v7861
    %v8254 = vpack.c.b16 %v7870, %v7862
    %v8255 = vpack.c.b16 %v7871, %v7863
    %v8256 = vpack.c.b16 %v7872, %v7864
    %v8257 = vpack.c.b16 %v7873, %v7865
    %v8258 = vpack.c.b16 %v7874, %v7866
    %v8259 = vpack.c.b16 %v7883, %v7875
    %v8260 = vpack.c.b16 %v7884, %v7876
    %v8261 = vpack.c.b16 %v7885, %v7877
    %v8262 = vpack.c.b16 %v7886, %v7878
    %v8263 = vpack.c.b16 %v7887, %v7879
    %v8264 = vpack.c.b16 %v7888, %v7880
    %v8265 = vpack.c.b16 %v7889, %v7881
    %v8266 = vpack.c.b16 %v7890, %v7882
    %v8267 = vpack.c.b16 %v7899, %v7891
    %v8268 = vpack.c.b16 %v7900, %v7892
    %v8269 = vpack.c.b16 %v7901, %v7893
    %v8270 = vpack.c.b16 %v7902, %v7894
    %v8271 = vpack.c.b16 %v7903, %v7895
    %v8272 = vpack.c.b16 %v7904, %v7896
    %v8273 = vpack.c.b16 %v7905, %v7897
    %v8274 = vpack.c.b16 %v7906, %v7898
    %v8275 = vpack.c.b16 %v7915, %v7907
    %v8276 = vpack.c.b16 %v7916, %v7908
    %v8277 = vpack.c.b16 %v7917, %v7909
    %v8278 = vpack.c.b16 %v7918, %v7910
    %v8279 = vpack.c.b16 %v7919, %v7911
    %v8280 = vpack.c.b16 %v7920, %v7912
    %v8281 = vpack.c.b16 %v7921, %v7913
    %v8282 = vpack.c.b16 %v7922, %v7914
    %v8283 = vpack.c.b16 %v7931, %v7923
    %v8284 = vpack.c.b16 %v7932, %v7924
    %v8285 = vpack.c.b16 %v7933, %v7925
    %v8286 = vpack.c.b16 %v7934, %v7926
    %v8287 = vpack.c.b16 %v7935, %v7927
    %v8288 = vpack.c.b16 %v7936, %v7928
    %v8289 = vpack.c.b16 %v7937, %v7929
    %v8290 = vpack.c.b16 %v7938, %v7930
    %v8291 = vpack.c.b16 %v7947, %v7939
    %v8292 = vpack.c.b16 %v7948, %v7940
    %v8293 = vpack.c.b16 %v7949, %v7941
    %v8294 = vpack.c.b16 %v7950, %v7942
    %v8295 = vpack.c.b16 %v7951, %v7943
    %v8296 = vpack.c.b16 %v7952, %v7944
    %v8297 = vpack.c.b16 %v7953, %v7945
    %v8298 = vpack.c.b16 %v7954, %v7946
    %v8299 = vpack.c.b16 %v7963, %v7955
    %v8300 = vpack.c.b16 %v7964, %v7956
    %v8301 = vpack.c.b16 %v7965, %v7957
    %v8302 = vpack.c.b16 %v7966, %v7958
    %v8303 = vpack.c.b16 %v7967, %v7959
    %v8304 = vpack.c.b16 %v7968, %v7960
    %v8305 = vpack.c.b16 %v7969, %v7961
    %v8306 = vpack.c.b16 %v7970, %v7962
    %v8307 = vpack.c.b16 %v7979, %v7971
    %v8308 = vpack.c.b16 %v7980, %v7972
    %v8309 = vpack.c.b16 %v7981, %v7973
    %v8310 = vpack.c.b16 %v7982, %v7974
    %v8311 = vpack.c.b16 %v7983, %v7975
    %v8312 = vpack.c.b16 %v7984, %v7976
    %v8313 = vpack.c.b16 %v7985, %v7977
    %v8314 = vpack.c.b16 %v7986, %v7978
    %v8315 = vpack.c.b16 %v7995, %v7987
    %v8316 = vpack.c.b16 %v7996, %v7988
    %v8317 = vpack.c.b16 %v7997, %v7989
    %v8318 = vpack.c.b16 %v7998, %v7990
    %v8319 = vpack.c.b16 %v7999, %v7991
    %v8320 = vpack.c.b16 %v8000, %v7992
    %v8321 = vpack.c.b16 %v8001, %v7993
    %v8322 = vpack.c.b16 %v8002, %v7994
    %v8323 = vpack.c.b16 %v8011, %v8003
    %v8324 = vpack.c.b16 %v8012, %v8004
    %v8325 = vpack.c.b16 %v8013, %v8005
    %v8326 = vpack.c.b16 %v8014, %v8006
    %v8327 = vpack.c.b16 %v8015, %v8007
    %v8328 = vpack.c.b16 %v8016, %v8008
    %v8329 = vpack.c.b16 %v8017, %v8009
    %v8330 = vpack.c.b16 %v8018, %v8010
    %v8331 = vpack.c.b16 %v8027, %v8019
    %v8332 = vpack.c.b16 %v8028, %v8020
    %v8333 = vpack.c.b16 %v8029, %v8021
    %v8334 = vpack.c.b16 %v8030, %v8022
    %v8335 = vpack.c.b16 %v8031, %v8023
    %v8336 = vpack.c.b16 %v8032, %v8024
    %v8337 = vpack.c.b16 %v8033, %v8025
    %v8338 = vpack.c.b16 %v8034, %v8026
    %v8339 = vpack.c.b16 %v8043, %v8035
    %v8340 = vpack.c.b16 %v8044, %v8036
    %v8341 = vpack.c.b16 %v8045, %v8037
    %v8342 = vpack.c.b16 %v8046, %v8038
    %v8343 = vpack.c.b16 %v8047, %v8039
    %v8344 = vpack.c.b16 %v8048, %v8040
    %v8345 = vpack.c.b16 %v8049, %v8041
    %v8346 = vpack.c.b16 %v8050, %v8042
    %v8347 = vpack.c.b16 %v8059, %v8051
    %v8348 = vpack.c.b16 %v8060, %v8052
    %v8349 = vpack.c.b16 %v8061, %v8053
    %v8350 = vpack.c.b16 %v8062, %v8054
    %v8351 = vpack.c.b16 %v8063, %v8055
    %v8352 = vpack.c.b16 %v8064, %v8056
    %v8353 = vpack.c.b16 %v8065, %v8057
    %v8354 = vpack.c.b16 %v8066, %v8058
    %v8355 = vpack.c.b16 %v8075, %v8067
    %v8356 = vpack.c.b16 %v8076, %v8068
    %v8357 = vpack.c.b16 %v8077, %v8069
    %v8358 = vpack.c.b16 %v8078, %v8070
    %v8359 = vpack.c.b16 %v8079, %v8071
    %v8360 = vpack.c.b16 %v8080, %v8072
    %v8361 = vpack.c.b16 %v8081, %v8073
    %v8362 = vpack.c.b16 %v8082, %v8074
    %v8363 = vpack.c.b16 %v8091, %v8083
    %v8364 = vpack.c.b16 %v8092, %v8084
    %v8365 = vpack.c.b16 %v8093, %v8085
    %v8366 = vpack.c.b16 %v8094, %v8086
    %v8367 = vpack.c.b16 %v8095, %v8087
    %v8368 = vpack.c.b16 %v8096, %v8088
    %v8369 = vpack.c.b16 %v8097, %v8089
    %v8370 = vpack.c.b16 %v8098, %v8090
    %v8371 = vpack.c.b16 %v8107, %v8099
    %v8372 = vpack.c.b16 %v8108, %v8100
    %v8373 = vpack.c.b16 %v8109, %v8101
    %v8374 = vpack.c.b16 %v8110, %v8102
    %v8375 = vpack.c.b16 %v8111, %v8103
    %v8376 = vpack.c.b16 %v8112, %v8104
    %v8377 = vpack.c.b16 %v8113, %v8105
    %v8378 = vpack.c.b16 %v8114, %v8106
    %v8379 = vpack.c.b16 %v8123, %v8115
    %v8380 = vpack.c.b16 %v8124, %v8116
    %v8381 = vpack.c.b16 %v8125, %v8117
    %v8382 = vpack.c.b16 %v8126, %v8118
    %v8383 = vpack.c.b16 %v8127, %v8119
    %v8384 = vpack.c.b16 %v8128, %v8120
    %v8385 = vpack.c.b16 %v8129, %v8121
    %v8386 = vpack.c.b16 %v8130, %v8122
    %8643 = vmatprep.subr.bf16.mxu0 %v8132
    %8644 = vmatpush1.bf16.msra.mxu0 %v8131
    %8645 = vmatprep.subr.bf16.mxu0 %v8140
    %8646 = vmatpush1.bf16.msra.mxu0 %v8139
    %8647 = vmatprep.subr.bf16.mxu0 %v8148
    %8648 = vmatpush1.bf16.msra.mxu0 %v8147
    %8649 = vmatprep.subr.bf16.mxu0 %v8156
    %8650 = vmatpush1.bf16.msra.mxu0 %v8155
    %8651 = vmatprep.subr.bf16.mxu0 %v8164
    %8652 = vmatpush1.bf16.msra.mxu0 %v8163
    %8653 = vmatprep.subr.bf16.mxu0 %v8172
    %8654 = vmatpush1.bf16.msra.mxu0 %v8171
    %8655 = vmatprep.subr.bf16.mxu0 %v8180
    %8656 = vmatpush1.bf16.msra.mxu0 %v8179
    %8657 = vmatprep.subr.bf16.mxu0 %v8188
    %8658 = vmatpush1.bf16.msra.mxu0 %v8187
    %8659 = vmatprep.subr.bf16.mxu0 %v8196
    %8660 = vmatpush1.bf16.msra.mxu0 %v8195
    %8661 = vmatprep.subr.bf16.mxu0 %v8204
    %8662 = vmatpush1.bf16.msra.mxu0 %v8203
    %8663 = vmatprep.subr.bf16.mxu0 %v8212
    %8664 = vmatpush1.bf16.msra.mxu0 %v8211
    %8665 = vmatprep.subr.bf16.mxu0 %v8220
    %8666 = vmatpush1.bf16.msra.mxu0 %v8219
    %8667 = vmatprep.subr.bf16.mxu0 %v8228
    %8668 = vmatpush1.bf16.msra.mxu0 %v8227
    %8669 = vmatprep.subr.bf16.mxu0 %v8236
    %8670 = vmatpush1.bf16.msra.mxu0 %v8235
    %8671 = vmatprep.subr.bf16.mxu0 %v8244
    %8672 = vmatpush1.bf16.msra.mxu0 %v8243
    %8673 = vmatprep.subr.bf16.mxu0 %v8252
    %8674 = vmatpush1.bf16.msra.mxu0 %v8251
    %8675 = vmatprep.mubr.bf16.mxu0 %v7103
    %8676 = vmatmul.mubr.bf16.gmra.mrb[0].mxu0 %v7102
    %v8677 = vpop.f32.mrb[0].mxu0
    %v8678 = vadd.f32 0.0, %v8677
    %v8679 = vpop.f32.mrb[0].mxu0
    %v8680 = vadd.f32 0.0, %v8679
    %v8681 = vpop.f32.mrb[0].mxu0
    %v8682 = vpop.f32.mrb[0].mxu0
    %8683 = vdwg.mxu0
    %8684 = vmatprep.subr.bf16.mxu0 %v8260
    %8685 = vmatpush1.bf16.msra.mxu0 %v8259
    %8686 = vmatprep.subr.bf16.mxu0 %v8268
    %8687 = vmatpush1.bf16.msra.mxu0 %v8267
    %8688 = vmatprep.subr.bf16.mxu0 %v8276
    %8689 = vmatpush1.bf16.msra.mxu0 %v8275
    %8690 = vmatprep.subr.bf16.mxu0 %v8284
    %8691 = vmatpush1.bf16.msra.mxu0 %v8283
    %8692 = vmatprep.subr.bf16.mxu0 %v8292
    %8693 = vmatpush1.bf16.msra.mxu0 %v8291
    %8694 = vmatprep.subr.bf16.mxu0 %v8300
    %8695 = vmatpush1.bf16.msra.mxu0 %v8299
    %8696 = vmatprep.subr.bf16.mxu0 %v8308
    %8697 = vmatpush1.bf16.msra.mxu0 %v8307
    %8698 = vmatprep.subr.bf16.mxu0 %v8316
    %8699 = vmatpush1.bf16.msra.mxu0 %v8315
    %8700 = vmatprep.subr.bf16.mxu0 %v8324
    %8701 = vmatpush1.bf16.msra.mxu0 %v8323
    %8702 = vmatprep.subr.bf16.mxu0 %v8332
    %8703 = vmatpush1.bf16.msra.mxu0 %v8331
    %8704 = vmatprep.subr.bf16.mxu0 %v8340
    %8705 = vmatpush1.bf16.msra.mxu0 %v8339
    %8706 = vmatprep.subr.bf16.mxu0 %v8348
    %8707 = vmatpush1.bf16.msra.mxu0 %v8347
    %8708 = vmatprep.subr.bf16.mxu0 %v8356
    %8709 = vmatpush1.bf16.msra.mxu0 %v8355
    %8710 = vmatprep.subr.bf16.mxu0 %v8364
    %8711 = vmatpush1.bf16.msra.mxu0 %v8363
    %8712 = vmatprep.subr.bf16.mxu0 %v8372
    %8713 = vmatpush1.bf16.msra.mxu0 %v8371
    %8714 = vmatprep.subr.bf16.mxu0 %v8380
    %8715 = vmatpush1.bf16.msra.mxu0 %v8379
    %8716 = vmatprep.mubr.bf16.mxu0 %v7105
    %8717 = vmatmul.mubr.bf16.gmra.mrb[0].mxu0 %v7104
    %v8718 = vpop.f32.mrb[0].mxu0
    %v8719 = vadd.f32 %v8678, %v8718
    %v8720 = vpop.f32.mrb[0].mxu0
    %v8721 = vadd.f32 %v8680, %v8720
    %v8722 = vpop.f32.mrb[0].mxu0
    %v8723 = vpop.f32.mrb[0].mxu0
    %8724 = vdwg.mxu0
    %8725 = vmatprep.subr.bf16.mxu0 %v8134
    %8726 = vmatpush1.bf16.msra.mxu0 %v8133
    %8727 = vmatprep.subr.bf16.mxu0 %v8142
    %8728 = vmatpush1.bf16.msra.mxu0 %v8141
    %8729 = vmatprep.subr.bf16.mxu0 %v8150
    %8730 = vmatpush1.bf16.msra.mxu0 %v8149
    %8731 = vmatprep.subr.bf16.mxu0 %v8158
    %8732 = vmatpush1.bf16.msra.mxu0 %v8157
    %8733 = vmatprep.subr.bf16.mxu0 %v8166
    %8734 = vmatpush1.bf16.msra.mxu0 %v8165
    %8735 = vmatprep.subr.bf16.mxu0 %v8174
    %8736 = vmatpush1.bf16.msra.mxu0 %v8173
    %8737 = vmatprep.subr.bf16.mxu0 %v8182
    %8738 = vmatpush1.bf16.msra.mxu0 %v8181
    %8739 = vmatprep.subr.bf16.mxu0 %v8190
    %8740 = vmatpush1.bf16.msra.mxu0 %v8189
    %8741 = vmatprep.subr.bf16.mxu0 %v8198
    %8742 = vmatpush1.bf16.msra.mxu0 %v8197
    %8743 = vmatprep.subr.bf16.mxu0 %v8206
    %8744 = vmatpush1.bf16.msra.mxu0 %v8205
    %8745 = vmatprep.subr.bf16.mxu0 %v8214
    %8746 = vmatpush1.bf16.msra.mxu0 %v8213
    %8747 = vmatprep.subr.bf16.mxu0 %v8222
    %8748 = vmatpush1.bf16.msra.mxu0 %v8221
    %8749 = vmatprep.subr.bf16.mxu0 %v8230
    %8750 = vmatpush1.bf16.msra.mxu0 %v8229
    %8751 = vmatprep.subr.bf16.mxu0 %v8238
    %8752 = vmatpush1.bf16.msra.mxu0 %v8237
    %8753 = vmatprep.subr.bf16.mxu0 %v8246
    %8754 = vmatpush1.bf16.msra.mxu0 %v8245
    %8755 = vmatprep.subr.bf16.mxu0 %v8254
    %8756 = vmatpush1.bf16.msra.mxu0 %v8253
    %8757 = vmatprep.mubr.bf16.mxu0 %v7103
    %8758 = vmatmul.mubr.bf16.gmra.mrb[0].mxu0 %v7102
    %v8759 = vpop.f32.mrb[0].mxu0
    %v8760 = vadd.f32 0.0, %v8759
    %v8761 = vpop.f32.mrb[0].mxu0
    %v8762 = vadd.f32 0.0, %v8761
    %v8763 = vpop.f32.mrb[0].mxu0
    %v8764 = vpop.f32.mrb[0].mxu0
    %8765 = vdwg.mxu0
    %8766 = vmatprep.subr.bf16.mxu0 %v8262
    %8767 = vmatpush1.bf16.msra.mxu0 %v8261
    %8768 = vmatprep.subr.bf16.mxu0 %v8270
    %8769 = vmatpush1.bf16.msra.mxu0 %v8269
    %8770 = vmatprep.subr.bf16.mxu0 %v8278
    %8771 = vmatpush1.bf16.msra.mxu0 %v8277
    %8772 = vmatprep.subr.bf16.mxu0 %v8286
    %8773 = vmatpush1.bf16.msra.mxu0 %v8285
    %8774 = vmatprep.subr.bf16.mxu0 %v8294
    %8775 = vmatpush1.bf16.msra.mxu0 %v8293
    %8776 = vmatprep.subr.bf16.mxu0 %v8302
    %8777 = vmatpush1.bf16.msra.mxu0 %v8301
    %8778 = vmatprep.subr.bf16.mxu0 %v8310
    %8779 = vmatpush1.bf16.msra.mxu0 %v8309
    %8780 = vmatprep.subr.bf16.mxu0 %v8318
    %8781 = vmatpush1.bf16.msra.mxu0 %v8317
    %8782 = vmatprep.subr.bf16.mxu0 %v8326
    %8783 = vmatpush1.bf16.msra.mxu0 %v8325
    %8784 = vmatprep.subr.bf16.mxu0 %v8334
    %8785 = vmatpush1.bf16.msra.mxu0 %v8333
    %8786 = vmatprep.subr.bf16.mxu0 %v8342
    %8787 = vmatpush1.bf16.msra.mxu0 %v8341
    %8788 = vmatprep.subr.bf16.mxu0 %v8350
    %8789 = vmatpush1.bf16.msra.mxu0 %v8349
    %8790 = vmatprep.subr.bf16.mxu0 %v8358
    %8791 = vmatpush1.bf16.msra.mxu0 %v8357
    %8792 = vmatprep.subr.bf16.mxu0 %v8366
    %8793 = vmatpush1.bf16.msra.mxu0 %v8365
    %8794 = vmatprep.subr.bf16.mxu0 %v8374
    %8795 = vmatpush1.bf16.msra.mxu0 %v8373
    %8796 = vmatprep.subr.bf16.mxu0 %v8382
    %8797 = vmatpush1.bf16.msra.mxu0 %v8381
    %8798 = vmatprep.mubr.bf16.mxu0 %v7105
    %8799 = vmatmul.mubr.bf16.gmra.mrb[0].mxu0 %v7104
    %v8800 = vpop.f32.mrb[0].mxu0
    %v8801 = vadd.f32 %v8760, %v8800
    %v8802 = vpop.f32.mrb[0].mxu0
    %v8803 = vadd.f32 %v8762, %v8802
    %v8804 = vpop.f32.mrb[0].mxu0
    %v8805 = vpop.f32.mrb[0].mxu0
    %8806 = vdwg.mxu0
    %8807 = vmatprep.subr.bf16.mxu0 %v8136
    %8808 = vmatpush1.bf16.msra.mxu0 %v8135
    %8809 = vmatprep.subr.bf16.mxu0 %v8144
    %8810 = vmatpush1.bf16.msra.mxu0 %v8143
    %8811 = vmatprep.subr.bf16.mxu0 %v8152
    %8812 = vmatpush1.bf16.msra.mxu0 %v8151
    %8813 = vmatprep.subr.bf16.mxu0 %v8160
    %8814 = vmatpush1.bf16.msra.mxu0 %v8159
    %8815 = vmatprep.subr.bf16.mxu0 %v8168
    %8816 = vmatpush1.bf16.msra.mxu0 %v8167
    %8817 = vmatprep.subr.bf16.mxu0 %v8176
    %8818 = vmatpush1.bf16.msra.mxu0 %v8175
    %8819 = vmatprep.subr.bf16.mxu0 %v8184
    %8820 = vmatpush1.bf16.msra.mxu0 %v8183
    %8821 = vmatprep.subr.bf16.mxu0 %v8192
    %8822 = vmatpush1.bf16.msra.mxu0 %v8191
    %8823 = vmatprep.subr.bf16.mxu0 %v8200
    %8824 = vmatpush1.bf16.msra.mxu0 %v8199
    %8825 = vmatprep.subr.bf16.mxu0 %v8208
    %8826 = vmatpush1.bf16.msra.mxu0 %v8207
    %8827 = vmatprep.subr.bf16.mxu0 %v8216
    %8828 = vmatpush1.bf16.msra.mxu0 %v8215
    %8829 = vmatprep.subr.bf16.mxu0 %v8224
    %8830 = vmatpush1.bf16.msra.mxu0 %v8223
    %8831 = vmatprep.subr.bf16.mxu0 %v8232
    %8832 = vmatpush1.bf16.msra.mxu0 %v8231
    %8833 = vmatprep.subr.bf16.mxu0 %v8240
    %8834 = vmatpush1.bf16.msra.mxu0 %v8239
    %8835 = vmatprep.subr.bf16.mxu0 %v8248
    %8836 = vmatpush1.bf16.msra.mxu0 %v8247
    %8837 = vmatprep.subr.bf16.mxu0 %v8256
    %8838 = vmatpush1.bf16.msra.mxu0 %v8255
    %8839 = vmatprep.mubr.bf16.mxu0 %v7103
    %8840 = vmatmul.mubr.bf16.gmra.mrb[0].mxu0 %v7102
    %v8841 = vpop.f32.mrb[0].mxu0
    %v8842 = vadd.f32 0.0, %v8841
    %v8843 = vpop.f32.mrb[0].mxu0
    %v8844 = vadd.f32 0.0, %v8843
    %v8845 = vpop.f32.mrb[0].mxu0
    %v8846 = vpop.f32.mrb[0].mxu0
    %8847 = vdwg.mxu0
    %8848 = vmatprep.subr.bf16.mxu0 %v8264
    %8849 = vmatpush1.bf16.msra.mxu0 %v8263
    %8850 = vmatprep.subr.bf16.mxu0 %v8272
    %8851 = vmatpush1.bf16.msra.mxu0 %v8271
    %8852 = vmatprep.subr.bf16.mxu0 %v8280
    %8853 = vmatpush1.bf16.msra.mxu0 %v8279
    %8854 = vmatprep.subr.bf16.mxu0 %v8288
    %8855 = vmatpush1.bf16.msra.mxu0 %v8287
    %8856 = vmatprep.subr.bf16.mxu0 %v8296
    %8857 = vmatpush1.bf16.msra.mxu0 %v8295
    %8858 = vmatprep.subr.bf16.mxu0 %v8304
    %8859 = vmatpush1.bf16.msra.mxu0 %v8303
    %8860 = vmatprep.subr.bf16.mxu0 %v8312
    %8861 = vmatpush1.bf16.msra.mxu0 %v8311
    %8862 = vmatprep.subr.bf16.mxu0 %v8320
    %8863 = vmatpush1.bf16.msra.mxu0 %v8319
    %8864 = vmatprep.subr.bf16.mxu0 %v8328
    %8865 = vmatpush1.bf16.msra.mxu0 %v8327
    %8866 = vmatprep.subr.bf16.mxu0 %v8336
    %8867 = vmatpush1.bf16.msra.mxu0 %v8335
    %8868 = vmatprep.subr.bf16.mxu0 %v8344
    %8869 = vmatpush1.bf16.msra.mxu0 %v8343
    %8870 = vmatprep.subr.bf16.mxu0 %v8352
    %8871 = vmatpush1.bf16.msra.mxu0 %v8351
    %8872 = vmatprep.subr.bf16.mxu0 %v8360
    %8873 = vmatpush1.bf16.msra.mxu0 %v8359
    %8874 = vmatprep.subr.bf16.mxu0 %v8368
    %8875 = vmatpush1.bf16.msra.mxu0 %v8367
    %8876 = vmatprep.subr.bf16.mxu0 %v8376
    %8877 = vmatpush1.bf16.msra.mxu0 %v8375
    %8878 = vmatprep.subr.bf16.mxu0 %v8384
    %8879 = vmatpush1.bf16.msra.mxu0 %v8383
    %8880 = vmatprep.mubr.bf16.mxu0 %v7105
    %8881 = vmatmul.mubr.bf16.gmra.mrb[0].mxu0 %v7104
    %v8882 = vpop.f32.mrb[0].mxu0
    %v8883 = vadd.f32 %v8842, %v8882
    %v8884 = vpop.f32.mrb[0].mxu0
    %v8885 = vadd.f32 %v8844, %v8884
    %v8886 = vpop.f32.mrb[0].mxu0
    %v8887 = vpop.f32.mrb[0].mxu0
    %8888 = vdwg.mxu0
    %8889 = vmatprep.subr.bf16.mxu0 %v8138
    %8890 = vmatpush1.bf16.msra.mxu0 %v8137
    %8891 = vmatprep.subr.bf16.mxu0 %v8146
    %8892 = vmatpush1.bf16.msra.mxu0 %v8145
    %8893 = vmatprep.subr.bf16.mxu0 %v8154
    %8894 = vmatpush1.bf16.msra.mxu0 %v8153
    %8895 = vmatprep.subr.bf16.mxu0 %v8162
    %8896 = vmatpush1.bf16.msra.mxu0 %v8161
    %8897 = vmatprep.subr.bf16.mxu0 %v8170
    %8898 = vmatpush1.bf16.msra.mxu0 %v8169
    %8899 = vmatprep.subr.bf16.mxu0 %v8178
    %8900 = vmatpush1.bf16.msra.mxu0 %v8177
    %8901 = vmatprep.subr.bf16.mxu0 %v8186
    %8902 = vmatpush1.bf16.msra.mxu0 %v8185
    %8903 = vmatprep.subr.bf16.mxu0 %v8194
    %8904 = vmatpush1.bf16.msra.mxu0 %v8193
    %8905 = vmatprep.subr.bf16.mxu0 %v8202
    %8906 = vmatpush1.bf16.msra.mxu0 %v8201
    %8907 = vmatprep.subr.bf16.mxu0 %v8210
    %8908 = vmatpush1.bf16.msra.mxu0 %v8209
    %8909 = vmatprep.subr.bf16.mxu0 %v8218
    %8910 = vmatpush1.bf16.msra.mxu0 %v8217
    %8911 = vmatprep.subr.bf16.mxu0 %v8226
    %8912 = vmatpush1.bf16.msra.mxu0 %v8225
    %8913 = vmatprep.subr.bf16.mxu0 %v8234
    %8914 = vmatpush1.bf16.msra.mxu0 %v8233
    %8915 = vmatprep.subr.bf16.mxu0 %v8242
    %8916 = vmatpush1.bf16.msra.mxu0 %v8241
    %8917 = vmatprep.subr.bf16.mxu0 %v8250
    %8918 = vmatpush1.bf16.msra.mxu0 %v8249
    %8919 = vmatprep.subr.bf16.mxu0 %v8258
    %8920 = vmatpush1.bf16.msra.mxu0 %v8257
    %8921 = vmatprep.mubr.bf16.mxu0 %v7103
    %8922 = vmatmul.mubr.bf16.gmra.mrb[0].mxu0 %v7102
    %v8923 = vpop.f32.mrb[0].mxu0
    %v8924 = vadd.f32 0.0, %v8923
    %v8925 = vpop.f32.mrb[0].mxu0
    %v8926 = vadd.f32 0.0, %v8925
    %v8927 = vpop.f32.mrb[0].mxu0
    %v8928 = vpop.f32.mrb[0].mxu0
    %8929 = vdwg.mxu0
    %8930 = vmatprep.subr.bf16.mxu0 %v8266
    %8931 = vmatpush1.bf16.msra.mxu0 %v8265
    %8932 = vmatprep.subr.bf16.mxu0 %v8274
    %8933 = vmatpush1.bf16.msra.mxu0 %v8273
    %8934 = vmatprep.subr.bf16.mxu0 %v8282
    %8935 = vmatpush1.bf16.msra.mxu0 %v8281
    %8936 = vmatprep.subr.bf16.mxu0 %v8290
    %8937 = vmatpush1.bf16.msra.mxu0 %v8289
    %8938 = vmatprep.subr.bf16.mxu0 %v8298
    %8939 = vmatpush1.bf16.msra.mxu0 %v8297
    %8940 = vmatprep.subr.bf16.mxu0 %v8306
    %8941 = vmatpush1.bf16.msra.mxu0 %v8305
    %8942 = vmatprep.subr.bf16.mxu0 %v8314
    %8943 = vmatpush1.bf16.msra.mxu0 %v8313
    %8944 = vmatprep.subr.bf16.mxu0 %v8322
    %8945 = vmatpush1.bf16.msra.mxu0 %v8321
    %8946 = vmatprep.subr.bf16.mxu0 %v8330
    %8947 = vmatpush1.bf16.msra.mxu0 %v8329
    %8948 = vmatprep.subr.bf16.mxu0 %v8338
    %8949 = vmatpush1.bf16.msra.mxu0 %v8337
    %8950 = vmatprep.subr.bf16.mxu0 %v8346
    %8951 = vmatpush1.bf16.msra.mxu0 %v8345
    %8952 = vmatprep.subr.bf16.mxu0 %v8354
    %8953 = vmatpush1.bf16.msra.mxu0 %v8353
    %8954 = vmatprep.subr.bf16.mxu0 %v8362
    %8955 = vmatpush1.bf16.msra.mxu0 %v8361
    %8956 = vmatprep.subr.bf16.mxu0 %v8370
    %8957 = vmatpush1.bf16.msra.mxu0 %v8369
    %8958 = vmatprep.subr.bf16.mxu0 %v8378
    %8959 = vmatpush1.bf16.msra.mxu0 %v8377
    %8960 = vmatprep.subr.bf16.mxu0 %v8386
    %8961 = vmatpush1.bf16.msra.mxu0 %v8385
    %8962 = vmatprep.mubr.bf16.mxu0 %v7105
    %8963 = vmatmul.mubr.bf16.gmra.mrb[0].mxu0 %v7104
    %v8964 = vpop.f32.mrb[0].mxu0
    %v8965 = vadd.f32 %v8924, %v8964
    %v8966 = vpop.f32.mrb[0].mxu0
    %v8967 = vadd.f32 %v8926, %v8966
    %v8968 = vpop.f32.mrb[0].mxu0
    %v8969 = vpop.f32.mrb[0].mxu0
    %8970 = vdwg.mxu0
    %v8971 = vpack.c.bf16 %v8719, %v8719
    %v8972 = vpack.c.bf16 %v8721, %v8721
    %v8973 = vpack.c.bf16 %v8801, %v8801
    %v8974 = vpack.c.bf16 %v8803, %v8803
    %v8975 = vpack.c.bf16 %v8883, %v8883
    %v8976 = vpack.c.bf16 %v8885, %v8885
    %v8977 = vpack.c.bf16 %v8965, %v8965
    %v8978 = vpack.c.bf16 %v8967, %v8967
    %v8980 = vlaneseq
    %v8981 = vshrl.u32 %v8980, 7
    %v8982 = vsub.s32 0, %v8981
    %v8983 = vrot.slane %v7362, %v8982
    %v8984 = vlaneseq
    %v8985 = vshrl.u32 %v8984, 7
    %v8986 = vsub.s32 1, %v8985
    %v8987 = vrot.slane %v7362, %v8986
    %v8988 = vlaneseq
    %v8989 = vshrl.u32 %v8988, 7
    %v8990 = vsub.s32 2, %v8989
    %v8991 = vrot.slane %v7362, %v8990
    %v8992 = vlaneseq
    %v8993 = vshrl.u32 %v8992, 7
    %v8994 = vsub.s32 3, %v8993
    %v8995 = vrot.slane %v7362, %v8994
    %v8996 = vlaneseq
    %v8997 = vshrl.u32 %v8996, 7
    %v8998 = vsub.s32 4, %v8997
    %v8999 = vrot.slane %v7362, %v8998
    %v9000 = vlaneseq
    %v9001 = vshrl.u32 %v9000, 7
    %v9002 = vsub.s32 5, %v9001
    %v9003 = vrot.slane %v7362, %v9002
    %v9004 = vlaneseq
    %v9005 = vshrl.u32 %v9004, 7
    %v9006 = vsub.s32 6, %v9005
    %v9007 = vrot.slane %v7362, %v9006
    %v9008 = vlaneseq
    %v9009 = vshrl.u32 %v9008, 7
    %v9010 = vsub.s32 7, %v9009
    %v9011 = vrot.slane %v7362, %v9010
    %v9020 = vpack.c.bf16 %v8983, %v8983
    %v9021 = vpack.c.bf16 %v8987, %v8987
    %v9022 = vpack.c.bf16 %v8991, %v8991
    %v9023 = vpack.c.bf16 %v8995, %v8995
    %v9024 = vpack.c.bf16 %v8999, %v8999
    %v9025 = vpack.c.bf16 %v9003, %v9003
    %v9026 = vpack.c.bf16 %v9007, %v9007
    %v9027 = vpack.c.bf16 %v9011, %v9011
    %v9029 = vpack.i.b16 %v9020, %v9020
    %v9031 = vlaneseq
    %v9032 = vshrl.u32 %v9031, 7
    %v9033 = vsub.s32 0, %v9032
    %v9034 = vrot.slane %v9029, %v9033
    %v9036 = vpack.i.b16 %v9021, %v9021
    %v9038 = vlaneseq
    %v9039 = vshrl.u32 %v9038, 7
    %v9040 = vsub.s32 0, %v9039
    %v9041 = vrot.slane %v9036, %v9040
    %v9043 = vpack.i.b16 %v9022, %v9022
    %v9045 = vlaneseq
    %v9046 = vshrl.u32 %v9045, 7
    %v9047 = vsub.s32 0, %v9046
    %v9048 = vrot.slane %v9043, %v9047
    %v9050 = vpack.i.b16 %v9023, %v9023
    %v9052 = vlaneseq
    %v9053 = vshrl.u32 %v9052, 7
    %v9054 = vsub.s32 0, %v9053
    %v9055 = vrot.slane %v9050, %v9054
    %v9057 = vpack.i.b16 %v9024, %v9024
    %v9059 = vlaneseq
    %v9060 = vshrl.u32 %v9059, 7
    %v9061 = vsub.s32 0, %v9060
    %v9062 = vrot.slane %v9057, %v9061
    %v9064 = vpack.i.b16 %v9025, %v9025
    %v9066 = vlaneseq
    %v9067 = vshrl.u32 %v9066, 7
    %v9068 = vsub.s32 0, %v9067
    %v9069 = vrot.slane %v9064, %v9068
    %v9071 = vpack.i.b16 %v9026, %v9026
    %v9073 = vlaneseq
    %v9074 = vshrl.u32 %v9073, 7
    %v9075 = vsub.s32 0, %v9074
    %v9076 = vrot.slane %v9071, %v9075
    %v9078 = vpack.i.b16 %v9027, %v9027
    %v9080 = vlaneseq
    %v9081 = vshrl.u32 %v9080, 7
    %v9082 = vsub.s32 0, %v9081
    %v9083 = vrot.slane %v9078, %v9082
    %v9084 = vadd.bf16 %v8971, %v9034
    %v9085 = vadd.bf16 %v8972, %v9041
    %v9086 = vadd.bf16 %v8973, %v9048
    %v9087 = vadd.bf16 %v8974, %v9055
    %v9088 = vadd.bf16 %v8975, %v9062
    %v9089 = vadd.bf16 %v8976, %v9069
    %v9090 = vadd.bf16 %v8977, %v9076
    %v9091 = vadd.bf16 %v8978, %v9083
    %v9092 = vmul.bf16 %v9084, 1009007652
    %v9093 = vmul.bf16 %v9085, 1009007652
    %v9094 = vmul.bf16 %v9086, 1009007652
    %v9095 = vmul.bf16 %v9087, 1009007652
    %v9096 = vmul.bf16 %v9088, 1009007652
    %v9097 = vmul.bf16 %v9089, 1009007652
    %v9098 = vmul.bf16 %v9090, 1009007652
    %v9099 = vmul.bf16 %v9091, 1009007652
    %v9100 = vmax.bf16 %v9084, %v9092
    %v9101 = vmax.bf16 %v9085, %v9093
    %v9102 = vmax.bf16 %v9086, %v9094
    %v9103 = vmax.bf16 %v9087, %v9095
    %v9104 = vmax.bf16 %v9088, %v9096
    %v9105 = vmax.bf16 %v9089, %v9097
    %v9106 = vmax.bf16 %v9090, %v9098
    %v9107 = vmax.bf16 %v9091, %v9099
    %v9108 = vld [vmem:[#allocation26] sm:$0xff]
    %v9109 = vld [vmem:[#allocation26 + $0x8] sm:$0xff]
    %v9110 = vld [vmem:[#allocation26 + $0x10] sm:$0xff]
    %v9111 = vld [vmem:[#allocation26 + $0x18] sm:$0xf]
    %v9112 = vld [vmem:[#allocation26 + $0x1c] sm:$0xff]
    %v9113 = vld [vmem:[#allocation26 + $0x24] sm:$0xff]
    %v9114 = vld [vmem:[#allocation26 + $0x2c] sm:$0xff]
    %v9115 = vld [vmem:[#allocation26 + $0x34] sm:$0xf]
    %v9116 = vld [vmem:[#allocation26 + $0x38] sm:$0xff]
    %v9117 = vld [vmem:[#allocation26 + $0x40] sm:$0xff]
    %v9118 = vld [vmem:[#allocation26 + $0x48] sm:$0xff]
    %v9119 = vld [vmem:[#allocation26 + $0x50] sm:$0xf]
    %v9120 = vld [vmem:[#allocation26 + $0x54] sm:$0xff]
    %v9121 = vld [vmem:[#allocation26 + $0x5c] sm:$0xff]
    %v9122 = vld [vmem:[#allocation26 + $0x64] sm:$0xff]
    %v9123 = vld [vmem:[#allocation26 + $0x6c] sm:$0xf]
    %v9124 = vld [vmem:[#allocation26 + $0x70] sm:$0xff]
    %v9125 = vld [vmem:[#allocation26 + $0x78] sm:$0xff]
    %v9126 = vld [vmem:[#allocation26 + $0x80] sm:$0xff]
    %v9127 = vld [vmem:[#allocation26 + $0x88] sm:$0xf]
    %v9128 = vld [vmem:[#allocation26 + $0x8c] sm:$0xff]
    %v9129 = vld [vmem:[#allocation26 + $0x94] sm:$0xff]
    %v9130 = vld [vmem:[#allocation26 + $0x9c] sm:$0xff]
    %v9131 = vld [vmem:[#allocation26 + $0xa4] sm:$0xf]
    %v9132 = vld [vmem:[#allocation26 + $0xa8] sm:$0xff]
    %v9133 = vld [vmem:[#allocation26 + $0xb0] sm:$0xff]
    %v9134 = vld [vmem:[#allocation26 + $0xb8] sm:$0xff]
    %v9135 = vld [vmem:[#allocation26 + $0xc0] sm:$0xf]
    %v9136 = vld [vmem:[#allocation26 + $0xc4] sm:$0xff]
    %v9137 = vld [vmem:[#allocation26 + $0xcc] sm:$0xff]
    %v9138 = vld [vmem:[#allocation26 + $0xd4] sm:$0xff]
    %v9139 = vld [vmem:[#allocation26 + $0xdc] sm:$0xf]
    %v9140 = vld [vmem:[#allocation26 + $0xe0] sm:$0xff]
    %v9141 = vld [vmem:[#allocation26 + $0xe8] sm:$0xff]
    %v9142 = vld [vmem:[#allocation26 + $0xf0] sm:$0xff]
    %v9143 = vld [vmem:[#allocation26 + $0xf8] sm:$0xf]
    %v9144 = vld [vmem:[#allocation26 + $0xfc] sm:$0xff]
    %v9145 = vld [vmem:[#allocation26 + $0x104] sm:$0xff]
    %v9146 = vld [vmem:[#allocation26 + $0x10c] sm:$0xff]
    %v9147 = vld [vmem:[#allocation26 + $0x114] sm:$0xf]
    %v9148 = vld [vmem:[#allocation26 + $0x118] sm:$0xff]
    %v9149 = vld [vmem:[#allocation26 + $0x120] sm:$0xff]
    %v9150 = vld [vmem:[#allocation26 + $0x128] sm:$0xff]
    %v9151 = vld [vmem:[#allocation26 + $0x130] sm:$0xf]
    %v9152 = vld [vmem:[#allocation26 + $0x134] sm:$0xff]
    %v9153 = vld [vmem:[#allocation26 + $0x13c] sm:$0xff]
    %v9154 = vld [vmem:[#allocation26 + $0x144] sm:$0xff]
    %v9155 = vld [vmem:[#allocation26 + $0x14c] sm:$0xf]
    %v9156 = vld [vmem:[#allocation26 + $0x150] sm:$0xff]
    %v9157 = vld [vmem:[#allocation26 + $0x158] sm:$0xff]
    %v9158 = vld [vmem:[#allocation26 + $0x160] sm:$0xff]
    %v9159 = vld [vmem:[#allocation26 + $0x168] sm:$0xf]
    %v9160 = vld [vmem:[#allocation26 + $0x16c] sm:$0xff]
    %v9161 = vld [vmem:[#allocation26 + $0x174] sm:$0xff]
    %v9162 = vld [vmem:[#allocation26 + $0x17c] sm:$0xff]
    %v9163 = vld [vmem:[#allocation26 + $0x184] sm:$0xf]
    %v9164 = vld [vmem:[#allocation26 + $0x188] sm:$0xff]
    %v9165 = vld [vmem:[#allocation26 + $0x190] sm:$0xff]
    %v9166 = vld [vmem:[#allocation26 + $0x198] sm:$0xff]
    %v9167 = vld [vmem:[#allocation26 + $0x1a0] sm:$0xf]
    %v9168 = vld [vmem:[#allocation26 + $0x1a4] sm:$0xff]
    %v9169 = vld [vmem:[#allocation26 + $0x1ac] sm:$0xff]
    %v9170 = vld [vmem:[#allocation26 + $0x1b4] sm:$0xff]
    %v9171 = vld [vmem:[#allocation26 + $0x1bc] sm:$0xf]
    %v9172 = vld [vmem:[#allocation26 + $0x1c0] sm:$0xff]
    %v9173 = vld [vmem:[#allocation26 + $0x1c8] sm:$0xff]
    %v9174 = vld [vmem:[#allocation26 + $0x1d0] sm:$0xff]
    %v9175 = vld [vmem:[#allocation26 + $0x1d8] sm:$0xf]
    %v9176 = vld [vmem:[#allocation26 + $0x1dc] sm:$0xff]
    %v9177 = vld [vmem:[#allocation26 + $0x1e4] sm:$0xff]
    %v9178 = vld [vmem:[#allocation26 + $0x1ec] sm:$0xff]
    %v9179 = vld [vmem:[#allocation26 + $0x1f4] sm:$0xf]
    %v9180 = vld [vmem:[#allocation26 + $0x1f8] sm:$0xff]
    %v9181 = vld [vmem:[#allocation26 + $0x200] sm:$0xff]
    %v9182 = vld [vmem:[#allocation26 + $0x208] sm:$0xff]
    %v9183 = vld [vmem:[#allocation26 + $0x210] sm:$0xf]
    %v9184 = vld [vmem:[#allocation26 + $0x214] sm:$0xff]
    %v9185 = vld [vmem:[#allocation26 + $0x21c] sm:$0xff]
    %v9186 = vld [vmem:[#allocation26 + $0x224] sm:$0xff]
    %v9187 = vld [vmem:[#allocation26 + $0x22c] sm:$0xf]
    %v9188 = vld [vmem:[#allocation26 + $0x230] sm:$0xff]
    %v9189 = vld [vmem:[#allocation26 + $0x238] sm:$0xff]
    %v9190 = vld [vmem:[#allocation26 + $0x240] sm:$0xff]
    %v9191 = vld [vmem:[#allocation26 + $0x248] sm:$0xf]
    %v9192 = vld [vmem:[#allocation26 + $0x24c] sm:$0xff]
    %v9193 = vld [vmem:[#allocation26 + $0x254] sm:$0xff]
    %v9194 = vld [vmem:[#allocation26 + $0x25c] sm:$0xff]
    %v9195 = vld [vmem:[#allocation26 + $0x264] sm:$0xf]
    %v9196 = vld [vmem:[#allocation26 + $0x268] sm:$0xff]
    %v9197 = vld [vmem:[#allocation26 + $0x270] sm:$0xff]
    %v9198 = vld [vmem:[#allocation26 + $0x278] sm:$0xff]
    %v9199 = vld [vmem:[#allocation26 + $0x280] sm:$0xf]
    %v9200 = vld [vmem:[#allocation26 + $0x284] sm:$0xff]
    %v9201 = vld [vmem:[#allocation26 + $0x28c] sm:$0xff]
    %v9202 = vld [vmem:[#allocation26 + $0x294] sm:$0xff]
    %v9203 = vld [vmem:[#allocation26 + $0x29c] sm:$0xf]
    %v9204 = vld [vmem:[#allocation26 + $0x2a0] sm:$0xff]
    %v9205 = vld [vmem:[#allocation26 + $0x2a8] sm:$0xff]
    %v9206 = vld [vmem:[#allocation26 + $0x2b0] sm:$0xff]
    %v9207 = vld [vmem:[#allocation26 + $0x2b8] sm:$0xf]
    %v9208 = vld [vmem:[#allocation26 + $0x2bc] sm:$0xff]
    %v9209 = vld [vmem:[#allocation26 + $0x2c4] sm:$0xff]
    %v9210 = vld [vmem:[#allocation26 + $0x2cc] sm:$0xff]
    %v9211 = vld [vmem:[#allocation26 + $0x2d4] sm:$0xf]
    %v9212 = vld [vmem:[#allocation26 + $0x2d8] sm:$0xff]
    %v9213 = vld [vmem:[#allocation26 + $0x2e0] sm:$0xff]
    %v9214 = vld [vmem:[#allocation26 + $0x2e8] sm:$0xff]
    %v9215 = vld [vmem:[#allocation26 + $0x2f0] sm:$0xf]
    %v9216 = vld [vmem:[#allocation26 + $0x2f4] sm:$0xff]
    %v9217 = vld [vmem:[#allocation26 + $0x2fc] sm:$0xff]
    %v9218 = vld [vmem:[#allocation26 + $0x304] sm:$0xff]
    %v9219 = vld [vmem:[#allocation26 + $0x30c] sm:$0xf]
    %v9220 = vld [vmem:[#allocation26 + $0x310] sm:$0xff]
    %v9221 = vld [vmem:[#allocation26 + $0x318] sm:$0xff]
    %v9222 = vld [vmem:[#allocation26 + $0x320] sm:$0xff]
    %v9223 = vld [vmem:[#allocation26 + $0x328] sm:$0xf]
    %v9224 = vld [vmem:[#allocation26 + $0x32c] sm:$0xff]
    %v9225 = vld [vmem:[#allocation26 + $0x334] sm:$0xff]
    %v9226 = vld [vmem:[#allocation26 + $0x33c] sm:$0xff]
    %v9227 = vld [vmem:[#allocation26 + $0x344] sm:$0xf]
    %v9228 = vld [vmem:[#allocation26 + $0x348] sm:$0xff]
    %v9229 = vld [vmem:[#allocation26 + $0x350] sm:$0xff]
    %v9230 = vld [vmem:[#allocation26 + $0x358] sm:$0xff]
    %v9231 = vld [vmem:[#allocation26 + $0x360] sm:$0xf]
    %v9232 = vld [vmem:[#allocation26 + $0x364] sm:$0xff]
    %v9233 = vld [vmem:[#allocation26 + $0x36c] sm:$0xff]
    %v9234 = vld [vmem:[#allocation26 + $0x374] sm:$0xff]
    %v9235 = vld [vmem:[#allocation26 + $0x37c] sm:$0xf]
    %v9236 = vld [vmem:[#allocation26 + $0x380] sm:$0xff]
    %v9237 = vld [vmem:[#allocation26 + $0x388] sm:$0xff]
    %v9238 = vld [vmem:[#allocation26 + $0x390] sm:$0xff]
    %v9239 = vld [vmem:[#allocation26 + $0x398] sm:$0xf]
    %v9240 = vld [vmem:[#allocation26 + $0x39c] sm:$0xff]
    %v9241 = vld [vmem:[#allocation26 + $0x3a4] sm:$0xff]
    %v9242 = vld [vmem:[#allocation26 + $0x3ac] sm:$0xff]
    %v9243 = vld [vmem:[#allocation26 + $0x3b4] sm:$0xf]
    %v9244 = vld [vmem:[#allocation26 + $0x3b8] sm:$0xff]
    %v9245 = vld [vmem:[#allocation26 + $0x3c0] sm:$0xff]
    %v9246 = vld [vmem:[#allocation26 + $0x3c8] sm:$0xff]
    %v9247 = vld [vmem:[#allocation26 + $0x3d0] sm:$0xf]
    %v9248 = vld [vmem:[#allocation26 + $0x3d4] sm:$0xff]
    %v9249 = vld [vmem:[#allocation26 + $0x3dc] sm:$0xff]
    %v9250 = vld [vmem:[#allocation26 + $0x3e4] sm:$0xff]
    %v9251 = vld [vmem:[#allocation26 + $0x3ec] sm:$0xf]
    %v9252 = vld [vmem:[#allocation26 + $0x3f0] sm:$0xff]
    %v9253 = vld [vmem:[#allocation26 + $0x3f8] sm:$0xff]
    %v9254 = vld [vmem:[#allocation26 + $0x400] sm:$0xff]
    %v9255 = vld [vmem:[#allocation26 + $0x408] sm:$0xf]
    %v9256 = vld [vmem:[#allocation26 + $0x40c] sm:$0xff]
    %v9257 = vld [vmem:[#allocation26 + $0x414] sm:$0xff]
    %v9258 = vld [vmem:[#allocation26 + $0x41c] sm:$0xff]
    %v9259 = vld [vmem:[#allocation26 + $0x424] sm:$0xf]
    %v9260 = vld [vmem:[#allocation26 + $0x428] sm:$0xff]
    %v9261 = vld [vmem:[#allocation26 + $0x430] sm:$0xff]
    %v9262 = vld [vmem:[#allocation26 + $0x438] sm:$0xff]
    %v9263 = vld [vmem:[#allocation26 + $0x440] sm:$0xf]
    %v9264 = vld [vmem:[#allocation26 + $0x444] sm:$0xff]
    %v9265 = vld [vmem:[#allocation26 + $0x44c] sm:$0xff]
    %v9266 = vld [vmem:[#allocation26 + $0x454] sm:$0xff]
    %v9267 = vld [vmem:[#allocation26 + $0x45c] sm:$0xf]
    %v9268 = vld [vmem:[#allocation26 + $0x460] sm:$0xff]
    %v9269 = vld [vmem:[#allocation26 + $0x468] sm:$0xff]
    %v9270 = vld [vmem:[#allocation26 + $0x470] sm:$0xff]
    %v9271 = vld [vmem:[#allocation26 + $0x478] sm:$0xf]
    %v9272 = vld [vmem:[#allocation26 + $0x47c] sm:$0xff]
    %v9273 = vld [vmem:[#allocation26 + $0x484] sm:$0xff]
    %v9274 = vld [vmem:[#allocation26 + $0x48c] sm:$0xff]
    %v9275 = vld [vmem:[#allocation26 + $0x494] sm:$0xf]
    %v9276 = vld [vmem:[#allocation26 + $0x498] sm:$0xff]
    %v9277 = vld [vmem:[#allocation26 + $0x4a0] sm:$0xff]
    %v9278 = vld [vmem:[#allocation26 + $0x4a8] sm:$0xff]
    %v9279 = vld [vmem:[#allocation26 + $0x4b0] sm:$0xf]
    %v9280 = vld [vmem:[#allocation26 + $0x4b4] sm:$0xff]
    %v9281 = vld [vmem:[#allocation26 + $0x4bc] sm:$0xff]
    %v9282 = vld [vmem:[#allocation26 + $0x4c4] sm:$0xff]
    %v9283 = vld [vmem:[#allocation26 + $0x4cc] sm:$0xf]
    %v9284 = vld [vmem:[#allocation26 + $0x4d0] sm:$0xff]
    %v9285 = vld [vmem:[#allocation26 + $0x4d8] sm:$0xff]
    %v9286 = vld [vmem:[#allocation26 + $0x4e0] sm:$0xff]
    %v9287 = vld [vmem:[#allocation26 + $0x4e8] sm:$0xf]
    %v9288 = vld [vmem:[#allocation26 + $0x4ec] sm:$0xff]
    %v9289 = vld [vmem:[#allocation26 + $0x4f4] sm:$0xff]
    %v9290 = vld [vmem:[#allocation26 + $0x4fc] sm:$0xff]
    %v9291 = vld [vmem:[#allocation26 + $0x504] sm:$0xf]
    %v9292 = vld [vmem:[#allocation26 + $0x508] sm:$0xff]
    %v9293 = vld [vmem:[#allocation26 + $0x510] sm:$0xff]
    %v9294 = vld [vmem:[#allocation26 + $0x518] sm:$0xff]
    %v9295 = vld [vmem:[#allocation26 + $0x520] sm:$0xf]
    %v9296 = vld [vmem:[#allocation26 + $0x524] sm:$0xff]
    %v9297 = vld [vmem:[#allocation26 + $0x52c] sm:$0xff]
    %v9298 = vld [vmem:[#allocation26 + $0x534] sm:$0xff]
    %v9299 = vld [vmem:[#allocation26 + $0x53c] sm:$0xf]
    %v9300 = vld [vmem:[#allocation26 + $0x540] sm:$0xff]
    %v9301 = vld [vmem:[#allocation26 + $0x548] sm:$0xff]
    %v9302 = vld [vmem:[#allocation26 + $0x550] sm:$0xff]
    %v9303 = vld [vmem:[#allocation26 + $0x558] sm:$0xf]
    %v9304 = vld [vmem:[#allocation26 + $0x55c] sm:$0xff]
    %v9305 = vld [vmem:[#allocation26 + $0x564] sm:$0xff]
    %v9306 = vld [vmem:[#allocation26 + $0x56c] sm:$0xff]
    %v9307 = vld [vmem:[#allocation26 + $0x574] sm:$0xf]
    %v9308 = vld [vmem:[#allocation26 + $0x578] sm:$0xff]
    %v9309 = vld [vmem:[#allocation26 + $0x580] sm:$0xff]
    %v9310 = vld [vmem:[#allocation26 + $0x588] sm:$0xff]
    %v9311 = vld [vmem:[#allocation26 + $0x590] sm:$0xf]
    %v9312 = vld [vmem:[#allocation26 + $0x594] sm:$0xff]
    %v9313 = vld [vmem:[#allocation26 + $0x59c] sm:$0xff]
    %v9314 = vld [vmem:[#allocation26 + $0x5a4] sm:$0xff]
    %v9315 = vld [vmem:[#allocation26 + $0x5ac] sm:$0xf]
    %v9316 = vld [vmem:[#allocation26 + $0x5b0] sm:$0xff]
    %v9317 = vld [vmem:[#allocation26 + $0x5b8] sm:$0xff]
    %v9318 = vld [vmem:[#allocation26 + $0x5c0] sm:$0xff]
    %v9319 = vld [vmem:[#allocation26 + $0x5c8] sm:$0xf]
    %v9320 = vld [vmem:[#allocation26 + $0x5cc] sm:$0xff]
    %v9321 = vld [vmem:[#allocation26 + $0x5d4] sm:$0xff]
    %v9322 = vld [vmem:[#allocation26 + $0x5dc] sm:$0xff]
    %v9323 = vld [vmem:[#allocation26 + $0x5e4] sm:$0xf]
    %v9324 = vld [vmem:[#allocation26 + $0x5e8] sm:$0xff]
    %v9325 = vld [vmem:[#allocation26 + $0x5f0] sm:$0xff]
    %v9326 = vld [vmem:[#allocation26 + $0x5f8] sm:$0xff]
    %v9327 = vld [vmem:[#allocation26 + $0x600] sm:$0xf]
    %v9328 = vld [vmem:[#allocation26 + $0x604] sm:$0xff]
    %v9329 = vld [vmem:[#allocation26 + $0x60c] sm:$0xff]
    %v9330 = vld [vmem:[#allocation26 + $0x614] sm:$0xff]
    %v9331 = vld [vmem:[#allocation26 + $0x61c] sm:$0xf]
    %v9332 = vld [vmem:[#allocation26 + $0x620] sm:$0xff]
    %v9333 = vld [vmem:[#allocation26 + $0x628] sm:$0xff]
    %v9334 = vld [vmem:[#allocation26 + $0x630] sm:$0xff]
    %v9335 = vld [vmem:[#allocation26 + $0x638] sm:$0xf]
    %v9336 = vld [vmem:[#allocation26 + $0x63c] sm:$0xff]
    %v9337 = vld [vmem:[#allocation26 + $0x644] sm:$0xff]
    %v9338 = vld [vmem:[#allocation26 + $0x64c] sm:$0xff]
    %v9339 = vld [vmem:[#allocation26 + $0x654] sm:$0xf]
    %v9340 = vld [vmem:[#allocation26 + $0x658] sm:$0xff]
    %v9341 = vld [vmem:[#allocation26 + $0x660] sm:$0xff]
    %v9342 = vld [vmem:[#allocation26 + $0x668] sm:$0xff]
    %v9343 = vld [vmem:[#allocation26 + $0x670] sm:$0xf]
    %v9344 = vld [vmem:[#allocation26 + $0x674] sm:$0xff]
    %v9345 = vld [vmem:[#allocation26 + $0x67c] sm:$0xff]
    %v9346 = vld [vmem:[#allocation26 + $0x684] sm:$0xff]
    %v9347 = vld [vmem:[#allocation26 + $0x68c] sm:$0xf]
    %v9348 = vld [vmem:[#allocation26 + $0x690] sm:$0xff]
    %v9349 = vld [vmem:[#allocation26 + $0x698] sm:$0xff]
    %v9350 = vld [vmem:[#allocation26 + $0x6a0] sm:$0xff]
    %v9351 = vld [vmem:[#allocation26 + $0x6a8] sm:$0xf]
    %v9352 = vld [vmem:[#allocation26 + $0x6ac] sm:$0xff]
    %v9353 = vld [vmem:[#allocation26 + $0x6b4] sm:$0xff]
    %v9354 = vld [vmem:[#allocation26 + $0x6bc] sm:$0xff]
    %v9355 = vld [vmem:[#allocation26 + $0x6c4] sm:$0xf]
    %v9356 = vld [vmem:[#allocation26 + $0x6c8] sm:$0xff]
    %v9357 = vld [vmem:[#allocation26 + $0x6d0] sm:$0xff]
    %v9358 = vld [vmem:[#allocation26 + $0x6d8] sm:$0xff]
    %v9359 = vld [vmem:[#allocation26 + $0x6e0] sm:$0xf]
    %v9360 = vld [vmem:[#allocation26 + $0x6e4] sm:$0xff]
    %v9361 = vld [vmem:[#allocation26 + $0x6ec] sm:$0xff]
    %v9362 = vld [vmem:[#allocation26 + $0x6f4] sm:$0xff]
    %v9363 = vld [vmem:[#allocation26 + $0x6fc] sm:$0xf]
    %v9364 = vld [vmem:[#allocation26 + $0x700] sm:$0xff]
    %v9365 = vld [vmem:[#allocation26 + $0x708] sm:$0xff]
    %v9366 = vld [vmem:[#allocation26 + $0x710] sm:$0xff]
    %v9367 = vld [vmem:[#allocation26 + $0x718] sm:$0xf]
    %v9368 = vld [vmem:[#allocation26 + $0x71c] sm:$0xff]
    %v9369 = vld [vmem:[#allocation26 + $0x724] sm:$0xff]
    %v9370 = vld [vmem:[#allocation26 + $0x72c] sm:$0xff]
    %v9371 = vld [vmem:[#allocation26 + $0x734] sm:$0xf]
    %v9372 = vld [vmem:[#allocation26 + $0x738] sm:$0xff]
    %v9373 = vld [vmem:[#allocation26 + $0x740] sm:$0xff]
    %v9374 = vld [vmem:[#allocation26 + $0x748] sm:$0xff]
    %v9375 = vld [vmem:[#allocation26 + $0x750] sm:$0xf]
    %v9376 = vld [vmem:[#allocation26 + $0x754] sm:$0xff]
    %v9377 = vld [vmem:[#allocation26 + $0x75c] sm:$0xff]
    %v9378 = vld [vmem:[#allocation26 + $0x764] sm:$0xff]
    %v9379 = vld [vmem:[#allocation26 + $0x76c] sm:$0xf]
    %v9380 = vld [vmem:[#allocation26 + $0x770] sm:$0xff]
    %v9381 = vld [vmem:[#allocation26 + $0x778] sm:$0xff]
    %v9382 = vld [vmem:[#allocation26 + $0x780] sm:$0xff]
    %v9383 = vld [vmem:[#allocation26 + $0x788] sm:$0xf]
    %v9384 = vld [vmem:[#allocation26 + $0x78c] sm:$0xff]
    %v9385 = vld [vmem:[#allocation26 + $0x794] sm:$0xff]
    %v9386 = vld [vmem:[#allocation26 + $0x79c] sm:$0xff]
    %v9387 = vld [vmem:[#allocation26 + $0x7a4] sm:$0xf]
    %v9388 = vld [vmem:[#allocation26 + $0x7a8] sm:$0xff]
    %v9389 = vld [vmem:[#allocation26 + $0x7b0] sm:$0xff]
    %v9390 = vld [vmem:[#allocation26 + $0x7b8] sm:$0xff]
    %v9391 = vld [vmem:[#allocation26 + $0x7c0] sm:$0xf]
    %v9392 = vld [vmem:[#allocation26 + $0x7c4] sm:$0xff]
    %v9393 = vld [vmem:[#allocation26 + $0x7cc] sm:$0xff]
    %v9394 = vld [vmem:[#allocation26 + $0x7d4] sm:$0xff]
    %v9395 = vld [vmem:[#allocation26 + $0x7dc] sm:$0xf]
    %v9396 = vld [vmem:[#allocation26 + $0x7e0] sm:$0xff]
    %v9397 = vld [vmem:[#allocation26 + $0x7e8] sm:$0xff]
    %v9398 = vld [vmem:[#allocation26 + $0x7f0] sm:$0xff]
    %v9399 = vld [vmem:[#allocation26 + $0x7f8] sm:$0xf]
    %v9400 = vld [vmem:[#allocation26 + $0x7fc] sm:$0xff]
    %v9401 = vld [vmem:[#allocation26 + $0x804] sm:$0xff]
    %v9402 = vld [vmem:[#allocation26 + $0x80c] sm:$0xff]
    %v9403 = vld [vmem:[#allocation26 + $0x814] sm:$0xf]
    %v9404 = vld [vmem:[#allocation26 + $0x818] sm:$0xff]
    %v9405 = vld [vmem:[#allocation26 + $0x820] sm:$0xff]
    %v9406 = vld [vmem:[#allocation26 + $0x828] sm:$0xff]
    %v9407 = vld [vmem:[#allocation26 + $0x830] sm:$0xf]
    %v9408 = vld [vmem:[#allocation26 + $0x834] sm:$0xff]
    %v9409 = vld [vmem:[#allocation26 + $0x83c] sm:$0xff]
    %v9410 = vld [vmem:[#allocation26 + $0x844] sm:$0xff]
    %v9411 = vld [vmem:[#allocation26 + $0x84c] sm:$0xf]
    %v9412 = vld [vmem:[#allocation26 + $0x850] sm:$0xff]
    %v9413 = vld [vmem:[#allocation26 + $0x858] sm:$0xff]
    %v9414 = vld [vmem:[#allocation26 + $0x860] sm:$0xff]
    %v9415 = vld [vmem:[#allocation26 + $0x868] sm:$0xf]
    %v9416 = vld [vmem:[#allocation26 + $0x86c] sm:$0xff]
    %v9417 = vld [vmem:[#allocation26 + $0x874] sm:$0xff]
    %v9418 = vld [vmem:[#allocation26 + $0x87c] sm:$0xff]
    %v9419 = vld [vmem:[#allocation26 + $0x884] sm:$0xf]
    %v9420 = vld [vmem:[#allocation26 + $0x888] sm:$0xff]
    %v9421 = vld [vmem:[#allocation26 + $0x890] sm:$0xff]
    %v9422 = vld [vmem:[#allocation26 + $0x898] sm:$0xff]
    %v9423 = vld [vmem:[#allocation26 + $0x8a0] sm:$0xf]
    %v9424 = vld [vmem:[#allocation26 + $0x8a4] sm:$0xff]
    %v9425 = vld [vmem:[#allocation26 + $0x8ac] sm:$0xff]
    %v9426 = vld [vmem:[#allocation26 + $0x8b4] sm:$0xff]
    %v9427 = vld [vmem:[#allocation26 + $0x8bc] sm:$0xf]
    %v9428 = vld [vmem:[#allocation26 + $0x8c0] sm:$0xff]
    %v9429 = vld [vmem:[#allocation26 + $0x8c8] sm:$0xff]
    %v9430 = vld [vmem:[#allocation26 + $0x8d0] sm:$0xff]
    %v9431 = vld [vmem:[#allocation26 + $0x8d8] sm:$0xf]
    %v9432 = vld [vmem:[#allocation26 + $0x8dc] sm:$0xff]
    %v9433 = vld [vmem:[#allocation26 + $0x8e4] sm:$0xff]
    %v9434 = vld [vmem:[#allocation26 + $0x8ec] sm:$0xff]
    %v9435 = vld [vmem:[#allocation26 + $0x8f4] sm:$0xf]
    %v9436 = vld [vmem:[#allocation26 + $0x8f8] sm:$0xff]
    %v9437 = vld [vmem:[#allocation26 + $0x900] sm:$0xff]
    %v9438 = vld [vmem:[#allocation26 + $0x908] sm:$0xff]
    %v9439 = vld [vmem:[#allocation26 + $0x910] sm:$0xf]
    %v9440 = vld [vmem:[#allocation26 + $0x914] sm:$0xff]
    %v9441 = vld [vmem:[#allocation26 + $0x91c] sm:$0xff]
    %v9442 = vld [vmem:[#allocation26 + $0x924] sm:$0xff]
    %v9443 = vld [vmem:[#allocation26 + $0x92c] sm:$0xf]
    %v9444 = vld [vmem:[#allocation26 + $0x930] sm:$0xff]
    %v9445 = vld [vmem:[#allocation26 + $0x938] sm:$0xff]
    %v9446 = vld [vmem:[#allocation26 + $0x940] sm:$0xff]
    %v9447 = vld [vmem:[#allocation26 + $0x948] sm:$0xf]
    %v9448 = vld [vmem:[#allocation26 + $0x94c] sm:$0xff]
    %v9449 = vld [vmem:[#allocation26 + $0x954] sm:$0xff]
    %v9450 = vld [vmem:[#allocation26 + $0x95c] sm:$0xff]
    %v9451 = vld [vmem:[#allocation26 + $0x964] sm:$0xf]
    %v9452 = vld [vmem:[#allocation26 + $0x968] sm:$0xff]
    %v9453 = vld [vmem:[#allocation26 + $0x970] sm:$0xff]
    %v9454 = vld [vmem:[#allocation26 + $0x978] sm:$0xff]
    %v9455 = vld [vmem:[#allocation26 + $0x980] sm:$0xf]
    %v9456 = vld [vmem:[#allocation26 + $0x984] sm:$0xff]
    %v9457 = vld [vmem:[#allocation26 + $0x98c] sm:$0xff]
    %v9458 = vld [vmem:[#allocation26 + $0x994] sm:$0xff]
    %v9459 = vld [vmem:[#allocation26 + $0x99c] sm:$0xf]
    %v9460 = vld [vmem:[#allocation26 + $0x9a0] sm:$0xff]
    %v9461 = vld [vmem:[#allocation26 + $0x9a8] sm:$0xff]
    %v9462 = vld [vmem:[#allocation26 + $0x9b0] sm:$0xff]
    %v9463 = vld [vmem:[#allocation26 + $0x9b8] sm:$0xf]
    %v9464 = vld [vmem:[#allocation26 + $0x9bc] sm:$0xff]
    %v9465 = vld [vmem:[#allocation26 + $0x9c4] sm:$0xff]
    %v9466 = vld [vmem:[#allocation26 + $0x9cc] sm:$0xff]
    %v9467 = vld [vmem:[#allocation26 + $0x9d4] sm:$0xf]
    %v9468 = vld [vmem:[#allocation26 + $0x9d8] sm:$0xff]
    %v9469 = vld [vmem:[#allocation26 + $0x9e0] sm:$0xff]
    %v9470 = vld [vmem:[#allocation26 + $0x9e8] sm:$0xff]
    %v9471 = vld [vmem:[#allocation26 + $0x9f0] sm:$0xf]
    %v9472 = vld [vmem:[#allocation26 + $0x9f4] sm:$0xff]
    %v9473 = vld [vmem:[#allocation26 + $0x9fc] sm:$0xff]
    %v9474 = vld [vmem:[#allocation26 + $0xa04] sm:$0xff]
    %v9475 = vld [vmem:[#allocation26 + $0xa0c] sm:$0xf]
    %v9476 = vld [vmem:[#allocation26 + $0xa10] sm:$0xff]
    %v9477 = vld [vmem:[#allocation26 + $0xa18] sm:$0xff]
    %v9478 = vld [vmem:[#allocation26 + $0xa20] sm:$0xff]
    %v9479 = vld [vmem:[#allocation26 + $0xa28] sm:$0xf]
    %v9480 = vld [vmem:[#allocation26 + $0xa2c] sm:$0xff]
    %v9481 = vld [vmem:[#allocation26 + $0xa34] sm:$0xff]
    %v9482 = vld [vmem:[#allocation26 + $0xa3c] sm:$0xff]
    %v9483 = vld [vmem:[#allocation26 + $0xa44] sm:$0xf]
    %v9484 = vld [vmem:[#allocation26 + $0xa48] sm:$0xff]
    %v9485 = vld [vmem:[#allocation26 + $0xa50] sm:$0xff]
    %v9486 = vld [vmem:[#allocation26 + $0xa58] sm:$0xff]
    %v9487 = vld [vmem:[#allocation26 + $0xa60] sm:$0xf]
    %v9488 = vld [vmem:[#allocation26 + $0xa64] sm:$0xff]
    %v9489 = vld [vmem:[#allocation26 + $0xa6c] sm:$0xff]
    %v9490 = vld [vmem:[#allocation26 + $0xa74] sm:$0xff]
    %v9491 = vld [vmem:[#allocation26 + $0xa7c] sm:$0xf]
    %v9492 = vld [vmem:[#allocation26 + $0xa80] sm:$0xff]
    %v9493 = vld [vmem:[#allocation26 + $0xa88] sm:$0xff]
    %v9494 = vld [vmem:[#allocation26 + $0xa90] sm:$0xff]
    %v9495 = vld [vmem:[#allocation26 + $0xa98] sm:$0xf]
    %v9496 = vld [vmem:[#allocation26 + $0xa9c] sm:$0xff]
    %v9497 = vld [vmem:[#allocation26 + $0xaa4] sm:$0xff]
    %v9498 = vld [vmem:[#allocation26 + $0xaac] sm:$0xff]
    %v9499 = vld [vmem:[#allocation26 + $0xab4] sm:$0xf]
    %v9500 = vld [vmem:[#allocation26 + $0xab8] sm:$0xff]
    %v9501 = vld [vmem:[#allocation26 + $0xac0] sm:$0xff]
    %v9502 = vld [vmem:[#allocation26 + $0xac8] sm:$0xff]
    %v9503 = vld [vmem:[#allocation26 + $0xad0] sm:$0xf]
    %v9504 = vld [vmem:[#allocation26 + $0xad4] sm:$0xff]
    %v9505 = vld [vmem:[#allocation26 + $0xadc] sm:$0xff]
    %v9506 = vld [vmem:[#allocation26 + $0xae4] sm:$0xff]
    %v9507 = vld [vmem:[#allocation26 + $0xaec] sm:$0xf]
    %v9508 = vld [vmem:[#allocation26 + $0xaf0] sm:$0xff]
    %v9509 = vld [vmem:[#allocation26 + $0xaf8] sm:$0xff]
    %v9510 = vld [vmem:[#allocation26 + $0xb00] sm:$0xff]
    %v9511 = vld [vmem:[#allocation26 + $0xb08] sm:$0xf]
    %v9512 = vld [vmem:[#allocation26 + $0xb0c] sm:$0xff]
    %v9513 = vld [vmem:[#allocation26 + $0xb14] sm:$0xff]
    %v9514 = vld [vmem:[#allocation26 + $0xb1c] sm:$0xff]
    %v9515 = vld [vmem:[#allocation26 + $0xb24] sm:$0xf]
    %v9516 = vld [vmem:[#allocation26 + $0xb28] sm:$0xff]
    %v9517 = vld [vmem:[#allocation26 + $0xb30] sm:$0xff]
    %v9518 = vld [vmem:[#allocation26 + $0xb38] sm:$0xff]
    %v9519 = vld [vmem:[#allocation26 + $0xb40] sm:$0xf]
    %v9520 = vld [vmem:[#allocation26 + $0xb44] sm:$0xff]
    %v9521 = vld [vmem:[#allocation26 + $0xb4c] sm:$0xff]
    %v9522 = vld [vmem:[#allocation26 + $0xb54] sm:$0xff]
    %v9523 = vld [vmem:[#allocation26 + $0xb5c] sm:$0xf]
    %v9524 = vld [vmem:[#allocation26 + $0xb60] sm:$0xff]
    %v9525 = vld [vmem:[#allocation26 + $0xb68] sm:$0xff]
    %v9526 = vld [vmem:[#allocation26 + $0xb70] sm:$0xff]
    %v9527 = vld [vmem:[#allocation26 + $0xb78] sm:$0xf]
    %v9528 = vld [vmem:[#allocation26 + $0xb7c] sm:$0xff]
    %v9529 = vld [vmem:[#allocation26 + $0xb84] sm:$0xff]
    %v9530 = vld [vmem:[#allocation26 + $0xb8c] sm:$0xff]
    %v9531 = vld [vmem:[#allocation26 + $0xb94] sm:$0xf]
    %v9532 = vld [vmem:[#allocation26 + $0xb98] sm:$0xff]
    %v9533 = vld [vmem:[#allocation26 + $0xba0] sm:$0xff]
    %v9534 = vld [vmem:[#allocation26 + $0xba8] sm:$0xff]
    %v9535 = vld [vmem:[#allocation26 + $0xbb0] sm:$0xf]
    %v9536 = vld [vmem:[#allocation26 + $0xbb4] sm:$0xff]
    %v9537 = vld [vmem:[#allocation26 + $0xbbc] sm:$0xff]
    %v9538 = vld [vmem:[#allocation26 + $0xbc4] sm:$0xff]
    %v9539 = vld [vmem:[#allocation26 + $0xbcc] sm:$0xf]
    %v9540 = vld [vmem:[#allocation26 + $0xbd0] sm:$0xff]
    %v9541 = vld [vmem:[#allocation26 + $0xbd8] sm:$0xff]
    %v9542 = vld [vmem:[#allocation26 + $0xbe0] sm:$0xff]
    %v9543 = vld [vmem:[#allocation26 + $0xbe8] sm:$0xf]
    %v9544 = vld [vmem:[#allocation26 + $0xbec] sm:$0xff]
    %v9545 = vld [vmem:[#allocation26 + $0xbf4] sm:$0xff]
    %v9546 = vld [vmem:[#allocation26 + $0xbfc] sm:$0xff]
    %v9547 = vld [vmem:[#allocation26 + $0xc04] sm:$0xf]
    %v9548 = vld [vmem:[#allocation26 + $0xc08] sm:$0xff]
    %v9549 = vld [vmem:[#allocation26 + $0xc10] sm:$0xff]
    %v9550 = vld [vmem:[#allocation26 + $0xc18] sm:$0xff]
    %v9551 = vld [vmem:[#allocation26 + $0xc20] sm:$0xf]
    %v9552 = vld [vmem:[#allocation26 + $0xc24] sm:$0xff]
    %v9553 = vld [vmem:[#allocation26 + $0xc2c] sm:$0xff]
    %v9554 = vld [vmem:[#allocation26 + $0xc34] sm:$0xff]
    %v9555 = vld [vmem:[#allocation26 + $0xc3c] sm:$0xf]
    %v9556 = vld [vmem:[#allocation26 + $0xc40] sm:$0xff]
    %v9557 = vld [vmem:[#allocation26 + $0xc48] sm:$0xff]
    %v9558 = vld [vmem:[#allocation26 + $0xc50] sm:$0xff]
    %v9559 = vld [vmem:[#allocation26 + $0xc58] sm:$0xf]
    %v9560 = vld [vmem:[#allocation26 + $0xc5c] sm:$0xff]
    %v9561 = vld [vmem:[#allocation26 + $0xc64] sm:$0xff]
    %v9562 = vld [vmem:[#allocation26 + $0xc6c] sm:$0xff]
    %v9563 = vld [vmem:[#allocation26 + $0xc74] sm:$0xf]
    %v9564 = vld [vmem:[#allocation26 + $0xc78] sm:$0xff]
    %v9565 = vld [vmem:[#allocation26 + $0xc80] sm:$0xff]
    %v9566 = vld [vmem:[#allocation26 + $0xc88] sm:$0xff]
    %v9567 = vld [vmem:[#allocation26 + $0xc90] sm:$0xf]
    %v9568 = vld [vmem:[#allocation26 + $0xc94] sm:$0xff]
    %v9569 = vld [vmem:[#allocation26 + $0xc9c] sm:$0xff]
    %v9570 = vld [vmem:[#allocation26 + $0xca4] sm:$0xff]
    %v9571 = vld [vmem:[#allocation26 + $0xcac] sm:$0xf]
    %v9572 = vld [vmem:[#allocation26 + $0xcb0] sm:$0xff]
    %v9573 = vld [vmem:[#allocation26 + $0xcb8] sm:$0xff]
    %v9574 = vld [vmem:[#allocation26 + $0xcc0] sm:$0xff]
    %v9575 = vld [vmem:[#allocation26 + $0xcc8] sm:$0xf]
    %v9576 = vld [vmem:[#allocation26 + $0xccc] sm:$0xff]
    %v9577 = vld [vmem:[#allocation26 + $0xcd4] sm:$0xff]
    %v9578 = vld [vmem:[#allocation26 + $0xcdc] sm:$0xff]
    %v9579 = vld [vmem:[#allocation26 + $0xce4] sm:$0xf]
    %v9580 = vld [vmem:[#allocation26 + $0xce8] sm:$0xff]
    %v9581 = vld [vmem:[#allocation26 + $0xcf0] sm:$0xff]
    %v9582 = vld [vmem:[#allocation26 + $0xcf8] sm:$0xff]
    %v9583 = vld [vmem:[#allocation26 + $0xd00] sm:$0xf]
    %v9584 = vld [vmem:[#allocation26 + $0xd04] sm:$0xff]
    %v9585 = vld [vmem:[#allocation26 + $0xd0c] sm:$0xff]
    %v9586 = vld [vmem:[#allocation26 + $0xd14] sm:$0xff]
    %v9587 = vld [vmem:[#allocation26 + $0xd1c] sm:$0xf]
    %v9588 = vld [vmem:[#allocation26 + $0xd20] sm:$0xff]
    %v9589 = vld [vmem:[#allocation26 + $0xd28] sm:$0xff]
    %v9590 = vld [vmem:[#allocation26 + $0xd30] sm:$0xff]
    %v9591 = vld [vmem:[#allocation26 + $0xd38] sm:$0xf]
    %v9592 = vld [vmem:[#allocation26 + $0xd3c] sm:$0xff]
    %v9593 = vld [vmem:[#allocation26 + $0xd44] sm:$0xff]
    %v9594 = vld [vmem:[#allocation26 + $0xd4c] sm:$0xff]
    %v9595 = vld [vmem:[#allocation26 + $0xd54] sm:$0xf]
    %v9596 = vld [vmem:[#allocation26 + $0xd58] sm:$0xff]
    %v9597 = vld [vmem:[#allocation26 + $0xd60] sm:$0xff]
    %v9598 = vld [vmem:[#allocation26 + $0xd68] sm:$0xff]
    %v9599 = vld [vmem:[#allocation26 + $0xd70] sm:$0xf]
    %v9600 = vld [vmem:[#allocation26 + $0xd74] sm:$0xff]
    %v9601 = vld [vmem:[#allocation26 + $0xd7c] sm:$0xff]
    %v9602 = vld [vmem:[#allocation26 + $0xd84] sm:$0xff]
    %v9603 = vld [vmem:[#allocation26 + $0xd8c] sm:$0xf]
    %v9604 = vld [vmem:[#allocation26 + $0xd90] sm:$0xff]
    %v9605 = vld [vmem:[#allocation26 + $0xd98] sm:$0xff]
    %v9606 = vld [vmem:[#allocation26 + $0xda0] sm:$0xff]
    %v9607 = vld [vmem:[#allocation26 + $0xda8] sm:$0xf]
    %v9608 = vld [vmem:[#allocation26 + $0xdac] sm:$0xff]
    %v9609 = vld [vmem:[#allocation26 + $0xdb4] sm:$0xff]
    %v9610 = vld [vmem:[#allocation26 + $0xdbc] sm:$0xff]
    %v9611 = vld [vmem:[#allocation26 + $0xdc4] sm:$0xf]
    %v9612 = vld [vmem:[#allocation26 + $0xdc8] sm:$0xff]
    %v9613 = vld [vmem:[#allocation26 + $0xdd0] sm:$0xff]
    %v9614 = vld [vmem:[#allocation26 + $0xdd8] sm:$0xff]
    %v9615 = vld [vmem:[#allocation26 + $0xde0] sm:$0xf]
    %v9616 = vld [vmem:[#allocation26 + $0xde4] sm:$0xff]
    %v9617 = vld [vmem:[#allocation26 + $0xdec] sm:$0xff]
    %v9618 = vld [vmem:[#allocation26 + $0xdf4] sm:$0xff]
    %v9619 = vld [vmem:[#allocation26 + $0xdfc] sm:$0xf]
    %v9620 = vld [vmem:[#allocation28] sm:$0xff]
    %v9622 = vlaneseq
    %v9623 = vshrl.u32 %v9622, 7
    %v9624 = vsub.s32 0, %v9623
    %v9625 = vrot.slane %v9620, %v9624
    %v9626 = vlaneseq
    %v9627 = vshrl.u32 %v9626, 7
    %v9628 = vsub.s32 1, %v9627
    %v9629 = vrot.slane %v9620, %v9628
    %v9630 = vlaneseq
    %v9631 = vshrl.u32 %v9630, 7
    %v9632 = vsub.s32 2, %v9631
    %v9633 = vrot.slane %v9620, %v9632
    %v9634 = vlaneseq
    %v9635 = vshrl.u32 %v9634, 7
    %v9636 = vsub.s32 3, %v9635
    %v9637 = vrot.slane %v9620, %v9636
    %v9638 = vlaneseq
    %v9639 = vshrl.u32 %v9638, 7
    %v9640 = vsub.s32 4, %v9639
    %v9641 = vrot.slane %v9620, %v9640
    %v9642 = vlaneseq
    %v9643 = vshrl.u32 %v9642, 7
    %v9644 = vsub.s32 5, %v9643
    %v9645 = vrot.slane %v9620, %v9644
    %v9646 = vlaneseq
    %v9647 = vshrl.u32 %v9646, 7
    %v9648 = vsub.s32 6, %v9647
    %v9649 = vrot.slane %v9620, %v9648
    %v10169 = vunpack.c.l.b16 %v9108
    %v10170 = vunpack.c.h.b16 %v9108
    %v10171 = vunpack.c.l.b16 %v9109
    %v10172 = vunpack.c.h.b16 %v9109
    %v10173 = vunpack.c.l.b16 %v9110
    %v10174 = vunpack.c.h.b16 %v9110
    %v10175 = vunpack.c.l.b16 %v9111
    %v10176 = vunpack.c.l.b16 %v9112
    %v10177 = vunpack.c.h.b16 %v9112
    %v10178 = vunpack.c.l.b16 %v9113
    %v10179 = vunpack.c.h.b16 %v9113
    %v10180 = vunpack.c.l.b16 %v9114
    %v10181 = vunpack.c.h.b16 %v9114
    %v10182 = vunpack.c.l.b16 %v9115
    %v10183 = vunpack.c.l.b16 %v9116
    %v10184 = vunpack.c.h.b16 %v9116
    %v10185 = vunpack.c.l.b16 %v9117
    %v10186 = vunpack.c.h.b16 %v9117
    %v10187 = vunpack.c.l.b16 %v9118
    %v10188 = vunpack.c.h.b16 %v9118
    %v10189 = vunpack.c.l.b16 %v9119
    %v10190 = vunpack.c.l.b16 %v9120
    %v10191 = vunpack.c.h.b16 %v9120
    %v10192 = vunpack.c.l.b16 %v9121
    %v10193 = vunpack.c.h.b16 %v9121
    %v10194 = vunpack.c.l.b16 %v9122
    %v10195 = vunpack.c.h.b16 %v9122
    %v10196 = vunpack.c.l.b16 %v9123
    %v10197 = vunpack.c.l.b16 %v9124
    %v10198 = vunpack.c.h.b16 %v9124
    %v10199 = vunpack.c.l.b16 %v9125
    %v10200 = vunpack.c.h.b16 %v9125
    %v10201 = vunpack.c.l.b16 %v9126
    %v10202 = vunpack.c.h.b16 %v9126
    %v10203 = vunpack.c.l.b16 %v9127
    %v10204 = vunpack.c.l.b16 %v9128
    %v10205 = vunpack.c.h.b16 %v9128
    %v10206 = vunpack.c.l.b16 %v9129
    %v10207 = vunpack.c.h.b16 %v9129
    %v10208 = vunpack.c.l.b16 %v9130
    %v10209 = vunpack.c.h.b16 %v9130
    %v10210 = vunpack.c.l.b16 %v9131
    %v10211 = vunpack.c.l.b16 %v9132
    %v10212 = vunpack.c.h.b16 %v9132
    %v10213 = vunpack.c.l.b16 %v9133
    %v10214 = vunpack.c.h.b16 %v9133
    %v10215 = vunpack.c.l.b16 %v9134
    %v10216 = vunpack.c.h.b16 %v9134
    %v10217 = vunpack.c.l.b16 %v9135
    %v10218 = vunpack.c.l.b16 %v9136
    %v10219 = vunpack.c.h.b16 %v9136
    %v10220 = vunpack.c.l.b16 %v9137
    %v10221 = vunpack.c.h.b16 %v9137
    %v10222 = vunpack.c.l.b16 %v9138
    %v10223 = vunpack.c.h.b16 %v9138
    %v10224 = vunpack.c.l.b16 %v9139
    %v10225 = vunpack.c.l.b16 %v9140
    %v10226 = vunpack.c.h.b16 %v9140
    %v10227 = vunpack.c.l.b16 %v9141
    %v10228 = vunpack.c.h.b16 %v9141
    %v10229 = vunpack.c.l.b16 %v9142
    %v10230 = vunpack.c.h.b16 %v9142
    %v10231 = vunpack.c.l.b16 %v9143
    %v10232 = vunpack.c.l.b16 %v9144
    %v10233 = vunpack.c.h.b16 %v9144
    %v10234 = vunpack.c.l.b16 %v9145
    %v10235 = vunpack.c.h.b16 %v9145
    %v10236 = vunpack.c.l.b16 %v9146
    %v10237 = vunpack.c.h.b16 %v9146
    %v10238 = vunpack.c.l.b16 %v9147
    %v10239 = vunpack.c.l.b16 %v9148
    %v10240 = vunpack.c.h.b16 %v9148
    %v10241 = vunpack.c.l.b16 %v9149
    %v10242 = vunpack.c.h.b16 %v9149
    %v10243 = vunpack.c.l.b16 %v9150
    %v10244 = vunpack.c.h.b16 %v9150
    %v10245 = vunpack.c.l.b16 %v9151
    %v10246 = vunpack.c.l.b16 %v9152
    %v10247 = vunpack.c.h.b16 %v9152
    %v10248 = vunpack.c.l.b16 %v9153
    %v10249 = vunpack.c.h.b16 %v9153
    %v10250 = vunpack.c.l.b16 %v9154
    %v10251 = vunpack.c.h.b16 %v9154
    %v10252 = vunpack.c.l.b16 %v9155
    %v10253 = vunpack.c.l.b16 %v9156
    %v10254 = vunpack.c.h.b16 %v9156
    %v10255 = vunpack.c.l.b16 %v9157
    %v10256 = vunpack.c.h.b16 %v9157
    %v10257 = vunpack.c.l.b16 %v9158
    %v10258 = vunpack.c.h.b16 %v9158
    %v10259 = vunpack.c.l.b16 %v9159
    %v10260 = vunpack.c.l.b16 %v9160
    %v10261 = vunpack.c.h.b16 %v9160
    %v10262 = vunpack.c.l.b16 %v9161
    %v10263 = vunpack.c.h.b16 %v9161
    %v10264 = vunpack.c.l.b16 %v9162
    %v10265 = vunpack.c.h.b16 %v9162
    %v10266 = vunpack.c.l.b16 %v9163
    %v10267 = vunpack.c.l.b16 %v9164
    %v10268 = vunpack.c.h.b16 %v9164
    %v10269 = vunpack.c.l.b16 %v9165
    %v10270 = vunpack.c.h.b16 %v9165
    %v10271 = vunpack.c.l.b16 %v9166
    %v10272 = vunpack.c.h.b16 %v9166
    %v10273 = vunpack.c.l.b16 %v9167
    %v10274 = vunpack.c.l.b16 %v9168
    %v10275 = vunpack.c.h.b16 %v9168
    %v10276 = vunpack.c.l.b16 %v9169
    %v10277 = vunpack.c.h.b16 %v9169
    %v10278 = vunpack.c.l.b16 %v9170
    %v10279 = vunpack.c.h.b16 %v9170
    %v10280 = vunpack.c.l.b16 %v9171
    %v10281 = vunpack.c.l.b16 %v9172
    %v10282 = vunpack.c.h.b16 %v9172
    %v10283 = vunpack.c.l.b16 %v9173
    %v10284 = vunpack.c.h.b16 %v9173
    %v10285 = vunpack.c.l.b16 %v9174
    %v10286 = vunpack.c.h.b16 %v9174
    %v10287 = vunpack.c.l.b16 %v9175
    %v10288 = vunpack.c.l.b16 %v9176
    %v10289 = vunpack.c.h.b16 %v9176
    %v10290 = vunpack.c.l.b16 %v9177
    %v10291 = vunpack.c.h.b16 %v9177
    %v10292 = vunpack.c.l.b16 %v9178
    %v10293 = vunpack.c.h.b16 %v9178
    %v10294 = vunpack.c.l.b16 %v9179
    %v10295 = vunpack.c.l.b16 %v9180
    %v10296 = vunpack.c.h.b16 %v9180
    %v10297 = vunpack.c.l.b16 %v9181
    %v10298 = vunpack.c.h.b16 %v9181
    %v10299 = vunpack.c.l.b16 %v9182
    %v10300 = vunpack.c.h.b16 %v9182
    %v10301 = vunpack.c.l.b16 %v9183
    %v10302 = vunpack.c.l.b16 %v9184
    %v10303 = vunpack.c.h.b16 %v9184
    %v10304 = vunpack.c.l.b16 %v9185
    %v10305 = vunpack.c.h.b16 %v9185
    %v10306 = vunpack.c.l.b16 %v9186
    %v10307 = vunpack.c.h.b16 %v9186
    %v10308 = vunpack.c.l.b16 %v9187
    %v10309 = vunpack.c.l.b16 %v9188
    %v10310 = vunpack.c.h.b16 %v9188
    %v10311 = vunpack.c.l.b16 %v9189
    %v10312 = vunpack.c.h.b16 %v9189
    %v10313 = vunpack.c.l.b16 %v9190
    %v10314 = vunpack.c.h.b16 %v9190
    %v10315 = vunpack.c.l.b16 %v9191
    %v10316 = vunpack.c.l.b16 %v9192
    %v10317 = vunpack.c.h.b16 %v9192
    %v10318 = vunpack.c.l.b16 %v9193
    %v10319 = vunpack.c.h.b16 %v9193
    %v10320 = vunpack.c.l.b16 %v9194
    %v10321 = vunpack.c.h.b16 %v9194
    %v10322 = vunpack.c.l.b16 %v9195
    %v10323 = vunpack.c.l.b16 %v9196
    %v10324 = vunpack.c.h.b16 %v9196
    %v10325 = vunpack.c.l.b16 %v9197
    %v10326 = vunpack.c.h.b16 %v9197
    %v10327 = vunpack.c.l.b16 %v9198
    %v10328 = vunpack.c.h.b16 %v9198
    %v10329 = vunpack.c.l.b16 %v9199
    %v10330 = vunpack.c.l.b16 %v9200
    %v10331 = vunpack.c.h.b16 %v9200
    %v10332 = vunpack.c.l.b16 %v9201
    %v10333 = vunpack.c.h.b16 %v9201
    %v10334 = vunpack.c.l.b16 %v9202
    %v10335 = vunpack.c.h.b16 %v9202
    %v10336 = vunpack.c.l.b16 %v9203
    %v10337 = vunpack.c.l.b16 %v9204
    %v10338 = vunpack.c.h.b16 %v9204
    %v10339 = vunpack.c.l.b16 %v9205
    %v10340 = vunpack.c.h.b16 %v9205
    %v10341 = vunpack.c.l.b16 %v9206
    %v10342 = vunpack.c.h.b16 %v9206
    %v10343 = vunpack.c.l.b16 %v9207
    %v10344 = vunpack.c.l.b16 %v9208
    %v10345 = vunpack.c.h.b16 %v9208
    %v10346 = vunpack.c.l.b16 %v9209
    %v10347 = vunpack.c.h.b16 %v9209
    %v10348 = vunpack.c.l.b16 %v9210
    %v10349 = vunpack.c.h.b16 %v9210
    %v10350 = vunpack.c.l.b16 %v9211
    %v10351 = vunpack.c.l.b16 %v9212
    %v10352 = vunpack.c.h.b16 %v9212
    %v10353 = vunpack.c.l.b16 %v9213
    %v10354 = vunpack.c.h.b16 %v9213
    %v10355 = vunpack.c.l.b16 %v9214
    %v10356 = vunpack.c.h.b16 %v9214
    %v10357 = vunpack.c.l.b16 %v9215
    %v10358 = vunpack.c.l.b16 %v9216
    %v10359 = vunpack.c.h.b16 %v9216
    %v10360 = vunpack.c.l.b16 %v9217
    %v10361 = vunpack.c.h.b16 %v9217
    %v10362 = vunpack.c.l.b16 %v9218
    %v10363 = vunpack.c.h.b16 %v9218
    %v10364 = vunpack.c.l.b16 %v9219
    %v10365 = vunpack.c.l.b16 %v9220
    %v10366 = vunpack.c.h.b16 %v9220
    %v10367 = vunpack.c.l.b16 %v9221
    %v10368 = vunpack.c.h.b16 %v9221
    %v10369 = vunpack.c.l.b16 %v9222
    %v10370 = vunpack.c.h.b16 %v9222
    %v10371 = vunpack.c.l.b16 %v9223
    %v10372 = vunpack.c.l.b16 %v9224
    %v10373 = vunpack.c.h.b16 %v9224
    %v10374 = vunpack.c.l.b16 %v9225
    %v10375 = vunpack.c.h.b16 %v9225
    %v10376 = vunpack.c.l.b16 %v9226
    %v10377 = vunpack.c.h.b16 %v9226
    %v10378 = vunpack.c.l.b16 %v9227
    %v10379 = vunpack.c.l.b16 %v9228
    %v10380 = vunpack.c.h.b16 %v9228
    %v10381 = vunpack.c.l.b16 %v9229
    %v10382 = vunpack.c.h.b16 %v9229
    %v10383 = vunpack.c.l.b16 %v9230
    %v10384 = vunpack.c.h.b16 %v9230
    %v10385 = vunpack.c.l.b16 %v9231
    %v10386 = vunpack.c.l.b16 %v9232
    %v10387 = vunpack.c.h.b16 %v9232
    %v10388 = vunpack.c.l.b16 %v9233
    %v10389 = vunpack.c.h.b16 %v9233
    %v10390 = vunpack.c.l.b16 %v9234
    %v10391 = vunpack.c.h.b16 %v9234
    %v10392 = vunpack.c.l.b16 %v9235
    %v10393 = vunpack.c.l.b16 %v9236
    %v10394 = vunpack.c.h.b16 %v9236
    %v10395 = vunpack.c.l.b16 %v9237
    %v10396 = vunpack.c.h.b16 %v9237
    %v10397 = vunpack.c.l.b16 %v9238
    %v10398 = vunpack.c.h.b16 %v9238
    %v10399 = vunpack.c.l.b16 %v9239
    %v10400 = vunpack.c.l.b16 %v9240
    %v10401 = vunpack.c.h.b16 %v9240
    %v10402 = vunpack.c.l.b16 %v9241
    %v10403 = vunpack.c.h.b16 %v9241
    %v10404 = vunpack.c.l.b16 %v9242
    %v10405 = vunpack.c.h.b16 %v9242
    %v10406 = vunpack.c.l.b16 %v9243
    %v10407 = vunpack.c.l.b16 %v9244
    %v10408 = vunpack.c.h.b16 %v9244
    %v10409 = vunpack.c.l.b16 %v9245
    %v10410 = vunpack.c.h.b16 %v9245
    %v10411 = vunpack.c.l.b16 %v9246
    %v10412 = vunpack.c.h.b16 %v9246
    %v10413 = vunpack.c.l.b16 %v9247
    %v10414 = vunpack.c.l.b16 %v9248
    %v10415 = vunpack.c.h.b16 %v9248
    %v10416 = vunpack.c.l.b16 %v9249
    %v10417 = vunpack.c.h.b16 %v9249
    %v10418 = vunpack.c.l.b16 %v9250
    %v10419 = vunpack.c.h.b16 %v9250
    %v10420 = vunpack.c.l.b16 %v9251
    %v10421 = vunpack.c.l.b16 %v9252
    %v10422 = vunpack.c.h.b16 %v9252
    %v10423 = vunpack.c.l.b16 %v9253
    %v10424 = vunpack.c.h.b16 %v9253
    %v10425 = vunpack.c.l.b16 %v9254
    %v10426 = vunpack.c.h.b16 %v9254
    %v10427 = vunpack.c.l.b16 %v9255
    %v10428 = vunpack.c.l.b16 %v9256
    %v10429 = vunpack.c.h.b16 %v9256
    %v10430 = vunpack.c.l.b16 %v9257
    %v10431 = vunpack.c.h.b16 %v9257
    %v10432 = vunpack.c.l.b16 %v9258
    %v10433 = vunpack.c.h.b16 %v9258
    %v10434 = vunpack.c.l.b16 %v9259
    %v10435 = vunpack.c.l.b16 %v9260
    %v10436 = vunpack.c.h.b16 %v9260
    %v10437 = vunpack.c.l.b16 %v9261
    %v10438 = vunpack.c.h.b16 %v9261
    %v10439 = vunpack.c.l.b16 %v9262
    %v10440 = vunpack.c.h.b16 %v9262
    %v10441 = vunpack.c.l.b16 %v9263
    %v10442 = vunpack.c.l.b16 %v9264
    %v10443 = vunpack.c.h.b16 %v9264
    %v10444 = vunpack.c.l.b16 %v9265
    %v10445 = vunpack.c.h.b16 %v9265
    %v10446 = vunpack.c.l.b16 %v9266
    %v10447 = vunpack.c.h.b16 %v9266
    %v10448 = vunpack.c.l.b16 %v9267
    %v10449 = vunpack.c.l.b16 %v9268
    %v10450 = vunpack.c.h.b16 %v9268
    %v10451 = vunpack.c.l.b16 %v9269
    %v10452 = vunpack.c.h.b16 %v9269
    %v10453 = vunpack.c.l.b16 %v9270
    %v10454 = vunpack.c.h.b16 %v9270
    %v10455 = vunpack.c.l.b16 %v9271
    %v10456 = vunpack.c.l.b16 %v9272
    %v10457 = vunpack.c.h.b16 %v9272
    %v10458 = vunpack.c.l.b16 %v9273
    %v10459 = vunpack.c.h.b16 %v9273
    %v10460 = vunpack.c.l.b16 %v9274
    %v10461 = vunpack.c.h.b16 %v9274
    %v10462 = vunpack.c.l.b16 %v9275
    %v10463 = vunpack.c.l.b16 %v9276
    %v10464 = vunpack.c.h.b16 %v9276
    %v10465 = vunpack.c.l.b16 %v9277
    %v10466 = vunpack.c.h.b16 %v9277
    %v10467 = vunpack.c.l.b16 %v9278
    %v10468 = vunpack.c.h.b16 %v9278
    %v10469 = vunpack.c.l.b16 %v9279
    %v10470 = vunpack.c.l.b16 %v9280
    %v10471 = vunpack.c.h.b16 %v9280
    %v10472 = vunpack.c.l.b16 %v9281
    %v10473 = vunpack.c.h.b16 %v9281
    %v10474 = vunpack.c.l.b16 %v9282
    %v10475 = vunpack.c.h.b16 %v9282
    %v10476 = vunpack.c.l.b16 %v9283
    %v10477 = vunpack.c.l.b16 %v9284
    %v10478 = vunpack.c.h.b16 %v9284
    %v10479 = vunpack.c.l.b16 %v9285
    %v10480 = vunpack.c.h.b16 %v9285
    %v10481 = vunpack.c.l.b16 %v9286
    %v10482 = vunpack.c.h.b16 %v9286
    %v10483 = vunpack.c.l.b16 %v9287
    %v10484 = vunpack.c.l.b16 %v9288
    %v10485 = vunpack.c.h.b16 %v9288
    %v10486 = vunpack.c.l.b16 %v9289
    %v10487 = vunpack.c.h.b16 %v9289
    %v10488 = vunpack.c.l.b16 %v9290
    %v10489 = vunpack.c.h.b16 %v9290
    %v10490 = vunpack.c.l.b16 %v9291
    %v10491 = vunpack.c.l.b16 %v9292
    %v10492 = vunpack.c.h.b16 %v9292
    %v10493 = vunpack.c.l.b16 %v9293
    %v10494 = vunpack.c.h.b16 %v9293
    %v10495 = vunpack.c.l.b16 %v9294
    %v10496 = vunpack.c.h.b16 %v9294
    %v10497 = vunpack.c.l.b16 %v9295
    %v10498 = vunpack.c.l.b16 %v9296
    %v10499 = vunpack.c.h.b16 %v9296
    %v10500 = vunpack.c.l.b16 %v9297
    %v10501 = vunpack.c.h.b16 %v9297
    %v10502 = vunpack.c.l.b16 %v9298
    %v10503 = vunpack.c.h.b16 %v9298
    %v10504 = vunpack.c.l.b16 %v9299
    %v10505 = vunpack.c.l.b16 %v9300
    %v10506 = vunpack.c.h.b16 %v9300
    %v10507 = vunpack.c.l.b16 %v9301
    %v10508 = vunpack.c.h.b16 %v9301
    %v10509 = vunpack.c.l.b16 %v9302
    %v10510 = vunpack.c.h.b16 %v9302
    %v10511 = vunpack.c.l.b16 %v9303
    %v10512 = vunpack.c.l.b16 %v9304
    %v10513 = vunpack.c.h.b16 %v9304
    %v10514 = vunpack.c.l.b16 %v9305
    %v10515 = vunpack.c.h.b16 %v9305
    %v10516 = vunpack.c.l.b16 %v9306
    %v10517 = vunpack.c.h.b16 %v9306
    %v10518 = vunpack.c.l.b16 %v9307
    %v10519 = vunpack.c.l.b16 %v9308
    %v10520 = vunpack.c.h.b16 %v9308
    %v10521 = vunpack.c.l.b16 %v9309
    %v10522 = vunpack.c.h.b16 %v9309
    %v10523 = vunpack.c.l.b16 %v9310
    %v10524 = vunpack.c.h.b16 %v9310
    %v10525 = vunpack.c.l.b16 %v9311
    %v10526 = vunpack.c.l.b16 %v9312
    %v10527 = vunpack.c.h.b16 %v9312
    %v10528 = vunpack.c.l.b16 %v9313
    %v10529 = vunpack.c.h.b16 %v9313
    %v10530 = vunpack.c.l.b16 %v9314
    %v10531 = vunpack.c.h.b16 %v9314
    %v10532 = vunpack.c.l.b16 %v9315
    %v10533 = vunpack.c.l.b16 %v9316
    %v10534 = vunpack.c.h.b16 %v9316
    %v10535 = vunpack.c.l.b16 %v9317
    %v10536 = vunpack.c.h.b16 %v9317
    %v10537 = vunpack.c.l.b16 %v9318
    %v10538 = vunpack.c.h.b16 %v9318
    %v10539 = vunpack.c.l.b16 %v9319
    %v10540 = vunpack.c.l.b16 %v9320
    %v10541 = vunpack.c.h.b16 %v9320
    %v10542 = vunpack.c.l.b16 %v9321
    %v10543 = vunpack.c.h.b16 %v9321
    %v10544 = vunpack.c.l.b16 %v9322
    %v10545 = vunpack.c.h.b16 %v9322
    %v10546 = vunpack.c.l.b16 %v9323
    %v10547 = vunpack.c.l.b16 %v9324
    %v10548 = vunpack.c.h.b16 %v9324
    %v10549 = vunpack.c.l.b16 %v9325
    %v10550 = vunpack.c.h.b16 %v9325
    %v10551 = vunpack.c.l.b16 %v9326
    %v10552 = vunpack.c.h.b16 %v9326
    %v10553 = vunpack.c.l.b16 %v9327
    %v10554 = vunpack.c.l.b16 %v9328
    %v10555 = vunpack.c.h.b16 %v9328
    %v10556 = vunpack.c.l.b16 %v9329
    %v10557 = vunpack.c.h.b16 %v9329
    %v10558 = vunpack.c.l.b16 %v9330
    %v10559 = vunpack.c.h.b16 %v9330
    %v10560 = vunpack.c.l.b16 %v9331
    %v10561 = vunpack.c.l.b16 %v9332
    %v10562 = vunpack.c.h.b16 %v9332
    %v10563 = vunpack.c.l.b16 %v9333
    %v10564 = vunpack.c.h.b16 %v9333
    %v10565 = vunpack.c.l.b16 %v9334
    %v10566 = vunpack.c.h.b16 %v9334
    %v10567 = vunpack.c.l.b16 %v9335
    %v10568 = vunpack.c.l.b16 %v9336
    %v10569 = vunpack.c.h.b16 %v9336
    %v10570 = vunpack.c.l.b16 %v9337
    %v10571 = vunpack.c.h.b16 %v9337
    %v10572 = vunpack.c.l.b16 %v9338
    %v10573 = vunpack.c.h.b16 %v9338
    %v10574 = vunpack.c.l.b16 %v9339
    %v10575 = vunpack.c.l.b16 %v9340
    %v10576 = vunpack.c.h.b16 %v9340
    %v10577 = vunpack.c.l.b16 %v9341
    %v10578 = vunpack.c.h.b16 %v9341
    %v10579 = vunpack.c.l.b16 %v9342
    %v10580 = vunpack.c.h.b16 %v9342
    %v10581 = vunpack.c.l.b16 %v9343
    %v10582 = vunpack.c.l.b16 %v9344
    %v10583 = vunpack.c.h.b16 %v9344
    %v10584 = vunpack.c.l.b16 %v9345
    %v10585 = vunpack.c.h.b16 %v9345
    %v10586 = vunpack.c.l.b16 %v9346
    %v10587 = vunpack.c.h.b16 %v9346
    %v10588 = vunpack.c.l.b16 %v9347
    %v10589 = vunpack.c.l.b16 %v9348
    %v10590 = vunpack.c.h.b16 %v9348
    %v10591 = vunpack.c.l.b16 %v9349
    %v10592 = vunpack.c.h.b16 %v9349
    %v10593 = vunpack.c.l.b16 %v9350
    %v10594 = vunpack.c.h.b16 %v9350
    %v10595 = vunpack.c.l.b16 %v9351
    %v10596 = vunpack.c.l.b16 %v9352
    %v10597 = vunpack.c.h.b16 %v9352
    %v10598 = vunpack.c.l.b16 %v9353
    %v10599 = vunpack.c.h.b16 %v9353
    %v10600 = vunpack.c.l.b16 %v9354
    %v10601 = vunpack.c.h.b16 %v9354
    %v10602 = vunpack.c.l.b16 %v9355
    %v10603 = vunpack.c.l.b16 %v9356
    %v10604 = vunpack.c.h.b16 %v9356
    %v10605 = vunpack.c.l.b16 %v9357
    %v10606 = vunpack.c.h.b16 %v9357
    %v10607 = vunpack.c.l.b16 %v9358
    %v10608 = vunpack.c.h.b16 %v9358
    %v10609 = vunpack.c.l.b16 %v9359
    %v10610 = vunpack.c.l.b16 %v9360
    %v10611 = vunpack.c.h.b16 %v9360
    %v10612 = vunpack.c.l.b16 %v9361
    %v10613 = vunpack.c.h.b16 %v9361
    %v10614 = vunpack.c.l.b16 %v9362
    %v10615 = vunpack.c.h.b16 %v9362
    %v10616 = vunpack.c.l.b16 %v9363
    %v10617 = vunpack.c.l.b16 %v9364
    %v10618 = vunpack.c.h.b16 %v9364
    %v10619 = vunpack.c.l.b16 %v9365
    %v10620 = vunpack.c.h.b16 %v9365
    %v10621 = vunpack.c.l.b16 %v9366
    %v10622 = vunpack.c.h.b16 %v9366
    %v10623 = vunpack.c.l.b16 %v9367
    %v10624 = vunpack.c.l.b16 %v9368
    %v10625 = vunpack.c.h.b16 %v9368
    %v10626 = vunpack.c.l.b16 %v9369
    %v10627 = vunpack.c.h.b16 %v9369
    %v10628 = vunpack.c.l.b16 %v9370
    %v10629 = vunpack.c.h.b16 %v9370
    %v10630 = vunpack.c.l.b16 %v9371
    %v10631 = vunpack.c.l.b16 %v9372
    %v10632 = vunpack.c.h.b16 %v9372
    %v10633 = vunpack.c.l.b16 %v9373
    %v10634 = vunpack.c.h.b16 %v9373
    %v10635 = vunpack.c.l.b16 %v9374
    %v10636 = vunpack.c.h.b16 %v9374
    %v10637 = vunpack.c.l.b16 %v9375
    %v10638 = vunpack.c.l.b16 %v9376
    %v10639 = vunpack.c.h.b16 %v9376
    %v10640 = vunpack.c.l.b16 %v9377
    %v10641 = vunpack.c.h.b16 %v9377
    %v10642 = vunpack.c.l.b16 %v9378
    %v10643 = vunpack.c.h.b16 %v9378
    %v10644 = vunpack.c.l.b16 %v9379
    %v10645 = vunpack.c.l.b16 %v9380
    %v10646 = vunpack.c.h.b16 %v9380
    %v10647 = vunpack.c.l.b16 %v9381
    %v10648 = vunpack.c.h.b16 %v9381
    %v10649 = vunpack.c.l.b16 %v9382
    %v10650 = vunpack.c.h.b16 %v9382
    %v10651 = vunpack.c.l.b16 %v9383
    %v10652 = vunpack.c.l.b16 %v9384
    %v10653 = vunpack.c.h.b16 %v9384
    %v10654 = vunpack.c.l.b16 %v9385
    %v10655 = vunpack.c.h.b16 %v9385
    %v10656 = vunpack.c.l.b16 %v9386
    %v10657 = vunpack.c.h.b16 %v9386
    %v10658 = vunpack.c.l.b16 %v9387
    %v10659 = vunpack.c.l.b16 %v9388
    %v10660 = vunpack.c.h.b16 %v9388
    %v10661 = vunpack.c.l.b16 %v9389
    %v10662 = vunpack.c.h.b16 %v9389
    %v10663 = vunpack.c.l.b16 %v9390
    %v10664 = vunpack.c.h.b16 %v9390
    %v10665 = vunpack.c.l.b16 %v9391
    %v10666 = vunpack.c.l.b16 %v9392
    %v10667 = vunpack.c.h.b16 %v9392
    %v10668 = vunpack.c.l.b16 %v9393
    %v10669 = vunpack.c.h.b16 %v9393
    %v10670 = vunpack.c.l.b16 %v9394
    %v10671 = vunpack.c.h.b16 %v9394
    %v10672 = vunpack.c.l.b16 %v9395
    %v10673 = vunpack.c.l.b16 %v9396
    %v10674 = vunpack.c.h.b16 %v9396
    %v10675 = vunpack.c.l.b16 %v9397
    %v10676 = vunpack.c.h.b16 %v9397
    %v10677 = vunpack.c.l.b16 %v9398
    %v10678 = vunpack.c.h.b16 %v9398
    %v10679 = vunpack.c.l.b16 %v9399
    %v10680 = vunpack.c.l.b16 %v9400
    %v10681 = vunpack.c.h.b16 %v9400
    %v10682 = vunpack.c.l.b16 %v9401
    %v10683 = vunpack.c.h.b16 %v9401
    %v10684 = vunpack.c.l.b16 %v9402
    %v10685 = vunpack.c.h.b16 %v9402
    %v10686 = vunpack.c.l.b16 %v9403
    %v10687 = vunpack.c.l.b16 %v9404
    %v10688 = vunpack.c.h.b16 %v9404
    %v10689 = vunpack.c.l.b16 %v9405
    %v10690 = vunpack.c.h.b16 %v9405
    %v10691 = vunpack.c.l.b16 %v9406
    %v10692 = vunpack.c.h.b16 %v9406
    %v10693 = vunpack.c.l.b16 %v9407
    %v10694 = vunpack.c.l.b16 %v9408
    %v10695 = vunpack.c.h.b16 %v9408
    %v10696 = vunpack.c.l.b16 %v9409
    %v10697 = vunpack.c.h.b16 %v9409
    %v10698 = vunpack.c.l.b16 %v9410
    %v10699 = vunpack.c.h.b16 %v9410
    %v10700 = vunpack.c.l.b16 %v9411
    %v10701 = vunpack.c.l.b16 %v9412
    %v10702 = vunpack.c.h.b16 %v9412
    %v10703 = vunpack.c.l.b16 %v9413
    %v10704 = vunpack.c.h.b16 %v9413
    %v10705 = vunpack.c.l.b16 %v9414
    %v10706 = vunpack.c.h.b16 %v9414
    %v10707 = vunpack.c.l.b16 %v9415
    %v10708 = vunpack.c.l.b16 %v9416
    %v10709 = vunpack.c.h.b16 %v9416
    %v10710 = vunpack.c.l.b16 %v9417
    %v10711 = vunpack.c.h.b16 %v9417
    %v10712 = vunpack.c.l.b16 %v9418
    %v10713 = vunpack.c.h.b16 %v9418
    %v10714 = vunpack.c.l.b16 %v9419
    %v10715 = vunpack.c.l.b16 %v9420
    %v10716 = vunpack.c.h.b16 %v9420
    %v10717 = vunpack.c.l.b16 %v9421
    %v10718 = vunpack.c.h.b16 %v9421
    %v10719 = vunpack.c.l.b16 %v9422
    %v10720 = vunpack.c.h.b16 %v9422
    %v10721 = vunpack.c.l.b16 %v9423
    %v10722 = vunpack.c.l.b16 %v9424
    %v10723 = vunpack.c.h.b16 %v9424
    %v10724 = vunpack.c.l.b16 %v9425
    %v10725 = vunpack.c.h.b16 %v9425
    %v10726 = vunpack.c.l.b16 %v9426
    %v10727 = vunpack.c.h.b16 %v9426
    %v10728 = vunpack.c.l.b16 %v9427
    %v10729 = vunpack.c.l.b16 %v9428
    %v10730 = vunpack.c.h.b16 %v9428
    %v10731 = vunpack.c.l.b16 %v9429
    %v10732 = vunpack.c.h.b16 %v9429
    %v10733 = vunpack.c.l.b16 %v9430
    %v10734 = vunpack.c.h.b16 %v9430
    %v10735 = vunpack.c.l.b16 %v9431
    %v10736 = vunpack.c.l.b16 %v9432
    %v10737 = vunpack.c.h.b16 %v9432
    %v10738 = vunpack.c.l.b16 %v9433
    %v10739 = vunpack.c.h.b16 %v9433
    %v10740 = vunpack.c.l.b16 %v9434
    %v10741 = vunpack.c.h.b16 %v9434
    %v10742 = vunpack.c.l.b16 %v9435
    %v10743 = vunpack.c.l.b16 %v9436
    %v10744 = vunpack.c.h.b16 %v9436
    %v10745 = vunpack.c.l.b16 %v9437
    %v10746 = vunpack.c.h.b16 %v9437
    %v10747 = vunpack.c.l.b16 %v9438
    %v10748 = vunpack.c.h.b16 %v9438
    %v10749 = vunpack.c.l.b16 %v9439
    %v10750 = vunpack.c.l.b16 %v9440
    %v10751 = vunpack.c.h.b16 %v9440
    %v10752 = vunpack.c.l.b16 %v9441
    %v10753 = vunpack.c.h.b16 %v9441
    %v10754 = vunpack.c.l.b16 %v9442
    %v10755 = vunpack.c.h.b16 %v9442
    %v10756 = vunpack.c.l.b16 %v9443
    %v10757 = vunpack.c.l.b16 %v9444
    %v10758 = vunpack.c.h.b16 %v9444
    %v10759 = vunpack.c.l.b16 %v9445
    %v10760 = vunpack.c.h.b16 %v9445
    %v10761 = vunpack.c.l.b16 %v9446
    %v10762 = vunpack.c.h.b16 %v9446
    %v10763 = vunpack.c.l.b16 %v9447
    %v10764 = vunpack.c.l.b16 %v9448
    %v10765 = vunpack.c.h.b16 %v9448
    %v10766 = vunpack.c.l.b16 %v9449
    %v10767 = vunpack.c.h.b16 %v9449
    %v10768 = vunpack.c.l.b16 %v9450
    %v10769 = vunpack.c.h.b16 %v9450
    %v10770 = vunpack.c.l.b16 %v9451
    %v10771 = vunpack.c.l.b16 %v9452
    %v10772 = vunpack.c.h.b16 %v9452
    %v10773 = vunpack.c.l.b16 %v9453
    %v10774 = vunpack.c.h.b16 %v9453
    %v10775 = vunpack.c.l.b16 %v9454
    %v10776 = vunpack.c.h.b16 %v9454
    %v10777 = vunpack.c.l.b16 %v9455
    %v10778 = vunpack.c.l.b16 %v9456
    %v10779 = vunpack.c.h.b16 %v9456
    %v10780 = vunpack.c.l.b16 %v9457
    %v10781 = vunpack.c.h.b16 %v9457
    %v10782 = vunpack.c.l.b16 %v9458
    %v10783 = vunpack.c.h.b16 %v9458
    %v10784 = vunpack.c.l.b16 %v9459
    %v10785 = vunpack.c.l.b16 %v9460
    %v10786 = vunpack.c.h.b16 %v9460
    %v10787 = vunpack.c.l.b16 %v9461
    %v10788 = vunpack.c.h.b16 %v9461
    %v10789 = vunpack.c.l.b16 %v9462
    %v10790 = vunpack.c.h.b16 %v9462
    %v10791 = vunpack.c.l.b16 %v9463
    %v10792 = vunpack.c.l.b16 %v9464
    %v10793 = vunpack.c.h.b16 %v9464
    %v10794 = vunpack.c.l.b16 %v9465
    %v10795 = vunpack.c.h.b16 %v9465
    %v10796 = vunpack.c.l.b16 %v9466
    %v10797 = vunpack.c.h.b16 %v9466
    %v10798 = vunpack.c.l.b16 %v9467
    %v10799 = vunpack.c.l.b16 %v9468
    %v10800 = vunpack.c.h.b16 %v9468
    %v10801 = vunpack.c.l.b16 %v9469
    %v10802 = vunpack.c.h.b16 %v9469
    %v10803 = vunpack.c.l.b16 %v9470
    %v10804 = vunpack.c.h.b16 %v9470
    %v10805 = vunpack.c.l.b16 %v9471
    %v10806 = vunpack.c.l.b16 %v9472
    %v10807 = vunpack.c.h.b16 %v9472
    %v10808 = vunpack.c.l.b16 %v9473
    %v10809 = vunpack.c.h.b16 %v9473
    %v10810 = vunpack.c.l.b16 %v9474
    %v10811 = vunpack.c.h.b16 %v9474
    %v10812 = vunpack.c.l.b16 %v9475
    %v10813 = vunpack.c.l.b16 %v9476
    %v10814 = vunpack.c.h.b16 %v9476
    %v10815 = vunpack.c.l.b16 %v9477
    %v10816 = vunpack.c.h.b16 %v9477
    %v10817 = vunpack.c.l.b16 %v9478
    %v10818 = vunpack.c.h.b16 %v9478
    %v10819 = vunpack.c.l.b16 %v9479
    %v10820 = vunpack.c.l.b16 %v9480
    %v10821 = vunpack.c.h.b16 %v9480
    %v10822 = vunpack.c.l.b16 %v9481
    %v10823 = vunpack.c.h.b16 %v9481
    %v10824 = vunpack.c.l.b16 %v9482
    %v10825 = vunpack.c.h.b16 %v9482
    %v10826 = vunpack.c.l.b16 %v9483
    %v10827 = vunpack.c.l.b16 %v9484
    %v10828 = vunpack.c.h.b16 %v9484
    %v10829 = vunpack.c.l.b16 %v9485
    %v10830 = vunpack.c.h.b16 %v9485
    %v10831 = vunpack.c.l.b16 %v9486
    %v10832 = vunpack.c.h.b16 %v9486
    %v10833 = vunpack.c.l.b16 %v9487
    %v10834 = vunpack.c.l.b16 %v9488
    %v10835 = vunpack.c.h.b16 %v9488
    %v10836 = vunpack.c.l.b16 %v9489
    %v10837 = vunpack.c.h.b16 %v9489
    %v10838 = vunpack.c.l.b16 %v9490
    %v10839 = vunpack.c.h.b16 %v9490
    %v10840 = vunpack.c.l.b16 %v9491
    %v10841 = vunpack.c.l.b16 %v9492
    %v10842 = vunpack.c.h.b16 %v9492
    %v10843 = vunpack.c.l.b16 %v9493
    %v10844 = vunpack.c.h.b16 %v9493
    %v10845 = vunpack.c.l.b16 %v9494
    %v10846 = vunpack.c.h.b16 %v9494
    %v10847 = vunpack.c.l.b16 %v9495
    %v10848 = vunpack.c.l.b16 %v9496
    %v10849 = vunpack.c.h.b16 %v9496
    %v10850 = vunpack.c.l.b16 %v9497
    %v10851 = vunpack.c.h.b16 %v9497
    %v10852 = vunpack.c.l.b16 %v9498
    %v10853 = vunpack.c.h.b16 %v9498
    %v10854 = vunpack.c.l.b16 %v9499
    %v10855 = vunpack.c.l.b16 %v9500
    %v10856 = vunpack.c.h.b16 %v9500
    %v10857 = vunpack.c.l.b16 %v9501
    %v10858 = vunpack.c.h.b16 %v9501
    %v10859 = vunpack.c.l.b16 %v9502
    %v10860 = vunpack.c.h.b16 %v9502
    %v10861 = vunpack.c.l.b16 %v9503
    %v10862 = vunpack.c.l.b16 %v9504
    %v10863 = vunpack.c.h.b16 %v9504
    %v10864 = vunpack.c.l.b16 %v9505
    %v10865 = vunpack.c.h.b16 %v9505
    %v10866 = vunpack.c.l.b16 %v9506
    %v10867 = vunpack.c.h.b16 %v9506
    %v10868 = vunpack.c.l.b16 %v9507
    %v10869 = vunpack.c.l.b16 %v9508
    %v10870 = vunpack.c.h.b16 %v9508
    %v10871 = vunpack.c.l.b16 %v9509
    %v10872 = vunpack.c.h.b16 %v9509
    %v10873 = vunpack.c.l.b16 %v9510
    %v10874 = vunpack.c.h.b16 %v9510
    %v10875 = vunpack.c.l.b16 %v9511
    %v10876 = vunpack.c.l.b16 %v9512
    %v10877 = vunpack.c.h.b16 %v9512
    %v10878 = vunpack.c.l.b16 %v9513
    %v10879 = vunpack.c.h.b16 %v9513
    %v10880 = vunpack.c.l.b16 %v9514
    %v10881 = vunpack.c.h.b16 %v9514
    %v10882 = vunpack.c.l.b16 %v9515
    %v10883 = vunpack.c.l.b16 %v9516
    %v10884 = vunpack.c.h.b16 %v9516
    %v10885 = vunpack.c.l.b16 %v9517
    %v10886 = vunpack.c.h.b16 %v9517
    %v10887 = vunpack.c.l.b16 %v9518
    %v10888 = vunpack.c.h.b16 %v9518
    %v10889 = vunpack.c.l.b16 %v9519
    %v10890 = vunpack.c.l.b16 %v9520
    %v10891 = vunpack.c.h.b16 %v9520
    %v10892 = vunpack.c.l.b16 %v9521
    %v10893 = vunpack.c.h.b16 %v9521
    %v10894 = vunpack.c.l.b16 %v9522
    %v10895 = vunpack.c.h.b16 %v9522
    %v10896 = vunpack.c.l.b16 %v9523
    %v10897 = vunpack.c.l.b16 %v9524
    %v10898 = vunpack.c.h.b16 %v9524
    %v10899 = vunpack.c.l.b16 %v9525
    %v10900 = vunpack.c.h.b16 %v9525
    %v10901 = vunpack.c.l.b16 %v9526
    %v10902 = vunpack.c.h.b16 %v9526
    %v10903 = vunpack.c.l.b16 %v9527
    %v10904 = vunpack.c.l.b16 %v9528
    %v10905 = vunpack.c.h.b16 %v9528
    %v10906 = vunpack.c.l.b16 %v9529
    %v10907 = vunpack.c.h.b16 %v9529
    %v10908 = vunpack.c.l.b16 %v9530
    %v10909 = vunpack.c.h.b16 %v9530
    %v10910 = vunpack.c.l.b16 %v9531
    %v10911 = vunpack.c.l.b16 %v9532
    %v10912 = vunpack.c.h.b16 %v9532
    %v10913 = vunpack.c.l.b16 %v9533
    %v10914 = vunpack.c.h.b16 %v9533
    %v10915 = vunpack.c.l.b16 %v9534
    %v10916 = vunpack.c.h.b16 %v9534
    %v10917 = vunpack.c.l.b16 %v9535
    %v10918 = vunpack.c.l.b16 %v9536
    %v10919 = vunpack.c.h.b16 %v9536
    %v10920 = vunpack.c.l.b16 %v9537
    %v10921 = vunpack.c.h.b16 %v9537
    %v10922 = vunpack.c.l.b16 %v9538
    %v10923 = vunpack.c.h.b16 %v9538
    %v10924 = vunpack.c.l.b16 %v9539
    %v10925 = vunpack.c.l.b16 %v9540
    %v10926 = vunpack.c.h.b16 %v9540
    %v10927 = vunpack.c.l.b16 %v9541
    %v10928 = vunpack.c.h.b16 %v9541
    %v10929 = vunpack.c.l.b16 %v9542
    %v10930 = vunpack.c.h.b16 %v9542
    %v10931 = vunpack.c.l.b16 %v9543
    %v10932 = vunpack.c.l.b16 %v9544
    %v10933 = vunpack.c.h.b16 %v9544
    %v10934 = vunpack.c.l.b16 %v9545
    %v10935 = vunpack.c.h.b16 %v9545
    %v10936 = vunpack.c.l.b16 %v9546
    %v10937 = vunpack.c.h.b16 %v9546
    %v10938 = vunpack.c.l.b16 %v9547
    %v10939 = vunpack.c.l.b16 %v9548
    %v10940 = vunpack.c.h.b16 %v9548
    %v10941 = vunpack.c.l.b16 %v9549
    %v10942 = vunpack.c.h.b16 %v9549
    %v10943 = vunpack.c.l.b16 %v9550
    %v10944 = vunpack.c.h.b16 %v9550
    %v10945 = vunpack.c.l.b16 %v9551
    %v10946 = vunpack.c.l.b16 %v9552
    %v10947 = vunpack.c.h.b16 %v9552
    %v10948 = vunpack.c.l.b16 %v9553
    %v10949 = vunpack.c.h.b16 %v9553
    %v10950 = vunpack.c.l.b16 %v9554
    %v10951 = vunpack.c.h.b16 %v9554
    %v10952 = vunpack.c.l.b16 %v9555
    %v10953 = vunpack.c.l.b16 %v9556
    %v10954 = vunpack.c.h.b16 %v9556
    %v10955 = vunpack.c.l.b16 %v9557
    %v10956 = vunpack.c.h.b16 %v9557
    %v10957 = vunpack.c.l.b16 %v9558
    %v10958 = vunpack.c.h.b16 %v9558
    %v10959 = vunpack.c.l.b16 %v9559
    %v10960 = vunpack.c.l.b16 %v9560
    %v10961 = vunpack.c.h.b16 %v9560
    %v10962 = vunpack.c.l.b16 %v9561
    %v10963 = vunpack.c.h.b16 %v9561
    %v10964 = vunpack.c.l.b16 %v9562
    %v10965 = vunpack.c.h.b16 %v9562
    %v10966 = vunpack.c.l.b16 %v9563
    %v10967 = vunpack.c.l.b16 %v9564
    %v10968 = vunpack.c.h.b16 %v9564
    %v10969 = vunpack.c.l.b16 %v9565
    %v10970 = vunpack.c.h.b16 %v9565
    %v10971 = vunpack.c.l.b16 %v9566
    %v10972 = vunpack.c.h.b16 %v9566
    %v10973 = vunpack.c.l.b16 %v9567
    %v10974 = vunpack.c.l.b16 %v9568
    %v10975 = vunpack.c.h.b16 %v9568
    %v10976 = vunpack.c.l.b16 %v9569
    %v10977 = vunpack.c.h.b16 %v9569
    %v10978 = vunpack.c.l.b16 %v9570
    %v10979 = vunpack.c.h.b16 %v9570
    %v10980 = vunpack.c.l.b16 %v9571
    %v10981 = vunpack.c.l.b16 %v9572
    %v10982 = vunpack.c.h.b16 %v9572
    %v10983 = vunpack.c.l.b16 %v9573
    %v10984 = vunpack.c.h.b16 %v9573
    %v10985 = vunpack.c.l.b16 %v9574
    %v10986 = vunpack.c.h.b16 %v9574
    %v10987 = vunpack.c.l.b16 %v9575
    %v10988 = vunpack.c.l.b16 %v9576
    %v10989 = vunpack.c.h.b16 %v9576
    %v10990 = vunpack.c.l.b16 %v9577
    %v10991 = vunpack.c.h.b16 %v9577
    %v10992 = vunpack.c.l.b16 %v9578
    %v10993 = vunpack.c.h.b16 %v9578
    %v10994 = vunpack.c.l.b16 %v9579
    %v10995 = vunpack.c.l.b16 %v9580
    %v10996 = vunpack.c.h.b16 %v9580
    %v10997 = vunpack.c.l.b16 %v9581
    %v10998 = vunpack.c.h.b16 %v9581
    %v10999 = vunpack.c.l.b16 %v9582
    %v11000 = vunpack.c.h.b16 %v9582
    %v11001 = vunpack.c.l.b16 %v9583
    %v11002 = vunpack.c.l.b16 %v9584
    %v11003 = vunpack.c.h.b16 %v9584
    %v11004 = vunpack.c.l.b16 %v9585
    %v11005 = vunpack.c.h.b16 %v9585
    %v11006 = vunpack.c.l.b16 %v9586
    %v11007 = vunpack.c.h.b16 %v9586
    %v11008 = vunpack.c.l.b16 %v9587
    %v11009 = vunpack.c.l.b16 %v9588
    %v11010 = vunpack.c.h.b16 %v9588
    %v11011 = vunpack.c.l.b16 %v9589
    %v11012 = vunpack.c.h.b16 %v9589
    %v11013 = vunpack.c.l.b16 %v9590
    %v11014 = vunpack.c.h.b16 %v9590
    %v11015 = vunpack.c.l.b16 %v9591
    %v11016 = vunpack.c.l.b16 %v9592
    %v11017 = vunpack.c.h.b16 %v9592
    %v11018 = vunpack.c.l.b16 %v9593
    %v11019 = vunpack.c.h.b16 %v9593
    %v11020 = vunpack.c.l.b16 %v9594
    %v11021 = vunpack.c.h.b16 %v9594
    %v11022 = vunpack.c.l.b16 %v9595
    %v11023 = vunpack.c.l.b16 %v9596
    %v11024 = vunpack.c.h.b16 %v9596
    %v11025 = vunpack.c.l.b16 %v9597
    %v11026 = vunpack.c.h.b16 %v9597
    %v11027 = vunpack.c.l.b16 %v9598
    %v11028 = vunpack.c.h.b16 %v9598
    %v11029 = vunpack.c.l.b16 %v9599
    %v11030 = vunpack.c.l.b16 %v9600
    %v11031 = vunpack.c.h.b16 %v9600
    %v11032 = vunpack.c.l.b16 %v9601
    %v11033 = vunpack.c.h.b16 %v9601
    %v11034 = vunpack.c.l.b16 %v9602
    %v11035 = vunpack.c.h.b16 %v9602
    %v11036 = vunpack.c.l.b16 %v9603
    %v11037 = vunpack.c.l.b16 %v9604
    %v11038 = vunpack.c.h.b16 %v9604
    %v11039 = vunpack.c.l.b16 %v9605
    %v11040 = vunpack.c.h.b16 %v9605
    %v11041 = vunpack.c.l.b16 %v9606
    %v11042 = vunpack.c.h.b16 %v9606
    %v11043 = vunpack.c.l.b16 %v9607
    %v11044 = vunpack.c.l.b16 %v9608
    %v11045 = vunpack.c.h.b16 %v9608
    %v11046 = vunpack.c.l.b16 %v9609
    %v11047 = vunpack.c.h.b16 %v9609
    %v11048 = vunpack.c.l.b16 %v9610
    %v11049 = vunpack.c.h.b16 %v9610
    %v11050 = vunpack.c.l.b16 %v9611
    %v11051 = vunpack.c.l.b16 %v9612
    %v11052 = vunpack.c.h.b16 %v9612
    %v11053 = vunpack.c.l.b16 %v9613
    %v11054 = vunpack.c.h.b16 %v9613
    %v11055 = vunpack.c.l.b16 %v9614
    %v11056 = vunpack.c.h.b16 %v9614
    %v11057 = vunpack.c.l.b16 %v9615
    %v11058 = vunpack.c.l.b16 %v9616
    %v11059 = vunpack.c.h.b16 %v9616
    %v11060 = vunpack.c.l.b16 %v9617
    %v11061 = vunpack.c.h.b16 %v9617
    %v11062 = vunpack.c.l.b16 %v9618
    %v11063 = vunpack.c.h.b16 %v9618
    %v11064 = vunpack.c.l.b16 %v9619
    %v11065 = vpack.c.b16 %v10176, %v10169
    %v11066 = vpack.c.b16 %v10177, %v10170
    %v11067 = vpack.c.b16 %v10178, %v10171
    %v11068 = vpack.c.b16 %v10179, %v10172
    %v11069 = vpack.c.b16 %v10180, %v10173
    %v11070 = vpack.c.b16 %v10181, %v10174
    %v11071 = vpack.c.b16 %v10182, %v10175
    %v11072 = vpack.c.b16 %v10190, %v10183
    %v11073 = vpack.c.b16 %v10191, %v10184
    %v11074 = vpack.c.b16 %v10192, %v10185
    %v11075 = vpack.c.b16 %v10193, %v10186
    %v11076 = vpack.c.b16 %v10194, %v10187
    %v11077 = vpack.c.b16 %v10195, %v10188
    %v11078 = vpack.c.b16 %v10196, %v10189
    %v11079 = vpack.c.b16 %v10204, %v10197
    %v11080 = vpack.c.b16 %v10205, %v10198
    %v11081 = vpack.c.b16 %v10206, %v10199
    %v11082 = vpack.c.b16 %v10207, %v10200
    %v11083 = vpack.c.b16 %v10208, %v10201
    %v11084 = vpack.c.b16 %v10209, %v10202
    %v11085 = vpack.c.b16 %v10210, %v10203
    %v11086 = vpack.c.b16 %v10218, %v10211
    %v11087 = vpack.c.b16 %v10219, %v10212
    %v11088 = vpack.c.b16 %v10220, %v10213
    %v11089 = vpack.c.b16 %v10221, %v10214
    %v11090 = vpack.c.b16 %v10222, %v10215
    %v11091 = vpack.c.b16 %v10223, %v10216
    %v11092 = vpack.c.b16 %v10224, %v10217
    %v11093 = vpack.c.b16 %v10232, %v10225
    %v11094 = vpack.c.b16 %v10233, %v10226
    %v11095 = vpack.c.b16 %v10234, %v10227
    %v11096 = vpack.c.b16 %v10235, %v10228
    %v11097 = vpack.c.b16 %v10236, %v10229
    %v11098 = vpack.c.b16 %v10237, %v10230
    %v11099 = vpack.c.b16 %v10238, %v10231
    %v11100 = vpack.c.b16 %v10246, %v10239
    %v11101 = vpack.c.b16 %v10247, %v10240
    %v11102 = vpack.c.b16 %v10248, %v10241
    %v11103 = vpack.c.b16 %v10249, %v10242
    %v11104 = vpack.c.b16 %v10250, %v10243
    %v11105 = vpack.c.b16 %v10251, %v10244
    %v11106 = vpack.c.b16 %v10252, %v10245
    %v11107 = vpack.c.b16 %v10260, %v10253
    %v11108 = vpack.c.b16 %v10261, %v10254
    %v11109 = vpack.c.b16 %v10262, %v10255
    %v11110 = vpack.c.b16 %v10263, %v10256
    %v11111 = vpack.c.b16 %v10264, %v10257
    %v11112 = vpack.c.b16 %v10265, %v10258
    %v11113 = vpack.c.b16 %v10266, %v10259
    %v11114 = vpack.c.b16 %v10274, %v10267
    %v11115 = vpack.c.b16 %v10275, %v10268
    %v11116 = vpack.c.b16 %v10276, %v10269
    %v11117 = vpack.c.b16 %v10277, %v10270
    %v11118 = vpack.c.b16 %v10278, %v10271
    %v11119 = vpack.c.b16 %v10279, %v10272
    %v11120 = vpack.c.b16 %v10280, %v10273
    %v11121 = vpack.c.b16 %v10288, %v10281
    %v11122 = vpack.c.b16 %v10289, %v10282
    %v11123 = vpack.c.b16 %v10290, %v10283
    %v11124 = vpack.c.b16 %v10291, %v10284
    %v11125 = vpack.c.b16 %v10292, %v10285
    %v11126 = vpack.c.b16 %v10293, %v10286
    %v11127 = vpack.c.b16 %v10294, %v10287
    %v11128 = vpack.c.b16 %v10302, %v10295
    %v11129 = vpack.c.b16 %v10303, %v10296
    %v11130 = vpack.c.b16 %v10304, %v10297
    %v11131 = vpack.c.b16 %v10305, %v10298
    %v11132 = vpack.c.b16 %v10306, %v10299
    %v11133 = vpack.c.b16 %v10307, %v10300
    %v11134 = vpack.c.b16 %v10308, %v10301
    %v11135 = vpack.c.b16 %v10316, %v10309
    %v11136 = vpack.c.b16 %v10317, %v10310
    %v11137 = vpack.c.b16 %v10318, %v10311
    %v11138 = vpack.c.b16 %v10319, %v10312
    %v11139 = vpack.c.b16 %v10320, %v10313
    %v11140 = vpack.c.b16 %v10321, %v10314
    %v11141 = vpack.c.b16 %v10322, %v10315
    %v11142 = vpack.c.b16 %v10330, %v10323
    %v11143 = vpack.c.b16 %v10331, %v10324
    %v11144 = vpack.c.b16 %v10332, %v10325
    %v11145 = vpack.c.b16 %v10333, %v10326
    %v11146 = vpack.c.b16 %v10334, %v10327
    %v11147 = vpack.c.b16 %v10335, %v10328
    %v11148 = vpack.c.b16 %v10336, %v10329
    %v11149 = vpack.c.b16 %v10344, %v10337
    %v11150 = vpack.c.b16 %v10345, %v10338
    %v11151 = vpack.c.b16 %v10346, %v10339
    %v11152 = vpack.c.b16 %v10347, %v10340
    %v11153 = vpack.c.b16 %v10348, %v10341
    %v11154 = vpack.c.b16 %v10349, %v10342
    %v11155 = vpack.c.b16 %v10350, %v10343
    %v11156 = vpack.c.b16 %v10358, %v10351
    %v11157 = vpack.c.b16 %v10359, %v10352
    %v11158 = vpack.c.b16 %v10360, %v10353
    %v11159 = vpack.c.b16 %v10361, %v10354
    %v11160 = vpack.c.b16 %v10362, %v10355
    %v11161 = vpack.c.b16 %v10363, %v10356
    %v11162 = vpack.c.b16 %v10364, %v10357
    %v11163 = vpack.c.b16 %v10372, %v10365
    %v11164 = vpack.c.b16 %v10373, %v10366
    %v11165 = vpack.c.b16 %v10374, %v10367
    %v11166 = vpack.c.b16 %v10375, %v10368
    %v11167 = vpack.c.b16 %v10376, %v10369
    %v11168 = vpack.c.b16 %v10377, %v10370
    %v11169 = vpack.c.b16 %v10378, %v10371
    %v11170 = vpack.c.b16 %v10386, %v10379
    %v11171 = vpack.c.b16 %v10387, %v10380
    %v11172 = vpack.c.b16 %v10388, %v10381
    %v11173 = vpack.c.b16 %v10389, %v10382
    %v11174 = vpack.c.b16 %v10390, %v10383
    %v11175 = vpack.c.b16 %v10391, %v10384
    %v11176 = vpack.c.b16 %v10392, %v10385
    %v11177 = vpack.c.b16 %v10400, %v10393
    %v11178 = vpack.c.b16 %v10401, %v10394
    %v11179 = vpack.c.b16 %v10402, %v10395
    %v11180 = vpack.c.b16 %v10403, %v10396
    %v11181 = vpack.c.b16 %v10404, %v10397
    %v11182 = vpack.c.b16 %v10405, %v10398
    %v11183 = vpack.c.b16 %v10406, %v10399
    %v11184 = vpack.c.b16 %v10414, %v10407
    %v11185 = vpack.c.b16 %v10415, %v10408
    %v11186 = vpack.c.b16 %v10416, %v10409
    %v11187 = vpack.c.b16 %v10417, %v10410
    %v11188 = vpack.c.b16 %v10418, %v10411
    %v11189 = vpack.c.b16 %v10419, %v10412
    %v11190 = vpack.c.b16 %v10420, %v10413
    %v11191 = vpack.c.b16 %v10428, %v10421
    %v11192 = vpack.c.b16 %v10429, %v10422
    %v11193 = vpack.c.b16 %v10430, %v10423
    %v11194 = vpack.c.b16 %v10431, %v10424
    %v11195 = vpack.c.b16 %v10432, %v10425
    %v11196 = vpack.c.b16 %v10433, %v10426
    %v11197 = vpack.c.b16 %v10434, %v10427
    %v11198 = vpack.c.b16 %v10442, %v10435
    %v11199 = vpack.c.b16 %v10443, %v10436
    %v11200 = vpack.c.b16 %v10444, %v10437
    %v11201 = vpack.c.b16 %v10445, %v10438
    %v11202 = vpack.c.b16 %v10446, %v10439
    %v11203 = vpack.c.b16 %v10447, %v10440
    %v11204 = vpack.c.b16 %v10448, %v10441
    %v11205 = vpack.c.b16 %v10456, %v10449
    %v11206 = vpack.c.b16 %v10457, %v10450
    %v11207 = vpack.c.b16 %v10458, %v10451
    %v11208 = vpack.c.b16 %v10459, %v10452
    %v11209 = vpack.c.b16 %v10460, %v10453
    %v11210 = vpack.c.b16 %v10461, %v10454
    %v11211 = vpack.c.b16 %v10462, %v10455
    %v11212 = vpack.c.b16 %v10470, %v10463
    %v11213 = vpack.c.b16 %v10471, %v10464
    %v11214 = vpack.c.b16 %v10472, %v10465
    %v11215 = vpack.c.b16 %v10473, %v10466
    %v11216 = vpack.c.b16 %v10474, %v10467
    %v11217 = vpack.c.b16 %v10475, %v10468
    %v11218 = vpack.c.b16 %v10476, %v10469
    %v11219 = vpack.c.b16 %v10484, %v10477
    %v11220 = vpack.c.b16 %v10485, %v10478
    %v11221 = vpack.c.b16 %v10486, %v10479
    %v11222 = vpack.c.b16 %v10487, %v10480
    %v11223 = vpack.c.b16 %v10488, %v10481
    %v11224 = vpack.c.b16 %v10489, %v10482
    %v11225 = vpack.c.b16 %v10490, %v10483
    %v11226 = vpack.c.b16 %v10498, %v10491
    %v11227 = vpack.c.b16 %v10499, %v10492
    %v11228 = vpack.c.b16 %v10500, %v10493
    %v11229 = vpack.c.b16 %v10501, %v10494
    %v11230 = vpack.c.b16 %v10502, %v10495
    %v11231 = vpack.c.b16 %v10503, %v10496
    %v11232 = vpack.c.b16 %v10504, %v10497
    %v11233 = vpack.c.b16 %v10512, %v10505
    %v11234 = vpack.c.b16 %v10513, %v10506
    %v11235 = vpack.c.b16 %v10514, %v10507
    %v11236 = vpack.c.b16 %v10515, %v10508
    %v11237 = vpack.c.b16 %v10516, %v10509
    %v11238 = vpack.c.b16 %v10517, %v10510
    %v11239 = vpack.c.b16 %v10518, %v10511
    %v11240 = vpack.c.b16 %v10526, %v10519
    %v11241 = vpack.c.b16 %v10527, %v10520
    %v11242 = vpack.c.b16 %v10528, %v10521
    %v11243 = vpack.c.b16 %v10529, %v10522
    %v11244 = vpack.c.b16 %v10530, %v10523
    %v11245 = vpack.c.b16 %v10531, %v10524
    %v11246 = vpack.c.b16 %v10532, %v10525
    %v11247 = vpack.c.b16 %v10540, %v10533
    %v11248 = vpack.c.b16 %v10541, %v10534
    %v11249 = vpack.c.b16 %v10542, %v10535
    %v11250 = vpack.c.b16 %v10543, %v10536
    %v11251 = vpack.c.b16 %v10544, %v10537
    %v11252 = vpack.c.b16 %v10545, %v10538
    %v11253 = vpack.c.b16 %v10546, %v10539
    %v11254 = vpack.c.b16 %v10554, %v10547
    %v11255 = vpack.c.b16 %v10555, %v10548
    %v11256 = vpack.c.b16 %v10556, %v10549
    %v11257 = vpack.c.b16 %v10557, %v10550
    %v11258 = vpack.c.b16 %v10558, %v10551
    %v11259 = vpack.c.b16 %v10559, %v10552
    %v11260 = vpack.c.b16 %v10560, %v10553
    %v11261 = vpack.c.b16 %v10568, %v10561
    %v11262 = vpack.c.b16 %v10569, %v10562
    %v11263 = vpack.c.b16 %v10570, %v10563
    %v11264 = vpack.c.b16 %v10571, %v10564
    %v11265 = vpack.c.b16 %v10572, %v10565
    %v11266 = vpack.c.b16 %v10573, %v10566
    %v11267 = vpack.c.b16 %v10574, %v10567
    %v11268 = vpack.c.b16 %v10582, %v10575
    %v11269 = vpack.c.b16 %v10583, %v10576
    %v11270 = vpack.c.b16 %v10584, %v10577
    %v11271 = vpack.c.b16 %v10585, %v10578
    %v11272 = vpack.c.b16 %v10586, %v10579
    %v11273 = vpack.c.b16 %v10587, %v10580
    %v11274 = vpack.c.b16 %v10588, %v10581
    %v11275 = vpack.c.b16 %v10596, %v10589
    %v11276 = vpack.c.b16 %v10597, %v10590
    %v11277 = vpack.c.b16 %v10598, %v10591
    %v11278 = vpack.c.b16 %v10599, %v10592
    %v11279 = vpack.c.b16 %v10600, %v10593
    %v11280 = vpack.c.b16 %v10601, %v10594
    %v11281 = vpack.c.b16 %v10602, %v10595
    %v11282 = vpack.c.b16 %v10610, %v10603
    %v11283 = vpack.c.b16 %v10611, %v10604
    %v11284 = vpack.c.b16 %v10612, %v10605
    %v11285 = vpack.c.b16 %v10613, %v10606
    %v11286 = vpack.c.b16 %v10614, %v10607
    %v11287 = vpack.c.b16 %v10615, %v10608
    %v11288 = vpack.c.b16 %v10616, %v10609
    %v11289 = vpack.c.b16 %v10624, %v10617
    %v11290 = vpack.c.b16 %v10625, %v10618
    %v11291 = vpack.c.b16 %v10626, %v10619
    %v11292 = vpack.c.b16 %v10627, %v10620
    %v11293 = vpack.c.b16 %v10628, %v10621
    %v11294 = vpack.c.b16 %v10629, %v10622
    %v11295 = vpack.c.b16 %v10630, %v10623
    %v11296 = vpack.c.b16 %v10638, %v10631
    %v11297 = vpack.c.b16 %v10639, %v10632
    %v11298 = vpack.c.b16 %v10640, %v10633
    %v11299 = vpack.c.b16 %v10641, %v10634
    %v11300 = vpack.c.b16 %v10642, %v10635
    %v11301 = vpack.c.b16 %v10643, %v10636
    %v11302 = vpack.c.b16 %v10644, %v10637
    %v11303 = vpack.c.b16 %v10652, %v10645
    %v11304 = vpack.c.b16 %v10653, %v10646
    %v11305 = vpack.c.b16 %v10654, %v10647
    %v11306 = vpack.c.b16 %v10655, %v10648
    %v11307 = vpack.c.b16 %v10656, %v10649
    %v11308 = vpack.c.b16 %v10657, %v10650
    %v11309 = vpack.c.b16 %v10658, %v10651
    %v11310 = vpack.c.b16 %v10666, %v10659
    %v11311 = vpack.c.b16 %v10667, %v10660
    %v11312 = vpack.c.b16 %v10668, %v10661
    %v11313 = vpack.c.b16 %v10669, %v10662
    %v11314 = vpack.c.b16 %v10670, %v10663
    %v11315 = vpack.c.b16 %v10671, %v10664
    %v11316 = vpack.c.b16 %v10672, %v10665
    %v11317 = vpack.c.b16 %v10680, %v10673
    %v11318 = vpack.c.b16 %v10681, %v10674
    %v11319 = vpack.c.b16 %v10682, %v10675
    %v11320 = vpack.c.b16 %v10683, %v10676
    %v11321 = vpack.c.b16 %v10684, %v10677
    %v11322 = vpack.c.b16 %v10685, %v10678
    %v11323 = vpack.c.b16 %v10686, %v10679
    %v11324 = vpack.c.b16 %v10694, %v10687
    %v11325 = vpack.c.b16 %v10695, %v10688
    %v11326 = vpack.c.b16 %v10696, %v10689
    %v11327 = vpack.c.b16 %v10697, %v10690
    %v11328 = vpack.c.b16 %v10698, %v10691
    %v11329 = vpack.c.b16 %v10699, %v10692
    %v11330 = vpack.c.b16 %v10700, %v10693
    %v11331 = vpack.c.b16 %v10708, %v10701
    %v11332 = vpack.c.b16 %v10709, %v10702
    %v11333 = vpack.c.b16 %v10710, %v10703
    %v11334 = vpack.c.b16 %v10711, %v10704
    %v11335 = vpack.c.b16 %v10712, %v10705
    %v11336 = vpack.c.b16 %v10713, %v10706
    %v11337 = vpack.c.b16 %v10714, %v10707
    %v11338 = vpack.c.b16 %v10722, %v10715
    %v11339 = vpack.c.b16 %v10723, %v10716
    %v11340 = vpack.c.b16 %v10724, %v10717
    %v11341 = vpack.c.b16 %v10725, %v10718
    %v11342 = vpack.c.b16 %v10726, %v10719
    %v11343 = vpack.c.b16 %v10727, %v10720
    %v11344 = vpack.c.b16 %v10728, %v10721
    %v11345 = vpack.c.b16 %v10736, %v10729
    %v11346 = vpack.c.b16 %v10737, %v10730
    %v11347 = vpack.c.b16 %v10738, %v10731
    %v11348 = vpack.c.b16 %v10739, %v10732
    %v11349 = vpack.c.b16 %v10740, %v10733
    %v11350 = vpack.c.b16 %v10741, %v10734
    %v11351 = vpack.c.b16 %v10742, %v10735
    %v11352 = vpack.c.b16 %v10750, %v10743
    %v11353 = vpack.c.b16 %v10751, %v10744
    %v11354 = vpack.c.b16 %v10752, %v10745
    %v11355 = vpack.c.b16 %v10753, %v10746
    %v11356 = vpack.c.b16 %v10754, %v10747
    %v11357 = vpack.c.b16 %v10755, %v10748
    %v11358 = vpack.c.b16 %v10756, %v10749
    %v11359 = vpack.c.b16 %v10764, %v10757
    %v11360 = vpack.c.b16 %v10765, %v10758
    %v11361 = vpack.c.b16 %v10766, %v10759
    %v11362 = vpack.c.b16 %v10767, %v10760
    %v11363 = vpack.c.b16 %v10768, %v10761
    %v11364 = vpack.c.b16 %v10769, %v10762
    %v11365 = vpack.c.b16 %v10770, %v10763
    %v11366 = vpack.c.b16 %v10778, %v10771
    %v11367 = vpack.c.b16 %v10779, %v10772
    %v11368 = vpack.c.b16 %v10780, %v10773
    %v11369 = vpack.c.b16 %v10781, %v10774
    %v11370 = vpack.c.b16 %v10782, %v10775
    %v11371 = vpack.c.b16 %v10783, %v10776
    %v11372 = vpack.c.b16 %v10784, %v10777
    %v11373 = vpack.c.b16 %v10792, %v10785
    %v11374 = vpack.c.b16 %v10793, %v10786
    %v11375 = vpack.c.b16 %v10794, %v10787
    %v11376 = vpack.c.b16 %v10795, %v10788
    %v11377 = vpack.c.b16 %v10796, %v10789
    %v11378 = vpack.c.b16 %v10797, %v10790
    %v11379 = vpack.c.b16 %v10798, %v10791
    %v11380 = vpack.c.b16 %v10806, %v10799
    %v11381 = vpack.c.b16 %v10807, %v10800
    %v11382 = vpack.c.b16 %v10808, %v10801
    %v11383 = vpack.c.b16 %v10809, %v10802
    %v11384 = vpack.c.b16 %v10810, %v10803
    %v11385 = vpack.c.b16 %v10811, %v10804
    %v11386 = vpack.c.b16 %v10812, %v10805
    %v11387 = vpack.c.b16 %v10820, %v10813
    %v11388 = vpack.c.b16 %v10821, %v10814
    %v11389 = vpack.c.b16 %v10822, %v10815
    %v11390 = vpack.c.b16 %v10823, %v10816
    %v11391 = vpack.c.b16 %v10824, %v10817
    %v11392 = vpack.c.b16 %v10825, %v10818
    %v11393 = vpack.c.b16 %v10826, %v10819
    %v11394 = vpack.c.b16 %v10834, %v10827
    %v11395 = vpack.c.b16 %v10835, %v10828
    %v11396 = vpack.c.b16 %v10836, %v10829
    %v11397 = vpack.c.b16 %v10837, %v10830
    %v11398 = vpack.c.b16 %v10838, %v10831
    %v11399 = vpack.c.b16 %v10839, %v10832
    %v11400 = vpack.c.b16 %v10840, %v10833
    %v11401 = vpack.c.b16 %v10848, %v10841
    %v11402 = vpack.c.b16 %v10849, %v10842
    %v11403 = vpack.c.b16 %v10850, %v10843
    %v11404 = vpack.c.b16 %v10851, %v10844
    %v11405 = vpack.c.b16 %v10852, %v10845
    %v11406 = vpack.c.b16 %v10853, %v10846
    %v11407 = vpack.c.b16 %v10854, %v10847
    %v11408 = vpack.c.b16 %v10862, %v10855
    %v11409 = vpack.c.b16 %v10863, %v10856
    %v11410 = vpack.c.b16 %v10864, %v10857
    %v11411 = vpack.c.b16 %v10865, %v10858
    %v11412 = vpack.c.b16 %v10866, %v10859
    %v11413 = vpack.c.b16 %v10867, %v10860
    %v11414 = vpack.c.b16 %v10868, %v10861
    %v11415 = vpack.c.b16 %v10876, %v10869
    %v11416 = vpack.c.b16 %v10877, %v10870
    %v11417 = vpack.c.b16 %v10878, %v10871
    %v11418 = vpack.c.b16 %v10879, %v10872
    %v11419 = vpack.c.b16 %v10880, %v10873
    %v11420 = vpack.c.b16 %v10881, %v10874
    %v11421 = vpack.c.b16 %v10882, %v10875
    %v11422 = vpack.c.b16 %v10890, %v10883
    %v11423 = vpack.c.b16 %v10891, %v10884
    %v11424 = vpack.c.b16 %v10892, %v10885
    %v11425 = vpack.c.b16 %v10893, %v10886
    %v11426 = vpack.c.b16 %v10894, %v10887
    %v11427 = vpack.c.b16 %v10895, %v10888
    %v11428 = vpack.c.b16 %v10896, %v10889
    %v11429 = vpack.c.b16 %v10904, %v10897
    %v11430 = vpack.c.b16 %v10905, %v10898
    %v11431 = vpack.c.b16 %v10906, %v10899
    %v11432 = vpack.c.b16 %v10907, %v10900
    %v11433 = vpack.c.b16 %v10908, %v10901
    %v11434 = vpack.c.b16 %v10909, %v10902
    %v11435 = vpack.c.b16 %v10910, %v10903
    %v11436 = vpack.c.b16 %v10918, %v10911
    %v11437 = vpack.c.b16 %v10919, %v10912
    %v11438 = vpack.c.b16 %v10920, %v10913
    %v11439 = vpack.c.b16 %v10921, %v10914
    %v11440 = vpack.c.b16 %v10922, %v10915
    %v11441 = vpack.c.b16 %v10923, %v10916
    %v11442 = vpack.c.b16 %v10924, %v10917
    %v11443 = vpack.c.b16 %v10932, %v10925
    %v11444 = vpack.c.b16 %v10933, %v10926
    %v11445 = vpack.c.b16 %v10934, %v10927
    %v11446 = vpack.c.b16 %v10935, %v10928
    %v11447 = vpack.c.b16 %v10936, %v10929
    %v11448 = vpack.c.b16 %v10937, %v10930
    %v11449 = vpack.c.b16 %v10938, %v10931
    %v11450 = vpack.c.b16 %v10946, %v10939
    %v11451 = vpack.c.b16 %v10947, %v10940
    %v11452 = vpack.c.b16 %v10948, %v10941
    %v11453 = vpack.c.b16 %v10949, %v10942
    %v11454 = vpack.c.b16 %v10950, %v10943
    %v11455 = vpack.c.b16 %v10951, %v10944
    %v11456 = vpack.c.b16 %v10952, %v10945
    %v11457 = vpack.c.b16 %v10960, %v10953
    %v11458 = vpack.c.b16 %v10961, %v10954
    %v11459 = vpack.c.b16 %v10962, %v10955
    %v11460 = vpack.c.b16 %v10963, %v10956
    %v11461 = vpack.c.b16 %v10964, %v10957
    %v11462 = vpack.c.b16 %v10965, %v10958
    %v11463 = vpack.c.b16 %v10966, %v10959
    %v11464 = vpack.c.b16 %v10974, %v10967
    %v11465 = vpack.c.b16 %v10975, %v10968
    %v11466 = vpack.c.b16 %v10976, %v10969
    %v11467 = vpack.c.b16 %v10977, %v10970
    %v11468 = vpack.c.b16 %v10978, %v10971
    %v11469 = vpack.c.b16 %v10979, %v10972
    %v11470 = vpack.c.b16 %v10980, %v10973
    %v11471 = vpack.c.b16 %v10988, %v10981
    %v11472 = vpack.c.b16 %v10989, %v10982
    %v11473 = vpack.c.b16 %v10990, %v10983
    %v11474 = vpack.c.b16 %v10991, %v10984
    %v11475 = vpack.c.b16 %v10992, %v10985
    %v11476 = vpack.c.b16 %v10993, %v10986
    %v11477 = vpack.c.b16 %v10994, %v10987
    %v11478 = vpack.c.b16 %v11002, %v10995
    %v11479 = vpack.c.b16 %v11003, %v10996
    %v11480 = vpack.c.b16 %v11004, %v10997
    %v11481 = vpack.c.b16 %v11005, %v10998
    %v11482 = vpack.c.b16 %v11006, %v10999
    %v11483 = vpack.c.b16 %v11007, %v11000
    %v11484 = vpack.c.b16 %v11008, %v11001
    %v11485 = vpack.c.b16 %v11016, %v11009
    %v11486 = vpack.c.b16 %v11017, %v11010
    %v11487 = vpack.c.b16 %v11018, %v11011
    %v11488 = vpack.c.b16 %v11019, %v11012
    %v11489 = vpack.c.b16 %v11020, %v11013
    %v11490 = vpack.c.b16 %v11021, %v11014
    %v11491 = vpack.c.b16 %v11022, %v11015
    %v11492 = vpack.c.b16 %v11030, %v11023
    %v11493 = vpack.c.b16 %v11031, %v11024
    %v11494 = vpack.c.b16 %v11032, %v11025
    %v11495 = vpack.c.b16 %v11033, %v11026
    %v11496 = vpack.c.b16 %v11034, %v11027
    %v11497 = vpack.c.b16 %v11035, %v11028
    %v11498 = vpack.c.b16 %v11036, %v11029
    %v11499 = vpack.c.b16 %v11044, %v11037
    %v11500 = vpack.c.b16 %v11045, %v11038
    %v11501 = vpack.c.b16 %v11046, %v11039
    %v11502 = vpack.c.b16 %v11047, %v11040
    %v11503 = vpack.c.b16 %v11048, %v11041
    %v11504 = vpack.c.b16 %v11049, %v11042
    %v11505 = vpack.c.b16 %v11050, %v11043
    %v11506 = vpack.c.b16 %v11058, %v11051
    %v11507 = vpack.c.b16 %v11059, %v11052
    %v11508 = vpack.c.b16 %v11060, %v11053
    %v11509 = vpack.c.b16 %v11061, %v11054
    %v11510 = vpack.c.b16 %v11062, %v11055
    %v11511 = vpack.c.b16 %v11063, %v11056
    %v11512 = vpack.c.b16 %v11064, %v11057
    %11961 = vmatprep.subr.bf16.mxu0 %v11066
    %11962 = vmatpush1.bf16.msra.mxu0 %v11065
    %11963 = vmatprep.subr.bf16.mxu0 %v11073
    %11964 = vmatpush1.bf16.msra.mxu0 %v11072
    %11965 = vmatprep.subr.bf16.mxu0 %v11080
    %11966 = vmatpush1.bf16.msra.mxu0 %v11079
    %11967 = vmatprep.subr.bf16.mxu0 %v11087
    %11968 = vmatpush1.bf16.msra.mxu0 %v11086
    %11969 = vmatprep.subr.bf16.mxu0 %v11094
    %11970 = vmatpush1.bf16.msra.mxu0 %v11093
    %11971 = vmatprep.subr.bf16.mxu0 %v11101
    %11972 = vmatpush1.bf16.msra.mxu0 %v11100
    %11973 = vmatprep.subr.bf16.mxu0 %v11108
    %11974 = vmatpush1.bf16.msra.mxu0 %v11107
    %11975 = vmatprep.subr.bf16.mxu0 %v11115
    %11976 = vmatpush1.bf16.msra.mxu0 %v11114
    %11977 = vmatprep.subr.bf16.mxu0 %v11122
    %11978 = vmatpush1.bf16.msra.mxu0 %v11121
    %11979 = vmatprep.subr.bf16.mxu0 %v11129
    %11980 = vmatpush1.bf16.msra.mxu0 %v11128
    %11981 = vmatprep.subr.bf16.mxu0 %v11136
    %11982 = vmatpush1.bf16.msra.mxu0 %v11135
    %11983 = vmatprep.subr.bf16.mxu0 %v11143
    %11984 = vmatpush1.bf16.msra.mxu0 %v11142
    %11985 = vmatprep.subr.bf16.mxu0 %v11150
    %11986 = vmatpush1.bf16.msra.mxu0 %v11149
    %11987 = vmatprep.subr.bf16.mxu0 %v11157
    %11988 = vmatpush1.bf16.msra.mxu0 %v11156
    %11989 = vmatprep.subr.bf16.mxu0 %v11164
    %11990 = vmatpush1.bf16.msra.mxu0 %v11163
    %11991 = vmatprep.subr.bf16.mxu0 %v11171
    %11992 = vmatpush1.bf16.msra.mxu0 %v11170
    %11993 = vmatprep.mubr.bf16.mxu0 %v9101
    %11994 = vmatmul.mubr.bf16.gmra.mrb[0].mxu0 %v9100
    %v11995 = vpop.f32.mrb[0].mxu0
    %v11996 = vadd.f32 %v9625, %v11995
    %v11997 = vpop.f32.mrb[0].mxu0
    %v11998 = vadd.f32 %v9629, %v11997
    %v11999 = vpop.f32.mrb[0].mxu0
    %v12000 = vpop.f32.mrb[0].mxu0
    %12001 = vdwg.mxu0
    %12002 = vmatprep.subr.bf16.mxu0 %v11178
    %12003 = vmatpush1.bf16.msra.mxu0 %v11177
    %12004 = vmatprep.subr.bf16.mxu0 %v11185
    %12005 = vmatpush1.bf16.msra.mxu0 %v11184
    %12006 = vmatprep.subr.bf16.mxu0 %v11192
    %12007 = vmatpush1.bf16.msra.mxu0 %v11191
    %12008 = vmatprep.subr.bf16.mxu0 %v11199
    %12009 = vmatpush1.bf16.msra.mxu0 %v11198
    %12010 = vmatprep.subr.bf16.mxu0 %v11206
    %12011 = vmatpush1.bf16.msra.mxu0 %v11205
    %12012 = vmatprep.subr.bf16.mxu0 %v11213
    %12013 = vmatpush1.bf16.msra.mxu0 %v11212
    %12014 = vmatprep.subr.bf16.mxu0 %v11220
    %12015 = vmatpush1.bf16.msra.mxu0 %v11219
    %12016 = vmatprep.subr.bf16.mxu0 %v11227
    %12017 = vmatpush1.bf16.msra.mxu0 %v11226
    %12018 = vmatprep.subr.bf16.mxu0 %v11234
    %12019 = vmatpush1.bf16.msra.mxu0 %v11233
    %12020 = vmatprep.subr.bf16.mxu0 %v11241
    %12021 = vmatpush1.bf16.msra.mxu0 %v11240
    %12022 = vmatprep.subr.bf16.mxu0 %v11248
    %12023 = vmatpush1.bf16.msra.mxu0 %v11247
    %12024 = vmatprep.subr.bf16.mxu0 %v11255
    %12025 = vmatpush1.bf16.msra.mxu0 %v11254
    %12026 = vmatprep.subr.bf16.mxu0 %v11262
    %12027 = vmatpush1.bf16.msra.mxu0 %v11261
    %12028 = vmatprep.subr.bf16.mxu0 %v11269
    %12029 = vmatpush1.bf16.msra.mxu0 %v11268
    %12030 = vmatprep.subr.bf16.mxu0 %v11276
    %12031 = vmatpush1.bf16.msra.mxu0 %v11275
    %12032 = vmatprep.subr.bf16.mxu0 %v11283
    %12033 = vmatpush1.bf16.msra.mxu0 %v11282
    %12034 = vmatprep.mubr.bf16.mxu0 %v9103
    %12035 = vmatmul.mubr.bf16.gmra.mrb[0].mxu0 %v9102
    %v12036 = vpop.f32.mrb[0].mxu0
    %v12037 = vadd.f32 %v11996, %v12036
    %v12038 = vpop.f32.mrb[0].mxu0
    %v12039 = vadd.f32 %v11998, %v12038
    %v12040 = vpop.f32.mrb[0].mxu0
    %v12041 = vpop.f32.mrb[0].mxu0
    %12042 = vdwg.mxu0
    %12043 = vmatprep.subr.bf16.mxu0 %v11290
    %12044 = vmatpush1.bf16.msra.mxu0 %v11289
    %12045 = vmatprep.subr.bf16.mxu0 %v11297
    %12046 = vmatpush1.bf16.msra.mxu0 %v11296
    %12047 = vmatprep.subr.bf16.mxu0 %v11304
    %12048 = vmatpush1.bf16.msra.mxu0 %v11303
    %12049 = vmatprep.subr.bf16.mxu0 %v11311
    %12050 = vmatpush1.bf16.msra.mxu0 %v11310
    %12051 = vmatprep.subr.bf16.mxu0 %v11318
    %12052 = vmatpush1.bf16.msra.mxu0 %v11317
    %12053 = vmatprep.subr.bf16.mxu0 %v11325
    %12054 = vmatpush1.bf16.msra.mxu0 %v11324
    %12055 = vmatprep.subr.bf16.mxu0 %v11332
    %12056 = vmatpush1.bf16.msra.mxu0 %v11331
    %12057 = vmatprep.subr.bf16.mxu0 %v11339
    %12058 = vmatpush1.bf16.msra.mxu0 %v11338
    %12059 = vmatprep.subr.bf16.mxu0 %v11346
    %12060 = vmatpush1.bf16.msra.mxu0 %v11345
    %12061 = vmatprep.subr.bf16.mxu0 %v11353
    %12062 = vmatpush1.bf16.msra.mxu0 %v11352
    %12063 = vmatprep.subr.bf16.mxu0 %v11360
    %12064 = vmatpush1.bf16.msra.mxu0 %v11359
    %12065 = vmatprep.subr.bf16.mxu0 %v11367
    %12066 = vmatpush1.bf16.msra.mxu0 %v11366
    %12067 = vmatprep.subr.bf16.mxu0 %v11374
    %12068 = vmatpush1.bf16.msra.mxu0 %v11373
    %12069 = vmatprep.subr.bf16.mxu0 %v11381
    %12070 = vmatpush1.bf16.msra.mxu0 %v11380
    %12071 = vmatprep.subr.bf16.mxu0 %v11388
    %12072 = vmatpush1.bf16.msra.mxu0 %v11387
    %12073 = vmatprep.subr.bf16.mxu0 %v11395
    %12074 = vmatpush1.bf16.msra.mxu0 %v11394
    %12075 = vmatprep.mubr.bf16.mxu0 %v9105
    %12076 = vmatmul.mubr.bf16.gmra.mrb[0].mxu0 %v9104
    %v12077 = vpop.f32.mrb[0].mxu0
    %v12078 = vadd.f32 %v12037, %v12077
    %v12079 = vpop.f32.mrb[0].mxu0
    %v12080 = vadd.f32 %v12039, %v12079
    %v12081 = vpop.f32.mrb[0].mxu0
    %v12082 = vpop.f32.mrb[0].mxu0
    %12083 = vdwg.mxu0
    %12084 = vmatprep.subr.bf16.mxu0 %v11402
    %12085 = vmatpush1.bf16.msra.mxu0 %v11401
    %12086 = vmatprep.subr.bf16.mxu0 %v11409
    %12087 = vmatpush1.bf16.msra.mxu0 %v11408
    %12088 = vmatprep.subr.bf16.mxu0 %v11416
    %12089 = vmatpush1.bf16.msra.mxu0 %v11415
    %12090 = vmatprep.subr.bf16.mxu0 %v11423
    %12091 = vmatpush1.bf16.msra.mxu0 %v11422
    %12092 = vmatprep.subr.bf16.mxu0 %v11430
    %12093 = vmatpush1.bf16.msra.mxu0 %v11429
    %12094 = vmatprep.subr.bf16.mxu0 %v11437
    %12095 = vmatpush1.bf16.msra.mxu0 %v11436
    %12096 = vmatprep.subr.bf16.mxu0 %v11444
    %12097 = vmatpush1.bf16.msra.mxu0 %v11443
    %12098 = vmatprep.subr.bf16.mxu0 %v11451
    %12099 = vmatpush1.bf16.msra.mxu0 %v11450
    %12100 = vmatprep.subr.bf16.mxu0 %v11458
    %12101 = vmatpush1.bf16.msra.mxu0 %v11457
    %12102 = vmatprep.subr.bf16.mxu0 %v11465
    %12103 = vmatpush1.bf16.msra.mxu0 %v11464
    %12104 = vmatprep.subr.bf16.mxu0 %v11472
    %12105 = vmatpush1.bf16.msra.mxu0 %v11471
    %12106 = vmatprep.subr.bf16.mxu0 %v11479
    %12107 = vmatpush1.bf16.msra.mxu0 %v11478
    %12108 = vmatprep.subr.bf16.mxu0 %v11486
    %12109 = vmatpush1.bf16.msra.mxu0 %v11485
    %12110 = vmatprep.subr.bf16.mxu0 %v11493
    %12111 = vmatpush1.bf16.msra.mxu0 %v11492
    %12112 = vmatprep.subr.bf16.mxu0 %v11500
    %12113 = vmatpush1.bf16.msra.mxu0 %v11499
    %12114 = vmatprep.subr.bf16.mxu0 %v11507
    %12115 = vmatpush1.bf16.msra.mxu0 %v11506
    %12116 = vmatprep.mubr.bf16.mxu0 %v9107
    %12117 = vmatmul.mubr.bf16.gmra.mrb[0].mxu0 %v9106
    %v12118 = vpop.f32.mrb[0].mxu0
    %v12119 = vadd.f32 %v12078, %v12118
    %v12120 = vpop.f32.mrb[0].mxu0
    %v12121 = vadd.f32 %v12080, %v12120
    %v12122 = vpop.f32.mrb[0].mxu0
    %v12123 = vpop.f32.mrb[0].mxu0
    %12124 = vdwg.mxu0
    %12125 = vmatprep.subr.bf16.mxu0 %v11068
    %12126 = vmatpush1.bf16.msra.mxu0 %v11067
    %12127 = vmatprep.subr.bf16.mxu0 %v11075
    %12128 = vmatpush1.bf16.msra.mxu0 %v11074
    %12129 = vmatprep.subr.bf16.mxu0 %v11082
    %12130 = vmatpush1.bf16.msra.mxu0 %v11081
    %12131 = vmatprep.subr.bf16.mxu0 %v11089
    %12132 = vmatpush1.bf16.msra.mxu0 %v11088
    %12133 = vmatprep.subr.bf16.mxu0 %v11096
    %12134 = vmatpush1.bf16.msra.mxu0 %v11095
    %12135 = vmatprep.subr.bf16.mxu0 %v11103
    %12136 = vmatpush1.bf16.msra.mxu0 %v11102
    %12137 = vmatprep.subr.bf16.mxu0 %v11110
    %12138 = vmatpush1.bf16.msra.mxu0 %v11109
    %12139 = vmatprep.subr.bf16.mxu0 %v11117
    %12140 = vmatpush1.bf16.msra.mxu0 %v11116
    %12141 = vmatprep.subr.bf16.mxu0 %v11124
    %12142 = vmatpush1.bf16.msra.mxu0 %v11123
    %12143 = vmatprep.subr.bf16.mxu0 %v11131
    %12144 = vmatpush1.bf16.msra.mxu0 %v11130
    %12145 = vmatprep.subr.bf16.mxu0 %v11138
    %12146 = vmatpush1.bf16.msra.mxu0 %v11137
    %12147 = vmatprep.subr.bf16.mxu0 %v11145
    %12148 = vmatpush1.bf16.msra.mxu0 %v11144
    %12149 = vmatprep.subr.bf16.mxu0 %v11152
    %12150 = vmatpush1.bf16.msra.mxu0 %v11151
    %12151 = vmatprep.subr.bf16.mxu0 %v11159
    %12152 = vmatpush1.bf16.msra.mxu0 %v11158
    %12153 = vmatprep.subr.bf16.mxu0 %v11166
    %12154 = vmatpush1.bf16.msra.mxu0 %v11165
    %12155 = vmatprep.subr.bf16.mxu0 %v11173
    %12156 = vmatpush1.bf16.msra.mxu0 %v11172
    %12157 = vmatprep.mubr.bf16.mxu0 %v9101
    %12158 = vmatmul.mubr.bf16.gmra.mrb[0].mxu0 %v9100
    %v12159 = vpop.f32.mrb[0].mxu0
    %v12160 = vadd.f32 %v9633, %v12159
    %v12161 = vpop.f32.mrb[0].mxu0
    %v12162 = vadd.f32 %v9637, %v12161
    %v12163 = vpop.f32.mrb[0].mxu0
    %v12164 = vpop.f32.mrb[0].mxu0
    %12165 = vdwg.mxu0
    %12166 = vmatprep.subr.bf16.mxu0 %v11180
    %12167 = vmatpush1.bf16.msra.mxu0 %v11179
    %12168 = vmatprep.subr.bf16.mxu0 %v11187
    %12169 = vmatpush1.bf16.msra.mxu0 %v11186
    %12170 = vmatprep.subr.bf16.mxu0 %v11194
    %12171 = vmatpush1.bf16.msra.mxu0 %v11193
    %12172 = vmatprep.subr.bf16.mxu0 %v11201
    %12173 = vmatpush1.bf16.msra.mxu0 %v11200
    %12174 = vmatprep.subr.bf16.mxu0 %v11208
    %12175 = vmatpush1.bf16.msra.mxu0 %v11207
    %12176 = vmatprep.subr.bf16.mxu0 %v11215
    %12177 = vmatpush1.bf16.msra.mxu0 %v11214
    %12178 = vmatprep.subr.bf16.mxu0 %v11222
    %12179 = vmatpush1.bf16.msra.mxu0 %v11221
    %12180 = vmatprep.subr.bf16.mxu0 %v11229
    %12181 = vmatpush1.bf16.msra.mxu0 %v11228
    %12182 = vmatprep.subr.bf16.mxu0 %v11236
    %12183 = vmatpush1.bf16.msra.mxu0 %v11235
    %12184 = vmatprep.subr.bf16.mxu0 %v11243
    %12185 = vmatpush1.bf16.msra.mxu0 %v11242
    %12186 = vmatprep.subr.bf16.mxu0 %v11250
    %12187 = vmatpush1.bf16.msra.mxu0 %v11249
    %12188 = vmatprep.subr.bf16.mxu0 %v11257
    %12189 = vmatpush1.bf16.msra.mxu0 %v11256
    %12190 = vmatprep.subr.bf16.mxu0 %v11264
    %12191 = vmatpush1.bf16.msra.mxu0 %v11263
    %12192 = vmatprep.subr.bf16.mxu0 %v11271
    %12193 = vmatpush1.bf16.msra.mxu0 %v11270
    %12194 = vmatprep.subr.bf16.mxu0 %v11278
    %12195 = vmatpush1.bf16.msra.mxu0 %v11277
    %12196 = vmatprep.subr.bf16.mxu0 %v11285
    %12197 = vmatpush1.bf16.msra.mxu0 %v11284
    %12198 = vmatprep.mubr.bf16.mxu0 %v9103
    %12199 = vmatmul.mubr.bf16.gmra.mrb[0].mxu0 %v9102
    %v12200 = vpop.f32.mrb[0].mxu0
    %v12201 = vadd.f32 %v12160, %v12200
    %v12202 = vpop.f32.mrb[0].mxu0
    %v12203 = vadd.f32 %v12162, %v12202
    %v12204 = vpop.f32.mrb[0].mxu0
    %v12205 = vpop.f32.mrb[0].mxu0
    %12206 = vdwg.mxu0
    %12207 = vmatprep.subr.bf16.mxu0 %v11292
    %12208 = vmatpush1.bf16.msra.mxu0 %v11291
    %12209 = vmatprep.subr.bf16.mxu0 %v11299
    %12210 = vmatpush1.bf16.msra.mxu0 %v11298
    %12211 = vmatprep.subr.bf16.mxu0 %v11306
    %12212 = vmatpush1.bf16.msra.mxu0 %v11305
    %12213 = vmatprep.subr.bf16.mxu0 %v11313
    %12214 = vmatpush1.bf16.msra.mxu0 %v11312
    %12215 = vmatprep.subr.bf16.mxu0 %v11320
    %12216 = vmatpush1.bf16.msra.mxu0 %v11319
    %12217 = vmatprep.subr.bf16.mxu0 %v11327
    %12218 = vmatpush1.bf16.msra.mxu0 %v11326
    %12219 = vmatprep.subr.bf16.mxu0 %v11334
    %12220 = vmatpush1.bf16.msra.mxu0 %v11333
    %12221 = vmatprep.subr.bf16.mxu0 %v11341
    %12222 = vmatpush1.bf16.msra.mxu0 %v11340
    %12223 = vmatprep.subr.bf16.mxu0 %v11348
    %12224 = vmatpush1.bf16.msra.mxu0 %v11347
    %12225 = vmatprep.subr.bf16.mxu0 %v11355
    %12226 = vmatpush1.bf16.msra.mxu0 %v11354
    %12227 = vmatprep.subr.bf16.mxu0 %v11362
    %12228 = vmatpush1.bf16.msra.mxu0 %v11361
    %12229 = vmatprep.subr.bf16.mxu0 %v11369
    %12230 = vmatpush1.bf16.msra.mxu0 %v11368
    %12231 = vmatprep.subr.bf16.mxu0 %v11376
    %12232 = vmatpush1.bf16.msra.mxu0 %v11375
    %12233 = vmatprep.subr.bf16.mxu0 %v11383
    %12234 = vmatpush1.bf16.msra.mxu0 %v11382
    %12235 = vmatprep.subr.bf16.mxu0 %v11390
    %12236 = vmatpush1.bf16.msra.mxu0 %v11389
    %12237 = vmatprep.subr.bf16.mxu0 %v11397
    %12238 = vmatpush1.bf16.msra.mxu0 %v11396
    %12239 = vmatprep.mubr.bf16.mxu0 %v9105
    %12240 = vmatmul.mubr.bf16.gmra.mrb[0].mxu0 %v9104
    %v12241 = vpop.f32.mrb[0].mxu0
    %v12242 = vadd.f32 %v12201, %v12241
    %v12243 = vpop.f32.mrb[0].mxu0
    %v12244 = vadd.f32 %v12203, %v12243
    %v12245 = vpop.f32.mrb[0].mxu0
    %v12246 = vpop.f32.mrb[0].mxu0
    %12247 = vdwg.mxu0
    %12248 = vmatprep.subr.bf16.mxu0 %v11404
    %12249 = vmatpush1.bf16.msra.mxu0 %v11403
    %12250 = vmatprep.subr.bf16.mxu0 %v11411
    %12251 = vmatpush1.bf16.msra.mxu0 %v11410
    %12252 = vmatprep.subr.bf16.mxu0 %v11418
    %12253 = vmatpush1.bf16.msra.mxu0 %v11417
    %12254 = vmatprep.subr.bf16.mxu0 %v11425
    %12255 = vmatpush1.bf16.msra.mxu0 %v11424
    %12256 = vmatprep.subr.bf16.mxu0 %v11432
    %12257 = vmatpush1.bf16.msra.mxu0 %v11431
    %12258 = vmatprep.subr.bf16.mxu0 %v11439
    %12259 = vmatpush1.bf16.msra.mxu0 %v11438
    %12260 = vmatprep.subr.bf16.mxu0 %v11446
    %12261 = vmatpush1.bf16.msra.mxu0 %v11445
    %12262 = vmatprep.subr.bf16.mxu0 %v11453
    %12263 = vmatpush1.bf16.msra.mxu0 %v11452
    %12264 = vmatprep.subr.bf16.mxu0 %v11460
    %12265 = vmatpush1.bf16.msra.mxu0 %v11459
    %12266 = vmatprep.subr.bf16.mxu0 %v11467
    %12267 = vmatpush1.bf16.msra.mxu0 %v11466
    %12268 = vmatprep.subr.bf16.mxu0 %v11474
    %12269 = vmatpush1.bf16.msra.mxu0 %v11473
    %12270 = vmatprep.subr.bf16.mxu0 %v11481
    %12271 = vmatpush1.bf16.msra.mxu0 %v11480
    %12272 = vmatprep.subr.bf16.mxu0 %v11488
    %12273 = vmatpush1.bf16.msra.mxu0 %v11487
    %12274 = vmatprep.subr.bf16.mxu0 %v11495
    %12275 = vmatpush1.bf16.msra.mxu0 %v11494
    %12276 = vmatprep.subr.bf16.mxu0 %v11502
    %12277 = vmatpush1.bf16.msra.mxu0 %v11501
    %12278 = vmatprep.subr.bf16.mxu0 %v11509
    %12279 = vmatpush1.bf16.msra.mxu0 %v11508
    %12280 = vmatprep.mubr.bf16.mxu0 %v9107
    %12281 = vmatmul.mubr.bf16.gmra.mrb[0].mxu0 %v9106
    %v12282 = vpop.f32.mrb[0].mxu0
    %v12283 = vadd.f32 %v12242, %v12282
    %v12284 = vpop.f32.mrb[0].mxu0
    %v12285 = vadd.f32 %v12244, %v12284
    %v12286 = vpop.f32.mrb[0].mxu0
    %v12287 = vpop.f32.mrb[0].mxu0
    %12288 = vdwg.mxu0
    %12289 = vmatprep.subr.bf16.mxu0 %v11070
    %12290 = vmatpush1.bf16.msra.mxu0 %v11069
    %12291 = vmatprep.subr.bf16.mxu0 %v11077
    %12292 = vmatpush1.bf16.msra.mxu0 %v11076
    %12293 = vmatprep.subr.bf16.mxu0 %v11084
    %12294 = vmatpush1.bf16.msra.mxu0 %v11083
    %12295 = vmatprep.subr.bf16.mxu0 %v11091
    %12296 = vmatpush1.bf16.msra.mxu0 %v11090
    %12297 = vmatprep.subr.bf16.mxu0 %v11098
    %12298 = vmatpush1.bf16.msra.mxu0 %v11097
    %12299 = vmatprep.subr.bf16.mxu0 %v11105
    %12300 = vmatpush1.bf16.msra.mxu0 %v11104
    %12301 = vmatprep.subr.bf16.mxu0 %v11112
    %12302 = vmatpush1.bf16.msra.mxu0 %v11111
    %12303 = vmatprep.subr.bf16.mxu0 %v11119
    %12304 = vmatpush1.bf16.msra.mxu0 %v11118
    %12305 = vmatprep.subr.bf16.mxu0 %v11126
    %12306 = vmatpush1.bf16.msra.mxu0 %v11125
    %12307 = vmatprep.subr.bf16.mxu0 %v11133
    %12308 = vmatpush1.bf16.msra.mxu0 %v11132
    %12309 = vmatprep.subr.bf16.mxu0 %v11140
    %12310 = vmatpush1.bf16.msra.mxu0 %v11139
    %12311 = vmatprep.subr.bf16.mxu0 %v11147
    %12312 = vmatpush1.bf16.msra.mxu0 %v11146
    %12313 = vmatprep.subr.bf16.mxu0 %v11154
    %12314 = vmatpush1.bf16.msra.mxu0 %v11153
    %12315 = vmatprep.subr.bf16.mxu0 %v11161
    %12316 = vmatpush1.bf16.msra.mxu0 %v11160
    %12317 = vmatprep.subr.bf16.mxu0 %v11168
    %12318 = vmatpush1.bf16.msra.mxu0 %v11167
    %12319 = vmatprep.subr.bf16.mxu0 %v11175
    %12320 = vmatpush1.bf16.msra.mxu0 %v11174
    %12321 = vmatprep.mubr.bf16.mxu0 %v9101
    %12322 = vmatmul.mubr.bf16.gmra.mrb[0].mxu0 %v9100
    %v12323 = vpop.f32.mrb[0].mxu0
    %v12324 = vadd.f32 %v9641, %v12323
    %v12325 = vpop.f32.mrb[0].mxu0
    %v12326 = vadd.f32 %v9645, %v12325
    %v12327 = vpop.f32.mrb[0].mxu0
    %v12328 = vpop.f32.mrb[0].mxu0
    %12329 = vdwg.mxu0
    %12330 = vmatprep.subr.bf16.mxu0 %v11182
    %12331 = vmatpush1.bf16.msra.mxu0 %v11181
    %12332 = vmatprep.subr.bf16.mxu0 %v11189
    %12333 = vmatpush1.bf16.msra.mxu0 %v11188
    %12334 = vmatprep.subr.bf16.mxu0 %v11196
    %12335 = vmatpush1.bf16.msra.mxu0 %v11195
    %12336 = vmatprep.subr.bf16.mxu0 %v11203
    %12337 = vmatpush1.bf16.msra.mxu0 %v11202
    %12338 = vmatprep.subr.bf16.mxu0 %v11210
    %12339 = vmatpush1.bf16.msra.mxu0 %v11209
    %12340 = vmatprep.subr.bf16.mxu0 %v11217
    %12341 = vmatpush1.bf16.msra.mxu0 %v11216
    %12342 = vmatprep.subr.bf16.mxu0 %v11224
    %12343 = vmatpush1.bf16.msra.mxu0 %v11223
    %12344 = vmatprep.subr.bf16.mxu0 %v11231
    %12345 = vmatpush1.bf16.msra.mxu0 %v11230
    %12346 = vmatprep.subr.bf16.mxu0 %v11238
    %12347 = vmatpush1.bf16.msra.mxu0 %v11237
    %12348 = vmatprep.subr.bf16.mxu0 %v11245
    %12349 = vmatpush1.bf16.msra.mxu0 %v11244
    %12350 = vmatprep.subr.bf16.mxu0 %v11252
    %12351 = vmatpush1.bf16.msra.mxu0 %v11251
    %12352 = vmatprep.subr.bf16.mxu0 %v11259
    %12353 = vmatpush1.bf16.msra.mxu0 %v11258
    %12354 = vmatprep.subr.bf16.mxu0 %v11266
    %12355 = vmatpush1.bf16.msra.mxu0 %v11265
    %12356 = vmatprep.subr.bf16.mxu0 %v11273
    %12357 = vmatpush1.bf16.msra.mxu0 %v11272
    %12358 = vmatprep.subr.bf16.mxu0 %v11280
    %12359 = vmatpush1.bf16.msra.mxu0 %v11279
    %12360 = vmatprep.subr.bf16.mxu0 %v11287
    %12361 = vmatpush1.bf16.msra.mxu0 %v11286
    %12362 = vmatprep.mubr.bf16.mxu0 %v9103
    %12363 = vmatmul.mubr.bf16.gmra.mrb[0].mxu0 %v9102
    %v12364 = vpop.f32.mrb[0].mxu0
    %v12365 = vadd.f32 %v12324, %v12364
    %v12366 = vpop.f32.mrb[0].mxu0
    %v12367 = vadd.f32 %v12326, %v12366
    %v12368 = vpop.f32.mrb[0].mxu0
    %v12369 = vpop.f32.mrb[0].mxu0
    %12370 = vdwg.mxu0
    %12371 = vmatprep.subr.bf16.mxu0 %v11294
    %12372 = vmatpush1.bf16.msra.mxu0 %v11293
    %12373 = vmatprep.subr.bf16.mxu0 %v11301
    %12374 = vmatpush1.bf16.msra.mxu0 %v11300
    %12375 = vmatprep.subr.bf16.mxu0 %v11308
    %12376 = vmatpush1.bf16.msra.mxu0 %v11307
    %12377 = vmatprep.subr.bf16.mxu0 %v11315
    %12378 = vmatpush1.bf16.msra.mxu0 %v11314
    %12379 = vmatprep.subr.bf16.mxu0 %v11322
    %12380 = vmatpush1.bf16.msra.mxu0 %v11321
    %12381 = vmatprep.subr.bf16.mxu0 %v11329
    %12382 = vmatpush1.bf16.msra.mxu0 %v11328
    %12383 = vmatprep.subr.bf16.mxu0 %v11336
    %12384 = vmatpush1.bf16.msra.mxu0 %v11335
    %12385 = vmatprep.subr.bf16.mxu0 %v11343
    %12386 = vmatpush1.bf16.msra.mxu0 %v11342
    %12387 = vmatprep.subr.bf16.mxu0 %v11350
    %12388 = vmatpush1.bf16.msra.mxu0 %v11349
    %12389 = vmatprep.subr.bf16.mxu0 %v11357
    %12390 = vmatpush1.bf16.msra.mxu0 %v11356
    %12391 = vmatprep.subr.bf16.mxu0 %v11364
    %12392 = vmatpush1.bf16.msra.mxu0 %v11363
    %12393 = vmatprep.subr.bf16.mxu0 %v11371
    %12394 = vmatpush1.bf16.msra.mxu0 %v11370
    %12395 = vmatprep.subr.bf16.mxu0 %v11378
    %12396 = vmatpush1.bf16.msra.mxu0 %v11377
    %12397 = vmatprep.subr.bf16.mxu0 %v11385
    %12398 = vmatpush1.bf16.msra.mxu0 %v11384
    %12399 = vmatprep.subr.bf16.mxu0 %v11392
    %12400 = vmatpush1.bf16.msra.mxu0 %v11391
    %12401 = vmatprep.subr.bf16.mxu0 %v11399
    %12402 = vmatpush1.bf16.msra.mxu0 %v11398
    %12403 = vmatprep.mubr.bf16.mxu0 %v9105
    %12404 = vmatmul.mubr.bf16.gmra.mrb[0].mxu0 %v9104
    %v12405 = vpop.f32.mrb[0].mxu0
    %v12406 = vadd.f32 %v12365, %v12405
    %v12407 = vpop.f32.mrb[0].mxu0
    %v12408 = vadd.f32 %v12367, %v12407
    %v12409 = vpop.f32.mrb[0].mxu0
    %v12410 = vpop.f32.mrb[0].mxu0
    %12411 = vdwg.mxu0
    %12412 = vmatprep.subr.bf16.mxu0 %v11406
    %12413 = vmatpush1.bf16.msra.mxu0 %v11405
    %12414 = vmatprep.subr.bf16.mxu0 %v11413
    %12415 = vmatpush1.bf16.msra.mxu0 %v11412
    %12416 = vmatprep.subr.bf16.mxu0 %v11420
    %12417 = vmatpush1.bf16.msra.mxu0 %v11419
    %12418 = vmatprep.subr.bf16.mxu0 %v11427
    %12419 = vmatpush1.bf16.msra.mxu0 %v11426
    %12420 = vmatprep.subr.bf16.mxu0 %v11434
    %12421 = vmatpush1.bf16.msra.mxu0 %v11433
    %12422 = vmatprep.subr.bf16.mxu0 %v11441
    %12423 = vmatpush1.bf16.msra.mxu0 %v11440
    %12424 = vmatprep.subr.bf16.mxu0 %v11448
    %12425 = vmatpush1.bf16.msra.mxu0 %v11447
    %12426 = vmatprep.subr.bf16.mxu0 %v11455
    %12427 = vmatpush1.bf16.msra.mxu0 %v11454
    %12428 = vmatprep.subr.bf16.mxu0 %v11462
    %12429 = vmatpush1.bf16.msra.mxu0 %v11461
    %12430 = vmatprep.subr.bf16.mxu0 %v11469
    %12431 = vmatpush1.bf16.msra.mxu0 %v11468
    %12432 = vmatprep.subr.bf16.mxu0 %v11476
    %12433 = vmatpush1.bf16.msra.mxu0 %v11475
    %12434 = vmatprep.subr.bf16.mxu0 %v11483
    %12435 = vmatpush1.bf16.msra.mxu0 %v11482
    %12436 = vmatprep.subr.bf16.mxu0 %v11490
    %12437 = vmatpush1.bf16.msra.mxu0 %v11489
    %12438 = vmatprep.subr.bf16.mxu0 %v11497
    %12439 = vmatpush1.bf16.msra.mxu0 %v11496
    %12440 = vmatprep.subr.bf16.mxu0 %v11504
    %12441 = vmatpush1.bf16.msra.mxu0 %v11503
    %12442 = vmatprep.subr.bf16.mxu0 %v11511
    %12443 = vmatpush1.bf16.msra.mxu0 %v11510
    %12444 = vmatprep.mubr.bf16.mxu0 %v9107
    %12445 = vmatmul.mubr.bf16.gmra.mrb[0].mxu0 %v9106
    %v12446 = vpop.f32.mrb[0].mxu0
    %v12447 = vadd.f32 %v12406, %v12446
    %v12448 = vpop.f32.mrb[0].mxu0
    %v12449 = vadd.f32 %v12408, %v12448
    %v12450 = vpop.f32.mrb[0].mxu0
    %v12451 = vpop.f32.mrb[0].mxu0
    %12452 = vdwg.mxu0
    %12453 = vmatprep.subr.bf16.mxu0 0
    %12454 = vmatpush1.bf16.msra.mxu0 %v11071
    %12455 = vmatprep.subr.bf16.mxu0 0
    %12456 = vmatpush1.bf16.msra.mxu0 %v11078
    %12457 = vmatprep.subr.bf16.mxu0 0
    %12458 = vmatpush1.bf16.msra.mxu0 %v11085
    %12459 = vmatprep.subr.bf16.mxu0 0
    %12460 = vmatpush1.bf16.msra.mxu0 %v11092
    %12461 = vmatprep.subr.bf16.mxu0 0
    %12462 = vmatpush1.bf16.msra.mxu0 %v11099
    %12463 = vmatprep.subr.bf16.mxu0 0
    %12464 = vmatpush1.bf16.msra.mxu0 %v11106
    %12465 = vmatprep.subr.bf16.mxu0 0
    %12466 = vmatpush1.bf16.msra.mxu0 %v11113
    %12467 = vmatprep.subr.bf16.mxu0 0
    %12468 = vmatpush1.bf16.msra.mxu0 %v11120
    %12469 = vmatprep.subr.bf16.mxu0 0
    %12470 = vmatpush1.bf16.msra.mxu0 %v11127
    %12471 = vmatprep.subr.bf16.mxu0 0
    %12472 = vmatpush1.bf16.msra.mxu0 %v11134
    %12473 = vmatprep.subr.bf16.mxu0 0
    %12474 = vmatpush1.bf16.msra.mxu0 %v11141
    %12475 = vmatprep.subr.bf16.mxu0 0
    %12476 = vmatpush1.bf16.msra.mxu0 %v11148
    %12477 = vmatprep.subr.bf16.mxu0 0
    %12478 = vmatpush1.bf16.msra.mxu0 %v11155
    %12479 = vmatprep.subr.bf16.mxu0 0
    %12480 = vmatpush1.bf16.msra.mxu0 %v11162
    %12481 = vmatprep.subr.bf16.mxu0 0
    %12482 = vmatpush1.bf16.msra.mxu0 %v11169
    %12483 = vmatprep.subr.bf16.mxu0 0
    %12484 = vmatpush1.bf16.msra.mxu0 %v11176
    %12485 = vmatprep.mubr.bf16.mxu0 %v9101
    %12486 = vmatmul.mubr.bf16.gmra.mrb[0].mxu0 %v9100
    %v12487 = vpop.f32.mrb[0].mxu0
    %v12488 = vadd.f32 %v9649, %v12487
    %v12489 = vpop.f32.mrb[0].mxu0
    %v12490 = vpop.f32.mrb[0].mxu0
    %v12491 = vpop.f32.mrb[0].mxu0
    %12492 = vdwg.mxu0
    %12493 = vmatprep.subr.bf16.mxu0 0
    %12494 = vmatpush1.bf16.msra.mxu0 %v11183
    %12495 = vmatprep.subr.bf16.mxu0 0
    %12496 = vmatpush1.bf16.msra.mxu0 %v11190
    %12497 = vmatprep.subr.bf16.mxu0 0
    %12498 = vmatpush1.bf16.msra.mxu0 %v11197
    %12499 = vmatprep.subr.bf16.mxu0 0
    %12500 = vmatpush1.bf16.msra.mxu0 %v11204
    %12501 = vmatprep.subr.bf16.mxu0 0
    %12502 = vmatpush1.bf16.msra.mxu0 %v11211
    %12503 = vmatprep.subr.bf16.mxu0 0
    %12504 = vmatpush1.bf16.msra.mxu0 %v11218
    %12505 = vmatprep.subr.bf16.mxu0 0
    %12506 = vmatpush1.bf16.msra.mxu0 %v11225
    %12507 = vmatprep.subr.bf16.mxu0 0
    %12508 = vmatpush1.bf16.msra.mxu0 %v11232
    %12509 = vmatprep.subr.bf16.mxu0 0
    %12510 = vmatpush1.bf16.msra.mxu0 %v11239
    %12511 = vmatprep.subr.bf16.mxu0 0
    %12512 = vmatpush1.bf16.msra.mxu0 %v11246
    %12513 = vmatprep.subr.bf16.mxu0 0
    %12514 = vmatpush1.bf16.msra.mxu0 %v11253
    %12515 = vmatprep.subr.bf16.mxu0 0
    %12516 = vmatpush1.bf16.msra.mxu0 %v11260
    %12517 = vmatprep.subr.bf16.mxu0 0
    %12518 = vmatpush1.bf16.msra.mxu0 %v11267
    %12519 = vmatprep.subr.bf16.mxu0 0
    %12520 = vmatpush1.bf16.msra.mxu0 %v11274
    %12521 = vmatprep.subr.bf16.mxu0 0
    %12522 = vmatpush1.bf16.msra.mxu0 %v11281
    %12523 = vmatprep.subr.bf16.mxu0 0
    %12524 = vmatpush1.bf16.msra.mxu0 %v11288
    %12525 = vmatprep.mubr.bf16.mxu0 %v9103
    %12526 = vmatmul.mubr.bf16.gmra.mrb[0].mxu0 %v9102
    %v12527 = vpop.f32.mrb[0].mxu0
    %v12528 = vadd.f32 %v12488, %v12527
    %v12529 = vpop.f32.mrb[0].mxu0
    %v12530 = vpop.f32.mrb[0].mxu0
    %v12531 = vpop.f32.mrb[0].mxu0
    %12532 = vdwg.mxu0
    %12533 = vmatprep.subr.bf16.mxu0 0
    %12534 = vmatpush1.bf16.msra.mxu0 %v11295
    %12535 = vmatprep.subr.bf16.mxu0 0
    %12536 = vmatpush1.bf16.msra.mxu0 %v11302
    %12537 = vmatprep.subr.bf16.mxu0 0
    %12538 = vmatpush1.bf16.msra.mxu0 %v11309
    %12539 = vmatprep.subr.bf16.mxu0 0
    %12540 = vmatpush1.bf16.msra.mxu0 %v11316
    %12541 = vmatprep.subr.bf16.mxu0 0
    %12542 = vmatpush1.bf16.msra.mxu0 %v11323
    %12543 = vmatprep.subr.bf16.mxu0 0
    %12544 = vmatpush1.bf16.msra.mxu0 %v11330
    %12545 = vmatprep.subr.bf16.mxu0 0
    %12546 = vmatpush1.bf16.msra.mxu0 %v11337
    %12547 = vmatprep.subr.bf16.mxu0 0
    %12548 = vmatpush1.bf16.msra.mxu0 %v11344
    %12549 = vmatprep.subr.bf16.mxu0 0
    %12550 = vmatpush1.bf16.msra.mxu0 %v11351
    %12551 = vmatprep.subr.bf16.mxu0 0
    %12552 = vmatpush1.bf16.msra.mxu0 %v11358
    %12553 = vmatprep.subr.bf16.mxu0 0
    %12554 = vmatpush1.bf16.msra.mxu0 %v11365
    %12555 = vmatprep.subr.bf16.mxu0 0
    %12556 = vmatpush1.bf16.msra.mxu0 %v11372
    %12557 = vmatprep.subr.bf16.mxu0 0
    %12558 = vmatpush1.bf16.msra.mxu0 %v11379
    %12559 = vmatprep.subr.bf16.mxu0 0
    %12560 = vmatpush1.bf16.msra.mxu0 %v11386
    %12561 = vmatprep.subr.bf16.mxu0 0
    %12562 = vmatpush1.bf16.msra.mxu0 %v11393
    %12563 = vmatprep.subr.bf16.mxu0 0
    %12564 = vmatpush1.bf16.msra.mxu0 %v11400
    %12565 = vmatprep.mubr.bf16.mxu0 %v9105
    %12566 = vmatmul.mubr.bf16.gmra.mrb[0].mxu0 %v9104
    %v12567 = vpop.f32.mrb[0].mxu0
    %v12568 = vadd.f32 %v12528, %v12567
    %v12569 = vpop.f32.mrb[0].mxu0
    %v12570 = vpop.f32.mrb[0].mxu0
    %v12571 = vpop.f32.mrb[0].mxu0
    %12572 = vdwg.mxu0
    %12573 = vmatprep.subr.bf16.mxu0 0
    %12574 = vmatpush1.bf16.msra.mxu0 %v11407
    %12575 = vmatprep.subr.bf16.mxu0 0
    %12576 = vmatpush1.bf16.msra.mxu0 %v11414
    %12577 = vmatprep.subr.bf16.mxu0 0
    %12578 = vmatpush1.bf16.msra.mxu0 %v11421
    %12579 = vmatprep.subr.bf16.mxu0 0
    %12580 = vmatpush1.bf16.msra.mxu0 %v11428
    %12581 = vmatprep.subr.bf16.mxu0 0
    %12582 = vmatpush1.bf16.msra.mxu0 %v11435
    %12583 = vmatprep.subr.bf16.mxu0 0
    %12584 = vmatpush1.bf16.msra.mxu0 %v11442
    %12585 = vmatprep.subr.bf16.mxu0 0
    %12586 = vmatpush1.bf16.msra.mxu0 %v11449
    %12587 = vmatprep.subr.bf16.mxu0 0
    %12588 = vmatpush1.bf16.msra.mxu0 %v11456
    %12589 = vmatprep.subr.bf16.mxu0 0
    %12590 = vmatpush1.bf16.msra.mxu0 %v11463
    %12591 = vmatprep.subr.bf16.mxu0 0
    %12592 = vmatpush1.bf16.msra.mxu0 %v11470
    %12593 = vmatprep.subr.bf16.mxu0 0
    %12594 = vmatpush1.bf16.msra.mxu0 %v11477
    %12595 = vmatprep.subr.bf16.mxu0 0
    %12596 = vmatpush1.bf16.msra.mxu0 %v11484
    %12597 = vmatprep.subr.bf16.mxu0 0
    %12598 = vmatpush1.bf16.msra.mxu0 %v11491
    %12599 = vmatprep.subr.bf16.mxu0 0
    %12600 = vmatpush1.bf16.msra.mxu0 %v11498
    %12601 = vmatprep.subr.bf16.mxu0 0
    %12602 = vmatpush1.bf16.msra.mxu0 %v11505
    %12603 = vmatprep.subr.bf16.mxu0 0
    %12604 = vmatpush1.bf16.msra.mxu0 %v11512
    %12605 = vmatprep.mubr.bf16.mxu0 %v9107
    %12606 = vmatmul.mubr.bf16.gmra.mrb[0].mxu0 %v9106
    %v12607 = vpop.f32.mrb[0].mxu0
    %v12608 = vadd.f32 %v12568, %v12607
    %v12609 = vpop.f32.mrb[0].mxu0
    %v12610 = vpop.f32.mrb[0].mxu0
    %v12611 = vpop.f32.mrb[0].mxu0
    %12612 = vdwg.mxu0
    %v12613 = vxor.u32 %v12119, 2147483648
    %v12614 = vxor.u32 %v12121, 2147483648
    %v12615 = vxor.u32 %v12283, 2147483648
    %v12616 = vxor.u32 %v12285, 2147483648
    %v12617 = vxor.u32 %v12447, 2147483648
    %v12618 = vxor.u32 %v12449, 2147483648
    %v12619 = vxor.u32 %v12608, 2147483648
    %v12620 = vmul.f32 %v12613, 1.442695
    %v12621 = vpow.pop %v12620
    %v12622 = vmul.f32 %v12614, 1.442695
    %v12623 = vpow.pop %v12622
    %v12624 = vmul.f32 %v12615, 1.442695
    %v12625 = vpow.pop %v12624
    %v12626 = vmul.f32 %v12616, 1.442695
    %v12627 = vpow.pop %v12626
    %v12628 = vmul.f32 %v12617, 1.442695
    %v12629 = vpow.pop %v12628
    %v12630 = vmul.f32 %v12618, 1.442695
    %v12631 = vpow.pop %v12630
    %v12632 = vmul.f32 %v12619, 1.442695
    %v12633 = vpow.pop %v12632
    %v12634 = vadd.f32 %v12621, 1.0
    %v12635 = vadd.f32 %v12623, 1.0
    %v12636 = vadd.f32 %v12625, 1.0
    %v12637 = vadd.f32 %v12627, 1.0
    %v12638 = vadd.f32 %v12629, 1.0
    %v12639 = vadd.f32 %v12631, 1.0
    %v12640 = vadd.f32 %v12633, 1.0
    %v12641 = vrcp.pop %v12634
    %v12642 = vmul.f32 1.0, %v12641
    %v12643 = vrcp.pop %v12635
    %v12644 = vmul.f32 1.0, %v12643
    %v12645 = vrcp.pop %v12636
    %v12646 = vmul.f32 1.0, %v12645
    %v12647 = vrcp.pop %v12637
    %v12648 = vmul.f32 1.0, %v12647
    %v12649 = vrcp.pop %v12638
    %v12650 = vmul.f32 1.0, %v12649
    %v12651 = vrcp.pop %v12639
    %v12652 = vmul.f32 1.0, %v12651
    %v12653 = vrcp.pop %v12640
    %v12654 = vmul.f32 1.0, %v12653
    %12655 = vst [vmem:[#allocation29] sm:$0xff] %v12642
    %12656 = vst [vmem:[#allocation29 + $0x8] sm:$0xff] %v12644
    %12657 = vst [vmem:[#allocation29 + $0x10] sm:$0xff] %v12646
    %12658 = vst [vmem:[#allocation29 + $0x18] sm:$0xff] %v12648
    %12659 = vst [vmem:[#allocation29 + $0x20] sm:$0xff] %v12650
    %12660 = vst [vmem:[#allocation29 + $0x28] sm:$0xff] %v12652
    %12661 = vst [vmem:[#allocation29 + $0x30] sm:$0xff] %v12654
    // Predicated region
    $region138: #{tpu_custom_call.1} parent=1 // pred_check
      _
    $region139: #{tpu_custom_call.1} parent=1 // pred_check_branch
      %12663 = sbr.rel (0) target = $region141
    $region140: #{tpu_custom_call.1} parent=1 // pred_region
      %s12665 = ssub.s32 896, 896
      %12666 = vsyncadd [#allocation4], %s12665
      %s12668 = sshll.u32 [#allocation29], 4
      %s12669 = int_to_ptr.vmem [resolvable:$true] %s12668
      %12671 = dma.vmem_to_hbm [thread:$0]  %s12669, 896, %s17, [#allocation4]
    $region141: #{tpu_custom_call.1} parent=1 // pred_fallthru
      _
    // Predicated region
    $region142: #{tpu_custom_call.1} parent=1 // pred_check
      _
    $region143: #{tpu_custom_call.1} parent=1 // pred_check_branch
      %12673 = sbr.rel (0) target = $region145
    $region144: #{tpu_custom_call.1} parent=1 // pred_region
      %12674 = dma.done [#allocation4], 896
    $region145: #{tpu_custom_call.1} parent=1 // pred_fallthru
      _
    %12675 = vsyncpa [#allocation3], 1
    %12676 = vsyncpa [#allocation6], 1
    %12677 = vsyncpa [#allocation9], 1
    %12678 = vsyncpa [#allocation12], 1
    %12679 = vsyncpa [#allocation15], 1
    %12680 = vsyncpa [#allocation18], 1
    %12681 = vsyncpa [#allocation21], 1
    %12682 = vsyncpa [#allocation24], 1
    %12683 = vsyncpa [#allocation27], 1
    %12684 = vsyncpa [#allocation4], 1

</llo_original>
